<compile_context>
chip_gen: v7x
topology: tpu7x:2x2x1
jax: 0.10.0
libtpu: 0.0.40
codegen_flags: <defaults>
</compile_context>

<pallas_src>
import numpy as np
import jax
import jax.numpy as jnp
from jax.experimental import pallas as pl
from jax.experimental.pallas import tpu as pltpu

C = 1792              # EfficientNet-B4 feature channels (in_features of classifier[1])
RATIO = 16
CR = C // RATIO       # 112
CRP = 128             # CR padded to a full lane tile
NUM_CLASSES = 5
OUT_PAD = 128         # merged cls(5)+reg(1) head, padded to one lane tile
HID1 = 1024
HID2 = 512
BN_EPS = 1e-5


# ----------------------------------------------------------------------------------
# Fused kernel: CBAM (channel + spatial attention) -> global avg pool ->
#               feature_extractor (Linear+BN-folded+ReLU x2) -> merged cls/reg head.
# One grid step processes a whole batch tile (Bt, HW, C).
# ----------------------------------------------------------------------------------
def fused_cbam_head_kernel(x_ref, caw1_ref, caw2_ref, wsa_ref, wsm_ref,
                           w1_ref, b1_ref, w2_ref, b2_ref,
                           whd_ref, bhd_ref, out_ref):
    Bt, HW, _ = x_ref.shape
    x = x_ref[...]                                              # (Bt, HW, C) bf16, stays bf16

    # ---- Channel attention: sigmoid(fc(avgpool) + fc(maxpool)); fc run once on stacked rows ----
    avg_c = jnp.mean(x, axis=1, dtype=jnp.float32)              # (Bt, C), f32 accumulation
    max_c = jnp.max(x, axis=1).astype(jnp.float32)              # (Bt, C)
    pooled2 = jnp.concatenate([avg_c, max_c], axis=0)           # (2*Bt, C) -> single MXU pass
    h = jnp.dot(pooled2.astype(jnp.bfloat16), caw1_ref[...],
                preferred_element_type=jnp.float32)             # (2*Bt, CRP)
    h = jnp.maximum(h, 0.0)
    att2 = jnp.dot(h.astype(jnp.bfloat16), caw2_ref[...],
                   preferred_element_type=jnp.float32)          # (2*Bt, C)
    chan_att = jax.nn.sigmoid(att2[:Bt] + att2[Bt:]).astype(jnp.bfloat16)   # (Bt, C)
    y = x * chan_att[:, None, :]                                # (Bt, HW, C) bf16 (one VPU pass)

    # ---- Spatial attention: 7x7 conv as two dense (HW,HW) matmuls, batched over Bt ----
    avg_s = jnp.mean(y, axis=2, dtype=jnp.float32)              # (Bt, HW)  lane-dense stats
    max_s = jnp.max(y, axis=2).astype(jnp.float32)              # (Bt, HW)
    spat = (jnp.dot(avg_s.astype(jnp.bfloat16), wsa_ref[...],
                    preferred_element_type=jnp.float32) +
            jnp.dot(max_s.astype(jnp.bfloat16), wsm_ref[...],
                    preferred_element_type=jnp.float32))        # (Bt, HW)
    sig = jax.nn.sigmoid(spat).astype(jnp.bfloat16)             # (Bt, HW)

    # ---- spatial-attn multiply fused with backbone.avgpool: z is never materialized ----
    pooled = jnp.einsum('bqh,bhc->bqc', sig[:, None, :], y,
                        preferred_element_type=jnp.float32)[:, 0, :] * (1.0 / HW)   # (Bt, C)

    # ---- feature_extractor (BN folded into the Linears, eval mode) + merged heads ----
    h1 = jnp.maximum(jnp.dot(pooled.astype(jnp.bfloat16), w1_ref[...],
                             preferred_element_type=jnp.float32) + b1_ref[...], 0.0)  # (Bt,1024)
    h2 = jnp.maximum(jnp.dot(h1.astype(jnp.bfloat16), w2_ref[...],
                             preferred_element_type=jnp.float32) + b2_ref[...], 0.0)  # (Bt,512)
    out = jnp.dot(h2.astype(jnp.bfloat16), whd_ref[...],
                  preferred_element_type=jnp.float32) + bhd_ref[...]                  # (Bt,128)
    out_ref[...] = out[None, :, :]


def _pick_batch_tile(B):
    """Largest batch-tile <= 8 that divides B, preferring grid >= 2 (v7x has 2 TensorCores)."""
    divisors = [d for d in range(1, min(B, 8) + 1) if B % d == 0]
    two_step = [d for d in divisors if B // d >= 2]
    return max(two_step) if two_step else max(divisors)


def features_nchw_to_kernel_layout(x_nchw):
    """One-off converter from a PyTorch-style NCHW f32 feature map.
    # TODO(synk): prefer emitting the backbone output channels-last/bf16 upstream so this extra
    #             full-feature-map HBM round-trip never exists in the real pipeline."""
    return jnp.transpose(x_nchw, (0, 2, 3, 1)).astype(jnp.bfloat16)


def improved_dr_model_forward(x_features_bhwc, params, *, vmem_limit_bytes=32 << 20):
    """x_features_bhwc: backbone feature map, channels-last (B, Hf, Wf, C), bf16 preferred.
    vmem_limit_bytes: 32 MiB is safe on v7x (64 MiB physical VMEM); raise to 64-96 MiB on
    v5e/v6e (128 MiB physical) for large feature maps / bigger batch tiles."""
    B, H, W, Cc = x_features_bhwc.shape
    assert Cc == C
    HW = H * W
    # reshape only (no transpose, no dtype round-trip when the input is already bf16)
    x = x_features_bhwc.reshape(B, HW, Cc).astype(jnp.bfloat16)

    Bt = _pick_batch_tile(B)
    nb = B // Bt

    out = pl.pallas_call(
        fused_cbam_head_kernel,
        out_shape=jax.ShapeDtypeStruct((nb, Bt, OUT_PAD), jnp.float32),
        grid_spec=pltpu.PrefetchScalarGridSpec(
            num_scalar_prefetch=0,
            grid=(nb,),
            in_specs=[
                pl.BlockSpec((Bt, HW, Cc), lambda i: (i, 0, 0)),     # feature map tile (bf16)
                pl.BlockSpec((Cc, CRP), lambda i: (0, 0)),           # channel-attn fc1 (T, padded)
                pl.BlockSpec((CRP, Cc), lambda i: (0, 0)),           # channel-attn fc2 (T, padded)
                pl.BlockSpec((HW, HW), lambda i: (0, 0)),            # spatial conv (avg path)^T
                pl.BlockSpec((HW, HW), lambda i: (0, 0)),            # spatial conv (max path)^T
                pl.BlockSpec((Cc, HID1), lambda i: (0, 0)),          # fc1 weight (BN folded), bf16
                pl.BlockSpec((1, HID1), lambda i: (0, 0)),           # fc1 bias (BN folded)
                pl.BlockSpec((HID1, HID2), lambda i: (0, 0)),        # fc2 weight (BN folded), bf16
                pl.BlockSpec((1, HID2), lambda i: (0, 0)),           # fc2 bias (BN folded)
                pl.BlockSpec((HID2, OUT_PAD), lambda i: (0, 0)),     # merged cls|reg head weight
                pl.BlockSpec((1, OUT_PAD), lambda i: (0, 0)),        # merged head bias
            ],
            out_specs=pl.BlockSpec((1, Bt, OUT_PAD), lambda i: (i, 0, 0)),
        ),
        compiler_params=pltpu.CompilerParams(
            dimension_semantics=("parallel",),   # batch tiles independent -> 2-TC sharding (v7x)
            vmem_limit_bytes=vmem_limit_bytes,
        ),
    )(x, params["ca_w1t"], params["ca_w2t"], params["w_sp_avg_t"], params["w_sp_max_t"],
      params["fc1_wt"], params["fc1_b"], params["fc2_wt"], params["fc2_b"],
      params["head_wt"], params["head_b"])

    out = out.reshape(B, OUT_PAD)
    cls_out = out[:, :NUM_CLASSES]
    reg_out = out[:, NUM_CLASSES:NUM_CLASSES + 1]
    return cls_out, reg_out


# ----------------------------------------------------------------------------------
# Deterministic parameter construction (shapes from the module's __init__).
# ----------------------------------------------------------------------------------
def _conv7x7_as_matrix(w_kk, H, W, pad=3):
    """Dense (HW, HW) matrix for a single-channel 7x7 'same' cross-correlation.
    NOTE: O((H*W)^2); fine for EfficientNet-B4 feature maps (HW is small)."""
    K = w_kk.shape[0]
    M = np.zeros((H * W, H * W), dtype=np.float32)
    for i in range(H):
        for j in range(W):
            for ki in range(K):
                for kj in range(K):
                    ii, jj = i + ki - pad, j + kj - pad
                    if 0 <= ii < H and 0 <= jj < W:
                        M[i * W + j, ii * W + jj] += float(w_kk[ki, kj])
    return M


def _fold_bn_into_linear(w, b, gamma, beta, mean, var, eps=BN_EPS):
    """Eval-mode BatchNorm1d folded into the preceding Linear (works with trained stats too)."""
    scale = gamma / np.sqrt(var + eps)
    w_f = w * scale[:, None]
    b_f = b * scale + (beta - mean * scale)
    return w_f, b_f


def init_params(key, H, W):
    ks = jax.random.split(key, 7)
    f32, bf16 = jnp.float32, jnp.bfloat16

    # CBAM channel attention fc: Conv2d(C, C//16, 1, bias=False) / Conv2d(C//16, C, 1, bias=False)
    ca_w1 = np.asarray(jax.random.normal(ks[0], (CR, C), f32)) * np.sqrt(2.0 / C)
    ca_w2 = np.asarray(jax.random.normal(ks[1], (C, CR), f32)) * np.sqrt(2.0 / CR)
    # pad CR=112 -> 128 so the intermediate activation is lane-aligned (zero padding is exact)
    ca_w1t = np.zeros((C, CRP), np.float32); ca_w1t[:, :CR] = ca_w1.T
    ca_w2t = np.zeros((CRP, C), np.float32); ca_w2t[:CR, :] = ca_w2.T

    # CBAM spatial attention: Conv2d(2, 1, 7, padding=3, bias=False)  (bias=False per the module)
    # Stored PRE-TRANSPOSED so the kernel does spat = avg_s @ M_avg^T + max_s @ M_max^T as two
    # batched lane-dense bf16 matmuls (no per-sample 1-column matmuls, no jnp.stack).
    sa_w = np.asarray(jax.random.normal(ks[2], (1, 2, 7, 7), f32)) * np.sqrt(2.0 / (2 * 49))
    w_sp_avg_t = _conv7x7_as_matrix(sa_w[0, 0], H, W).T          # (HW, HW)
    w_sp_max_t = _conv7x7_as_matrix(sa_w[0, 1], H, W).T          # (HW, HW)

    # feature_extractor / heads (kaiming_normal weights, zero biases; Dropout = identity in eval)
    fc1_w = np.asarray(jax.random.normal(ks[3], (HID1, C), f32)) * np.sqrt(2.0 / C)
    fc2_w = np.asarray(jax.random.normal(ks[4], (HID2, HID1), f32)) * np.sqrt(2.0 / HID1)
    cls_w = np.asarray(jax.random.normal(ks[5], (NUM_CLASSES, HID2), f32)) * np.sqrt(2.0 / HID2)
    reg_w = np.asarray(jax.random.normal(ks[6], (1, HID2), f32)) * np.sqrt(2.0 / HID2)
    fc1_b = np.zeros((HID1,), np.float32)
    fc2_b = np.zeros((HID2,), np.float32)
    cls_b = np.zeros((NUM_CLASSES,), np.float32)
    reg_b = np.zeros((1,), np.float32)

    # BatchNorm1d eval-mode stats (fresh model: gamma=1, beta=0, mean=0, var=1).
    # For a trained checkpoint, plug the real running stats into the same fold.
    bn1 = dict(gamma=np.ones(HID1, np.float32), beta=np.zeros(HID1, np.float32),
               mean=np.zeros(HID1, np.float32), var=np.ones(HID1, np.float32))
    bn2 = dict(gamma=np.ones(HID2, np.float32), beta=np.zeros(HID2, np.float32),
               mean=np.zeros(HID2, np.float32), var=np.ones(HID2, np.float32))
    fc1_wf, fc1_bf = _fold_bn_into_linear(fc1_w, fc1_b, **bn1)
    fc2_wf, fc2_bf = _fold_bn_into_linear(fc2_w, fc2_b, **bn2)

    # merged classifier(5) + regressor(1) head, lane-padded to 128 output columns
    head_w = np.zeros((HID2, OUT_PAD), np.float32)
    head_w[:, :NUM_CLASSES] = cls_w.T
    head_w[:, NUM_CLASSES:NUM_CLASSES + 1] = reg_w.T
    head_b = np.zeros((1, OUT_PAD), np.float32)
    head_b[0, :NUM_CLASSES] = cls_b
    head_b[0, NUM_CLASSES] = reg_b[0]

    return {
        "ca_w1t": jnp.asarray(ca_w1t, bf16),                    # (C, 128)
        "ca_w2t": jnp.asarray(ca_w2t, bf16),                    # (128, C)
        "w_sp_avg_t": jnp.asarray(w_sp_avg_t, bf16),            # (HW, HW), bf16 MXU operand
        "w_sp_max_t": jnp.asarray(w_sp_max_t, bf16),            # (HW, HW), bf16 MXU operand
        "fc1_wt": jnp.asarray(fc1_wf.T, bf16),                  # (C, 1024), BN folded
        "fc1_b": jnp.asarray(fc1_bf.reshape(1, HID1), f32),
        "fc2_wt": jnp.asarray(fc2_wf.T, bf16),                  # (1024, 512), BN folded
        "fc2_b": jnp.asarray(fc2_bf.reshape(1, HID2), f32),
        "head_wt": jnp.asarray(head_w, bf16),                   # (512, 128) = [cls | reg | 0...]
        "head_b": jnp.asarray(head_b, f32),                     # (1, 128)
    }


if __name__ == "__main__":
    key = jax.random.PRNGKey(0)
    k_in, k_par = jax.random.split(key)

    B, H, W = 2, 4, 4   # small spatial extent for the 1792-channel backbone feature map
    # Backbone feature map, already channels-last + bf16 (the real pipeline should emit it in
    # this layout so no standalone transpose/cast round-trip exists before the kernel).
    x_features = jax.random.normal(k_in, (B, H, W, C), jnp.float32).astype(jnp.bfloat16)
    params = init_params(k_par, H, W)

    fwd = jax.jit(improved_dr_model_forward)
    cls_out, reg_out = fwd(x_features, params)
    jax.block_until_ready((cls_out, reg_out))

    assert cls_out.shape == (B, NUM_CLASSES) and cls_out.dtype == jnp.float32
    assert reg_out.shape == (B, 1) and reg_out.dtype == jnp.float32
    assert bool(jnp.all(jnp.isfinite(cls_out))) and bool(jnp.all(jnp.isfinite(reg_out)))
    print("KERNEL_OK")
</pallas_src>

<mosaic_0001>
module attributes {stable_mosaic.version = 11 : i64} {
  func.func @fused_cbam_head_kernel(%arg0: i32, %arg1: memref<1x16x1792xbf16, #tpu.memory_space<vmem>>, %arg2: memref<1792x128xbf16, #tpu.memory_space<vmem>>, %arg3: memref<128x1792xbf16, #tpu.memory_space<vmem>>, %arg4: memref<16x16xbf16, #tpu.memory_space<vmem>>, %arg5: memref<16x16xbf16, #tpu.memory_space<vmem>>, %arg6: memref<1792x1024xbf16, #tpu.memory_space<vmem>>, %arg7: memref<1x1024xf32, #tpu.memory_space<vmem>>, %arg8: memref<1024x512xbf16, #tpu.memory_space<vmem>>, %arg9: memref<1x512xf32, #tpu.memory_space<vmem>>, %arg10: memref<512x128xbf16, #tpu.memory_space<vmem>>, %arg11: memref<1x128xf32, #tpu.memory_space<vmem>>, %arg12: memref<1x1x128xf32, #tpu.memory_space<vmem>>) attributes {dimension_semantics = [#tpu.dimension_semantics<parallel>], iteration_bounds = array<i64: 2>, scalar_prefetch = 0 : i64, scratch_operands = 0 : i64, tpu.core_type = #tpu.core_type<tc>, window_params = [{transform_indices = @transform_0, window_bounds = array<i64: 1, 16, 1792>}, {pipeline_mode = #tpu.pipeline_mode<synchronous>, transform_indices = @transform_1, window_bounds = array<i64: 1792, 128>}, {pipeline_mode = #tpu.pipeline_mode<synchronous>, transform_indices = @transform_2, window_bounds = array<i64: 128, 1792>}, {pipeline_mode = #tpu.pipeline_mode<synchronous>, transform_indices = @transform_3, window_bounds = array<i64: 16, 16>}, {pipeline_mode = #tpu.pipeline_mode<synchronous>, transform_indices = @transform_4, window_bounds = array<i64: 16, 16>}, {pipeline_mode = #tpu.pipeline_mode<synchronous>, transform_indices = @transform_5, window_bounds = array<i64: 1792, 1024>}, {pipeline_mode = #tpu.pipeline_mode<synchronous>, transform_indices = @transform_6, window_bounds = array<i64: 1, 1024>}, {pipeline_mode = #tpu.pipeline_mode<synchronous>, transform_indices = @transform_7, window_bounds = array<i64: 1024, 512>}, {pipeline_mode = #tpu.pipeline_mode<synchronous>, transform_indices = @transform_8, window_bounds = array<i64: 1, 512>}, {pipeline_mode = #tpu.pipeline_mode<synchronous>, transform_indices = @transform_9, window_bounds = array<i64: 512, 128>}, {pipeline_mode = #tpu.pipeline_mode<synchronous>, transform_indices = @transform_10, window_bounds = array<i64: 1, 128>}, {transform_indices = @transform_11, window_bounds = array<i64: 1, 1, 128>}]} {
    %c0 = arith.constant 0 : index
    %c0_0 = arith.constant 0 : index
    %c0_1 = arith.constant 0 : index
    %0 = vector.load %arg1[%c0, %c0_0, %c0_1] : memref<1x16x1792xbf16, #tpu.memory_space<vmem>>, vector<1x16x1792xbf16>
    %1 = arith.extf %0 : vector<1x16x1792xbf16> to vector<1x16x1792xf32>
    %cst = arith.constant dense<0.000000e+00> : vector<1x1792xf32>
    %2 = vector.multi_reduction <add>, %1, %cst [1] : vector<1x16x1792xf32> to vector<1x1792xf32>
    %cst_2 = arith.constant 1.600000e+01 : f32
    %3 = vector.broadcast %cst_2 : f32 to vector<1x1792xf32>
    %4 = arith.divf %2, %3 : vector<1x1792xf32>
    %cst_3 = arith.constant dense<0xFF80> : vector<1x1792xbf16>
    %5 = vector.multi_reduction <maximumf>, %0, %cst_3 [1] : vector<1x16x1792xbf16> to vector<1x1792xbf16>
    %6 = arith.extf %5 : vector<1x1792xbf16> to vector<1x1792xf32>
    %7 = tpu.concatenate %4, %6 in 0 : vector<1x1792xf32>, vector<1x1792xf32> -> vector<2x1792xf32>
    %8 = arith.truncf %7 : vector<2x1792xf32> to vector<2x1792xbf16>
    %c0_4 = arith.constant 0 : index
    %c0_5 = arith.constant 0 : index
    %9 = vector.load %arg2[%c0_4, %c0_5] : memref<1792x128xbf16, #tpu.memory_space<vmem>>, vector<1792x128xbf16>
    %cst_6 = arith.constant dense<0.000000e+00> : vector<2x128xf32>
    %10 = tpu.matmul %8, %9, %cst_6 {dimension_numbers = #tpu.dot_dimension_numbers<[1], [0], [0], [1], [0, 0, 1, 1], [], []>} : vector<2x1792xbf16>, vector<1792x128xbf16>, vector<2x128xf32> -> vector<2x128xf32>
    %cst_7 = arith.constant 0.000000e+00 : f32
    %11 = vector.broadcast %cst_7 : f32 to vector<2x128xf32>
    %12 = arith.maximumf %10, %11 : vector<2x128xf32>
    %13 = arith.truncf %12 : vector<2x128xf32> to vector<2x128xbf16>
    %c0_8 = arith.constant 0 : index
    %c0_9 = arith.constant 0 : index
    %14 = vector.load %arg3[%c0_8, %c0_9] : memref<128x1792xbf16, #tpu.memory_space<vmem>>, vector<128x1792xbf16>
    %cst_10 = arith.constant dense<0.000000e+00> : vector<2x1792xf32>
    %15 = tpu.matmul %13, %14, %cst_10 {dimension_numbers = #tpu.dot_dimension_numbers<[1], [0], [0], [1], [0, 0, 1, 1], [], []>} : vector<2x128xbf16>, vector<128x1792xbf16>, vector<2x1792xf32> -> vector<2x1792xf32>
    %16 = vector.extract_strided_slice %15 {offsets = [0, 0], sizes = [1, 1792], strides = [1, 1]} : vector<2x1792xf32> to vector<1x1792xf32>
    %17 = vector.extract_strided_slice %15 {offsets = [1, 0], sizes = [1, 1792], strides = [1, 1]} : vector<2x1792xf32> to vector<1x1792xf32>
    %18 = arith.addf %16, %17 : vector<1x1792xf32>
    %19 = arith.negf %18 : vector<1x1792xf32>
    %20 = math.exp %19 : vector<1x1792xf32>
    %cst_11 = arith.constant 1.000000e+00 : f32
    %21 = vector.broadcast %cst_11 : f32 to vector<1x1792xf32>
    %22 = arith.addf %21, %20 : vector<1x1792xf32>
    %23 = arith.divf %21, %22 : vector<1x1792xf32>
    %24 = arith.truncf %23 : vector<1x1792xf32> to vector<1x1792xbf16>
    %25 = vector.shape_cast %24 : vector<1x1792xbf16> to vector<1x1x1792xbf16>
    %26 = vector.broadcast %25 : vector<1x1x1792xbf16> to vector<1x16x1792xbf16>
    %27 = arith.mulf %0, %26 : vector<1x16x1792xbf16>
    %28 = arith.extf %27 : vector<1x16x1792xbf16> to vector<1x16x1792xf32>
    %cst_12 = arith.constant dense<0.000000e+00> : vector<1x16xf32>
    %29 = vector.multi_reduction <add>, %28, %cst_12 [2] : vector<1x16x1792xf32> to vector<1x16xf32>
    %cst_13 = arith.constant 1.792000e+03 : f32
    %30 = vector.broadcast %cst_13 : f32 to vector<1x16xf32>
    %31 = arith.divf %29, %30 : vector<1x16xf32>
    %cst_14 = arith.constant dense<0xFF80> : vector<1x16xbf16>
    %32 = vector.multi_reduction <maximumf>, %27, %cst_14 [2] : vector<1x16x1792xbf16> to vector<1x16xbf16>
    %33 = arith.extf %32 : vector<1x16xbf16> to vector<1x16xf32>
    %34 = arith.truncf %31 : vector<1x16xf32> to vector<1x16xbf16>
    %c0_15 = arith.constant 0 : index
    %c0_16 = arith.constant 0 : index
    %35 = vector.load %arg4[%c0_15, %c0_16] : memref<16x16xbf16, #tpu.memory_space<vmem>>, vector<16x16xbf16>
    %cst_17 = arith.constant dense<0.000000e+00> : vector<1x16xf32>
    %36 = tpu.matmul %34, %35, %cst_17 {dimension_numbers = #tpu.dot_dimension_numbers<[1], [0], [0], [1], [0, 0, 1, 1], [], []>} : vector<1x16xbf16>, vector<16x16xbf16>, vector<1x16xf32> -> vector<1x16xf32>
    %37 = arith.truncf %33 : vector<1x16xf32> to vector<1x16xbf16>
    %c0_18 = arith.constant 0 : index
    %c0_19 = arith.constant 0 : index
    %38 = vector.load %arg5[%c0_18, %c0_19] : memref<16x16xbf16, #tpu.memory_space<vmem>>, vector<16x16xbf16>
    %cst_20 = arith.constant dense<0.000000e+00> : vector<1x16xf32>
    %39 = tpu.matmul %37, %38, %cst_20 {dimension_numbers = #tpu.dot_dimension_numbers<[1], [0], [0], [1], [0, 0, 1, 1], [], []>} : vector<1x16xbf16>, vector<16x16xbf16>, vector<1x16xf32> -> vector<1x16xf32>
    %40 = arith.addf %36, %39 : vector<1x16xf32>
    %41 = arith.negf %40 : vector<1x16xf32>
    %42 = math.exp %41 : vector<1x16xf32>
    %cst_21 = arith.constant 1.000000e+00 : f32
    %43 = vector.broadcast %cst_21 : f32 to vector<1x16xf32>
    %44 = arith.addf %43, %42 : vector<1x16xf32>
    %45 = arith.divf %43, %44 : vector<1x16xf32>
    %46 = arith.truncf %45 : vector<1x16xf32> to vector<1x16xbf16>
    %47 = vector.shape_cast %46 : vector<1x16xbf16> to vector<1x1x16xbf16>
    "tpu.trace_start"() <{level = 10 : i32, message = "bqh,bhc->bqc"}> : () -> ()
    %cst_22 = arith.constant dense<0.000000e+00> : vector<1x1x1792xf32>
    %48 = tpu.matmul %47, %27, %cst_22 {dimension_numbers = #tpu.dot_dimension_numbers<[2], [1], [1], [2], [0, 0, 0, 1, 1, 2], [0], [0]>} : vector<1x1x16xbf16>, vector<1x16x1792xbf16>, vector<1x1x1792xf32> -> vector<1x1x1792xf32>
    "tpu.trace_stop"() : () -> ()
    %49 = vector.shape_cast %48 : vector<1x1x1792xf32> to vector<1x1792xf32>
    %cst_23 = arith.constant 6.250000e-02 : f32
    %50 = vector.broadcast %cst_23 : f32 to vector<1x1792xf32>
    %51 = arith.mulf %49, %50 : vector<1x1792xf32>
    %52 = arith.truncf %51 : vector<1x1792xf32> to vector<1x1792xbf16>
    %c0_24 = arith.constant 0 : index
    %c0_25 = arith.constant 0 : index
    %53 = vector.load %arg6[%c0_24, %c0_25] : memref<1792x1024xbf16, #tpu.memory_space<vmem>>, vector<1792x1024xbf16>
    %cst_26 = arith.constant dense<0.000000e+00> : vector<1x1024xf32>
    %54 = tpu.matmul %52, %53, %cst_26 {dimension_numbers = #tpu.dot_dimension_numbers<[1], [0], [0], [1], [0, 0, 1, 1], [], []>} : vector<1x1792xbf16>, vector<1792x1024xbf16>, vector<1x1024xf32> -> vector<1x1024xf32>
    %c0_27 = arith.constant 0 : index
    %c0_28 = arith.constant 0 : index
    %55 = vector.load %arg7[%c0_27, %c0_28] : memref<1x1024xf32, #tpu.memory_space<vmem>>, vector<1x1024xf32>
    %56 = arith.addf %54, %55 : vector<1x1024xf32>
    %cst_29 = arith.constant 0.000000e+00 : f32
    %57 = vector.broadcast %cst_29 : f32 to vector<1x1024xf32>
    %58 = arith.maximumf %56, %57 : vector<1x1024xf32>
    %59 = arith.truncf %58 : vector<1x1024xf32> to vector<1x1024xbf16>
    %c0_30 = arith.constant 0 : index
    %c0_31 = arith.constant 0 : index
    %60 = vector.load %arg8[%c0_30, %c0_31] : memref<1024x512xbf16, #tpu.memory_space<vmem>>, vector<1024x512xbf16>
    %cst_32 = arith.constant dense<0.000000e+00> : vector<1x512xf32>
    %61 = tpu.matmul %59, %60, %cst_32 {dimension_numbers = #tpu.dot_dimension_numbers<[1], [0], [0], [1], [0, 0, 1, 1], [], []>} : vector<1x1024xbf16>, vector<1024x512xbf16>, vector<1x512xf32> -> vector<1x512xf32>
    %c0_33 = arith.constant 0 : index
    %c0_34 = arith.constant 0 : index
    %62 = vector.load %arg9[%c0_33, %c0_34] : memref<1x512xf32, #tpu.memory_space<vmem>>, vector<1x512xf32>
    %63 = arith.addf %61, %62 : vector<1x512xf32>
    %cst_35 = arith.constant 0.000000e+00 : f32
    %64 = vector.broadcast %cst_35 : f32 to vector<1x512xf32>
    %65 = arith.maximumf %63, %64 : vector<1x512xf32>
    %66 = arith.truncf %65 : vector<1x512xf32> to vector<1x512xbf16>
    %c0_36 = arith.constant 0 : index
    %c0_37 = arith.constant 0 : index
    %67 = vector.load %arg10[%c0_36, %c0_37] : memref<512x128xbf16, #tpu.memory_space<vmem>>, vector<512x128xbf16>
    %cst_38 = arith.constant dense<0.000000e+00> : vector<1x128xf32>
    %68 = tpu.matmul %66, %67, %cst_38 {dimension_numbers = #tpu.dot_dimension_numbers<[1], [0], [0], [1], [0, 0, 1, 1], [], []>} : vector<1x512xbf16>, vector<512x128xbf16>, vector<1x128xf32> -> vector<1x128xf32>
    %c0_39 = arith.constant 0 : index
    %c0_40 = arith.constant 0 : index
    %69 = vector.load %arg11[%c0_39, %c0_40] : memref<1x128xf32, #tpu.memory_space<vmem>>, vector<1x128xf32>
    %70 = arith.addf %68, %69 : vector<1x128xf32>
    %71 = vector.shape_cast %70 : vector<1x128xf32> to vector<1x1x128xf32>
    %c0_41 = arith.constant 0 : index
    %c0_42 = arith.constant 0 : index
    %c0_43 = arith.constant 0 : index
    %72 = vector.load %arg12[%c0_41, %c0_42, %c0_43] : memref<1x1x128xf32, #tpu.memory_space<vmem>>, vector<1x1x128xf32>
    tpu.vector_store %arg12[%c0_41, %c0_42, %c0_43], %71 {strides = array<i32>} : memref<1x1x128xf32, #tpu.memory_space<vmem>>, vector<1x1x128xf32>,
    return
  }
  func.func @transform_0(%arg0: i32) -> (i32, i32, i32) {
    %c0_i32 = arith.constant 0 : i32
    %c0_i32_0 = arith.constant 0 : i32
    %c0_i32_1 = arith.constant 0 : i32
    return %arg0, %c0_i32, %c0_i32_0 : i32, i32, i32
  }
  func.func @transform_1(%arg0: i32) -> (i32, i32) {
    %c0_i32 = arith.constant 0 : i32
    %c0_i32_0 = arith.constant 0 : i32
    %c0_i32_1 = arith.constant 0 : i32
    return %c0_i32, %c0_i32_0 : i32, i32
  }
  func.func @transform_2(%arg0: i32) -> (i32, i32) {
    %c0_i32 = arith.constant 0 : i32
    %c0_i32_0 = arith.constant 0 : i32
    %c0_i32_1 = arith.constant 0 : i32
    return %c0_i32, %c0_i32_0 : i32, i32
  }
  func.func @transform_3(%arg0: i32) -> (i32, i32) {
    %c0_i32 = arith.constant 0 : i32
    %c0_i32_0 = arith.constant 0 : i32
    %c0_i32_1 = arith.constant 0 : i32
    return %c0_i32, %c0_i32_0 : i32, i32
  }
  func.func @transform_4(%arg0: i32) -> (i32, i32) {
    %c0_i32 = arith.constant 0 : i32
    %c0_i32_0 = arith.constant 0 : i32
    %c0_i32_1 = arith.constant 0 : i32
    return %c0_i32, %c0_i32_0 : i32, i32
  }
  func.func @transform_5(%arg0: i32) -> (i32, i32) {
    %c0_i32 = arith.constant 0 : i32
    %c0_i32_0 = arith.constant 0 : i32
    %c0_i32_1 = arith.constant 0 : i32
    return %c0_i32, %c0_i32_0 : i32, i32
  }
  func.func @transform_6(%arg0: i32) -> (i32, i32) {
    %c0_i32 = arith.constant 0 : i32
    %c0_i32_0 = arith.constant 0 : i32
    %c0_i32_1 = arith.constant 0 : i32
    return %c0_i32, %c0_i32_0 : i32, i32
  }
  func.func @transform_7(%arg0: i32) -> (i32, i32) {
    %c0_i32 = arith.constant 0 : i32
    %c0_i32_0 = arith.constant 0 : i32
    %c0_i32_1 = arith.constant 0 : i32
    return %c0_i32, %c0_i32_0 : i32, i32
  }
  func.func @transform_8(%arg0: i32) -> (i32, i32) {
    %c0_i32 = arith.constant 0 : i32
    %c0_i32_0 = arith.constant 0 : i32
    %c0_i32_1 = arith.constant 0 : i32
    return %c0_i32, %c0_i32_0 : i32, i32
  }
  func.func @transform_9(%arg0: i32) -> (i32, i32) {
    %c0_i32 = arith.constant 0 : i32
    %c0_i32_0 = arith.constant 0 : i32
    %c0_i32_1 = arith.constant 0 : i32
    return %c0_i32, %c0_i32_0 : i32, i32
  }
  func.func @transform_10(%arg0: i32) -> (i32, i32) {
    %c0_i32 = arith.constant 0 : i32
    %c0_i32_0 = arith.constant 0 : i32
    %c0_i32_1 = arith.constant 0 : i32
    return %c0_i32, %c0_i32_0 : i32, i32
  }
  func.func @transform_11(%arg0: i32) -> (i32, i32, i32) {
    %c0_i32 = arith.constant 0 : i32
    %c0_i32_0 = arith.constant 0 : i32
    %c0_i32_1 = arith.constant 0 : i32
    return %arg0, %c0_i32, %c0_i32_0 : i32, i32, i32
  }
}

</mosaic_0001>

<llo_original>
// kernel: improved_dr_model_forward.1
$region0: #{improved_dr_model_forward.1}
  #allocation0 [shape = 'u32[]', space=smem, size = 0x4, offset = 0x4, fixed_abs, tag = 'smem constant byte address 0x4 - core index']
  #allocation1 [shape = 'u32[144,128]{1,0:T(1,128)}', space=vmem, size = 0x12000, scoped, tag = 'internal scratch']
  %s0 = inlined_call_operand.vmem [shape: bf16[2,16,1792], index: 0, kind: input, shape index: {}]
  %s1 = inlined_call_operand.hbm [shape: bf16[1792,128], index: 1, kind: input, shape index: {}]
  %s2 = inlined_call_operand.hbm [shape: bf16[128,1792], index: 2, kind: input, shape index: {}]
  %s3 = inlined_call_operand.hbm [shape: bf16[16,16], index: 3, kind: input, shape index: {}]
  %s4 = inlined_call_operand.hbm [shape: bf16[16,16], index: 4, kind: input, shape index: {}]
  %s5 = inlined_call_operand.hbm [shape: bf16[1792,1024], index: 5, kind: input, shape index: {}]
  %s6 = inlined_call_operand.hbm [shape: f32[1,1024], index: 6, kind: input, shape index: {}]
  %s7 = inlined_call_operand.hbm [shape: bf16[1024,512], index: 7, kind: input, shape index: {}]
  %s8 = inlined_call_operand.hbm [shape: f32[1,512], index: 8, kind: input, shape index: {}]
  %s9 = inlined_call_operand.hbm [shape: bf16[512,128], index: 9, kind: input, shape index: {}]
  %s10 = inlined_call_operand.hbm [shape: f32[1,128], index: 10, kind: input, shape index: {}]
  %s11 = inlined_call_operand.vmem [shape: f32[2,1,128], index: 11, kind: output, shape index: {}]
  %s12 = sld [smem:[#allocation0]]
  $region117: #{improved_dr_model_forward.1} parent=0
    _
  %s14 = ssub.s32 1, %s12
  %s15 = scalar_select 0, %s14, %s12
  $region1: #{improved_dr_model_forward.1} parent=0
    #allocation2 [shape = 'u8[458752]{0}', space=vmem, size = 0x70000, scoped, tag = 'input window, operand 1, single buffered']
    #allocation3 [shape = 's32[2]{0}', space=sflag, size = 0x8, scoped, tag = 'scoped memory for improved_dr_model_forward.1']
    #allocation4 [shape = 'u8[458752]{0}', space=vmem, size = 0x70000, scoped, tag = 'input window, operand 2, single buffered']
    #allocation5 [shape = 's32[1]{0}', space=sflag, size = 0x4, scoped, tag = 'scoped memory for improved_dr_model_forward.1']
    #allocation6 [shape = 'u8[4096]{0}', space=vmem, size = 0x1000, scoped, tag = 'input window, operand 3, single buffered']
    #allocation7 [shape = 'u8[4096]{0}', space=vmem, size = 0x1000, scoped, tag = 'input window, operand 4, single buffered']
    #allocation8 [shape = 's32[1]{0}', space=sflag, size = 0x4, scoped, tag = 'scoped memory for improved_dr_model_forward.1']
    #allocation9 [shape = 'u8[3670016]{0}', space=vmem, size = 0x380000, scoped, tag = 'input window, operand 5, single buffered']
    #allocation10 [shape = 'u8[4096]{0}', space=vmem, size = 0x1000, scoped, tag = 'input window, operand 6, single buffered']
    #allocation11 [shape = 's32[1]{0}', space=sflag, size = 0x4, scoped, tag = 'scoped memory for improved_dr_model_forward.1']
    #allocation12 [shape = 'u8[1048576]{0}', space=vmem, size = 0x100000, scoped, tag = 'input window, operand 7, single buffered']
    #allocation13 [shape = 'u8[2048]{0}', space=vmem, size = 0x800, scoped, tag = 'input window, operand 8, single buffered']
    #allocation14 [shape = 's32[1]{0}', space=sflag, size = 0x4, scoped, tag = 'scoped memory for improved_dr_model_forward.1']
    #allocation15 [shape = 'u8[131072]{0}', space=vmem, size = 0x20000, scoped, tag = 'input window, operand 9, single buffered']
    #allocation16 [shape = 'u8[512]{0}', space=vmem, size = 0x400, scoped, tag = 'input window, operand 10, single buffered']
    #allocation17 [shape = 's32[1]{0}', space=sflag, size = 0x4, scoped, tag = 'scoped memory for improved_dr_model_forward.1']
    %16 = vsyncpa [#allocation3], 0
    %17 = vsyncpa [#allocation5], 0
    %18 = vsyncpa [#allocation8], 0
    %19 = vsyncpa [#allocation11], 0
    %20 = vsyncpa [#allocation14], 0
    %21 = vsyncpa [#allocation17], 0
    loop: start=0, step=1, limit=4
    $region2: #{improved_dr_model_forward.1} parent=1 // loop_pre_header
      _
    $region3: #{improved_dr_model_forward.1} parent=1 // loop_header
      %s23 = sphi 0, %s27
      %p24 = scmp.ge.s32.totalorder %s23, 4
      %s33 = sphi 0, %s35
      %s36 = sphi 0, %s33
      %s37 = sphi 0, %s36
      %s53 = sphi 0, %s37
      %s57 = sphi 0, %s57
      %s59 = sphi 0, %s57
      %s60 = sphi 0, %s59
      %s74 = sphi 0, %s60
      %s78 = sphi 0, %s78
      %s80 = sphi 0, %s78
      %s81 = sphi 0, %s80
      %s95 = sphi 0, %s81
      %s99 = sphi 0, %s99
      %s101 = sphi 0, %s99
      %s102 = sphi 0, %s101
      %s116 = sphi 0, %s102
      %s120 = sphi 0, %s120
      %s122 = sphi 0, %s120
      %s123 = sphi 0, %s122
      %s137 = sphi 0, %s123
      %s141 = sphi 0, %s141
      %s143 = sphi 0, %s141
      %s144 = sphi 0, %s143
      %s158 = sphi 0, %s144
      %s162 = sphi 0, %s162
      %s164 = sphi 0, %s162
      %s165 = sphi 0, %s164
      %s179 = sphi 0, %s165
      %s183 = sphi 0, %s183
      %s185 = sphi 0, %s183
      %s186 = sphi 0, %s185
      %s200 = sphi 0, %s186
      %s204 = sphi 0, %s204
      %s206 = sphi 0, %s204
      %s207 = sphi 0, %s206
      %s221 = sphi 0, %s207
      %s225 = sphi 0, %s225
      %s227 = sphi 0, %s225
      %s228 = sphi 0, %s227
      %s242 = sphi 0, %s228
      %s246 = sphi 0, %s246
      %s248 = sphi 0, %s246
      %s249 = sphi 0, %s248
      %s263 = sphi 0, %s249
      %s269 = sphi 0, %s271
      %s272 = sphi 0, %s269
      %s273 = sphi 0, %s272
      %s289 = sphi 0, %s273
    $region4: #{improved_dr_model_forward.1} parent=1 // loop_header_branch
      %26 = sbr.rel (%p24) target = $region8
    $region5: #{improved_dr_model_forward.1} parent=1 // loop_body
      %s28 = ssub.s32 %s23, 1
      %s29 = ssub.s32 %s23, 2
      %s30 = sadd.s32 %s23, 1
      %s31 = ssub.s32 %s23, %s30
      %p32 = scmp.eq.s32.totalorder %s31, 0
      %s34 = sadd.s32 %s33, 1
      %s35 = scalar_select %p32, %s33, %s34
      %p38 = pneg %p32
      %p39 = scmp.eq.s32.totalorder %s23, 1
      %p40 = por %p38, %p39
      %p41 = scmp.ne.s32.totalorder %s33, %s36
      %p42 = scmp.eq.s32.totalorder %s23, 0
      %p43 = por %p41, %p42
      %p44 = scmp.ne.s32.totalorder %s33, %s36
      %p45 = scmp.eq.s32.totalorder %s28, 1
      %p46 = por %p44, %p45
      %p47 = scmp.ne.s32.totalorder %s36, %s37
      %p48 = scmp.eq.s32.totalorder %s28, 0
      %p49 = por %p47, %p48
      %p50 = scmp.ne.s32.totalorder %s36, %s37
      %p51 = scmp.eq.s32.totalorder %s29, 1
      %p52 = por %p50, %p51
      %p54 = scmp.ne.s32.totalorder %s37, %s53
      %p55 = scmp.eq.s32.totalorder %s29, 0
      %p56 = por %p54, %p55
      %s58 = sadd.s32 %s57, 1
      %p61 = scmp.eq.s32.totalorder %s23, 1
      %p62 = scmp.ne.s32.totalorder %s57, %s59
      %p63 = scmp.eq.s32.totalorder %s23, 0
      %p64 = por %p62, %p63
      %p65 = scmp.ne.s32.totalorder %s57, %s59
      %p66 = scmp.eq.s32.totalorder %s28, 1
      %p67 = por %p65, %p66
      %p68 = scmp.ne.s32.totalorder %s59, %s60
      %p69 = scmp.eq.s32.totalorder %s28, 0
      %p70 = por %p68, %p69
      %p71 = scmp.ne.s32.totalorder %s59, %s60
      %p72 = scmp.eq.s32.totalorder %s29, 1
      %p73 = por %p71, %p72
      %p75 = scmp.ne.s32.totalorder %s60, %s74
      %p76 = scmp.eq.s32.totalorder %s29, 0
      %p77 = por %p75, %p76
      %s79 = sadd.s32 %s78, 1
      %p82 = scmp.eq.s32.totalorder %s23, 1
      %p83 = scmp.ne.s32.totalorder %s78, %s80
      %p84 = scmp.eq.s32.totalorder %s23, 0
      %p85 = por %p83, %p84
      %p86 = scmp.ne.s32.totalorder %s78, %s80
      %p87 = scmp.eq.s32.totalorder %s28, 1
      %p88 = por %p86, %p87
      %p89 = scmp.ne.s32.totalorder %s80, %s81
      %p90 = scmp.eq.s32.totalorder %s28, 0
      %p91 = por %p89, %p90
      %p92 = scmp.ne.s32.totalorder %s80, %s81
      %p93 = scmp.eq.s32.totalorder %s29, 1
      %p94 = por %p92, %p93
      %p96 = scmp.ne.s32.totalorder %s81, %s95
      %p97 = scmp.eq.s32.totalorder %s29, 0
      %p98 = por %p96, %p97
      %s100 = sadd.s32 %s99, 1
      %p103 = scmp.eq.s32.totalorder %s23, 1
      %p104 = scmp.ne.s32.totalorder %s99, %s101
      %p105 = scmp.eq.s32.totalorder %s23, 0
      %p106 = por %p104, %p105
      %p107 = scmp.ne.s32.totalorder %s99, %s101
      %p108 = scmp.eq.s32.totalorder %s28, 1
      %p109 = por %p107, %p108
      %p110 = scmp.ne.s32.totalorder %s101, %s102
      %p111 = scmp.eq.s32.totalorder %s28, 0
      %p112 = por %p110, %p111
      %p113 = scmp.ne.s32.totalorder %s101, %s102
      %p114 = scmp.eq.s32.totalorder %s29, 1
      %p115 = por %p113, %p114
      %p117 = scmp.ne.s32.totalorder %s102, %s116
      %p118 = scmp.eq.s32.totalorder %s29, 0
      %p119 = por %p117, %p118
      %s121 = sadd.s32 %s120, 1
      %p124 = scmp.eq.s32.totalorder %s23, 1
      %p125 = scmp.ne.s32.totalorder %s120, %s122
      %p126 = scmp.eq.s32.totalorder %s23, 0
      %p127 = por %p125, %p126
      %p128 = scmp.ne.s32.totalorder %s120, %s122
      %p129 = scmp.eq.s32.totalorder %s28, 1
      %p130 = por %p128, %p129
      %p131 = scmp.ne.s32.totalorder %s122, %s123
      %p132 = scmp.eq.s32.totalorder %s28, 0
      %p133 = por %p131, %p132
      %p134 = scmp.ne.s32.totalorder %s122, %s123
      %p135 = scmp.eq.s32.totalorder %s29, 1
      %p136 = por %p134, %p135
      %p138 = scmp.ne.s32.totalorder %s123, %s137
      %p139 = scmp.eq.s32.totalorder %s29, 0
      %p140 = por %p138, %p139
      %s142 = sadd.s32 %s141, 1
      %p145 = scmp.eq.s32.totalorder %s23, 1
      %p146 = scmp.ne.s32.totalorder %s141, %s143
      %p147 = scmp.eq.s32.totalorder %s23, 0
      %p148 = por %p146, %p147
      %p149 = scmp.ne.s32.totalorder %s141, %s143
      %p150 = scmp.eq.s32.totalorder %s28, 1
      %p151 = por %p149, %p150
      %p152 = scmp.ne.s32.totalorder %s143, %s144
      %p153 = scmp.eq.s32.totalorder %s28, 0
      %p154 = por %p152, %p153
      %p155 = scmp.ne.s32.totalorder %s143, %s144
      %p156 = scmp.eq.s32.totalorder %s29, 1
      %p157 = por %p155, %p156
      %p159 = scmp.ne.s32.totalorder %s144, %s158
      %p160 = scmp.eq.s32.totalorder %s29, 0
      %p161 = por %p159, %p160
      %s163 = sadd.s32 %s162, 1
      %p166 = scmp.eq.s32.totalorder %s23, 1
      %p167 = scmp.ne.s32.totalorder %s162, %s164
      %p168 = scmp.eq.s32.totalorder %s23, 0
      %p169 = por %p167, %p168
      %p170 = scmp.ne.s32.totalorder %s162, %s164
      %p171 = scmp.eq.s32.totalorder %s28, 1
      %p172 = por %p170, %p171
      %p173 = scmp.ne.s32.totalorder %s164, %s165
      %p174 = scmp.eq.s32.totalorder %s28, 0
      %p175 = por %p173, %p174
      %p176 = scmp.ne.s32.totalorder %s164, %s165
      %p177 = scmp.eq.s32.totalorder %s29, 1
      %p178 = por %p176, %p177
      %p180 = scmp.ne.s32.totalorder %s165, %s179
      %p181 = scmp.eq.s32.totalorder %s29, 0
      %p182 = por %p180, %p181
      %s184 = sadd.s32 %s183, 1
      %p187 = scmp.eq.s32.totalorder %s23, 1
      %p188 = scmp.ne.s32.totalorder %s183, %s185
      %p189 = scmp.eq.s32.totalorder %s23, 0
      %p190 = por %p188, %p189
      %p191 = scmp.ne.s32.totalorder %s183, %s185
      %p192 = scmp.eq.s32.totalorder %s28, 1
      %p193 = por %p191, %p192
      %p194 = scmp.ne.s32.totalorder %s185, %s186
      %p195 = scmp.eq.s32.totalorder %s28, 0
      %p196 = por %p194, %p195
      %p197 = scmp.ne.s32.totalorder %s185, %s186
      %p198 = scmp.eq.s32.totalorder %s29, 1
      %p199 = por %p197, %p198
      %p201 = scmp.ne.s32.totalorder %s186, %s200
      %p202 = scmp.eq.s32.totalorder %s29, 0
      %p203 = por %p201, %p202
      %s205 = sadd.s32 %s204, 1
      %p208 = scmp.eq.s32.totalorder %s23, 1
      %p209 = scmp.ne.s32.totalorder %s204, %s206
      %p210 = scmp.eq.s32.totalorder %s23, 0
      %p211 = por %p209, %p210
      %p212 = scmp.ne.s32.totalorder %s204, %s206
      %p213 = scmp.eq.s32.totalorder %s28, 1
      %p214 = por %p212, %p213
      %p215 = scmp.ne.s32.totalorder %s206, %s207
      %p216 = scmp.eq.s32.totalorder %s28, 0
      %p217 = por %p215, %p216
      %p218 = scmp.ne.s32.totalorder %s206, %s207
      %p219 = scmp.eq.s32.totalorder %s29, 1
      %p220 = por %p218, %p219
      %p222 = scmp.ne.s32.totalorder %s207, %s221
      %p223 = scmp.eq.s32.totalorder %s29, 0
      %p224 = por %p222, %p223
      %s226 = sadd.s32 %s225, 1
      %p229 = scmp.eq.s32.totalorder %s23, 1
      %p230 = scmp.ne.s32.totalorder %s225, %s227
      %p231 = scmp.eq.s32.totalorder %s23, 0
      %p232 = por %p230, %p231
      %p233 = scmp.ne.s32.totalorder %s225, %s227
      %p234 = scmp.eq.s32.totalorder %s28, 1
      %p235 = por %p233, %p234
      %p236 = scmp.ne.s32.totalorder %s227, %s228
      %p237 = scmp.eq.s32.totalorder %s28, 0
      %p238 = por %p236, %p237
      %p239 = scmp.ne.s32.totalorder %s227, %s228
      %p240 = scmp.eq.s32.totalorder %s29, 1
      %p241 = por %p239, %p240
      %p243 = scmp.ne.s32.totalorder %s228, %s242
      %p244 = scmp.eq.s32.totalorder %s29, 0
      %p245 = por %p243, %p244
      %s247 = sadd.s32 %s246, 1
      %p250 = scmp.eq.s32.totalorder %s23, 1
      %p251 = scmp.ne.s32.totalorder %s246, %s248
      %p252 = scmp.eq.s32.totalorder %s23, 0
      %p253 = por %p251, %p252
      %p254 = scmp.ne.s32.totalorder %s246, %s248
      %p255 = scmp.eq.s32.totalorder %s28, 1
      %p256 = por %p254, %p255
      %p257 = scmp.ne.s32.totalorder %s248, %s249
      %p258 = scmp.eq.s32.totalorder %s28, 0
      %p259 = por %p257, %p258
      %p260 = scmp.ne.s32.totalorder %s248, %s249
      %p261 = scmp.eq.s32.totalorder %s29, 1
      %p262 = por %p260, %p261
      %p264 = scmp.ne.s32.totalorder %s249, %s263
      %p265 = scmp.eq.s32.totalorder %s29, 0
      %p266 = por %p264, %p265
      %s267 = ssub.s32 %s23, %s30
      %p268 = scmp.eq.s32.totalorder %s267, 0
      %s270 = sadd.s32 %s269, 1
      %s271 = scalar_select %p268, %s269, %s270
      %p274 = pneg %p268
      %p275 = scmp.eq.s32.totalorder %s23, 1
      %p276 = por %p274, %p275
      %p277 = scmp.ne.s32.totalorder %s269, %s272
      %p278 = scmp.eq.s32.totalorder %s23, 0
      %p279 = por %p277, %p278
      %p280 = scmp.ne.s32.totalorder %s269, %s272
      %p281 = scmp.eq.s32.totalorder %s28, 1
      %p282 = por %p280, %p281
      %p283 = scmp.ne.s32.totalorder %s272, %s273
      %p284 = scmp.eq.s32.totalorder %s28, 0
      %p285 = por %p283, %p284
      %p286 = scmp.ne.s32.totalorder %s272, %s273
      %p287 = scmp.eq.s32.totalorder %s29, 1
      %p288 = por %p286, %p287
      %p290 = scmp.ne.s32.totalorder %s273, %s289
      %p291 = scmp.eq.s32.totalorder %s29, 0
      %p292 = por %p290, %p291
      %p293 = scmp.le.s32.totalorder 1, %s23
      %p294 = scmp.lt.s32.totalorder %s23, 3
      %p295 = pnand %p293, %p294
      %p296 = pneg %p295
      // Predicated region
      $region9: #{improved_dr_model_forward.1} parent=5 // pred_check
        _
      $region10: #{improved_dr_model_forward.1} parent=5 // pred_check_branch
        %298 = sbr.rel (%p295) target = $region12
      $region11: #{improved_dr_model_forward.1} parent=5 // pred_region
        %s299 = ssub.s32 %s23, 1
        // Predicated region
        $region13: #{improved_dr_model_forward.1} parent=11 // pred_check
          %p300 = pneg %p70
        $region14: #{improved_dr_model_forward.1} parent=11 // pred_check_branch
          %302 = sbr.rel (%p300) target = $region16
        $region15: #{improved_dr_model_forward.1} parent=11 // pred_region
          %s304 = ssub.s32 14336, 14336
          %305 = vsyncadd [#allocation3], %s304
          %s306 = sshll.u32 [#allocation2], 4
          %s307 = int_to_ptr.vmem [resolvable:$true] %s306
          %312 = dma.hbm_to_vmem [thread:$0]  %s1, 14336, %s307, [#allocation3], 64, 64, 4
        $region16: #{improved_dr_model_forward.1} parent=11 // pred_fallthru
          _
        // Predicated region
        $region17: #{improved_dr_model_forward.1} parent=11 // pred_check
          %p313 = pneg %p91
        $region18: #{improved_dr_model_forward.1} parent=11 // pred_check_branch
          %315 = sbr.rel (%p313) target = $region20
        $region19: #{improved_dr_model_forward.1} parent=11 // pred_region
          %s317 = ssub.s32 14336, 14336
          %318 = vsyncadd [#allocation5], %s317
          %s319 = sshll.u32 [#allocation4], 4
          %s320 = int_to_ptr.vmem [resolvable:$true] %s319
          %325 = dma.hbm_to_vmem [thread:$0]  %s2, 14336, %s320, [#allocation5], 896, 896, 56
        $region20: #{improved_dr_model_forward.1} parent=11 // pred_fallthru
          _
        // Predicated region
        $region21: #{improved_dr_model_forward.1} parent=11 // pred_check
          %p326 = pneg %p112
        $region22: #{improved_dr_model_forward.1} parent=11 // pred_check_branch
          %328 = sbr.rel (%p326) target = $region24
        $region23: #{improved_dr_model_forward.1} parent=11 // pred_region
          %s330 = ssub.s32 128, 128
          %331 = vsyncadd [#allocation5], %s330
          %s332 = sshll.u32 [#allocation6], 4
          %s333 = int_to_ptr.vmem [resolvable:$true] %s332
          %338 = dma.hbm_to_vmem [thread:$0]  %s3, 128, %s333, [#allocation5], 64, 64, 4
        $region24: #{improved_dr_model_forward.1} parent=11 // pred_fallthru
          _
        // Predicated region
        $region25: #{improved_dr_model_forward.1} parent=11 // pred_check
          %p339 = pneg %p133
        $region26: #{improved_dr_model_forward.1} parent=11 // pred_check_branch
          %341 = sbr.rel (%p339) target = $region28
        $region27: #{improved_dr_model_forward.1} parent=11 // pred_region
          %s343 = ssub.s32 128, 128
          %344 = vsyncadd [#allocation8], %s343
          %s345 = sshll.u32 [#allocation7], 4
          %s346 = int_to_ptr.vmem [resolvable:$true] %s345
          %351 = dma.hbm_to_vmem [thread:$0]  %s4, 128, %s346, [#allocation8], 64, 64, 4
        $region28: #{improved_dr_model_forward.1} parent=11 // pred_fallthru
          _
        // Predicated region
        $region29: #{improved_dr_model_forward.1} parent=11 // pred_check
          %p352 = pneg %p154
        $region30: #{improved_dr_model_forward.1} parent=11 // pred_check_branch
          %354 = sbr.rel (%p352) target = $region32
        $region31: #{improved_dr_model_forward.1} parent=11 // pred_region
          %s356 = ssub.s32 114688, 114688
          %357 = vsyncadd [#allocation8], %s356
          %s358 = sshll.u32 [#allocation9], 4
          %s359 = int_to_ptr.vmem [resolvable:$true] %s358
          %364 = dma.hbm_to_vmem [thread:$0]  %s5, 114688, %s359, [#allocation8], 512, 512, 32
        $region32: #{improved_dr_model_forward.1} parent=11 // pred_fallthru
          _
        // Predicated region
        $region33: #{improved_dr_model_forward.1} parent=11 // pred_check
          %p365 = pneg %p175
        $region34: #{improved_dr_model_forward.1} parent=11 // pred_check_branch
          %367 = sbr.rel (%p365) target = $region36
        $region35: #{improved_dr_model_forward.1} parent=11 // pred_region
          %s369 = ssub.s32 128, 128
          %370 = vsyncadd [#allocation11], %s369
          %s372 = sshll.u32 [#allocation10], 4
          %s373 = int_to_ptr.vmem [resolvable:$true] %s372
          %375 = dma.hbm_to_vmem [thread:$0]  %s6, 128, %s373, [#allocation11]
        $region36: #{improved_dr_model_forward.1} parent=11 // pred_fallthru
          _
        // Predicated region
        $region37: #{improved_dr_model_forward.1} parent=11 // pred_check
          %p376 = pneg %p196
        $region38: #{improved_dr_model_forward.1} parent=11 // pred_check_branch
          %378 = sbr.rel (%p376) target = $region40
        $region39: #{improved_dr_model_forward.1} parent=11 // pred_region
          %s380 = ssub.s32 32768, 32768
          %381 = vsyncadd [#allocation11], %s380
          %s382 = sshll.u32 [#allocation12], 4
          %s383 = int_to_ptr.vmem [resolvable:$true] %s382
          %388 = dma.hbm_to_vmem [thread:$0]  %s7, 32768, %s383, [#allocation11], 256, 256, 16
        $region40: #{improved_dr_model_forward.1} parent=11 // pred_fallthru
          _
        // Predicated region
        $region41: #{improved_dr_model_forward.1} parent=11 // pred_check
          %p389 = pneg %p217
        $region42: #{improved_dr_model_forward.1} parent=11 // pred_check_branch
          %391 = sbr.rel (%p389) target = $region44
        $region43: #{improved_dr_model_forward.1} parent=11 // pred_region
          %s393 = ssub.s32 64, 64
          %394 = vsyncadd [#allocation14], %s393
          %s396 = sshll.u32 [#allocation13], 4
          %s397 = int_to_ptr.vmem [resolvable:$true] %s396
          %399 = dma.hbm_to_vmem [thread:$0]  %s8, 64, %s397, [#allocation14]
        $region44: #{improved_dr_model_forward.1} parent=11 // pred_fallthru
          _
        // Predicated region
        $region45: #{improved_dr_model_forward.1} parent=11 // pred_check
          %p400 = pneg %p238
        $region46: #{improved_dr_model_forward.1} parent=11 // pred_check_branch
          %402 = sbr.rel (%p400) target = $region48
        $region47: #{improved_dr_model_forward.1} parent=11 // pred_region
          %s404 = ssub.s32 4096, 4096
          %405 = vsyncadd [#allocation14], %s404
          %s406 = sshll.u32 [#allocation15], 4
          %s407 = int_to_ptr.vmem [resolvable:$true] %s406
          %412 = dma.hbm_to_vmem [thread:$0]  %s9, 4096, %s407, [#allocation14], 64, 64, 4
        $region48: #{improved_dr_model_forward.1} parent=11 // pred_fallthru
          _
        // Predicated region
        $region49: #{improved_dr_model_forward.1} parent=11 // pred_check
          %p413 = pneg %p259
        $region50: #{improved_dr_model_forward.1} parent=11 // pred_check_branch
          %415 = sbr.rel (%p413) target = $region52
        $region51: #{improved_dr_model_forward.1} parent=11 // pred_region
          %s417 = ssub.s32 16, 16
          %418 = vsyncadd [#allocation17], %s417
          %s420 = sshll.u32 [#allocation16], 4
          %s421 = int_to_ptr.vmem [resolvable:$true] %s420
          %423 = dma.hbm_to_vmem [thread:$0]  %s10, 16, %s421, [#allocation17]
        $region52: #{improved_dr_model_forward.1} parent=11 // pred_fallthru
          _
      $region12: #{improved_dr_model_forward.1} parent=5 // pred_fallthru
        _
      %p424 = scmp.lt.s32.totalorder %s23, 2
      // Predicated region
      $region53: #{improved_dr_model_forward.1} parent=5 // pred_check
        %p425 = pneg %p424
      $region54: #{improved_dr_model_forward.1} parent=5 // pred_check_branch
        %427 = sbr.rel (%p425) target = $region56
      $region55: #{improved_dr_model_forward.1} parent=5 // pred_region
        // Predicated region
        $region57: #{improved_dr_model_forward.1} parent=55 // pred_check
          %p428 = pneg %p43
        $region58: #{improved_dr_model_forward.1} parent=55 // pred_check_branch
          %430 = sbr.rel (%p428) target = $region60
        $region59: #{improved_dr_model_forward.1} parent=55 // pred_region
          %p431 = scmp.lt.s32.totalorder %s23, 1
          %s432 = scalar_select %p431, %s23, 1
          %s433 = smul.addr %s432, 28
          %s434 = smul.addr %s433, 4
          %s435 = scalar_lea.vmem %s0, %s434
        $region60: #{improved_dr_model_forward.1} parent=55 // pred_fallthru
          _
      $region56: #{improved_dr_model_forward.1} parent=5 // pred_fallthru
        _
      %p436 = scmp.le.s32.totalorder 1, %s23
      %p437 = scmp.lt.s32.totalorder %s23, 3
      %p438 = pnand %p436, %p437
      %p439 = pneg %p438
      // Predicated region
      $region61: #{improved_dr_model_forward.1} parent=5 // pred_check
        _
      $region62: #{improved_dr_model_forward.1} parent=5 // pred_check_branch
        %441 = sbr.rel (%p438) target = $region64
      $region63: #{improved_dr_model_forward.1} parent=5 // pred_region
        %s442 = ssub.s32 %s23, 1
        // Predicated region
        $region65: #{improved_dr_model_forward.1} parent=63 // pred_check
          %p443 = pneg %p70
        $region66: #{improved_dr_model_forward.1} parent=63 // pred_check_branch
          %445 = sbr.rel (%p443) target = $region68
        $region67: #{improved_dr_model_forward.1} parent=63 // pred_region
          %446 = dma.done [#allocation3], 14336
        $region68: #{improved_dr_model_forward.1} parent=63 // pred_fallthru
          _
        // Predicated region
        $region69: #{improved_dr_model_forward.1} parent=63 // pred_check
          %p447 = pneg %p91
        $region70: #{improved_dr_model_forward.1} parent=63 // pred_check_branch
          %449 = sbr.rel (%p447) target = $region72
        $region71: #{improved_dr_model_forward.1} parent=63 // pred_region
          %450 = dma.done [#allocation5], 14336
        $region72: #{improved_dr_model_forward.1} parent=63 // pred_fallthru
          _
        // Predicated region
        $region73: #{improved_dr_model_forward.1} parent=63 // pred_check
          %p451 = pneg %p112
        $region74: #{improved_dr_model_forward.1} parent=63 // pred_check_branch
          %453 = sbr.rel (%p451) target = $region76
        $region75: #{improved_dr_model_forward.1} parent=63 // pred_region
          %454 = dma.done [#allocation5], 128
        $region76: #{improved_dr_model_forward.1} parent=63 // pred_fallthru
          _
        // Predicated region
        $region77: #{improved_dr_model_forward.1} parent=63 // pred_check
          %p455 = pneg %p133
        $region78: #{improved_dr_model_forward.1} parent=63 // pred_check_branch
          %457 = sbr.rel (%p455) target = $region80
        $region79: #{improved_dr_model_forward.1} parent=63 // pred_region
          %458 = dma.done [#allocation8], 128
        $region80: #{improved_dr_model_forward.1} parent=63 // pred_fallthru
          _
        // Predicated region
        $region81: #{improved_dr_model_forward.1} parent=63 // pred_check
          %p459 = pneg %p154
        $region82: #{improved_dr_model_forward.1} parent=63 // pred_check_branch
          %461 = sbr.rel (%p459) target = $region84
        $region83: #{improved_dr_model_forward.1} parent=63 // pred_region
          %462 = dma.done [#allocation8], 114688
        $region84: #{improved_dr_model_forward.1} parent=63 // pred_fallthru
          _
        // Predicated region
        $region85: #{improved_dr_model_forward.1} parent=63 // pred_check
          %p463 = pneg %p175
        $region86: #{improved_dr_model_forward.1} parent=63 // pred_check_branch
          %465 = sbr.rel (%p463) target = $region88
        $region87: #{improved_dr_model_forward.1} parent=63 // pred_region
          %466 = dma.done [#allocation11], 128
        $region88: #{improved_dr_model_forward.1} parent=63 // pred_fallthru
          _
        // Predicated region
        $region89: #{improved_dr_model_forward.1} parent=63 // pred_check
          %p467 = pneg %p196
        $region90: #{improved_dr_model_forward.1} parent=63 // pred_check_branch
          %469 = sbr.rel (%p467) target = $region92
        $region91: #{improved_dr_model_forward.1} parent=63 // pred_region
          %470 = dma.done [#allocation11], 32768
        $region92: #{improved_dr_model_forward.1} parent=63 // pred_fallthru
          _
        // Predicated region
        $region93: #{improved_dr_model_forward.1} parent=63 // pred_check
          %p471 = pneg %p217
        $region94: #{improved_dr_model_forward.1} parent=63 // pred_check_branch
          %473 = sbr.rel (%p471) target = $region96
        $region95: #{improved_dr_model_forward.1} parent=63 // pred_region
          %474 = dma.done [#allocation14], 64
        $region96: #{improved_dr_model_forward.1} parent=63 // pred_fallthru
          _
        // Predicated region
        $region97: #{improved_dr_model_forward.1} parent=63 // pred_check
          %p475 = pneg %p238
        $region98: #{improved_dr_model_forward.1} parent=63 // pred_check_branch
          %477 = sbr.rel (%p475) target = $region100
        $region99: #{improved_dr_model_forward.1} parent=63 // pred_region
          %478 = dma.done [#allocation14], 4096
        $region100: #{improved_dr_model_forward.1} parent=63 // pred_fallthru
          _
        // Predicated region
        $region101: #{improved_dr_model_forward.1} parent=63 // pred_check
          %p479 = pneg %p259
        $region102: #{improved_dr_model_forward.1} parent=63 // pred_check_branch
          %481 = sbr.rel (%p479) target = $region104
        $region103: #{improved_dr_model_forward.1} parent=63 // pred_region
          %482 = dma.done [#allocation17], 16
        $region104: #{improved_dr_model_forward.1} parent=63 // pred_fallthru
          _
        %p483 = scmp.lt.s32.totalorder %s28, 1
        %s484 = scalar_select %p483, %s28, 1
        %s485 = smul.addr %s484, 28
        %s486 = smul.addr %s485, 4
        %s487 = scalar_lea.vmem %s0, %s486
        %p488 = pneg %p49
        %p489 = pneg %p46
        %p490 = pneg %p70
        %p491 = pneg %p67
        %p492 = pneg %p91
        %p493 = pneg %p88
        %p494 = pneg %p112
        %p495 = pneg %p109
        %p496 = pneg %p133
        %p497 = pneg %p130
        %p498 = pneg %p154
        %p499 = pneg %p151
        %p500 = pneg %p175
        %p501 = pneg %p172
        %p502 = pneg %p196
        %p503 = pneg %p193
        %p504 = pneg %p217
        %p505 = pneg %p214
        %p506 = pneg %p238
        %p507 = pneg %p235
        %p508 = pneg %p259
        %p509 = pneg %p256
        %p510 = pneg %p285
        %p511 = pneg %p282
        %p512 = scmp.lt.s32.totalorder %s28, 1
        %s513 = scalar_select %p512, %s28, 1
        %s514 = scalar_lea.vmem %s11, %s513
        %p515 = scmp.lt.s32.totalorder %s28, 1
        %s516 = scalar_select %p515, %s28, 1
        %s517 = smul.addr %s516, 28
        %s518 = smul.addr %s517, 4
        %s519 = scalar_lea.vmem %s0, %s518
        %p520 = scmp.lt.s32.totalorder %s28, 1
        %s521 = scalar_select %p520, %s28, 1
        %s522 = scalar_lea.vmem %s11, %s521
        %v524 = vld [vmem:[%s519] sm:$0xff]
        %v525 = vld [vmem:[%s519 + $0x8] sm:$0xff]
        %v526 = vld [vmem:[%s519 + $0x10] sm:$0xff]
        %v527 = vld [vmem:[%s519 + $0x18] sm:$0xff]
        %v528 = vld [vmem:[%s519 + $0x20] sm:$0xff]
        %v529 = vld [vmem:[%s519 + $0x28] sm:$0xff]
        %v530 = vld [vmem:[%s519 + $0x30] sm:$0xff]
        %v531 = vld [vmem:[%s519 + $0x38] sm:$0xff]
        %v532 = vld [vmem:[%s519 + $0x40] sm:$0xff]
        %v533 = vld [vmem:[%s519 + $0x48] sm:$0xff]
        %v534 = vld [vmem:[%s519 + $0x50] sm:$0xff]
        %v535 = vld [vmem:[%s519 + $0x58] sm:$0xff]
        %v536 = vld [vmem:[%s519 + $0x60] sm:$0xff]
        %v537 = vld [vmem:[%s519 + $0x68] sm:$0xff]
        %v538 = vunpack.c.l.bf16 %v524
        %v539 = vunpack.c.h.bf16 %v524
        %v540 = vunpack.c.l.bf16 %v525
        %v541 = vunpack.c.h.bf16 %v525
        %v542 = vunpack.c.l.bf16 %v526
        %v543 = vunpack.c.h.bf16 %v526
        %v544 = vunpack.c.l.bf16 %v527
        %v545 = vunpack.c.h.bf16 %v527
        %v546 = vunpack.c.l.bf16 %v528
        %v547 = vunpack.c.h.bf16 %v528
        %v548 = vunpack.c.l.bf16 %v529
        %v549 = vunpack.c.h.bf16 %v529
        %v550 = vunpack.c.l.bf16 %v530
        %v551 = vunpack.c.h.bf16 %v530
        %v552 = vunpack.c.l.bf16 %v531
        %v553 = vunpack.c.h.bf16 %v531
        %v554 = vunpack.c.l.bf16 %v532
        %v555 = vunpack.c.h.bf16 %v532
        %v556 = vunpack.c.l.bf16 %v533
        %v557 = vunpack.c.h.bf16 %v533
        %v558 = vunpack.c.l.bf16 %v534
        %v559 = vunpack.c.h.bf16 %v534
        %v560 = vunpack.c.l.bf16 %v535
        %v561 = vunpack.c.h.bf16 %v535
        %v562 = vunpack.c.l.bf16 %v536
        %v563 = vunpack.c.h.bf16 %v536
        %v564 = vunpack.c.l.bf16 %v537
        %v565 = vunpack.c.h.bf16 %v537
        %v566 = vadd.f32 %v538, %v552
        %v567 = vrot.slane %v566, 4
        %v568 = vadd.f32 %v566, %v567
        %v569 = vrot.slane %v568, 2
        %v570 = vadd.f32 %v568, %v569
        %v571 = vrot.slane %v570, 1
        %v572 = vadd.f32 %v570, %v571
        %v573 = vadd.f32 %v539, %v553
        %v574 = vrot.slane %v573, 4
        %v575 = vadd.f32 %v573, %v574
        %v576 = vrot.slane %v575, 2
        %v577 = vadd.f32 %v575, %v576
        %v578 = vrot.slane %v577, 1
        %v579 = vadd.f32 %v577, %v578
        %v580 = vadd.f32 %v540, %v554
        %v581 = vrot.slane %v580, 4
        %v582 = vadd.f32 %v580, %v581
        %v583 = vrot.slane %v582, 2
        %v584 = vadd.f32 %v582, %v583
        %v585 = vrot.slane %v584, 1
        %v586 = vadd.f32 %v584, %v585
        %v587 = vadd.f32 %v541, %v555
        %v588 = vrot.slane %v587, 4
        %v589 = vadd.f32 %v587, %v588
        %v590 = vrot.slane %v589, 2
        %v591 = vadd.f32 %v589, %v590
        %v592 = vrot.slane %v591, 1
        %v593 = vadd.f32 %v591, %v592
        %v594 = vadd.f32 %v542, %v556
        %v595 = vrot.slane %v594, 4
        %v596 = vadd.f32 %v594, %v595
        %v597 = vrot.slane %v596, 2
        %v598 = vadd.f32 %v596, %v597
        %v599 = vrot.slane %v598, 1
        %v600 = vadd.f32 %v598, %v599
        %v601 = vadd.f32 %v543, %v557
        %v602 = vrot.slane %v601, 4
        %v603 = vadd.f32 %v601, %v602
        %v604 = vrot.slane %v603, 2
        %v605 = vadd.f32 %v603, %v604
        %v606 = vrot.slane %v605, 1
        %v607 = vadd.f32 %v605, %v606
        %v608 = vadd.f32 %v544, %v558
        %v609 = vrot.slane %v608, 4
        %v610 = vadd.f32 %v608, %v609
        %v611 = vrot.slane %v610, 2
        %v612 = vadd.f32 %v610, %v611
        %v613 = vrot.slane %v612, 1
        %v614 = vadd.f32 %v612, %v613
        %v615 = vadd.f32 %v545, %v559
        %v616 = vrot.slane %v615, 4
        %v617 = vadd.f32 %v615, %v616
        %v618 = vrot.slane %v617, 2
        %v619 = vadd.f32 %v617, %v618
        %v620 = vrot.slane %v619, 1
        %v621 = vadd.f32 %v619, %v620
        %v622 = vadd.f32 %v546, %v560
        %v623 = vrot.slane %v622, 4
        %v624 = vadd.f32 %v622, %v623
        %v625 = vrot.slane %v624, 2
        %v626 = vadd.f32 %v624, %v625
        %v627 = vrot.slane %v626, 1
        %v628 = vadd.f32 %v626, %v627
        %v629 = vadd.f32 %v547, %v561
        %v630 = vrot.slane %v629, 4
        %v631 = vadd.f32 %v629, %v630
        %v632 = vrot.slane %v631, 2
        %v633 = vadd.f32 %v631, %v632
        %v634 = vrot.slane %v633, 1
        %v635 = vadd.f32 %v633, %v634
        %v636 = vadd.f32 %v548, %v562
        %v637 = vrot.slane %v636, 4
        %v638 = vadd.f32 %v636, %v637
        %v639 = vrot.slane %v638, 2
        %v640 = vadd.f32 %v638, %v639
        %v641 = vrot.slane %v640, 1
        %v642 = vadd.f32 %v640, %v641
        %v643 = vadd.f32 %v549, %v563
        %v644 = vrot.slane %v643, 4
        %v645 = vadd.f32 %v643, %v644
        %v646 = vrot.slane %v645, 2
        %v647 = vadd.f32 %v645, %v646
        %v648 = vrot.slane %v647, 1
        %v649 = vadd.f32 %v647, %v648
        %v650 = vadd.f32 %v550, %v564
        %v651 = vrot.slane %v650, 4
        %v652 = vadd.f32 %v650, %v651
        %v653 = vrot.slane %v652, 2
        %v654 = vadd.f32 %v652, %v653
        %v655 = vrot.slane %v654, 1
        %v656 = vadd.f32 %v654, %v655
        %v657 = vadd.f32 %v551, %v565
        %v658 = vrot.slane %v657, 4
        %v659 = vadd.f32 %v657, %v658
        %v660 = vrot.slane %v659, 2
        %v661 = vadd.f32 %v659, %v660
        %v662 = vrot.slane %v661, 1
        %v663 = vadd.f32 %v661, %v662
        %v664 = vrcp.pop 16.0
        %v665 = vmul.f32 %v572, %v664
        %v666 = vmul.f32 %v579, %v664
        %v667 = vmul.f32 %v586, %v664
        %v668 = vmul.f32 %v593, %v664
        %v669 = vmul.f32 %v600, %v664
        %v670 = vmul.f32 %v607, %v664
        %v671 = vmul.f32 %v614, %v664
        %v672 = vmul.f32 %v621, %v664
        %v673 = vmul.f32 %v628, %v664
        %v674 = vmul.f32 %v635, %v664
        %v675 = vmul.f32 %v642, %v664
        %v676 = vmul.f32 %v649, %v664
        %v677 = vmul.f32 %v656, %v664
        %v678 = vmul.f32 %v663, %v664
        %v693 = vunpack.c.l.b16 %v524
        %v694 = vunpack.c.h.b16 %v524
        %v695 = vunpack.c.l.b16 %v525
        %v696 = vunpack.c.h.b16 %v525
        %v697 = vunpack.c.l.b16 %v526
        %v698 = vunpack.c.h.b16 %v526
        %v699 = vunpack.c.l.b16 %v527
        %v700 = vunpack.c.h.b16 %v527
        %v701 = vunpack.c.l.b16 %v528
        %v702 = vunpack.c.h.b16 %v528
        %v703 = vunpack.c.l.b16 %v529
        %v704 = vunpack.c.h.b16 %v529
        %v705 = vunpack.c.l.b16 %v530
        %v706 = vunpack.c.h.b16 %v530
        %v707 = vunpack.c.l.b16 %v531
        %v708 = vunpack.c.h.b16 %v531
        %v709 = vunpack.c.l.b16 %v532
        %v710 = vunpack.c.h.b16 %v532
        %v711 = vunpack.c.l.b16 %v533
        %v712 = vunpack.c.h.b16 %v533
        %v713 = vunpack.c.l.b16 %v534
        %v714 = vunpack.c.h.b16 %v534
        %v715 = vunpack.c.l.b16 %v535
        %v716 = vunpack.c.h.b16 %v535
        %v717 = vunpack.c.l.b16 %v536
        %v718 = vunpack.c.h.b16 %v536
        %v719 = vunpack.c.l.b16 %v537
        %v720 = vunpack.c.h.b16 %v537
        %v721 = vpack.c.b16 %v707, %v693
        %v722 = vpack.c.b16 %v708, %v694
        %v723 = vpack.c.b16 %v709, %v695
        %v724 = vpack.c.b16 %v710, %v696
        %v725 = vpack.c.b16 %v711, %v697
        %v726 = vpack.c.b16 %v712, %v698
        %v727 = vpack.c.b16 %v713, %v699
        %v728 = vpack.c.b16 %v714, %v700
        %v729 = vpack.c.b16 %v715, %v701
        %v730 = vpack.c.b16 %v716, %v702
        %v731 = vpack.c.b16 %v717, %v703
        %v732 = vpack.c.b16 %v718, %v704
        %v733 = vpack.c.b16 %v719, %v705
        %v734 = vpack.c.b16 %v720, %v706
        %v749 = vunpack.i.l.bf16 %v721
        %v750 = vunpack.i.h.bf16 %v721
        %v751 = vmax.f32 %v749, %v750
        %v752 = vrot.slane %v751, 4
        %v753 = vmax.f32 %v751, %v752
        %v754 = vrot.slane %v753, 2
        %v755 = vmax.f32 %v753, %v754
        %v756 = vrot.slane %v755, 1
        %v757 = vmax.f32 %v755, %v756
        %v758 = vpack.i.bf16 %v757, %v757
        %v759 = vunpack.i.l.bf16 %v722
        %v760 = vunpack.i.h.bf16 %v722
        %v761 = vmax.f32 %v759, %v760
        %v762 = vrot.slane %v761, 4
        %v763 = vmax.f32 %v761, %v762
        %v764 = vrot.slane %v763, 2
        %v765 = vmax.f32 %v763, %v764
        %v766 = vrot.slane %v765, 1
        %v767 = vmax.f32 %v765, %v766
        %v768 = vpack.i.bf16 %v767, %v767
        %v769 = vunpack.i.l.bf16 %v723
        %v770 = vunpack.i.h.bf16 %v723
        %v771 = vmax.f32 %v769, %v770
        %v772 = vrot.slane %v771, 4
        %v773 = vmax.f32 %v771, %v772
        %v774 = vrot.slane %v773, 2
        %v775 = vmax.f32 %v773, %v774
        %v776 = vrot.slane %v775, 1
        %v777 = vmax.f32 %v775, %v776
        %v778 = vpack.i.bf16 %v777, %v777
        %v779 = vunpack.i.l.bf16 %v724
        %v780 = vunpack.i.h.bf16 %v724
        %v781 = vmax.f32 %v779, %v780
        %v782 = vrot.slane %v781, 4
        %v783 = vmax.f32 %v781, %v782
        %v784 = vrot.slane %v783, 2
        %v785 = vmax.f32 %v783, %v784
        %v786 = vrot.slane %v785, 1
        %v787 = vmax.f32 %v785, %v786
        %v788 = vpack.i.bf16 %v787, %v787
        %v789 = vunpack.i.l.bf16 %v725
        %v790 = vunpack.i.h.bf16 %v725
        %v791 = vmax.f32 %v789, %v790
        %v792 = vrot.slane %v791, 4
        %v793 = vmax.f32 %v791, %v792
        %v794 = vrot.slane %v793, 2
        %v795 = vmax.f32 %v793, %v794
        %v796 = vrot.slane %v795, 1
        %v797 = vmax.f32 %v795, %v796
        %v798 = vpack.i.bf16 %v797, %v797
        %v799 = vunpack.i.l.bf16 %v726
        %v800 = vunpack.i.h.bf16 %v726
        %v801 = vmax.f32 %v799, %v800
        %v802 = vrot.slane %v801, 4
        %v803 = vmax.f32 %v801, %v802
        %v804 = vrot.slane %v803, 2
        %v805 = vmax.f32 %v803, %v804
        %v806 = vrot.slane %v805, 1
        %v807 = vmax.f32 %v805, %v806
        %v808 = vpack.i.bf16 %v807, %v807
        %v809 = vunpack.i.l.bf16 %v727
        %v810 = vunpack.i.h.bf16 %v727
        %v811 = vmax.f32 %v809, %v810
        %v812 = vrot.slane %v811, 4
        %v813 = vmax.f32 %v811, %v812
        %v814 = vrot.slane %v813, 2
        %v815 = vmax.f32 %v813, %v814
        %v816 = vrot.slane %v815, 1
        %v817 = vmax.f32 %v815, %v816
        %v818 = vpack.i.bf16 %v817, %v817
        %v819 = vunpack.i.l.bf16 %v728
        %v820 = vunpack.i.h.bf16 %v728
        %v821 = vmax.f32 %v819, %v820
        %v822 = vrot.slane %v821, 4
        %v823 = vmax.f32 %v821, %v822
        %v824 = vrot.slane %v823, 2
        %v825 = vmax.f32 %v823, %v824
        %v826 = vrot.slane %v825, 1
        %v827 = vmax.f32 %v825, %v826
        %v828 = vpack.i.bf16 %v827, %v827
        %v829 = vunpack.i.l.bf16 %v729
        %v830 = vunpack.i.h.bf16 %v729
        %v831 = vmax.f32 %v829, %v830
        %v832 = vrot.slane %v831, 4
        %v833 = vmax.f32 %v831, %v832
        %v834 = vrot.slane %v833, 2
        %v835 = vmax.f32 %v833, %v834
        %v836 = vrot.slane %v835, 1
        %v837 = vmax.f32 %v835, %v836
        %v838 = vpack.i.bf16 %v837, %v837
        %v839 = vunpack.i.l.bf16 %v730
        %v840 = vunpack.i.h.bf16 %v730
        %v841 = vmax.f32 %v839, %v840
        %v842 = vrot.slane %v841, 4
        %v843 = vmax.f32 %v841, %v842
        %v844 = vrot.slane %v843, 2
        %v845 = vmax.f32 %v843, %v844
        %v846 = vrot.slane %v845, 1
        %v847 = vmax.f32 %v845, %v846
        %v848 = vpack.i.bf16 %v847, %v847
        %v849 = vunpack.i.l.bf16 %v731
        %v850 = vunpack.i.h.bf16 %v731
        %v851 = vmax.f32 %v849, %v850
        %v852 = vrot.slane %v851, 4
        %v853 = vmax.f32 %v851, %v852
        %v854 = vrot.slane %v853, 2
        %v855 = vmax.f32 %v853, %v854
        %v856 = vrot.slane %v855, 1
        %v857 = vmax.f32 %v855, %v856
        %v858 = vpack.i.bf16 %v857, %v857
        %v859 = vunpack.i.l.bf16 %v732
        %v860 = vunpack.i.h.bf16 %v732
        %v861 = vmax.f32 %v859, %v860
        %v862 = vrot.slane %v861, 4
        %v863 = vmax.f32 %v861, %v862
        %v864 = vrot.slane %v863, 2
        %v865 = vmax.f32 %v863, %v864
        %v866 = vrot.slane %v865, 1
        %v867 = vmax.f32 %v865, %v866
        %v868 = vpack.i.bf16 %v867, %v867
        %v869 = vunpack.i.l.bf16 %v733
        %v870 = vunpack.i.h.bf16 %v733
        %v871 = vmax.f32 %v869, %v870
        %v872 = vrot.slane %v871, 4
        %v873 = vmax.f32 %v871, %v872
        %v874 = vrot.slane %v873, 2
        %v875 = vmax.f32 %v873, %v874
        %v876 = vrot.slane %v875, 1
        %v877 = vmax.f32 %v875, %v876
        %v878 = vpack.i.bf16 %v877, %v877
        %v879 = vunpack.i.l.bf16 %v734
        %v880 = vunpack.i.h.bf16 %v734
        %v881 = vmax.f32 %v879, %v880
        %v882 = vrot.slane %v881, 4
        %v883 = vmax.f32 %v881, %v882
        %v884 = vrot.slane %v883, 2
        %v885 = vmax.f32 %v883, %v884
        %v886 = vrot.slane %v885, 1
        %v887 = vmax.f32 %v885, %v886
        %v888 = vpack.i.bf16 %v887, %v887
        %v889 = vunpack.c.l.bf16 %v758
        %v890 = vunpack.c.l.bf16 %v768
        %v891 = vunpack.c.l.bf16 %v778
        %v892 = vunpack.c.l.bf16 %v788
        %v893 = vunpack.c.l.bf16 %v798
        %v894 = vunpack.c.l.bf16 %v808
        %v895 = vunpack.c.l.bf16 %v818
        %v896 = vunpack.c.l.bf16 %v828
        %v897 = vunpack.c.l.bf16 %v838
        %v898 = vunpack.c.l.bf16 %v848
        %v899 = vunpack.c.l.bf16 %v858
        %v900 = vunpack.c.l.bf16 %v868
        %v901 = vunpack.c.l.bf16 %v878
        %v902 = vunpack.c.l.bf16 %v888
        %vm903 = vcmask 1040384
        %v904 = vsel %vm903, %v665, %v889
        %v905 = vsel %vm903, %v666, %v890
        %v906 = vsel %vm903, %v667, %v891
        %v907 = vsel %vm903, %v668, %v892
        %v908 = vsel %vm903, %v669, %v893
        %v909 = vsel %vm903, %v670, %v894
        %v910 = vsel %vm903, %v671, %v895
        %v911 = vsel %vm903, %v672, %v896
        %v912 = vsel %vm903, %v673, %v897
        %v913 = vsel %vm903, %v674, %v898
        %v914 = vsel %vm903, %v675, %v899
        %v915 = vsel %vm903, %v676, %v900
        %v916 = vsel %vm903, %v677, %v901
        %v917 = vsel %vm903, %v678, %v902
        %v918 = vpack.c.bf16 %v904, %v904
        %v919 = vpack.c.bf16 %v905, %v905
        %v920 = vpack.c.bf16 %v906, %v906
        %v921 = vpack.c.bf16 %v907, %v907
        %v922 = vpack.c.bf16 %v908, %v908
        %v923 = vpack.c.bf16 %v909, %v909
        %v924 = vpack.c.bf16 %v910, %v910
        %v925 = vpack.c.bf16 %v911, %v911
        %v926 = vpack.c.bf16 %v912, %v912
        %v927 = vpack.c.bf16 %v913, %v913
        %v928 = vpack.c.bf16 %v914, %v914
        %v929 = vpack.c.bf16 %v915, %v915
        %v930 = vpack.c.bf16 %v916, %v916
        %v931 = vpack.c.bf16 %v917, %v917
        %v932 = vld [vmem:[#allocation2] sm:$0xf]
        %v933 = vld [vmem:[#allocation2 + $0x4] sm:$0xf]
        %v934 = vld [vmem:[#allocation2 + $0x8] sm:$0xf]
        %v935 = vld [vmem:[#allocation2 + $0xc] sm:$0xf]
        %v936 = vld [vmem:[#allocation2 + $0x10] sm:$0xf]
        %v937 = vld [vmem:[#allocation2 + $0x14] sm:$0xf]
        %v938 = vld [vmem:[#allocation2 + $0x18] sm:$0xf]
        %v939 = vld [vmem:[#allocation2 + $0x1c] sm:$0xf]
        %v940 = vld [vmem:[#allocation2 + $0x20] sm:$0xf]
        %v941 = vld [vmem:[#allocation2 + $0x24] sm:$0xf]
        %v942 = vld [vmem:[#allocation2 + $0x28] sm:$0xf]
        %v943 = vld [vmem:[#allocation2 + $0x2c] sm:$0xf]
        %v944 = vld [vmem:[#allocation2 + $0x30] sm:$0xf]
        %v945 = vld [vmem:[#allocation2 + $0x34] sm:$0xf]
        %v946 = vld [vmem:[#allocation2 + $0x38] sm:$0xf]
        %v947 = vld [vmem:[#allocation2 + $0x3c] sm:$0xf]
        %v948 = vld [vmem:[#allocation2 + $0x40] sm:$0xf]
        %v949 = vld [vmem:[#allocation2 + $0x44] sm:$0xf]
        %v950 = vld [vmem:[#allocation2 + $0x48] sm:$0xf]
        %v951 = vld [vmem:[#allocation2 + $0x4c] sm:$0xf]
        %v952 = vld [vmem:[#allocation2 + $0x50] sm:$0xf]
        %v953 = vld [vmem:[#allocation2 + $0x54] sm:$0xf]
        %v954 = vld [vmem:[#allocation2 + $0x58] sm:$0xf]
        %v955 = vld [vmem:[#allocation2 + $0x5c] sm:$0xf]
        %v956 = vld [vmem:[#allocation2 + $0x60] sm:$0xf]
        %v957 = vld [vmem:[#allocation2 + $0x64] sm:$0xf]
        %v958 = vld [vmem:[#allocation2 + $0x68] sm:$0xf]
        %v959 = vld [vmem:[#allocation2 + $0x6c] sm:$0xf]
        %v960 = vld [vmem:[#allocation2 + $0x70] sm:$0xf]
        %v961 = vld [vmem:[#allocation2 + $0x74] sm:$0xf]
        %v962 = vld [vmem:[#allocation2 + $0x78] sm:$0xf]
        %v963 = vld [vmem:[#allocation2 + $0x7c] sm:$0xf]
        %v964 = vld [vmem:[#allocation2 + $0x80] sm:$0xf]
        %v965 = vld [vmem:[#allocation2 + $0x84] sm:$0xf]
        %v966 = vld [vmem:[#allocation2 + $0x88] sm:$0xf]
        %v967 = vld [vmem:[#allocation2 + $0x8c] sm:$0xf]
        %v968 = vld [vmem:[#allocation2 + $0x90] sm:$0xf]
        %v969 = vld [vmem:[#allocation2 + $0x94] sm:$0xf]
        %v970 = vld [vmem:[#allocation2 + $0x98] sm:$0xf]
        %v971 = vld [vmem:[#allocation2 + $0x9c] sm:$0xf]
        %v972 = vld [vmem:[#allocation2 + $0xa0] sm:$0xf]
        %v973 = vld [vmem:[#allocation2 + $0xa4] sm:$0xf]
        %v974 = vld [vmem:[#allocation2 + $0xa8] sm:$0xf]
        %v975 = vld [vmem:[#allocation2 + $0xac] sm:$0xf]
        %v976 = vld [vmem:[#allocation2 + $0xb0] sm:$0xf]
        %v977 = vld [vmem:[#allocation2 + $0xb4] sm:$0xf]
        %v978 = vld [vmem:[#allocation2 + $0xb8] sm:$0xf]
        %v979 = vld [vmem:[#allocation2 + $0xbc] sm:$0xf]
        %v980 = vld [vmem:[#allocation2 + $0xc0] sm:$0xf]
        %v981 = vld [vmem:[#allocation2 + $0xc4] sm:$0xf]
        %v982 = vld [vmem:[#allocation2 + $0xc8] sm:$0xf]
        %v983 = vld [vmem:[#allocation2 + $0xcc] sm:$0xf]
        %v984 = vld [vmem:[#allocation2 + $0xd0] sm:$0xf]
        %v985 = vld [vmem:[#allocation2 + $0xd4] sm:$0xf]
        %v986 = vld [vmem:[#allocation2 + $0xd8] sm:$0xf]
        %v987 = vld [vmem:[#allocation2 + $0xdc] sm:$0xf]
        %v988 = vld [vmem:[#allocation2 + $0xe0] sm:$0xf]
        %v989 = vld [vmem:[#allocation2 + $0xe4] sm:$0xf]
        %v990 = vld [vmem:[#allocation2 + $0xe8] sm:$0xf]
        %v991 = vld [vmem:[#allocation2 + $0xec] sm:$0xf]
        %v992 = vld [vmem:[#allocation2 + $0xf0] sm:$0xf]
        %v993 = vld [vmem:[#allocation2 + $0xf4] sm:$0xf]
        %v994 = vld [vmem:[#allocation2 + $0xf8] sm:$0xf]
        %v995 = vld [vmem:[#allocation2 + $0xfc] sm:$0xf]
        %v996 = vld [vmem:[#allocation2 + $0x100] sm:$0xf]
        %v997 = vld [vmem:[#allocation2 + $0x104] sm:$0xf]
        %v998 = vld [vmem:[#allocation2 + $0x108] sm:$0xf]
        %v999 = vld [vmem:[#allocation2 + $0x10c] sm:$0xf]
        %v1000 = vld [vmem:[#allocation2 + $0x110] sm:$0xf]
        %v1001 = vld [vmem:[#allocation2 + $0x114] sm:$0xf]
        %v1002 = vld [vmem:[#allocation2 + $0x118] sm:$0xf]
        %v1003 = vld [vmem:[#allocation2 + $0x11c] sm:$0xf]
        %v1004 = vld [vmem:[#allocation2 + $0x120] sm:$0xf]
        %v1005 = vld [vmem:[#allocation2 + $0x124] sm:$0xf]
        %v1006 = vld [vmem:[#allocation2 + $0x128] sm:$0xf]
        %v1007 = vld [vmem:[#allocation2 + $0x12c] sm:$0xf]
        %v1008 = vld [vmem:[#allocation2 + $0x130] sm:$0xf]
        %v1009 = vld [vmem:[#allocation2 + $0x134] sm:$0xf]
        %v1010 = vld [vmem:[#allocation2 + $0x138] sm:$0xf]
        %v1011 = vld [vmem:[#allocation2 + $0x13c] sm:$0xf]
        %v1012 = vld [vmem:[#allocation2 + $0x140] sm:$0xf]
        %v1013 = vld [vmem:[#allocation2 + $0x144] sm:$0xf]
        %v1014 = vld [vmem:[#allocation2 + $0x148] sm:$0xf]
        %v1015 = vld [vmem:[#allocation2 + $0x14c] sm:$0xf]
        %v1016 = vld [vmem:[#allocation2 + $0x150] sm:$0xf]
        %v1017 = vld [vmem:[#allocation2 + $0x154] sm:$0xf]
        %v1018 = vld [vmem:[#allocation2 + $0x158] sm:$0xf]
        %v1019 = vld [vmem:[#allocation2 + $0x15c] sm:$0xf]
        %v1020 = vld [vmem:[#allocation2 + $0x160] sm:$0xf]
        %v1021 = vld [vmem:[#allocation2 + $0x164] sm:$0xf]
        %v1022 = vld [vmem:[#allocation2 + $0x168] sm:$0xf]
        %v1023 = vld [vmem:[#allocation2 + $0x16c] sm:$0xf]
        %v1024 = vld [vmem:[#allocation2 + $0x170] sm:$0xf]
        %v1025 = vld [vmem:[#allocation2 + $0x174] sm:$0xf]
        %v1026 = vld [vmem:[#allocation2 + $0x178] sm:$0xf]
        %v1027 = vld [vmem:[#allocation2 + $0x17c] sm:$0xf]
        %v1028 = vld [vmem:[#allocation2 + $0x180] sm:$0xf]
        %v1029 = vld [vmem:[#allocation2 + $0x184] sm:$0xf]
        %v1030 = vld [vmem:[#allocation2 + $0x188] sm:$0xf]
        %v1031 = vld [vmem:[#allocation2 + $0x18c] sm:$0xf]
        %v1032 = vld [vmem:[#allocation2 + $0x190] sm:$0xf]
        %v1033 = vld [vmem:[#allocation2 + $0x194] sm:$0xf]
        %v1034 = vld [vmem:[#allocation2 + $0x198] sm:$0xf]
        %v1035 = vld [vmem:[#allocation2 + $0x19c] sm:$0xf]
        %v1036 = vld [vmem:[#allocation2 + $0x1a0] sm:$0xf]
        %v1037 = vld [vmem:[#allocation2 + $0x1a4] sm:$0xf]
        %v1038 = vld [vmem:[#allocation2 + $0x1a8] sm:$0xf]
        %v1039 = vld [vmem:[#allocation2 + $0x1ac] sm:$0xf]
        %v1040 = vld [vmem:[#allocation2 + $0x1b0] sm:$0xf]
        %v1041 = vld [vmem:[#allocation2 + $0x1b4] sm:$0xf]
        %v1042 = vld [vmem:[#allocation2 + $0x1b8] sm:$0xf]
        %v1043 = vld [vmem:[#allocation2 + $0x1bc] sm:$0xf]
        %v1044 = vld [vmem:[#allocation2 + $0x1c0] sm:$0xf]
        %v1045 = vld [vmem:[#allocation2 + $0x1c4] sm:$0xf]
        %v1046 = vld [vmem:[#allocation2 + $0x1c8] sm:$0xf]
        %v1047 = vld [vmem:[#allocation2 + $0x1cc] sm:$0xf]
        %v1048 = vld [vmem:[#allocation2 + $0x1d0] sm:$0xf]
        %v1049 = vld [vmem:[#allocation2 + $0x1d4] sm:$0xf]
        %v1050 = vld [vmem:[#allocation2 + $0x1d8] sm:$0xf]
        %v1051 = vld [vmem:[#allocation2 + $0x1dc] sm:$0xf]
        %v1052 = vld [vmem:[#allocation2 + $0x1e0] sm:$0xf]
        %v1053 = vld [vmem:[#allocation2 + $0x1e4] sm:$0xf]
        %v1054 = vld [vmem:[#allocation2 + $0x1e8] sm:$0xf]
        %v1055 = vld [vmem:[#allocation2 + $0x1ec] sm:$0xf]
        %v1056 = vld [vmem:[#allocation2 + $0x1f0] sm:$0xf]
        %v1057 = vld [vmem:[#allocation2 + $0x1f4] sm:$0xf]
        %v1058 = vld [vmem:[#allocation2 + $0x1f8] sm:$0xf]
        %v1059 = vld [vmem:[#allocation2 + $0x1fc] sm:$0xf]
        %v1060 = vld [vmem:[#allocation2 + $0x200] sm:$0xf]
        %v1061 = vld [vmem:[#allocation2 + $0x204] sm:$0xf]
        %v1062 = vld [vmem:[#allocation2 + $0x208] sm:$0xf]
        %v1063 = vld [vmem:[#allocation2 + $0x20c] sm:$0xf]
        %v1064 = vld [vmem:[#allocation2 + $0x210] sm:$0xf]
        %v1065 = vld [vmem:[#allocation2 + $0x214] sm:$0xf]
        %v1066 = vld [vmem:[#allocation2 + $0x218] sm:$0xf]
        %v1067 = vld [vmem:[#allocation2 + $0x21c] sm:$0xf]
        %v1068 = vld [vmem:[#allocation2 + $0x220] sm:$0xf]
        %v1069 = vld [vmem:[#allocation2 + $0x224] sm:$0xf]
        %v1070 = vld [vmem:[#allocation2 + $0x228] sm:$0xf]
        %v1071 = vld [vmem:[#allocation2 + $0x22c] sm:$0xf]
        %v1072 = vld [vmem:[#allocation2 + $0x230] sm:$0xf]
        %v1073 = vld [vmem:[#allocation2 + $0x234] sm:$0xf]
        %v1074 = vld [vmem:[#allocation2 + $0x238] sm:$0xf]
        %v1075 = vld [vmem:[#allocation2 + $0x23c] sm:$0xf]
        %v1076 = vld [vmem:[#allocation2 + $0x240] sm:$0xf]
        %v1077 = vld [vmem:[#allocation2 + $0x244] sm:$0xf]
        %v1078 = vld [vmem:[#allocation2 + $0x248] sm:$0xf]
        %v1079 = vld [vmem:[#allocation2 + $0x24c] sm:$0xf]
        %v1080 = vld [vmem:[#allocation2 + $0x250] sm:$0xf]
        %v1081 = vld [vmem:[#allocation2 + $0x254] sm:$0xf]
        %v1082 = vld [vmem:[#allocation2 + $0x258] sm:$0xf]
        %v1083 = vld [vmem:[#allocation2 + $0x25c] sm:$0xf]
        %v1084 = vld [vmem:[#allocation2 + $0x260] sm:$0xf]
        %v1085 = vld [vmem:[#allocation2 + $0x264] sm:$0xf]
        %v1086 = vld [vmem:[#allocation2 + $0x268] sm:$0xf]
        %v1087 = vld [vmem:[#allocation2 + $0x26c] sm:$0xf]
        %v1088 = vld [vmem:[#allocation2 + $0x270] sm:$0xf]
        %v1089 = vld [vmem:[#allocation2 + $0x274] sm:$0xf]
        %v1090 = vld [vmem:[#allocation2 + $0x278] sm:$0xf]
        %v1091 = vld [vmem:[#allocation2 + $0x27c] sm:$0xf]
        %v1092 = vld [vmem:[#allocation2 + $0x280] sm:$0xf]
        %v1093 = vld [vmem:[#allocation2 + $0x284] sm:$0xf]
        %v1094 = vld [vmem:[#allocation2 + $0x288] sm:$0xf]
        %v1095 = vld [vmem:[#allocation2 + $0x28c] sm:$0xf]
        %v1096 = vld [vmem:[#allocation2 + $0x290] sm:$0xf]
        %v1097 = vld [vmem:[#allocation2 + $0x294] sm:$0xf]
        %v1098 = vld [vmem:[#allocation2 + $0x298] sm:$0xf]
        %v1099 = vld [vmem:[#allocation2 + $0x29c] sm:$0xf]
        %v1100 = vld [vmem:[#allocation2 + $0x2a0] sm:$0xf]
        %v1101 = vld [vmem:[#allocation2 + $0x2a4] sm:$0xf]
        %v1102 = vld [vmem:[#allocation2 + $0x2a8] sm:$0xf]
        %v1103 = vld [vmem:[#allocation2 + $0x2ac] sm:$0xf]
        %v1104 = vld [vmem:[#allocation2 + $0x2b0] sm:$0xf]
        %v1105 = vld [vmem:[#allocation2 + $0x2b4] sm:$0xf]
        %v1106 = vld [vmem:[#allocation2 + $0x2b8] sm:$0xf]
        %v1107 = vld [vmem:[#allocation2 + $0x2bc] sm:$0xf]
        %v1108 = vld [vmem:[#allocation2 + $0x2c0] sm:$0xf]
        %v1109 = vld [vmem:[#allocation2 + $0x2c4] sm:$0xf]
        %v1110 = vld [vmem:[#allocation2 + $0x2c8] sm:$0xf]
        %v1111 = vld [vmem:[#allocation2 + $0x2cc] sm:$0xf]
        %v1112 = vld [vmem:[#allocation2 + $0x2d0] sm:$0xf]
        %v1113 = vld [vmem:[#allocation2 + $0x2d4] sm:$0xf]
        %v1114 = vld [vmem:[#allocation2 + $0x2d8] sm:$0xf]
        %v1115 = vld [vmem:[#allocation2 + $0x2dc] sm:$0xf]
        %v1116 = vld [vmem:[#allocation2 + $0x2e0] sm:$0xf]
        %v1117 = vld [vmem:[#allocation2 + $0x2e4] sm:$0xf]
        %v1118 = vld [vmem:[#allocation2 + $0x2e8] sm:$0xf]
        %v1119 = vld [vmem:[#allocation2 + $0x2ec] sm:$0xf]
        %v1120 = vld [vmem:[#allocation2 + $0x2f0] sm:$0xf]
        %v1121 = vld [vmem:[#allocation2 + $0x2f4] sm:$0xf]
        %v1122 = vld [vmem:[#allocation2 + $0x2f8] sm:$0xf]
        %v1123 = vld [vmem:[#allocation2 + $0x2fc] sm:$0xf]
        %v1124 = vld [vmem:[#allocation2 + $0x300] sm:$0xf]
        %v1125 = vld [vmem:[#allocation2 + $0x304] sm:$0xf]
        %v1126 = vld [vmem:[#allocation2 + $0x308] sm:$0xf]
        %v1127 = vld [vmem:[#allocation2 + $0x30c] sm:$0xf]
        %v1128 = vld [vmem:[#allocation2 + $0x310] sm:$0xf]
        %v1129 = vld [vmem:[#allocation2 + $0x314] sm:$0xf]
        %v1130 = vld [vmem:[#allocation2 + $0x318] sm:$0xf]
        %v1131 = vld [vmem:[#allocation2 + $0x31c] sm:$0xf]
        %v1132 = vld [vmem:[#allocation2 + $0x320] sm:$0xf]
        %v1133 = vld [vmem:[#allocation2 + $0x324] sm:$0xf]
        %v1134 = vld [vmem:[#allocation2 + $0x328] sm:$0xf]
        %v1135 = vld [vmem:[#allocation2 + $0x32c] sm:$0xf]
        %v1136 = vld [vmem:[#allocation2 + $0x330] sm:$0xf]
        %v1137 = vld [vmem:[#allocation2 + $0x334] sm:$0xf]
        %v1138 = vld [vmem:[#allocation2 + $0x338] sm:$0xf]
        %v1139 = vld [vmem:[#allocation2 + $0x33c] sm:$0xf]
        %v1140 = vld [vmem:[#allocation2 + $0x340] sm:$0xf]
        %v1141 = vld [vmem:[#allocation2 + $0x344] sm:$0xf]
        %v1142 = vld [vmem:[#allocation2 + $0x348] sm:$0xf]
        %v1143 = vld [vmem:[#allocation2 + $0x34c] sm:$0xf]
        %v1144 = vld [vmem:[#allocation2 + $0x350] sm:$0xf]
        %v1145 = vld [vmem:[#allocation2 + $0x354] sm:$0xf]
        %v1146 = vld [vmem:[#allocation2 + $0x358] sm:$0xf]
        %v1147 = vld [vmem:[#allocation2 + $0x35c] sm:$0xf]
        %v1148 = vld [vmem:[#allocation2 + $0x360] sm:$0xf]
        %v1149 = vld [vmem:[#allocation2 + $0x364] sm:$0xf]
        %v1150 = vld [vmem:[#allocation2 + $0x368] sm:$0xf]
        %v1151 = vld [vmem:[#allocation2 + $0x36c] sm:$0xf]
        %v1152 = vld [vmem:[#allocation2 + $0x370] sm:$0xf]
        %v1153 = vld [vmem:[#allocation2 + $0x374] sm:$0xf]
        %v1154 = vld [vmem:[#allocation2 + $0x378] sm:$0xf]
        %v1155 = vld [vmem:[#allocation2 + $0x37c] sm:$0xf]
        %v1380 = vunpack.c.l.b16 %v932
        %v1381 = vunpack.c.l.b16 %v933
        %v1382 = vunpack.c.l.b16 %v934
        %v1383 = vunpack.c.l.b16 %v935
        %v1384 = vunpack.c.l.b16 %v936
        %v1385 = vunpack.c.l.b16 %v937
        %v1386 = vunpack.c.l.b16 %v938
        %v1387 = vunpack.c.l.b16 %v939
        %v1388 = vunpack.c.l.b16 %v940
        %v1389 = vunpack.c.l.b16 %v941
        %v1390 = vunpack.c.l.b16 %v942
        %v1391 = vunpack.c.l.b16 %v943
        %v1392 = vunpack.c.l.b16 %v944
        %v1393 = vunpack.c.l.b16 %v945
        %v1394 = vunpack.c.l.b16 %v946
        %v1395 = vunpack.c.l.b16 %v947
        %v1396 = vunpack.c.l.b16 %v948
        %v1397 = vunpack.c.l.b16 %v949
        %v1398 = vunpack.c.l.b16 %v950
        %v1399 = vunpack.c.l.b16 %v951
        %v1400 = vunpack.c.l.b16 %v952
        %v1401 = vunpack.c.l.b16 %v953
        %v1402 = vunpack.c.l.b16 %v954
        %v1403 = vunpack.c.l.b16 %v955
        %v1404 = vunpack.c.l.b16 %v956
        %v1405 = vunpack.c.l.b16 %v957
        %v1406 = vunpack.c.l.b16 %v958
        %v1407 = vunpack.c.l.b16 %v959
        %v1408 = vunpack.c.l.b16 %v960
        %v1409 = vunpack.c.l.b16 %v961
        %v1410 = vunpack.c.l.b16 %v962
        %v1411 = vunpack.c.l.b16 %v963
        %v1412 = vunpack.c.l.b16 %v964
        %v1413 = vunpack.c.l.b16 %v965
        %v1414 = vunpack.c.l.b16 %v966
        %v1415 = vunpack.c.l.b16 %v967
        %v1416 = vunpack.c.l.b16 %v968
        %v1417 = vunpack.c.l.b16 %v969
        %v1418 = vunpack.c.l.b16 %v970
        %v1419 = vunpack.c.l.b16 %v971
        %v1420 = vunpack.c.l.b16 %v972
        %v1421 = vunpack.c.l.b16 %v973
        %v1422 = vunpack.c.l.b16 %v974
        %v1423 = vunpack.c.l.b16 %v975
        %v1424 = vunpack.c.l.b16 %v976
        %v1425 = vunpack.c.l.b16 %v977
        %v1426 = vunpack.c.l.b16 %v978
        %v1427 = vunpack.c.l.b16 %v979
        %v1428 = vunpack.c.l.b16 %v980
        %v1429 = vunpack.c.l.b16 %v981
        %v1430 = vunpack.c.l.b16 %v982
        %v1431 = vunpack.c.l.b16 %v983
        %v1432 = vunpack.c.l.b16 %v984
        %v1433 = vunpack.c.l.b16 %v985
        %v1434 = vunpack.c.l.b16 %v986
        %v1435 = vunpack.c.l.b16 %v987
        %v1436 = vunpack.c.l.b16 %v988
        %v1437 = vunpack.c.l.b16 %v989
        %v1438 = vunpack.c.l.b16 %v990
        %v1439 = vunpack.c.l.b16 %v991
        %v1440 = vunpack.c.l.b16 %v992
        %v1441 = vunpack.c.l.b16 %v993
        %v1442 = vunpack.c.l.b16 %v994
        %v1443 = vunpack.c.l.b16 %v995
        %v1444 = vunpack.c.l.b16 %v996
        %v1445 = vunpack.c.l.b16 %v997
        %v1446 = vunpack.c.l.b16 %v998
        %v1447 = vunpack.c.l.b16 %v999
        %v1448 = vunpack.c.l.b16 %v1000
        %v1449 = vunpack.c.l.b16 %v1001
        %v1450 = vunpack.c.l.b16 %v1002
        %v1451 = vunpack.c.l.b16 %v1003
        %v1452 = vunpack.c.l.b16 %v1004
        %v1453 = vunpack.c.l.b16 %v1005
        %v1454 = vunpack.c.l.b16 %v1006
        %v1455 = vunpack.c.l.b16 %v1007
        %v1456 = vunpack.c.l.b16 %v1008
        %v1457 = vunpack.c.l.b16 %v1009
        %v1458 = vunpack.c.l.b16 %v1010
        %v1459 = vunpack.c.l.b16 %v1011
        %v1460 = vunpack.c.l.b16 %v1012
        %v1461 = vunpack.c.l.b16 %v1013
        %v1462 = vunpack.c.l.b16 %v1014
        %v1463 = vunpack.c.l.b16 %v1015
        %v1464 = vunpack.c.l.b16 %v1016
        %v1465 = vunpack.c.l.b16 %v1017
        %v1466 = vunpack.c.l.b16 %v1018
        %v1467 = vunpack.c.l.b16 %v1019
        %v1468 = vunpack.c.l.b16 %v1020
        %v1469 = vunpack.c.l.b16 %v1021
        %v1470 = vunpack.c.l.b16 %v1022
        %v1471 = vunpack.c.l.b16 %v1023
        %v1472 = vunpack.c.l.b16 %v1024
        %v1473 = vunpack.c.l.b16 %v1025
        %v1474 = vunpack.c.l.b16 %v1026
        %v1475 = vunpack.c.l.b16 %v1027
        %v1476 = vunpack.c.l.b16 %v1028
        %v1477 = vunpack.c.l.b16 %v1029
        %v1478 = vunpack.c.l.b16 %v1030
        %v1479 = vunpack.c.l.b16 %v1031
        %v1480 = vunpack.c.l.b16 %v1032
        %v1481 = vunpack.c.l.b16 %v1033
        %v1482 = vunpack.c.l.b16 %v1034
        %v1483 = vunpack.c.l.b16 %v1035
        %v1484 = vunpack.c.l.b16 %v1036
        %v1485 = vunpack.c.l.b16 %v1037
        %v1486 = vunpack.c.l.b16 %v1038
        %v1487 = vunpack.c.l.b16 %v1039
        %v1488 = vunpack.c.l.b16 %v1040
        %v1489 = vunpack.c.l.b16 %v1041
        %v1490 = vunpack.c.l.b16 %v1042
        %v1491 = vunpack.c.l.b16 %v1043
        %v1492 = vunpack.c.l.b16 %v1044
        %v1493 = vunpack.c.l.b16 %v1045
        %v1494 = vunpack.c.l.b16 %v1046
        %v1495 = vunpack.c.l.b16 %v1047
        %v1496 = vunpack.c.l.b16 %v1048
        %v1497 = vunpack.c.l.b16 %v1049
        %v1498 = vunpack.c.l.b16 %v1050
        %v1499 = vunpack.c.l.b16 %v1051
        %v1500 = vunpack.c.l.b16 %v1052
        %v1501 = vunpack.c.l.b16 %v1053
        %v1502 = vunpack.c.l.b16 %v1054
        %v1503 = vunpack.c.l.b16 %v1055
        %v1504 = vunpack.c.l.b16 %v1056
        %v1505 = vunpack.c.l.b16 %v1057
        %v1506 = vunpack.c.l.b16 %v1058
        %v1507 = vunpack.c.l.b16 %v1059
        %v1508 = vunpack.c.l.b16 %v1060
        %v1509 = vunpack.c.l.b16 %v1061
        %v1510 = vunpack.c.l.b16 %v1062
        %v1511 = vunpack.c.l.b16 %v1063
        %v1512 = vunpack.c.l.b16 %v1064
        %v1513 = vunpack.c.l.b16 %v1065
        %v1514 = vunpack.c.l.b16 %v1066
        %v1515 = vunpack.c.l.b16 %v1067
        %v1516 = vunpack.c.l.b16 %v1068
        %v1517 = vunpack.c.l.b16 %v1069
        %v1518 = vunpack.c.l.b16 %v1070
        %v1519 = vunpack.c.l.b16 %v1071
        %v1520 = vunpack.c.l.b16 %v1072
        %v1521 = vunpack.c.l.b16 %v1073
        %v1522 = vunpack.c.l.b16 %v1074
        %v1523 = vunpack.c.l.b16 %v1075
        %v1524 = vunpack.c.l.b16 %v1076
        %v1525 = vunpack.c.l.b16 %v1077
        %v1526 = vunpack.c.l.b16 %v1078
        %v1527 = vunpack.c.l.b16 %v1079
        %v1528 = vunpack.c.l.b16 %v1080
        %v1529 = vunpack.c.l.b16 %v1081
        %v1530 = vunpack.c.l.b16 %v1082
        %v1531 = vunpack.c.l.b16 %v1083
        %v1532 = vunpack.c.l.b16 %v1084
        %v1533 = vunpack.c.l.b16 %v1085
        %v1534 = vunpack.c.l.b16 %v1086
        %v1535 = vunpack.c.l.b16 %v1087
        %v1536 = vunpack.c.l.b16 %v1088
        %v1537 = vunpack.c.l.b16 %v1089
        %v1538 = vunpack.c.l.b16 %v1090
        %v1539 = vunpack.c.l.b16 %v1091
        %v1540 = vunpack.c.l.b16 %v1092
        %v1541 = vunpack.c.l.b16 %v1093
        %v1542 = vunpack.c.l.b16 %v1094
        %v1543 = vunpack.c.l.b16 %v1095
        %v1544 = vunpack.c.l.b16 %v1096
        %v1545 = vunpack.c.l.b16 %v1097
        %v1546 = vunpack.c.l.b16 %v1098
        %v1547 = vunpack.c.l.b16 %v1099
        %v1548 = vunpack.c.l.b16 %v1100
        %v1549 = vunpack.c.l.b16 %v1101
        %v1550 = vunpack.c.l.b16 %v1102
        %v1551 = vunpack.c.l.b16 %v1103
        %v1552 = vunpack.c.l.b16 %v1104
        %v1553 = vunpack.c.l.b16 %v1105
        %v1554 = vunpack.c.l.b16 %v1106
        %v1555 = vunpack.c.l.b16 %v1107
        %v1556 = vunpack.c.l.b16 %v1108
        %v1557 = vunpack.c.l.b16 %v1109
        %v1558 = vunpack.c.l.b16 %v1110
        %v1559 = vunpack.c.l.b16 %v1111
        %v1560 = vunpack.c.l.b16 %v1112
        %v1561 = vunpack.c.l.b16 %v1113
        %v1562 = vunpack.c.l.b16 %v1114
        %v1563 = vunpack.c.l.b16 %v1115
        %v1564 = vunpack.c.l.b16 %v1116
        %v1565 = vunpack.c.l.b16 %v1117
        %v1566 = vunpack.c.l.b16 %v1118
        %v1567 = vunpack.c.l.b16 %v1119
        %v1568 = vunpack.c.l.b16 %v1120
        %v1569 = vunpack.c.l.b16 %v1121
        %v1570 = vunpack.c.l.b16 %v1122
        %v1571 = vunpack.c.l.b16 %v1123
        %v1572 = vunpack.c.l.b16 %v1124
        %v1573 = vunpack.c.l.b16 %v1125
        %v1574 = vunpack.c.l.b16 %v1126
        %v1575 = vunpack.c.l.b16 %v1127
        %v1576 = vunpack.c.l.b16 %v1128
        %v1577 = vunpack.c.l.b16 %v1129
        %v1578 = vunpack.c.l.b16 %v1130
        %v1579 = vunpack.c.l.b16 %v1131
        %v1580 = vunpack.c.l.b16 %v1132
        %v1581 = vunpack.c.l.b16 %v1133
        %v1582 = vunpack.c.l.b16 %v1134
        %v1583 = vunpack.c.l.b16 %v1135
        %v1584 = vunpack.c.l.b16 %v1136
        %v1585 = vunpack.c.l.b16 %v1137
        %v1586 = vunpack.c.l.b16 %v1138
        %v1587 = vunpack.c.l.b16 %v1139
        %v1588 = vunpack.c.l.b16 %v1140
        %v1589 = vunpack.c.l.b16 %v1141
        %v1590 = vunpack.c.l.b16 %v1142
        %v1591 = vunpack.c.l.b16 %v1143
        %v1592 = vunpack.c.l.b16 %v1144
        %v1593 = vunpack.c.l.b16 %v1145
        %v1594 = vunpack.c.l.b16 %v1146
        %v1595 = vunpack.c.l.b16 %v1147
        %v1596 = vunpack.c.l.b16 %v1148
        %v1597 = vunpack.c.l.b16 %v1149
        %v1598 = vunpack.c.l.b16 %v1150
        %v1599 = vunpack.c.l.b16 %v1151
        %v1600 = vunpack.c.l.b16 %v1152
        %v1601 = vunpack.c.l.b16 %v1153
        %v1602 = vunpack.c.l.b16 %v1154
        %v1603 = vunpack.c.l.b16 %v1155
        %v1604 = vpack.c.b16 %v1381, %v1380
        %v1605 = vpack.c.b16 %v1383, %v1382
        %v1606 = vpack.c.b16 %v1385, %v1384
        %v1607 = vpack.c.b16 %v1387, %v1386
        %v1608 = vpack.c.b16 %v1389, %v1388
        %v1609 = vpack.c.b16 %v1391, %v1390
        %v1610 = vpack.c.b16 %v1393, %v1392
        %v1611 = vpack.c.b16 %v1395, %v1394
        %v1612 = vpack.c.b16 %v1397, %v1396
        %v1613 = vpack.c.b16 %v1399, %v1398
        %v1614 = vpack.c.b16 %v1401, %v1400
        %v1615 = vpack.c.b16 %v1403, %v1402
        %v1616 = vpack.c.b16 %v1405, %v1404
        %v1617 = vpack.c.b16 %v1407, %v1406
        %v1618 = vpack.c.b16 %v1409, %v1408
        %v1619 = vpack.c.b16 %v1411, %v1410
        %v1620 = vpack.c.b16 %v1413, %v1412
        %v1621 = vpack.c.b16 %v1415, %v1414
        %v1622 = vpack.c.b16 %v1417, %v1416
        %v1623 = vpack.c.b16 %v1419, %v1418
        %v1624 = vpack.c.b16 %v1421, %v1420
        %v1625 = vpack.c.b16 %v1423, %v1422
        %v1626 = vpack.c.b16 %v1425, %v1424
        %v1627 = vpack.c.b16 %v1427, %v1426
        %v1628 = vpack.c.b16 %v1429, %v1428
        %v1629 = vpack.c.b16 %v1431, %v1430
        %v1630 = vpack.c.b16 %v1433, %v1432
        %v1631 = vpack.c.b16 %v1435, %v1434
        %v1632 = vpack.c.b16 %v1437, %v1436
        %v1633 = vpack.c.b16 %v1439, %v1438
        %v1634 = vpack.c.b16 %v1441, %v1440
        %v1635 = vpack.c.b16 %v1443, %v1442
        %v1636 = vpack.c.b16 %v1445, %v1444
        %v1637 = vpack.c.b16 %v1447, %v1446
        %v1638 = vpack.c.b16 %v1449, %v1448
        %v1639 = vpack.c.b16 %v1451, %v1450
        %v1640 = vpack.c.b16 %v1453, %v1452
        %v1641 = vpack.c.b16 %v1455, %v1454
        %v1642 = vpack.c.b16 %v1457, %v1456
        %v1643 = vpack.c.b16 %v1459, %v1458
        %v1644 = vpack.c.b16 %v1461, %v1460
        %v1645 = vpack.c.b16 %v1463, %v1462
        %v1646 = vpack.c.b16 %v1465, %v1464
        %v1647 = vpack.c.b16 %v1467, %v1466
        %v1648 = vpack.c.b16 %v1469, %v1468
        %v1649 = vpack.c.b16 %v1471, %v1470
        %v1650 = vpack.c.b16 %v1473, %v1472
        %v1651 = vpack.c.b16 %v1475, %v1474
        %v1652 = vpack.c.b16 %v1477, %v1476
        %v1653 = vpack.c.b16 %v1479, %v1478
        %v1654 = vpack.c.b16 %v1481, %v1480
        %v1655 = vpack.c.b16 %v1483, %v1482
        %v1656 = vpack.c.b16 %v1485, %v1484
        %v1657 = vpack.c.b16 %v1487, %v1486
        %v1658 = vpack.c.b16 %v1489, %v1488
        %v1659 = vpack.c.b16 %v1491, %v1490
        %v1660 = vpack.c.b16 %v1493, %v1492
        %v1661 = vpack.c.b16 %v1495, %v1494
        %v1662 = vpack.c.b16 %v1497, %v1496
        %v1663 = vpack.c.b16 %v1499, %v1498
        %v1664 = vpack.c.b16 %v1501, %v1500
        %v1665 = vpack.c.b16 %v1503, %v1502
        %v1666 = vpack.c.b16 %v1505, %v1504
        %v1667 = vpack.c.b16 %v1507, %v1506
        %v1668 = vpack.c.b16 %v1509, %v1508
        %v1669 = vpack.c.b16 %v1511, %v1510
        %v1670 = vpack.c.b16 %v1513, %v1512
        %v1671 = vpack.c.b16 %v1515, %v1514
        %v1672 = vpack.c.b16 %v1517, %v1516
        %v1673 = vpack.c.b16 %v1519, %v1518
        %v1674 = vpack.c.b16 %v1521, %v1520
        %v1675 = vpack.c.b16 %v1523, %v1522
        %v1676 = vpack.c.b16 %v1525, %v1524
        %v1677 = vpack.c.b16 %v1527, %v1526
        %v1678 = vpack.c.b16 %v1529, %v1528
        %v1679 = vpack.c.b16 %v1531, %v1530
        %v1680 = vpack.c.b16 %v1533, %v1532
        %v1681 = vpack.c.b16 %v1535, %v1534
        %v1682 = vpack.c.b16 %v1537, %v1536
        %v1683 = vpack.c.b16 %v1539, %v1538
        %v1684 = vpack.c.b16 %v1541, %v1540
        %v1685 = vpack.c.b16 %v1543, %v1542
        %v1686 = vpack.c.b16 %v1545, %v1544
        %v1687 = vpack.c.b16 %v1547, %v1546
        %v1688 = vpack.c.b16 %v1549, %v1548
        %v1689 = vpack.c.b16 %v1551, %v1550
        %v1690 = vpack.c.b16 %v1553, %v1552
        %v1691 = vpack.c.b16 %v1555, %v1554
        %v1692 = vpack.c.b16 %v1557, %v1556
        %v1693 = vpack.c.b16 %v1559, %v1558
        %v1694 = vpack.c.b16 %v1561, %v1560
        %v1695 = vpack.c.b16 %v1563, %v1562
        %v1696 = vpack.c.b16 %v1565, %v1564
        %v1697 = vpack.c.b16 %v1567, %v1566
        %v1698 = vpack.c.b16 %v1569, %v1568
        %v1699 = vpack.c.b16 %v1571, %v1570
        %v1700 = vpack.c.b16 %v1573, %v1572
        %v1701 = vpack.c.b16 %v1575, %v1574
        %v1702 = vpack.c.b16 %v1577, %v1576
        %v1703 = vpack.c.b16 %v1579, %v1578
        %v1704 = vpack.c.b16 %v1581, %v1580
        %v1705 = vpack.c.b16 %v1583, %v1582
        %v1706 = vpack.c.b16 %v1585, %v1584
        %v1707 = vpack.c.b16 %v1587, %v1586
        %v1708 = vpack.c.b16 %v1589, %v1588
        %v1709 = vpack.c.b16 %v1591, %v1590
        %v1710 = vpack.c.b16 %v1593, %v1592
        %v1711 = vpack.c.b16 %v1595, %v1594
        %v1712 = vpack.c.b16 %v1597, %v1596
        %v1713 = vpack.c.b16 %v1599, %v1598
        %v1714 = vpack.c.b16 %v1601, %v1600
        %v1715 = vpack.c.b16 %v1603, %v1602
        %1828 = vmatprep.subr.bf16.mxu0 0
        %1829 = vmatpush1.bf16.msra.mxu0 %v1604
        %1830 = vmatprep.subr.bf16.mxu0 0
        %1831 = vmatpush1.bf16.msra.mxu0 %v1605
        %1832 = vmatprep.subr.bf16.mxu0 0
        %1833 = vmatpush1.bf16.msra.mxu0 %v1606
        %1834 = vmatprep.subr.bf16.mxu0 0
        %1835 = vmatpush1.bf16.msra.mxu0 %v1607
        %1836 = vmatprep.subr.bf16.mxu0 0
        %1837 = vmatpush1.bf16.msra.mxu0 %v1608
        %1838 = vmatprep.subr.bf16.mxu0 0
        %1839 = vmatpush1.bf16.msra.mxu0 %v1609
        %1840 = vmatprep.subr.bf16.mxu0 0
        %1841 = vmatpush1.bf16.msra.mxu0 %v1610
        %1842 = vmatprep.subr.bf16.mxu0 0
        %1843 = vmatpush1.bf16.msra.mxu0 %v1611
        %1844 = vmatprep.subr.bf16.mxu0 0
        %1845 = vmatpush1.bf16.msra.mxu0 %v1612
        %1846 = vmatprep.subr.bf16.mxu0 0
        %1847 = vmatpush1.bf16.msra.mxu0 %v1613
        %1848 = vmatprep.subr.bf16.mxu0 0
        %1849 = vmatpush1.bf16.msra.mxu0 %v1614
        %1850 = vmatprep.subr.bf16.mxu0 0
        %1851 = vmatpush1.bf16.msra.mxu0 %v1615
        %1852 = vmatprep.subr.bf16.mxu0 0
        %1853 = vmatpush1.bf16.msra.mxu0 %v1616
        %1854 = vmatprep.subr.bf16.mxu0 0
        %1855 = vmatpush1.bf16.msra.mxu0 %v1617
        %1856 = vmatprep.subr.bf16.mxu0 0
        %1857 = vmatpush1.bf16.msra.mxu0 %v1618
        %1858 = vmatprep.subr.bf16.mxu0 0
        %1859 = vmatpush1.bf16.msra.mxu0 %v1619
        %1860 = vmatprep.mubr.bf16.mxu0 %v919
        %1861 = vmatmul.mubr.bf16.gmra.mrb[0].mxu0 %v918
        %v1862 = vpop.f32.mrb[0].mxu0
        %v1863 = vadd.f32 0.0, %v1862
        %v1864 = vpop.f32.mrb[0].mxu0
        %v1865 = vpop.f32.mrb[0].mxu0
        %v1866 = vpop.f32.mrb[0].mxu0
        %1867 = vdwg.mxu0
        %1868 = vmatprep.subr.bf16.mxu0 0
        %1869 = vmatpush1.bf16.msra.mxu0 %v1620
        %1870 = vmatprep.subr.bf16.mxu0 0
        %1871 = vmatpush1.bf16.msra.mxu0 %v1621
        %1872 = vmatprep.subr.bf16.mxu0 0
        %1873 = vmatpush1.bf16.msra.mxu0 %v1622
        %1874 = vmatprep.subr.bf16.mxu0 0
        %1875 = vmatpush1.bf16.msra.mxu0 %v1623
        %1876 = vmatprep.subr.bf16.mxu0 0
        %1877 = vmatpush1.bf16.msra.mxu0 %v1624
        %1878 = vmatprep.subr.bf16.mxu0 0
        %1879 = vmatpush1.bf16.msra.mxu0 %v1625
        %1880 = vmatprep.subr.bf16.mxu0 0
        %1881 = vmatpush1.bf16.msra.mxu0 %v1626
        %1882 = vmatprep.subr.bf16.mxu0 0
        %1883 = vmatpush1.bf16.msra.mxu0 %v1627
        %1884 = vmatprep.subr.bf16.mxu0 0
        %1885 = vmatpush1.bf16.msra.mxu0 %v1628
        %1886 = vmatprep.subr.bf16.mxu0 0
        %1887 = vmatpush1.bf16.msra.mxu0 %v1629
        %1888 = vmatprep.subr.bf16.mxu0 0
        %1889 = vmatpush1.bf16.msra.mxu0 %v1630
        %1890 = vmatprep.subr.bf16.mxu0 0
        %1891 = vmatpush1.bf16.msra.mxu0 %v1631
        %1892 = vmatprep.subr.bf16.mxu0 0
        %1893 = vmatpush1.bf16.msra.mxu0 %v1632
        %1894 = vmatprep.subr.bf16.mxu0 0
        %1895 = vmatpush1.bf16.msra.mxu0 %v1633
        %1896 = vmatprep.subr.bf16.mxu0 0
        %1897 = vmatpush1.bf16.msra.mxu0 %v1634
        %1898 = vmatprep.subr.bf16.mxu0 0
        %1899 = vmatpush1.bf16.msra.mxu0 %v1635
        %1900 = vmatprep.mubr.bf16.mxu0 %v921
        %1901 = vmatmul.mubr.bf16.gmra.mrb[0].mxu0 %v920
        %v1902 = vpop.f32.mrb[0].mxu0
        %v1903 = vadd.f32 %v1863, %v1902
        %v1904 = vpop.f32.mrb[0].mxu0
        %v1905 = vpop.f32.mrb[0].mxu0
        %v1906 = vpop.f32.mrb[0].mxu0
        %1907 = vdwg.mxu0
        %1908 = vmatprep.subr.bf16.mxu0 0
        %1909 = vmatpush1.bf16.msra.mxu0 %v1636
        %1910 = vmatprep.subr.bf16.mxu0 0
        %1911 = vmatpush1.bf16.msra.mxu0 %v1637
        %1912 = vmatprep.subr.bf16.mxu0 0
        %1913 = vmatpush1.bf16.msra.mxu0 %v1638
        %1914 = vmatprep.subr.bf16.mxu0 0
        %1915 = vmatpush1.bf16.msra.mxu0 %v1639
        %1916 = vmatprep.subr.bf16.mxu0 0
        %1917 = vmatpush1.bf16.msra.mxu0 %v1640
        %1918 = vmatprep.subr.bf16.mxu0 0
        %1919 = vmatpush1.bf16.msra.mxu0 %v1641
        %1920 = vmatprep.subr.bf16.mxu0 0
        %1921 = vmatpush1.bf16.msra.mxu0 %v1642
        %1922 = vmatprep.subr.bf16.mxu0 0
        %1923 = vmatpush1.bf16.msra.mxu0 %v1643
        %1924 = vmatprep.subr.bf16.mxu0 0
        %1925 = vmatpush1.bf16.msra.mxu0 %v1644
        %1926 = vmatprep.subr.bf16.mxu0 0
        %1927 = vmatpush1.bf16.msra.mxu0 %v1645
        %1928 = vmatprep.subr.bf16.mxu0 0
        %1929 = vmatpush1.bf16.msra.mxu0 %v1646
        %1930 = vmatprep.subr.bf16.mxu0 0
        %1931 = vmatpush1.bf16.msra.mxu0 %v1647
        %1932 = vmatprep.subr.bf16.mxu0 0
        %1933 = vmatpush1.bf16.msra.mxu0 %v1648
        %1934 = vmatprep.subr.bf16.mxu0 0
        %1935 = vmatpush1.bf16.msra.mxu0 %v1649
        %1936 = vmatprep.subr.bf16.mxu0 0
        %1937 = vmatpush1.bf16.msra.mxu0 %v1650
        %1938 = vmatprep.subr.bf16.mxu0 0
        %1939 = vmatpush1.bf16.msra.mxu0 %v1651
        %1940 = vmatprep.mubr.bf16.mxu0 %v923
        %1941 = vmatmul.mubr.bf16.gmra.mrb[0].mxu0 %v922
        %v1942 = vpop.f32.mrb[0].mxu0
        %v1943 = vadd.f32 %v1903, %v1942
        %v1944 = vpop.f32.mrb[0].mxu0
        %v1945 = vpop.f32.mrb[0].mxu0
        %v1946 = vpop.f32.mrb[0].mxu0
        %1947 = vdwg.mxu0
        %1948 = vmatprep.subr.bf16.mxu0 0
        %1949 = vmatpush1.bf16.msra.mxu0 %v1652
        %1950 = vmatprep.subr.bf16.mxu0 0
        %1951 = vmatpush1.bf16.msra.mxu0 %v1653
        %1952 = vmatprep.subr.bf16.mxu0 0
        %1953 = vmatpush1.bf16.msra.mxu0 %v1654
        %1954 = vmatprep.subr.bf16.mxu0 0
        %1955 = vmatpush1.bf16.msra.mxu0 %v1655
        %1956 = vmatprep.subr.bf16.mxu0 0
        %1957 = vmatpush1.bf16.msra.mxu0 %v1656
        %1958 = vmatprep.subr.bf16.mxu0 0
        %1959 = vmatpush1.bf16.msra.mxu0 %v1657
        %1960 = vmatprep.subr.bf16.mxu0 0
        %1961 = vmatpush1.bf16.msra.mxu0 %v1658
        %1962 = vmatprep.subr.bf16.mxu0 0
        %1963 = vmatpush1.bf16.msra.mxu0 %v1659
        %1964 = vmatprep.subr.bf16.mxu0 0
        %1965 = vmatpush1.bf16.msra.mxu0 %v1660
        %1966 = vmatprep.subr.bf16.mxu0 0
        %1967 = vmatpush1.bf16.msra.mxu0 %v1661
        %1968 = vmatprep.subr.bf16.mxu0 0
        %1969 = vmatpush1.bf16.msra.mxu0 %v1662
        %1970 = vmatprep.subr.bf16.mxu0 0
        %1971 = vmatpush1.bf16.msra.mxu0 %v1663
        %1972 = vmatprep.subr.bf16.mxu0 0
        %1973 = vmatpush1.bf16.msra.mxu0 %v1664
        %1974 = vmatprep.subr.bf16.mxu0 0
        %1975 = vmatpush1.bf16.msra.mxu0 %v1665
        %1976 = vmatprep.subr.bf16.mxu0 0
        %1977 = vmatpush1.bf16.msra.mxu0 %v1666
        %1978 = vmatprep.subr.bf16.mxu0 0
        %1979 = vmatpush1.bf16.msra.mxu0 %v1667
        %1980 = vmatprep.mubr.bf16.mxu0 %v925
        %1981 = vmatmul.mubr.bf16.gmra.mrb[0].mxu0 %v924
        %v1982 = vpop.f32.mrb[0].mxu0
        %v1983 = vadd.f32 %v1943, %v1982
        %v1984 = vpop.f32.mrb[0].mxu0
        %v1985 = vpop.f32.mrb[0].mxu0
        %v1986 = vpop.f32.mrb[0].mxu0
        %1987 = vdwg.mxu0
        %1988 = vmatprep.subr.bf16.mxu0 0
        %1989 = vmatpush1.bf16.msra.mxu0 %v1668
        %1990 = vmatprep.subr.bf16.mxu0 0
        %1991 = vmatpush1.bf16.msra.mxu0 %v1669
        %1992 = vmatprep.subr.bf16.mxu0 0
        %1993 = vmatpush1.bf16.msra.mxu0 %v1670
        %1994 = vmatprep.subr.bf16.mxu0 0
        %1995 = vmatpush1.bf16.msra.mxu0 %v1671
        %1996 = vmatprep.subr.bf16.mxu0 0
        %1997 = vmatpush1.bf16.msra.mxu0 %v1672
        %1998 = vmatprep.subr.bf16.mxu0 0
        %1999 = vmatpush1.bf16.msra.mxu0 %v1673
        %2000 = vmatprep.subr.bf16.mxu0 0
        %2001 = vmatpush1.bf16.msra.mxu0 %v1674
        %2002 = vmatprep.subr.bf16.mxu0 0
        %2003 = vmatpush1.bf16.msra.mxu0 %v1675
        %2004 = vmatprep.subr.bf16.mxu0 0
        %2005 = vmatpush1.bf16.msra.mxu0 %v1676
        %2006 = vmatprep.subr.bf16.mxu0 0
        %2007 = vmatpush1.bf16.msra.mxu0 %v1677
        %2008 = vmatprep.subr.bf16.mxu0 0
        %2009 = vmatpush1.bf16.msra.mxu0 %v1678
        %2010 = vmatprep.subr.bf16.mxu0 0
        %2011 = vmatpush1.bf16.msra.mxu0 %v1679
        %2012 = vmatprep.subr.bf16.mxu0 0
        %2013 = vmatpush1.bf16.msra.mxu0 %v1680
        %2014 = vmatprep.subr.bf16.mxu0 0
        %2015 = vmatpush1.bf16.msra.mxu0 %v1681
        %2016 = vmatprep.subr.bf16.mxu0 0
        %2017 = vmatpush1.bf16.msra.mxu0 %v1682
        %2018 = vmatprep.subr.bf16.mxu0 0
        %2019 = vmatpush1.bf16.msra.mxu0 %v1683
        %2020 = vmatprep.mubr.bf16.mxu0 %v927
        %2021 = vmatmul.mubr.bf16.gmra.mrb[0].mxu0 %v926
        %v2022 = vpop.f32.mrb[0].mxu0
        %v2023 = vadd.f32 %v1983, %v2022
        %v2024 = vpop.f32.mrb[0].mxu0
        %v2025 = vpop.f32.mrb[0].mxu0
        %v2026 = vpop.f32.mrb[0].mxu0
        %2027 = vdwg.mxu0
        %2028 = vmatprep.subr.bf16.mxu0 0
        %2029 = vmatpush1.bf16.msra.mxu0 %v1684
        %2030 = vmatprep.subr.bf16.mxu0 0
        %2031 = vmatpush1.bf16.msra.mxu0 %v1685
        %2032 = vmatprep.subr.bf16.mxu0 0
        %2033 = vmatpush1.bf16.msra.mxu0 %v1686
        %2034 = vmatprep.subr.bf16.mxu0 0
        %2035 = vmatpush1.bf16.msra.mxu0 %v1687
        %2036 = vmatprep.subr.bf16.mxu0 0
        %2037 = vmatpush1.bf16.msra.mxu0 %v1688
        %2038 = vmatprep.subr.bf16.mxu0 0
        %2039 = vmatpush1.bf16.msra.mxu0 %v1689
        %2040 = vmatprep.subr.bf16.mxu0 0
        %2041 = vmatpush1.bf16.msra.mxu0 %v1690
        %2042 = vmatprep.subr.bf16.mxu0 0
        %2043 = vmatpush1.bf16.msra.mxu0 %v1691
        %2044 = vmatprep.subr.bf16.mxu0 0
        %2045 = vmatpush1.bf16.msra.mxu0 %v1692
        %2046 = vmatprep.subr.bf16.mxu0 0
        %2047 = vmatpush1.bf16.msra.mxu0 %v1693
        %2048 = vmatprep.subr.bf16.mxu0 0
        %2049 = vmatpush1.bf16.msra.mxu0 %v1694
        %2050 = vmatprep.subr.bf16.mxu0 0
        %2051 = vmatpush1.bf16.msra.mxu0 %v1695
        %2052 = vmatprep.subr.bf16.mxu0 0
        %2053 = vmatpush1.bf16.msra.mxu0 %v1696
        %2054 = vmatprep.subr.bf16.mxu0 0
        %2055 = vmatpush1.bf16.msra.mxu0 %v1697
        %2056 = vmatprep.subr.bf16.mxu0 0
        %2057 = vmatpush1.bf16.msra.mxu0 %v1698
        %2058 = vmatprep.subr.bf16.mxu0 0
        %2059 = vmatpush1.bf16.msra.mxu0 %v1699
        %2060 = vmatprep.mubr.bf16.mxu0 %v929
        %2061 = vmatmul.mubr.bf16.gmra.mrb[0].mxu0 %v928
        %v2062 = vpop.f32.mrb[0].mxu0
        %v2063 = vadd.f32 %v2023, %v2062
        %v2064 = vpop.f32.mrb[0].mxu0
        %v2065 = vpop.f32.mrb[0].mxu0
        %v2066 = vpop.f32.mrb[0].mxu0
        %2067 = vdwg.mxu0
        %2068 = vmatprep.subr.bf16.mxu0 0
        %2069 = vmatpush1.bf16.msra.mxu0 %v1700
        %2070 = vmatprep.subr.bf16.mxu0 0
        %2071 = vmatpush1.bf16.msra.mxu0 %v1701
        %2072 = vmatprep.subr.bf16.mxu0 0
        %2073 = vmatpush1.bf16.msra.mxu0 %v1702
        %2074 = vmatprep.subr.bf16.mxu0 0
        %2075 = vmatpush1.bf16.msra.mxu0 %v1703
        %2076 = vmatprep.subr.bf16.mxu0 0
        %2077 = vmatpush1.bf16.msra.mxu0 %v1704
        %2078 = vmatprep.subr.bf16.mxu0 0
        %2079 = vmatpush1.bf16.msra.mxu0 %v1705
        %2080 = vmatprep.subr.bf16.mxu0 0
        %2081 = vmatpush1.bf16.msra.mxu0 %v1706
        %2082 = vmatprep.subr.bf16.mxu0 0
        %2083 = vmatpush1.bf16.msra.mxu0 %v1707
        %2084 = vmatprep.subr.bf16.mxu0 0
        %2085 = vmatpush1.bf16.msra.mxu0 %v1708
        %2086 = vmatprep.subr.bf16.mxu0 0
        %2087 = vmatpush1.bf16.msra.mxu0 %v1709
        %2088 = vmatprep.subr.bf16.mxu0 0
        %2089 = vmatpush1.bf16.msra.mxu0 %v1710
        %2090 = vmatprep.subr.bf16.mxu0 0
        %2091 = vmatpush1.bf16.msra.mxu0 %v1711
        %2092 = vmatprep.subr.bf16.mxu0 0
        %2093 = vmatpush1.bf16.msra.mxu0 %v1712
        %2094 = vmatprep.subr.bf16.mxu0 0
        %2095 = vmatpush1.bf16.msra.mxu0 %v1713
        %2096 = vmatprep.subr.bf16.mxu0 0
        %2097 = vmatpush1.bf16.msra.mxu0 %v1714
        %2098 = vmatprep.subr.bf16.mxu0 0
        %2099 = vmatpush1.bf16.msra.mxu0 %v1715
        %2100 = vmatprep.mubr.bf16.mxu0 %v931
        %2101 = vmatmul.mubr.bf16.gmra.mrb[0].mxu0 %v930
        %v2102 = vpop.f32.mrb[0].mxu0
        %v2103 = vadd.f32 %v2063, %v2102
        %v2104 = vpop.f32.mrb[0].mxu0
        %v2105 = vpop.f32.mrb[0].mxu0
        %v2106 = vpop.f32.mrb[0].mxu0
        %2107 = vdwg.mxu0
        %v2108 = vmax.f32 %v2103, 0.0
        %v2109 = vpack.c.bf16 %v2108, %v2108
        %v2110 = vld [vmem:[#allocation4] sm:$0xff]
        %v2111 = vld [vmem:[#allocation4 + $0x8] sm:$0xff]
        %v2112 = vld [vmem:[#allocation4 + $0x10] sm:$0xff]
        %v2113 = vld [vmem:[#allocation4 + $0x18] sm:$0xff]
        %v2114 = vld [vmem:[#allocation4 + $0x20] sm:$0xff]
        %v2115 = vld [vmem:[#allocation4 + $0x28] sm:$0xff]
        %v2116 = vld [vmem:[#allocation4 + $0x30] sm:$0xff]
        %v2117 = vld [vmem:[#allocation4 + $0x38] sm:$0xff]
        %v2118 = vld [vmem:[#allocation4 + $0x40] sm:$0xff]
        %v2119 = vld [vmem:[#allocation4 + $0x48] sm:$0xff]
        %v2120 = vld [vmem:[#allocation4 + $0x50] sm:$0xff]
        %v2121 = vld [vmem:[#allocation4 + $0x58] sm:$0xff]
        %v2122 = vld [vmem:[#allocation4 + $0x60] sm:$0xff]
        %v2123 = vld [vmem:[#allocation4 + $0x68] sm:$0xff]
        %v2124 = vld [vmem:[#allocation4 + $0x70] sm:$0xff]
        %v2125 = vld [vmem:[#allocation4 + $0x78] sm:$0xff]
        %v2126 = vld [vmem:[#allocation4 + $0x80] sm:$0xff]
        %v2127 = vld [vmem:[#allocation4 + $0x88] sm:$0xff]
        %v2128 = vld [vmem:[#allocation4 + $0x90] sm:$0xff]
        %v2129 = vld [vmem:[#allocation4 + $0x98] sm:$0xff]
        %v2130 = vld [vmem:[#allocation4 + $0xa0] sm:$0xff]
        %v2131 = vld [vmem:[#allocation4 + $0xa8] sm:$0xff]
        %v2132 = vld [vmem:[#allocation4 + $0xb0] sm:$0xff]
        %v2133 = vld [vmem:[#allocation4 + $0xb8] sm:$0xff]
        %v2134 = vld [vmem:[#allocation4 + $0xc0] sm:$0xff]
        %v2135 = vld [vmem:[#allocation4 + $0xc8] sm:$0xff]
        %v2136 = vld [vmem:[#allocation4 + $0xd0] sm:$0xff]
        %v2137 = vld [vmem:[#allocation4 + $0xd8] sm:$0xff]
        %v2138 = vld [vmem:[#allocation4 + $0xe0] sm:$0xff]
        %v2139 = vld [vmem:[#allocation4 + $0xe8] sm:$0xff]
        %v2140 = vld [vmem:[#allocation4 + $0xf0] sm:$0xff]
        %v2141 = vld [vmem:[#allocation4 + $0xf8] sm:$0xff]
        %v2142 = vld [vmem:[#allocation4 + $0x100] sm:$0xff]
        %v2143 = vld [vmem:[#allocation4 + $0x108] sm:$0xff]
        %v2144 = vld [vmem:[#allocation4 + $0x110] sm:$0xff]
        %v2145 = vld [vmem:[#allocation4 + $0x118] sm:$0xff]
        %v2146 = vld [vmem:[#allocation4 + $0x120] sm:$0xff]
        %v2147 = vld [vmem:[#allocation4 + $0x128] sm:$0xff]
        %v2148 = vld [vmem:[#allocation4 + $0x130] sm:$0xff]
        %v2149 = vld [vmem:[#allocation4 + $0x138] sm:$0xff]
        %v2150 = vld [vmem:[#allocation4 + $0x140] sm:$0xff]
        %v2151 = vld [vmem:[#allocation4 + $0x148] sm:$0xff]
        %v2152 = vld [vmem:[#allocation4 + $0x150] sm:$0xff]
        %v2153 = vld [vmem:[#allocation4 + $0x158] sm:$0xff]
        %v2154 = vld [vmem:[#allocation4 + $0x160] sm:$0xff]
        %v2155 = vld [vmem:[#allocation4 + $0x168] sm:$0xff]
        %v2156 = vld [vmem:[#allocation4 + $0x170] sm:$0xff]
        %v2157 = vld [vmem:[#allocation4 + $0x178] sm:$0xff]
        %v2158 = vld [vmem:[#allocation4 + $0x180] sm:$0xff]
        %v2159 = vld [vmem:[#allocation4 + $0x188] sm:$0xff]
        %v2160 = vld [vmem:[#allocation4 + $0x190] sm:$0xff]
        %v2161 = vld [vmem:[#allocation4 + $0x198] sm:$0xff]
        %v2162 = vld [vmem:[#allocation4 + $0x1a0] sm:$0xff]
        %v2163 = vld [vmem:[#allocation4 + $0x1a8] sm:$0xff]
        %v2164 = vld [vmem:[#allocation4 + $0x1b0] sm:$0xff]
        %v2165 = vld [vmem:[#allocation4 + $0x1b8] sm:$0xff]
        %v2166 = vld [vmem:[#allocation4 + $0x1c0] sm:$0xff]
        %v2167 = vld [vmem:[#allocation4 + $0x1c8] sm:$0xff]
        %v2168 = vld [vmem:[#allocation4 + $0x1d0] sm:$0xff]
        %v2169 = vld [vmem:[#allocation4 + $0x1d8] sm:$0xff]
        %v2170 = vld [vmem:[#allocation4 + $0x1e0] sm:$0xff]
        %v2171 = vld [vmem:[#allocation4 + $0x1e8] sm:$0xff]
        %v2172 = vld [vmem:[#allocation4 + $0x1f0] sm:$0xff]
        %v2173 = vld [vmem:[#allocation4 + $0x1f8] sm:$0xff]
        %v2174 = vld [vmem:[#allocation4 + $0x200] sm:$0xff]
        %v2175 = vld [vmem:[#allocation4 + $0x208] sm:$0xff]
        %v2176 = vld [vmem:[#allocation4 + $0x210] sm:$0xff]
        %v2177 = vld [vmem:[#allocation4 + $0x218] sm:$0xff]
        %v2178 = vld [vmem:[#allocation4 + $0x220] sm:$0xff]
        %v2179 = vld [vmem:[#allocation4 + $0x228] sm:$0xff]
        %v2180 = vld [vmem:[#allocation4 + $0x230] sm:$0xff]
        %v2181 = vld [vmem:[#allocation4 + $0x238] sm:$0xff]
        %v2182 = vld [vmem:[#allocation4 + $0x240] sm:$0xff]
        %v2183 = vld [vmem:[#allocation4 + $0x248] sm:$0xff]
        %v2184 = vld [vmem:[#allocation4 + $0x250] sm:$0xff]
        %v2185 = vld [vmem:[#allocation4 + $0x258] sm:$0xff]
        %v2186 = vld [vmem:[#allocation4 + $0x260] sm:$0xff]
        %v2187 = vld [vmem:[#allocation4 + $0x268] sm:$0xff]
        %v2188 = vld [vmem:[#allocation4 + $0x270] sm:$0xff]
        %v2189 = vld [vmem:[#allocation4 + $0x278] sm:$0xff]
        %v2190 = vld [vmem:[#allocation4 + $0x280] sm:$0xff]
        %v2191 = vld [vmem:[#allocation4 + $0x288] sm:$0xff]
        %v2192 = vld [vmem:[#allocation4 + $0x290] sm:$0xff]
        %v2193 = vld [vmem:[#allocation4 + $0x298] sm:$0xff]
        %v2194 = vld [vmem:[#allocation4 + $0x2a0] sm:$0xff]
        %v2195 = vld [vmem:[#allocation4 + $0x2a8] sm:$0xff]
        %v2196 = vld [vmem:[#allocation4 + $0x2b0] sm:$0xff]
        %v2197 = vld [vmem:[#allocation4 + $0x2b8] sm:$0xff]
        %v2198 = vld [vmem:[#allocation4 + $0x2c0] sm:$0xff]
        %v2199 = vld [vmem:[#allocation4 + $0x2c8] sm:$0xff]
        %v2200 = vld [vmem:[#allocation4 + $0x2d0] sm:$0xff]
        %v2201 = vld [vmem:[#allocation4 + $0x2d8] sm:$0xff]
        %v2202 = vld [vmem:[#allocation4 + $0x2e0] sm:$0xff]
        %v2203 = vld [vmem:[#allocation4 + $0x2e8] sm:$0xff]
        %v2204 = vld [vmem:[#allocation4 + $0x2f0] sm:$0xff]
        %v2205 = vld [vmem:[#allocation4 + $0x2f8] sm:$0xff]
        %v2206 = vld [vmem:[#allocation4 + $0x300] sm:$0xff]
        %v2207 = vld [vmem:[#allocation4 + $0x308] sm:$0xff]
        %v2208 = vld [vmem:[#allocation4 + $0x310] sm:$0xff]
        %v2209 = vld [vmem:[#allocation4 + $0x318] sm:$0xff]
        %v2210 = vld [vmem:[#allocation4 + $0x320] sm:$0xff]
        %v2211 = vld [vmem:[#allocation4 + $0x328] sm:$0xff]
        %v2212 = vld [vmem:[#allocation4 + $0x330] sm:$0xff]
        %v2213 = vld [vmem:[#allocation4 + $0x338] sm:$0xff]
        %v2214 = vld [vmem:[#allocation4 + $0x340] sm:$0xff]
        %v2215 = vld [vmem:[#allocation4 + $0x348] sm:$0xff]
        %v2216 = vld [vmem:[#allocation4 + $0x350] sm:$0xff]
        %v2217 = vld [vmem:[#allocation4 + $0x358] sm:$0xff]
        %v2218 = vld [vmem:[#allocation4 + $0x360] sm:$0xff]
        %v2219 = vld [vmem:[#allocation4 + $0x368] sm:$0xff]
        %v2220 = vld [vmem:[#allocation4 + $0x370] sm:$0xff]
        %v2221 = vld [vmem:[#allocation4 + $0x378] sm:$0xff]
        %v2334 = vunpack.c.l.b16 %v2110
        %v2335 = vunpack.c.h.b16 %v2110
        %v2336 = vunpack.c.l.b16 %v2111
        %v2337 = vunpack.c.h.b16 %v2111
        %v2338 = vunpack.c.l.b16 %v2112
        %v2339 = vunpack.c.h.b16 %v2112
        %v2340 = vunpack.c.l.b16 %v2113
        %v2341 = vunpack.c.h.b16 %v2113
        %v2342 = vunpack.c.l.b16 %v2114
        %v2343 = vunpack.c.h.b16 %v2114
        %v2344 = vunpack.c.l.b16 %v2115
        %v2345 = vunpack.c.h.b16 %v2115
        %v2346 = vunpack.c.l.b16 %v2116
        %v2347 = vunpack.c.h.b16 %v2116
        %v2348 = vunpack.c.l.b16 %v2117
        %v2349 = vunpack.c.h.b16 %v2117
        %v2350 = vunpack.c.l.b16 %v2118
        %v2351 = vunpack.c.h.b16 %v2118
        %v2352 = vunpack.c.l.b16 %v2119
        %v2353 = vunpack.c.h.b16 %v2119
        %v2354 = vunpack.c.l.b16 %v2120
        %v2355 = vunpack.c.h.b16 %v2120
        %v2356 = vunpack.c.l.b16 %v2121
        %v2357 = vunpack.c.h.b16 %v2121
        %v2358 = vunpack.c.l.b16 %v2122
        %v2359 = vunpack.c.h.b16 %v2122
        %v2360 = vunpack.c.l.b16 %v2123
        %v2361 = vunpack.c.h.b16 %v2123
        %v2362 = vunpack.c.l.b16 %v2124
        %v2363 = vunpack.c.h.b16 %v2124
        %v2364 = vunpack.c.l.b16 %v2125
        %v2365 = vunpack.c.h.b16 %v2125
        %v2366 = vunpack.c.l.b16 %v2126
        %v2367 = vunpack.c.h.b16 %v2126
        %v2368 = vunpack.c.l.b16 %v2127
        %v2369 = vunpack.c.h.b16 %v2127
        %v2370 = vunpack.c.l.b16 %v2128
        %v2371 = vunpack.c.h.b16 %v2128
        %v2372 = vunpack.c.l.b16 %v2129
        %v2373 = vunpack.c.h.b16 %v2129
        %v2374 = vunpack.c.l.b16 %v2130
        %v2375 = vunpack.c.h.b16 %v2130
        %v2376 = vunpack.c.l.b16 %v2131
        %v2377 = vunpack.c.h.b16 %v2131
        %v2378 = vunpack.c.l.b16 %v2132
        %v2379 = vunpack.c.h.b16 %v2132
        %v2380 = vunpack.c.l.b16 %v2133
        %v2381 = vunpack.c.h.b16 %v2133
        %v2382 = vunpack.c.l.b16 %v2134
        %v2383 = vunpack.c.h.b16 %v2134
        %v2384 = vunpack.c.l.b16 %v2135
        %v2385 = vunpack.c.h.b16 %v2135
        %v2386 = vunpack.c.l.b16 %v2136
        %v2387 = vunpack.c.h.b16 %v2136
        %v2388 = vunpack.c.l.b16 %v2137
        %v2389 = vunpack.c.h.b16 %v2137
        %v2390 = vunpack.c.l.b16 %v2138
        %v2391 = vunpack.c.h.b16 %v2138
        %v2392 = vunpack.c.l.b16 %v2139
        %v2393 = vunpack.c.h.b16 %v2139
        %v2394 = vunpack.c.l.b16 %v2140
        %v2395 = vunpack.c.h.b16 %v2140
        %v2396 = vunpack.c.l.b16 %v2141
        %v2397 = vunpack.c.h.b16 %v2141
        %v2398 = vunpack.c.l.b16 %v2142
        %v2399 = vunpack.c.h.b16 %v2142
        %v2400 = vunpack.c.l.b16 %v2143
        %v2401 = vunpack.c.h.b16 %v2143
        %v2402 = vunpack.c.l.b16 %v2144
        %v2403 = vunpack.c.h.b16 %v2144
        %v2404 = vunpack.c.l.b16 %v2145
        %v2405 = vunpack.c.h.b16 %v2145
        %v2406 = vunpack.c.l.b16 %v2146
        %v2407 = vunpack.c.h.b16 %v2146
        %v2408 = vunpack.c.l.b16 %v2147
        %v2409 = vunpack.c.h.b16 %v2147
        %v2410 = vunpack.c.l.b16 %v2148
        %v2411 = vunpack.c.h.b16 %v2148
        %v2412 = vunpack.c.l.b16 %v2149
        %v2413 = vunpack.c.h.b16 %v2149
        %v2414 = vunpack.c.l.b16 %v2150
        %v2415 = vunpack.c.h.b16 %v2150
        %v2416 = vunpack.c.l.b16 %v2151
        %v2417 = vunpack.c.h.b16 %v2151
        %v2418 = vunpack.c.l.b16 %v2152
        %v2419 = vunpack.c.h.b16 %v2152
        %v2420 = vunpack.c.l.b16 %v2153
        %v2421 = vunpack.c.h.b16 %v2153
        %v2422 = vunpack.c.l.b16 %v2154
        %v2423 = vunpack.c.h.b16 %v2154
        %v2424 = vunpack.c.l.b16 %v2155
        %v2425 = vunpack.c.h.b16 %v2155
        %v2426 = vunpack.c.l.b16 %v2156
        %v2427 = vunpack.c.h.b16 %v2156
        %v2428 = vunpack.c.l.b16 %v2157
        %v2429 = vunpack.c.h.b16 %v2157
        %v2430 = vunpack.c.l.b16 %v2158
        %v2431 = vunpack.c.h.b16 %v2158
        %v2432 = vunpack.c.l.b16 %v2159
        %v2433 = vunpack.c.h.b16 %v2159
        %v2434 = vunpack.c.l.b16 %v2160
        %v2435 = vunpack.c.h.b16 %v2160
        %v2436 = vunpack.c.l.b16 %v2161
        %v2437 = vunpack.c.h.b16 %v2161
        %v2438 = vunpack.c.l.b16 %v2162
        %v2439 = vunpack.c.h.b16 %v2162
        %v2440 = vunpack.c.l.b16 %v2163
        %v2441 = vunpack.c.h.b16 %v2163
        %v2442 = vunpack.c.l.b16 %v2164
        %v2443 = vunpack.c.h.b16 %v2164
        %v2444 = vunpack.c.l.b16 %v2165
        %v2445 = vunpack.c.h.b16 %v2165
        %v2446 = vunpack.c.l.b16 %v2166
        %v2447 = vunpack.c.h.b16 %v2166
        %v2448 = vunpack.c.l.b16 %v2167
        %v2449 = vunpack.c.h.b16 %v2167
        %v2450 = vunpack.c.l.b16 %v2168
        %v2451 = vunpack.c.h.b16 %v2168
        %v2452 = vunpack.c.l.b16 %v2169
        %v2453 = vunpack.c.h.b16 %v2169
        %v2454 = vunpack.c.l.b16 %v2170
        %v2455 = vunpack.c.h.b16 %v2170
        %v2456 = vunpack.c.l.b16 %v2171
        %v2457 = vunpack.c.h.b16 %v2171
        %v2458 = vunpack.c.l.b16 %v2172
        %v2459 = vunpack.c.h.b16 %v2172
        %v2460 = vunpack.c.l.b16 %v2173
        %v2461 = vunpack.c.h.b16 %v2173
        %v2462 = vunpack.c.l.b16 %v2174
        %v2463 = vunpack.c.h.b16 %v2174
        %v2464 = vunpack.c.l.b16 %v2175
        %v2465 = vunpack.c.h.b16 %v2175
        %v2466 = vunpack.c.l.b16 %v2176
        %v2467 = vunpack.c.h.b16 %v2176
        %v2468 = vunpack.c.l.b16 %v2177
        %v2469 = vunpack.c.h.b16 %v2177
        %v2470 = vunpack.c.l.b16 %v2178
        %v2471 = vunpack.c.h.b16 %v2178
        %v2472 = vunpack.c.l.b16 %v2179
        %v2473 = vunpack.c.h.b16 %v2179
        %v2474 = vunpack.c.l.b16 %v2180
        %v2475 = vunpack.c.h.b16 %v2180
        %v2476 = vunpack.c.l.b16 %v2181
        %v2477 = vunpack.c.h.b16 %v2181
        %v2478 = vunpack.c.l.b16 %v2182
        %v2479 = vunpack.c.h.b16 %v2182
        %v2480 = vunpack.c.l.b16 %v2183
        %v2481 = vunpack.c.h.b16 %v2183
        %v2482 = vunpack.c.l.b16 %v2184
        %v2483 = vunpack.c.h.b16 %v2184
        %v2484 = vunpack.c.l.b16 %v2185
        %v2485 = vunpack.c.h.b16 %v2185
        %v2486 = vunpack.c.l.b16 %v2186
        %v2487 = vunpack.c.h.b16 %v2186
        %v2488 = vunpack.c.l.b16 %v2187
        %v2489 = vunpack.c.h.b16 %v2187
        %v2490 = vunpack.c.l.b16 %v2188
        %v2491 = vunpack.c.h.b16 %v2188
        %v2492 = vunpack.c.l.b16 %v2189
        %v2493 = vunpack.c.h.b16 %v2189
        %v2494 = vunpack.c.l.b16 %v2190
        %v2495 = vunpack.c.h.b16 %v2190
        %v2496 = vunpack.c.l.b16 %v2191
        %v2497 = vunpack.c.h.b16 %v2191
        %v2498 = vunpack.c.l.b16 %v2192
        %v2499 = vunpack.c.h.b16 %v2192
        %v2500 = vunpack.c.l.b16 %v2193
        %v2501 = vunpack.c.h.b16 %v2193
        %v2502 = vunpack.c.l.b16 %v2194
        %v2503 = vunpack.c.h.b16 %v2194
        %v2504 = vunpack.c.l.b16 %v2195
        %v2505 = vunpack.c.h.b16 %v2195
        %v2506 = vunpack.c.l.b16 %v2196
        %v2507 = vunpack.c.h.b16 %v2196
        %v2508 = vunpack.c.l.b16 %v2197
        %v2509 = vunpack.c.h.b16 %v2197
        %v2510 = vunpack.c.l.b16 %v2198
        %v2511 = vunpack.c.h.b16 %v2198
        %v2512 = vunpack.c.l.b16 %v2199
        %v2513 = vunpack.c.h.b16 %v2199
        %v2514 = vunpack.c.l.b16 %v2200
        %v2515 = vunpack.c.h.b16 %v2200
        %v2516 = vunpack.c.l.b16 %v2201
        %v2517 = vunpack.c.h.b16 %v2201
        %v2518 = vunpack.c.l.b16 %v2202
        %v2519 = vunpack.c.h.b16 %v2202
        %v2520 = vunpack.c.l.b16 %v2203
        %v2521 = vunpack.c.h.b16 %v2203
        %v2522 = vunpack.c.l.b16 %v2204
        %v2523 = vunpack.c.h.b16 %v2204
        %v2524 = vunpack.c.l.b16 %v2205
        %v2525 = vunpack.c.h.b16 %v2205
        %v2526 = vunpack.c.l.b16 %v2206
        %v2527 = vunpack.c.h.b16 %v2206
        %v2528 = vunpack.c.l.b16 %v2207
        %v2529 = vunpack.c.h.b16 %v2207
        %v2530 = vunpack.c.l.b16 %v2208
        %v2531 = vunpack.c.h.b16 %v2208
        %v2532 = vunpack.c.l.b16 %v2209
        %v2533 = vunpack.c.h.b16 %v2209
        %v2534 = vunpack.c.l.b16 %v2210
        %v2535 = vunpack.c.h.b16 %v2210
        %v2536 = vunpack.c.l.b16 %v2211
        %v2537 = vunpack.c.h.b16 %v2211
        %v2538 = vunpack.c.l.b16 %v2212
        %v2539 = vunpack.c.h.b16 %v2212
        %v2540 = vunpack.c.l.b16 %v2213
        %v2541 = vunpack.c.h.b16 %v2213
        %v2542 = vunpack.c.l.b16 %v2214
        %v2543 = vunpack.c.h.b16 %v2214
        %v2544 = vunpack.c.l.b16 %v2215
        %v2545 = vunpack.c.h.b16 %v2215
        %v2546 = vunpack.c.l.b16 %v2216
        %v2547 = vunpack.c.h.b16 %v2216
        %v2548 = vunpack.c.l.b16 %v2217
        %v2549 = vunpack.c.h.b16 %v2217
        %v2550 = vunpack.c.l.b16 %v2218
        %v2551 = vunpack.c.h.b16 %v2218
        %v2552 = vunpack.c.l.b16 %v2219
        %v2553 = vunpack.c.h.b16 %v2219
        %v2554 = vunpack.c.l.b16 %v2220
        %v2555 = vunpack.c.h.b16 %v2220
        %v2556 = vunpack.c.l.b16 %v2221
        %v2557 = vunpack.c.h.b16 %v2221
        %v2558 = vpack.c.b16 %v2348, %v2334
        %v2559 = vpack.c.b16 %v2349, %v2335
        %v2560 = vpack.c.b16 %v2350, %v2336
        %v2561 = vpack.c.b16 %v2351, %v2337
        %v2562 = vpack.c.b16 %v2352, %v2338
        %v2563 = vpack.c.b16 %v2353, %v2339
        %v2564 = vpack.c.b16 %v2354, %v2340
        %v2565 = vpack.c.b16 %v2355, %v2341
        %v2566 = vpack.c.b16 %v2356, %v2342
        %v2567 = vpack.c.b16 %v2357, %v2343
        %v2568 = vpack.c.b16 %v2358, %v2344
        %v2569 = vpack.c.b16 %v2359, %v2345
        %v2570 = vpack.c.b16 %v2360, %v2346
        %v2571 = vpack.c.b16 %v2361, %v2347
        %v2572 = vpack.c.b16 %v2376, %v2362
        %v2573 = vpack.c.b16 %v2377, %v2363
        %v2574 = vpack.c.b16 %v2378, %v2364
        %v2575 = vpack.c.b16 %v2379, %v2365
        %v2576 = vpack.c.b16 %v2380, %v2366
        %v2577 = vpack.c.b16 %v2381, %v2367
        %v2578 = vpack.c.b16 %v2382, %v2368
        %v2579 = vpack.c.b16 %v2383, %v2369
        %v2580 = vpack.c.b16 %v2384, %v2370
        %v2581 = vpack.c.b16 %v2385, %v2371
        %v2582 = vpack.c.b16 %v2386, %v2372
        %v2583 = vpack.c.b16 %v2387, %v2373
        %v2584 = vpack.c.b16 %v2388, %v2374
        %v2585 = vpack.c.b16 %v2389, %v2375
        %v2586 = vpack.c.b16 %v2404, %v2390
        %v2587 = vpack.c.b16 %v2405, %v2391
        %v2588 = vpack.c.b16 %v2406, %v2392
        %v2589 = vpack.c.b16 %v2407, %v2393
        %v2590 = vpack.c.b16 %v2408, %v2394
        %v2591 = vpack.c.b16 %v2409, %v2395
        %v2592 = vpack.c.b16 %v2410, %v2396
        %v2593 = vpack.c.b16 %v2411, %v2397
        %v2594 = vpack.c.b16 %v2412, %v2398
        %v2595 = vpack.c.b16 %v2413, %v2399
        %v2596 = vpack.c.b16 %v2414, %v2400
        %v2597 = vpack.c.b16 %v2415, %v2401
        %v2598 = vpack.c.b16 %v2416, %v2402
        %v2599 = vpack.c.b16 %v2417, %v2403
        %v2600 = vpack.c.b16 %v2432, %v2418
        %v2601 = vpack.c.b16 %v2433, %v2419
        %v2602 = vpack.c.b16 %v2434, %v2420
        %v2603 = vpack.c.b16 %v2435, %v2421
        %v2604 = vpack.c.b16 %v2436, %v2422
        %v2605 = vpack.c.b16 %v2437, %v2423
        %v2606 = vpack.c.b16 %v2438, %v2424
        %v2607 = vpack.c.b16 %v2439, %v2425
        %v2608 = vpack.c.b16 %v2440, %v2426
        %v2609 = vpack.c.b16 %v2441, %v2427
        %v2610 = vpack.c.b16 %v2442, %v2428
        %v2611 = vpack.c.b16 %v2443, %v2429
        %v2612 = vpack.c.b16 %v2444, %v2430
        %v2613 = vpack.c.b16 %v2445, %v2431
        %v2614 = vpack.c.b16 %v2460, %v2446
        %v2615 = vpack.c.b16 %v2461, %v2447
        %v2616 = vpack.c.b16 %v2462, %v2448
        %v2617 = vpack.c.b16 %v2463, %v2449
        %v2618 = vpack.c.b16 %v2464, %v2450
        %v2619 = vpack.c.b16 %v2465, %v2451
        %v2620 = vpack.c.b16 %v2466, %v2452
        %v2621 = vpack.c.b16 %v2467, %v2453
        %v2622 = vpack.c.b16 %v2468, %v2454
        %v2623 = vpack.c.b16 %v2469, %v2455
        %v2624 = vpack.c.b16 %v2470, %v2456
        %v2625 = vpack.c.b16 %v2471, %v2457
        %v2626 = vpack.c.b16 %v2472, %v2458
        %v2627 = vpack.c.b16 %v2473, %v2459
        %v2628 = vpack.c.b16 %v2488, %v2474
        %v2629 = vpack.c.b16 %v2489, %v2475
        %v2630 = vpack.c.b16 %v2490, %v2476
        %v2631 = vpack.c.b16 %v2491, %v2477
        %v2632 = vpack.c.b16 %v2492, %v2478
        %v2633 = vpack.c.b16 %v2493, %v2479
        %v2634 = vpack.c.b16 %v2494, %v2480
        %v2635 = vpack.c.b16 %v2495, %v2481
        %v2636 = vpack.c.b16 %v2496, %v2482
        %v2637 = vpack.c.b16 %v2497, %v2483
        %v2638 = vpack.c.b16 %v2498, %v2484
        %v2639 = vpack.c.b16 %v2499, %v2485
        %v2640 = vpack.c.b16 %v2500, %v2486
        %v2641 = vpack.c.b16 %v2501, %v2487
        %v2642 = vpack.c.b16 %v2516, %v2502
        %v2643 = vpack.c.b16 %v2517, %v2503
        %v2644 = vpack.c.b16 %v2518, %v2504
        %v2645 = vpack.c.b16 %v2519, %v2505
        %v2646 = vpack.c.b16 %v2520, %v2506
        %v2647 = vpack.c.b16 %v2521, %v2507
        %v2648 = vpack.c.b16 %v2522, %v2508
        %v2649 = vpack.c.b16 %v2523, %v2509
        %v2650 = vpack.c.b16 %v2524, %v2510
        %v2651 = vpack.c.b16 %v2525, %v2511
        %v2652 = vpack.c.b16 %v2526, %v2512
        %v2653 = vpack.c.b16 %v2527, %v2513
        %v2654 = vpack.c.b16 %v2528, %v2514
        %v2655 = vpack.c.b16 %v2529, %v2515
        %v2656 = vpack.c.b16 %v2544, %v2530
        %v2657 = vpack.c.b16 %v2545, %v2531
        %v2658 = vpack.c.b16 %v2546, %v2532
        %v2659 = vpack.c.b16 %v2547, %v2533
        %v2660 = vpack.c.b16 %v2548, %v2534
        %v2661 = vpack.c.b16 %v2549, %v2535
        %v2662 = vpack.c.b16 %v2550, %v2536
        %v2663 = vpack.c.b16 %v2551, %v2537
        %v2664 = vpack.c.b16 %v2552, %v2538
        %v2665 = vpack.c.b16 %v2553, %v2539
        %v2666 = vpack.c.b16 %v2554, %v2540
        %v2667 = vpack.c.b16 %v2555, %v2541
        %v2668 = vpack.c.b16 %v2556, %v2542
        %v2669 = vpack.c.b16 %v2557, %v2543
        %2782 = vmatprep.subr.bf16.mxu0 %v2559
        %2783 = vmatpush1.bf16.msra.mxu0 %v2558
        %2784 = vmatprep.subr.bf16.mxu0 %v2573
        %2785 = vmatpush1.bf16.msra.mxu0 %v2572
        %2786 = vmatprep.subr.bf16.mxu0 %v2587
        %2787 = vmatpush1.bf16.msra.mxu0 %v2586
        %2788 = vmatprep.subr.bf16.mxu0 %v2601
        %2789 = vmatpush1.bf16.msra.mxu0 %v2600
        %2790 = vmatprep.subr.bf16.mxu0 %v2615
        %2791 = vmatpush1.bf16.msra.mxu0 %v2614
        %2792 = vmatprep.subr.bf16.mxu0 %v2629
        %2793 = vmatpush1.bf16.msra.mxu0 %v2628
        %2794 = vmatprep.subr.bf16.mxu0 %v2643
        %2795 = vmatpush1.bf16.msra.mxu0 %v2642
        %2796 = vmatprep.subr.bf16.mxu0 %v2657
        %2797 = vmatpush1.bf16.msra.mxu0 %v2656
        %2798 = vmatprep.subr.bf16.mxu0 0
        %2799 = vmatpush1.bf16.msra.mxu0 0
        %2800 = vmatprep.subr.bf16.mxu0 0
        %2801 = vmatpush1.bf16.msra.mxu0 0
        %2802 = vmatprep.subr.bf16.mxu0 0
        %2803 = vmatpush1.bf16.msra.mxu0 0
        %2804 = vmatprep.subr.bf16.mxu0 0
        %2805 = vmatpush1.bf16.msra.mxu0 0
        %2806 = vmatprep.subr.bf16.mxu0 0
        %2807 = vmatpush1.bf16.msra.mxu0 0
        %2808 = vmatprep.subr.bf16.mxu0 0
        %2809 = vmatpush1.bf16.msra.mxu0 0
        %2810 = vmatprep.subr.bf16.mxu0 0
        %2811 = vmatpush1.bf16.msra.mxu0 0
        %2812 = vmatprep.subr.bf16.mxu0 0
        %2813 = vmatpush1.bf16.msra.mxu0 0
        %2814 = vmatprep.mubr.bf16.mxu0 0
        %2815 = vmatmul.mubr.bf16.gmra.mrb[0].mxu0 %v2109
        %v2816 = vpop.f32.mrb[0].mxu0
        %v2817 = vadd.f32 0.0, %v2816
        %v2818 = vpop.f32.mrb[0].mxu0
        %v2819 = vadd.f32 0.0, %v2818
        %v2820 = vpop.f32.mrb[0].mxu0
        %v2821 = vpop.f32.mrb[0].mxu0
        %2822 = vdwg.mxu0
        %2823 = vmatprep.subr.bf16.mxu0 %v2561
        %2824 = vmatpush1.bf16.msra.mxu0 %v2560
        %2825 = vmatprep.subr.bf16.mxu0 %v2575
        %2826 = vmatpush1.bf16.msra.mxu0 %v2574
        %2827 = vmatprep.subr.bf16.mxu0 %v2589
        %2828 = vmatpush1.bf16.msra.mxu0 %v2588
        %2829 = vmatprep.subr.bf16.mxu0 %v2603
        %2830 = vmatpush1.bf16.msra.mxu0 %v2602
        %2831 = vmatprep.subr.bf16.mxu0 %v2617
        %2832 = vmatpush1.bf16.msra.mxu0 %v2616
        %2833 = vmatprep.subr.bf16.mxu0 %v2631
        %2834 = vmatpush1.bf16.msra.mxu0 %v2630
        %2835 = vmatprep.subr.bf16.mxu0 %v2645
        %2836 = vmatpush1.bf16.msra.mxu0 %v2644
        %2837 = vmatprep.subr.bf16.mxu0 %v2659
        %2838 = vmatpush1.bf16.msra.mxu0 %v2658
        %2839 = vmatprep.subr.bf16.mxu0 0
        %2840 = vmatpush1.bf16.msra.mxu0 0
        %2841 = vmatprep.subr.bf16.mxu0 0
        %2842 = vmatpush1.bf16.msra.mxu0 0
        %2843 = vmatprep.subr.bf16.mxu0 0
        %2844 = vmatpush1.bf16.msra.mxu0 0
        %2845 = vmatprep.subr.bf16.mxu0 0
        %2846 = vmatpush1.bf16.msra.mxu0 0
        %2847 = vmatprep.subr.bf16.mxu0 0
        %2848 = vmatpush1.bf16.msra.mxu0 0
        %2849 = vmatprep.subr.bf16.mxu0 0
        %2850 = vmatpush1.bf16.msra.mxu0 0
        %2851 = vmatprep.subr.bf16.mxu0 0
        %2852 = vmatpush1.bf16.msra.mxu0 0
        %2853 = vmatprep.subr.bf16.mxu0 0
        %2854 = vmatpush1.bf16.msra.mxu0 0
        %2855 = vmatprep.mubr.bf16.mxu0 0
        %2856 = vmatmul.mubr.bf16.gmra.mrb[0].mxu0 %v2109
        %v2857 = vpop.f32.mrb[0].mxu0
        %v2858 = vadd.f32 0.0, %v2857
        %v2859 = vpop.f32.mrb[0].mxu0
        %v2860 = vadd.f32 0.0, %v2859
        %v2861 = vpop.f32.mrb[0].mxu0
        %v2862 = vpop.f32.mrb[0].mxu0
        %2863 = vdwg.mxu0
        %2864 = vmatprep.subr.bf16.mxu0 %v2563
        %2865 = vmatpush1.bf16.msra.mxu0 %v2562
        %2866 = vmatprep.subr.bf16.mxu0 %v2577
        %2867 = vmatpush1.bf16.msra.mxu0 %v2576
        %2868 = vmatprep.subr.bf16.mxu0 %v2591
        %2869 = vmatpush1.bf16.msra.mxu0 %v2590
        %2870 = vmatprep.subr.bf16.mxu0 %v2605
        %2871 = vmatpush1.bf16.msra.mxu0 %v2604
        %2872 = vmatprep.subr.bf16.mxu0 %v2619
        %2873 = vmatpush1.bf16.msra.mxu0 %v2618
        %2874 = vmatprep.subr.bf16.mxu0 %v2633
        %2875 = vmatpush1.bf16.msra.mxu0 %v2632
        %2876 = vmatprep.subr.bf16.mxu0 %v2647
        %2877 = vmatpush1.bf16.msra.mxu0 %v2646
        %2878 = vmatprep.subr.bf16.mxu0 %v2661
        %2879 = vmatpush1.bf16.msra.mxu0 %v2660
        %2880 = vmatprep.subr.bf16.mxu0 0
        %2881 = vmatpush1.bf16.msra.mxu0 0
        %2882 = vmatprep.subr.bf16.mxu0 0
        %2883 = vmatpush1.bf16.msra.mxu0 0
        %2884 = vmatprep.subr.bf16.mxu0 0
        %2885 = vmatpush1.bf16.msra.mxu0 0
        %2886 = vmatprep.subr.bf16.mxu0 0
        %2887 = vmatpush1.bf16.msra.mxu0 0
        %2888 = vmatprep.subr.bf16.mxu0 0
        %2889 = vmatpush1.bf16.msra.mxu0 0
        %2890 = vmatprep.subr.bf16.mxu0 0
        %2891 = vmatpush1.bf16.msra.mxu0 0
        %2892 = vmatprep.subr.bf16.mxu0 0
        %2893 = vmatpush1.bf16.msra.mxu0 0
        %2894 = vmatprep.subr.bf16.mxu0 0
        %2895 = vmatpush1.bf16.msra.mxu0 0
        %2896 = vmatprep.mubr.bf16.mxu0 0
        %2897 = vmatmul.mubr.bf16.gmra.mrb[0].mxu0 %v2109
        %v2898 = vpop.f32.mrb[0].mxu0
        %v2899 = vadd.f32 0.0, %v2898
        %v2900 = vpop.f32.mrb[0].mxu0
        %v2901 = vadd.f32 0.0, %v2900
        %v2902 = vpop.f32.mrb[0].mxu0
        %v2903 = vpop.f32.mrb[0].mxu0
        %2904 = vdwg.mxu0
        %2905 = vmatprep.subr.bf16.mxu0 %v2565
        %2906 = vmatpush1.bf16.msra.mxu0 %v2564
        %2907 = vmatprep.subr.bf16.mxu0 %v2579
        %2908 = vmatpush1.bf16.msra.mxu0 %v2578
        %2909 = vmatprep.subr.bf16.mxu0 %v2593
        %2910 = vmatpush1.bf16.msra.mxu0 %v2592
        %2911 = vmatprep.subr.bf16.mxu0 %v2607
        %2912 = vmatpush1.bf16.msra.mxu0 %v2606
        %2913 = vmatprep.subr.bf16.mxu0 %v2621
        %2914 = vmatpush1.bf16.msra.mxu0 %v2620
        %2915 = vmatprep.subr.bf16.mxu0 %v2635
        %2916 = vmatpush1.bf16.msra.mxu0 %v2634
        %2917 = vmatprep.subr.bf16.mxu0 %v2649
        %2918 = vmatpush1.bf16.msra.mxu0 %v2648
        %2919 = vmatprep.subr.bf16.mxu0 %v2663
        %2920 = vmatpush1.bf16.msra.mxu0 %v2662
        %2921 = vmatprep.subr.bf16.mxu0 0
        %2922 = vmatpush1.bf16.msra.mxu0 0
        %2923 = vmatprep.subr.bf16.mxu0 0
        %2924 = vmatpush1.bf16.msra.mxu0 0
        %2925 = vmatprep.subr.bf16.mxu0 0
        %2926 = vmatpush1.bf16.msra.mxu0 0
        %2927 = vmatprep.subr.bf16.mxu0 0
        %2928 = vmatpush1.bf16.msra.mxu0 0
        %2929 = vmatprep.subr.bf16.mxu0 0
        %2930 = vmatpush1.bf16.msra.mxu0 0
        %2931 = vmatprep.subr.bf16.mxu0 0
        %2932 = vmatpush1.bf16.msra.mxu0 0
        %2933 = vmatprep.subr.bf16.mxu0 0
        %2934 = vmatpush1.bf16.msra.mxu0 0
        %2935 = vmatprep.subr.bf16.mxu0 0
        %2936 = vmatpush1.bf16.msra.mxu0 0
        %2937 = vmatprep.mubr.bf16.mxu0 0
        %2938 = vmatmul.mubr.bf16.gmra.mrb[0].mxu0 %v2109
        %v2939 = vpop.f32.mrb[0].mxu0
        %v2940 = vadd.f32 0.0, %v2939
        %v2941 = vpop.f32.mrb[0].mxu0
        %v2942 = vadd.f32 0.0, %v2941
        %v2943 = vpop.f32.mrb[0].mxu0
        %v2944 = vpop.f32.mrb[0].mxu0
        %2945 = vdwg.mxu0
        %2946 = vmatprep.subr.bf16.mxu0 %v2567
        %2947 = vmatpush1.bf16.msra.mxu0 %v2566
        %2948 = vmatprep.subr.bf16.mxu0 %v2581
        %2949 = vmatpush1.bf16.msra.mxu0 %v2580
        %2950 = vmatprep.subr.bf16.mxu0 %v2595
        %2951 = vmatpush1.bf16.msra.mxu0 %v2594
        %2952 = vmatprep.subr.bf16.mxu0 %v2609
        %2953 = vmatpush1.bf16.msra.mxu0 %v2608
        %2954 = vmatprep.subr.bf16.mxu0 %v2623
        %2955 = vmatpush1.bf16.msra.mxu0 %v2622
        %2956 = vmatprep.subr.bf16.mxu0 %v2637
        %2957 = vmatpush1.bf16.msra.mxu0 %v2636
        %2958 = vmatprep.subr.bf16.mxu0 %v2651
        %2959 = vmatpush1.bf16.msra.mxu0 %v2650
        %2960 = vmatprep.subr.bf16.mxu0 %v2665
        %2961 = vmatpush1.bf16.msra.mxu0 %v2664
        %2962 = vmatprep.subr.bf16.mxu0 0
        %2963 = vmatpush1.bf16.msra.mxu0 0
        %2964 = vmatprep.subr.bf16.mxu0 0
        %2965 = vmatpush1.bf16.msra.mxu0 0
        %2966 = vmatprep.subr.bf16.mxu0 0
        %2967 = vmatpush1.bf16.msra.mxu0 0
        %2968 = vmatprep.subr.bf16.mxu0 0
        %2969 = vmatpush1.bf16.msra.mxu0 0
        %2970 = vmatprep.subr.bf16.mxu0 0
        %2971 = vmatpush1.bf16.msra.mxu0 0
        %2972 = vmatprep.subr.bf16.mxu0 0
        %2973 = vmatpush1.bf16.msra.mxu0 0
        %2974 = vmatprep.subr.bf16.mxu0 0
        %2975 = vmatpush1.bf16.msra.mxu0 0
        %2976 = vmatprep.subr.bf16.mxu0 0
        %2977 = vmatpush1.bf16.msra.mxu0 0
        %2978 = vmatprep.mubr.bf16.mxu0 0
        %2979 = vmatmul.mubr.bf16.gmra.mrb[0].mxu0 %v2109
        %v2980 = vpop.f32.mrb[0].mxu0
        %v2981 = vadd.f32 0.0, %v2980
        %v2982 = vpop.f32.mrb[0].mxu0
        %v2983 = vadd.f32 0.0, %v2982
        %v2984 = vpop.f32.mrb[0].mxu0
        %v2985 = vpop.f32.mrb[0].mxu0
        %2986 = vdwg.mxu0
        %2987 = vmatprep.subr.bf16.mxu0 %v2569
        %2988 = vmatpush1.bf16.msra.mxu0 %v2568
        %2989 = vmatprep.subr.bf16.mxu0 %v2583
        %2990 = vmatpush1.bf16.msra.mxu0 %v2582
        %2991 = vmatprep.subr.bf16.mxu0 %v2597
        %2992 = vmatpush1.bf16.msra.mxu0 %v2596
        %2993 = vmatprep.subr.bf16.mxu0 %v2611
        %2994 = vmatpush1.bf16.msra.mxu0 %v2610
        %2995 = vmatprep.subr.bf16.mxu0 %v2625
        %2996 = vmatpush1.bf16.msra.mxu0 %v2624
        %2997 = vmatprep.subr.bf16.mxu0 %v2639
        %2998 = vmatpush1.bf16.msra.mxu0 %v2638
        %2999 = vmatprep.subr.bf16.mxu0 %v2653
        %3000 = vmatpush1.bf16.msra.mxu0 %v2652
        %3001 = vmatprep.subr.bf16.mxu0 %v2667
        %3002 = vmatpush1.bf16.msra.mxu0 %v2666
        %3003 = vmatprep.subr.bf16.mxu0 0
        %3004 = vmatpush1.bf16.msra.mxu0 0
        %3005 = vmatprep.subr.bf16.mxu0 0
        %3006 = vmatpush1.bf16.msra.mxu0 0
        %3007 = vmatprep.subr.bf16.mxu0 0
        %3008 = vmatpush1.bf16.msra.mxu0 0
        %3009 = vmatprep.subr.bf16.mxu0 0
        %3010 = vmatpush1.bf16.msra.mxu0 0
        %3011 = vmatprep.subr.bf16.mxu0 0
        %3012 = vmatpush1.bf16.msra.mxu0 0
        %3013 = vmatprep.subr.bf16.mxu0 0
        %3014 = vmatpush1.bf16.msra.mxu0 0
        %3015 = vmatprep.subr.bf16.mxu0 0
        %3016 = vmatpush1.bf16.msra.mxu0 0
        %3017 = vmatprep.subr.bf16.mxu0 0
        %3018 = vmatpush1.bf16.msra.mxu0 0
        %3019 = vmatprep.mubr.bf16.mxu0 0
        %3020 = vmatmul.mubr.bf16.gmra.mrb[0].mxu0 %v2109
        %v3021 = vpop.f32.mrb[0].mxu0
        %v3022 = vadd.f32 0.0, %v3021
        %v3023 = vpop.f32.mrb[0].mxu0
        %v3024 = vadd.f32 0.0, %v3023
        %v3025 = vpop.f32.mrb[0].mxu0
        %v3026 = vpop.f32.mrb[0].mxu0
        %3027 = vdwg.mxu0
        %3028 = vmatprep.subr.bf16.mxu0 %v2571
        %3029 = vmatpush1.bf16.msra.mxu0 %v2570
        %3030 = vmatprep.subr.bf16.mxu0 %v2585
        %3031 = vmatpush1.bf16.msra.mxu0 %v2584
        %3032 = vmatprep.subr.bf16.mxu0 %v2599
        %3033 = vmatpush1.bf16.msra.mxu0 %v2598
        %3034 = vmatprep.subr.bf16.mxu0 %v2613
        %3035 = vmatpush1.bf16.msra.mxu0 %v2612
        %3036 = vmatprep.subr.bf16.mxu0 %v2627
        %3037 = vmatpush1.bf16.msra.mxu0 %v2626
        %3038 = vmatprep.subr.bf16.mxu0 %v2641
        %3039 = vmatpush1.bf16.msra.mxu0 %v2640
        %3040 = vmatprep.subr.bf16.mxu0 %v2655
        %3041 = vmatpush1.bf16.msra.mxu0 %v2654
        %3042 = vmatprep.subr.bf16.mxu0 %v2669
        %3043 = vmatpush1.bf16.msra.mxu0 %v2668
        %3044 = vmatprep.subr.bf16.mxu0 0
        %3045 = vmatpush1.bf16.msra.mxu0 0
        %3046 = vmatprep.subr.bf16.mxu0 0
        %3047 = vmatpush1.bf16.msra.mxu0 0
        %3048 = vmatprep.subr.bf16.mxu0 0
        %3049 = vmatpush1.bf16.msra.mxu0 0
        %3050 = vmatprep.subr.bf16.mxu0 0
        %3051 = vmatpush1.bf16.msra.mxu0 0
        %3052 = vmatprep.subr.bf16.mxu0 0
        %3053 = vmatpush1.bf16.msra.mxu0 0
        %3054 = vmatprep.subr.bf16.mxu0 0
        %3055 = vmatpush1.bf16.msra.mxu0 0
        %3056 = vmatprep.subr.bf16.mxu0 0
        %3057 = vmatpush1.bf16.msra.mxu0 0
        %3058 = vmatprep.subr.bf16.mxu0 0
        %3059 = vmatpush1.bf16.msra.mxu0 0
        %3060 = vmatprep.mubr.bf16.mxu0 0
        %3061 = vmatmul.mubr.bf16.gmra.mrb[0].mxu0 %v2109
        %v3062 = vpop.f32.mrb[0].mxu0
        %v3063 = vadd.f32 0.0, %v3062
        %v3064 = vpop.f32.mrb[0].mxu0
        %v3065 = vadd.f32 0.0, %v3064
        %v3066 = vpop.f32.mrb[0].mxu0
        %v3067 = vpop.f32.mrb[0].mxu0
        %3068 = vdwg.mxu0
        %v3083 = vrot.slane %v2817, 1
        %v3084 = vrot.slane %v2819, 1
        %v3085 = vrot.slane %v2858, 1
        %v3086 = vrot.slane %v2860, 1
        %v3087 = vrot.slane %v2899, 1
        %v3088 = vrot.slane %v2901, 1
        %v3089 = vrot.slane %v2940, 1
        %v3090 = vrot.slane %v2942, 1
        %v3091 = vrot.slane %v2981, 1
        %v3092 = vrot.slane %v2983, 1
        %v3093 = vrot.slane %v3022, 1
        %v3094 = vrot.slane %v3024, 1
        %v3095 = vrot.slane %v3063, 1
        %v3096 = vrot.slane %v3065, 1
        %v3111 = vadd.f32 %v2817, %v3083
        %v3112 = vadd.f32 %v2819, %v3084
        %v3113 = vadd.f32 %v2858, %v3085
        %v3114 = vadd.f32 %v2860, %v3086
        %v3115 = vadd.f32 %v2899, %v3087
        %v3116 = vadd.f32 %v2901, %v3088
        %v3117 = vadd.f32 %v2940, %v3089
        %v3118 = vadd.f32 %v2942, %v3090
        %v3119 = vadd.f32 %v2981, %v3091
        %v3120 = vadd.f32 %v2983, %v3092
        %v3121 = vadd.f32 %v3022, %v3093
        %v3122 = vadd.f32 %v3024, %v3094
        %v3123 = vadd.f32 %v3063, %v3095
        %v3124 = vadd.f32 %v3065, %v3096
        %v3125 = vxor.u32 %v3111, 2147483648
        %v3126 = vxor.u32 %v3112, 2147483648
        %v3127 = vxor.u32 %v3113, 2147483648
        %v3128 = vxor.u32 %v3114, 2147483648
        %v3129 = vxor.u32 %v3115, 2147483648
        %v3130 = vxor.u32 %v3116, 2147483648
        %v3131 = vxor.u32 %v3117, 2147483648
        %v3132 = vxor.u32 %v3118, 2147483648
        %v3133 = vxor.u32 %v3119, 2147483648
        %v3134 = vxor.u32 %v3120, 2147483648
        %v3135 = vxor.u32 %v3121, 2147483648
        %v3136 = vxor.u32 %v3122, 2147483648
        %v3137 = vxor.u32 %v3123, 2147483648
        %v3138 = vxor.u32 %v3124, 2147483648
        %v3139 = vmul.f32 %v3125, 1.442695
        %v3140 = vpow.pop %v3139
        %v3141 = vmul.f32 %v3126, 1.442695
        %v3142 = vpow.pop %v3141
        %v3143 = vmul.f32 %v3127, 1.442695
        %v3144 = vpow.pop %v3143
        %v3145 = vmul.f32 %v3128, 1.442695
        %v3146 = vpow.pop %v3145
        %v3147 = vmul.f32 %v3129, 1.442695
        %v3148 = vpow.pop %v3147
        %v3149 = vmul.f32 %v3130, 1.442695
        %v3150 = vpow.pop %v3149
        %v3151 = vmul.f32 %v3131, 1.442695
        %v3152 = vpow.pop %v3151
        %v3153 = vmul.f32 %v3132, 1.442695
        %v3154 = vpow.pop %v3153
        %v3155 = vmul.f32 %v3133, 1.442695
        %v3156 = vpow.pop %v3155
        %v3157 = vmul.f32 %v3134, 1.442695
        %v3158 = vpow.pop %v3157
        %v3159 = vmul.f32 %v3135, 1.442695
        %v3160 = vpow.pop %v3159
        %v3161 = vmul.f32 %v3136, 1.442695
        %v3162 = vpow.pop %v3161
        %v3163 = vmul.f32 %v3137, 1.442695
        %v3164 = vpow.pop %v3163
        %v3165 = vmul.f32 %v3138, 1.442695
        %v3166 = vpow.pop %v3165
        %v3167 = vadd.f32 %v3140, 1.0
        %v3168 = vadd.f32 %v3142, 1.0
        %v3169 = vadd.f32 %v3144, 1.0
        %v3170 = vadd.f32 %v3146, 1.0
        %v3171 = vadd.f32 %v3148, 1.0
        %v3172 = vadd.f32 %v3150, 1.0
        %v3173 = vadd.f32 %v3152, 1.0
        %v3174 = vadd.f32 %v3154, 1.0
        %v3175 = vadd.f32 %v3156, 1.0
        %v3176 = vadd.f32 %v3158, 1.0
        %v3177 = vadd.f32 %v3160, 1.0
        %v3178 = vadd.f32 %v3162, 1.0
        %v3179 = vadd.f32 %v3164, 1.0
        %v3180 = vadd.f32 %v3166, 1.0
        %v3181 = vrcp.pop %v3167
        %v3182 = vmul.f32 1.0, %v3181
        %v3183 = vrcp.pop %v3168
        %v3184 = vmul.f32 1.0, %v3183
        %v3185 = vrcp.pop %v3169
        %v3186 = vmul.f32 1.0, %v3185
        %v3187 = vrcp.pop %v3170
        %v3188 = vmul.f32 1.0, %v3187
        %v3189 = vrcp.pop %v3171
        %v3190 = vmul.f32 1.0, %v3189
        %v3191 = vrcp.pop %v3172
        %v3192 = vmul.f32 1.0, %v3191
        %v3193 = vrcp.pop %v3173
        %v3194 = vmul.f32 1.0, %v3193
        %v3195 = vrcp.pop %v3174
        %v3196 = vmul.f32 1.0, %v3195
        %v3197 = vrcp.pop %v3175
        %v3198 = vmul.f32 1.0, %v3197
        %v3199 = vrcp.pop %v3176
        %v3200 = vmul.f32 1.0, %v3199
        %v3201 = vrcp.pop %v3177
        %v3202 = vmul.f32 1.0, %v3201
        %v3203 = vrcp.pop %v3178
        %v3204 = vmul.f32 1.0, %v3203
        %v3205 = vrcp.pop %v3179
        %v3206 = vmul.f32 1.0, %v3205
        %v3207 = vrcp.pop %v3180
        %v3208 = vmul.f32 1.0, %v3207
        %v3209 = vpack.c.bf16 %v3182, %v3182
        %v3210 = vpack.c.bf16 %v3184, %v3184
        %v3211 = vpack.c.bf16 %v3186, %v3186
        %v3212 = vpack.c.bf16 %v3188, %v3188
        %v3213 = vpack.c.bf16 %v3190, %v3190
        %v3214 = vpack.c.bf16 %v3192, %v3192
        %v3215 = vpack.c.bf16 %v3194, %v3194
        %v3216 = vpack.c.bf16 %v3196, %v3196
        %v3217 = vpack.c.bf16 %v3198, %v3198
        %v3218 = vpack.c.bf16 %v3200, %v3200
        %v3219 = vpack.c.bf16 %v3202, %v3202
        %v3220 = vpack.c.bf16 %v3204, %v3204
        %v3221 = vpack.c.bf16 %v3206, %v3206
        %v3222 = vpack.c.bf16 %v3208, %v3208
        %v3224 = vpack.i.b16 %v3209, %v3209
        %v3226 = vlaneseq
        %v3227 = vshrl.u32 %v3226, 7
        %v3228 = vsub.s32 0, %v3227
        %v3229 = vrot.slane %v3224, %v3228
        %v3231 = vpack.i.b16 %v3210, %v3210
        %v3233 = vlaneseq
        %v3234 = vshrl.u32 %v3233, 7
        %v3235 = vsub.s32 0, %v3234
        %v3236 = vrot.slane %v3231, %v3235
        %v3238 = vpack.i.b16 %v3211, %v3211
        %v3240 = vlaneseq
        %v3241 = vshrl.u32 %v3240, 7
        %v3242 = vsub.s32 0, %v3241
        %v3243 = vrot.slane %v3238, %v3242
        %v3245 = vpack.i.b16 %v3212, %v3212
        %v3247 = vlaneseq
        %v3248 = vshrl.u32 %v3247, 7
        %v3249 = vsub.s32 0, %v3248
        %v3250 = vrot.slane %v3245, %v3249
        %v3252 = vpack.i.b16 %v3213, %v3213
        %v3254 = vlaneseq
        %v3255 = vshrl.u32 %v3254, 7
        %v3256 = vsub.s32 0, %v3255
        %v3257 = vrot.slane %v3252, %v3256
        %v3259 = vpack.i.b16 %v3214, %v3214
        %v3261 = vlaneseq
        %v3262 = vshrl.u32 %v3261, 7
        %v3263 = vsub.s32 0, %v3262
        %v3264 = vrot.slane %v3259, %v3263
        %v3266 = vpack.i.b16 %v3215, %v3215
        %v3268 = vlaneseq
        %v3269 = vshrl.u32 %v3268, 7
        %v3270 = vsub.s32 0, %v3269
        %v3271 = vrot.slane %v3266, %v3270
        %v3273 = vpack.i.b16 %v3216, %v3216
        %v3275 = vlaneseq
        %v3276 = vshrl.u32 %v3275, 7
        %v3277 = vsub.s32 0, %v3276
        %v3278 = vrot.slane %v3273, %v3277
        %v3280 = vpack.i.b16 %v3217, %v3217
        %v3282 = vlaneseq
        %v3283 = vshrl.u32 %v3282, 7
        %v3284 = vsub.s32 0, %v3283
        %v3285 = vrot.slane %v3280, %v3284
        %v3287 = vpack.i.b16 %v3218, %v3218
        %v3289 = vlaneseq
        %v3290 = vshrl.u32 %v3289, 7
        %v3291 = vsub.s32 0, %v3290
        %v3292 = vrot.slane %v3287, %v3291
        %v3294 = vpack.i.b16 %v3219, %v3219
        %v3296 = vlaneseq
        %v3297 = vshrl.u32 %v3296, 7
        %v3298 = vsub.s32 0, %v3297
        %v3299 = vrot.slane %v3294, %v3298
        %v3301 = vpack.i.b16 %v3220, %v3220
        %v3303 = vlaneseq
        %v3304 = vshrl.u32 %v3303, 7
        %v3305 = vsub.s32 0, %v3304
        %v3306 = vrot.slane %v3301, %v3305
        %v3308 = vpack.i.b16 %v3221, %v3221
        %v3310 = vlaneseq
        %v3311 = vshrl.u32 %v3310, 7
        %v3312 = vsub.s32 0, %v3311
        %v3313 = vrot.slane %v3308, %v3312
        %v3315 = vpack.i.b16 %v3222, %v3222
        %v3317 = vlaneseq
        %v3318 = vshrl.u32 %v3317, 7
        %v3319 = vsub.s32 0, %v3318
        %v3320 = vrot.slane %v3315, %v3319
        %v3335 = vunpack.c.l.b16 %v3229
        %v3336 = vunpack.c.l.b16 %v3236
        %v3337 = vunpack.c.l.b16 %v3243
        %v3338 = vunpack.c.l.b16 %v3250
        %v3339 = vunpack.c.l.b16 %v3257
        %v3340 = vunpack.c.l.b16 %v3264
        %v3341 = vunpack.c.l.b16 %v3271
        %v3342 = vunpack.c.l.b16 %v3278
        %v3343 = vunpack.c.l.b16 %v3285
        %v3344 = vunpack.c.l.b16 %v3292
        %v3345 = vunpack.c.l.b16 %v3299
        %v3346 = vunpack.c.l.b16 %v3306
        %v3347 = vunpack.c.l.b16 %v3313
        %v3348 = vunpack.c.l.b16 %v3320
        %v3349 = vpack.c.b16 %v3336, %v3335
        %v3350 = vpack.c.b16 %v3338, %v3337
        %v3351 = vpack.c.b16 %v3340, %v3339
        %v3352 = vpack.c.b16 %v3342, %v3341
        %v3353 = vpack.c.b16 %v3344, %v3343
        %v3354 = vpack.c.b16 %v3346, %v3345
        %v3355 = vpack.c.b16 %v3348, %v3347
        %v3363 = vmul.bf16 %v524, %v3349
        %v3364 = vmul.bf16 %v525, %v3350
        %v3365 = vmul.bf16 %v526, %v3351
        %v3366 = vmul.bf16 %v527, %v3352
        %v3367 = vmul.bf16 %v528, %v3353
        %v3368 = vmul.bf16 %v529, %v3354
        %v3369 = vmul.bf16 %v530, %v3355
        %v3370 = vmul.bf16 %v531, %v3349
        %v3371 = vmul.bf16 %v532, %v3350
        %v3372 = vmul.bf16 %v533, %v3351
        %v3373 = vmul.bf16 %v534, %v3352
        %v3374 = vmul.bf16 %v535, %v3353
        %v3375 = vmul.bf16 %v536, %v3354
        %v3376 = vmul.bf16 %v537, %v3355
        %v3377 = vunpack.c.l.bf16 %v3363
        %v3378 = vunpack.c.h.bf16 %v3363
        %v3379 = vunpack.c.l.bf16 %v3364
        %v3380 = vunpack.c.h.bf16 %v3364
        %v3381 = vunpack.c.l.bf16 %v3365
        %v3382 = vunpack.c.h.bf16 %v3365
        %v3383 = vunpack.c.l.bf16 %v3366
        %v3384 = vunpack.c.h.bf16 %v3366
        %v3385 = vunpack.c.l.bf16 %v3367
        %v3386 = vunpack.c.h.bf16 %v3367
        %v3387 = vunpack.c.l.bf16 %v3368
        %v3388 = vunpack.c.h.bf16 %v3368
        %v3389 = vunpack.c.l.bf16 %v3369
        %v3390 = vunpack.c.h.bf16 %v3369
        %v3391 = vunpack.c.l.bf16 %v3370
        %v3392 = vunpack.c.h.bf16 %v3370
        %v3393 = vunpack.c.l.bf16 %v3371
        %v3394 = vunpack.c.h.bf16 %v3371
        %v3395 = vunpack.c.l.bf16 %v3372
        %v3396 = vunpack.c.h.bf16 %v3372
        %v3397 = vunpack.c.l.bf16 %v3373
        %v3398 = vunpack.c.h.bf16 %v3373
        %v3399 = vunpack.c.l.bf16 %v3374
        %v3400 = vunpack.c.h.bf16 %v3374
        %v3401 = vunpack.c.l.bf16 %v3375
        %v3402 = vunpack.c.h.bf16 %v3375
        %v3403 = vunpack.c.l.bf16 %v3376
        %v3404 = vunpack.c.h.bf16 %v3376
        %v3405 = vadd.f32 %v3377, %v3378
        %v3406 = vadd.f32 %v3405, %v3379
        %v3407 = vadd.f32 %v3406, %v3380
        %v3408 = vadd.f32 %v3407, %v3381
        %v3409 = vadd.f32 %v3408, %v3382
        %v3410 = vadd.f32 %v3409, %v3383
        %v3411 = vadd.f32 %v3410, %v3384
        %v3412 = vadd.f32 %v3411, %v3385
        %v3413 = vadd.f32 %v3412, %v3386
        %v3414 = vadd.f32 %v3413, %v3387
        %v3415 = vadd.f32 %v3414, %v3388
        %v3416 = vadd.f32 %v3415, %v3389
        %v3417 = vadd.f32 %v3416, %v3390
        %3418 = vadd.xlane.f32.xlu0 %v3417
        %v3419 = vpop.xlane.xlu0 %3418
        %v3420 = vadd.f32 %v3391, %v3392
        %v3421 = vadd.f32 %v3420, %v3393
        %v3422 = vadd.f32 %v3421, %v3394
        %v3423 = vadd.f32 %v3422, %v3395
        %v3424 = vadd.f32 %v3423, %v3396
        %v3425 = vadd.f32 %v3424, %v3397
        %v3426 = vadd.f32 %v3425, %v3398
        %v3427 = vadd.f32 %v3426, %v3399
        %v3428 = vadd.f32 %v3427, %v3400
        %v3429 = vadd.f32 %v3428, %v3401
        %v3430 = vadd.f32 %v3429, %v3402
        %v3431 = vadd.f32 %v3430, %v3403
        %v3432 = vadd.f32 %v3431, %v3404
        %3433 = vadd.xlane.f32.xlu0 %v3432
        %v3434 = vpop.xlane.xlu0 %3433
        %v3435 = vrcp.pop 1792.0
        %v3436 = vmul.f32 %v3419, %v3435
        %v3437 = vmul.f32 %v3434, %v3435
        %v3452 = vunpack.c.l.b16 %v3363
        %v3453 = vunpack.c.h.b16 %v3363
        %v3454 = vunpack.c.l.b16 %v3364
        %v3455 = vunpack.c.h.b16 %v3364
        %v3456 = vunpack.c.l.b16 %v3365
        %v3457 = vunpack.c.h.b16 %v3365
        %v3458 = vunpack.c.l.b16 %v3366
        %v3459 = vunpack.c.h.b16 %v3366
        %v3460 = vunpack.c.l.b16 %v3367
        %v3461 = vunpack.c.h.b16 %v3367
        %v3462 = vunpack.c.l.b16 %v3368
        %v3463 = vunpack.c.h.b16 %v3368
        %v3464 = vunpack.c.l.b16 %v3369
        %v3465 = vunpack.c.h.b16 %v3369
        %v3466 = vunpack.c.l.b16 %v3370
        %v3467 = vunpack.c.h.b16 %v3370
        %v3468 = vunpack.c.l.b16 %v3371
        %v3469 = vunpack.c.h.b16 %v3371
        %v3470 = vunpack.c.l.b16 %v3372
        %v3471 = vunpack.c.h.b16 %v3372
        %v3472 = vunpack.c.l.b16 %v3373
        %v3473 = vunpack.c.h.b16 %v3373
        %v3474 = vunpack.c.l.b16 %v3374
        %v3475 = vunpack.c.h.b16 %v3374
        %v3476 = vunpack.c.l.b16 %v3375
        %v3477 = vunpack.c.h.b16 %v3375
        %v3478 = vunpack.c.l.b16 %v3376
        %v3479 = vunpack.c.h.b16 %v3376
        %v3480 = vpack.c.b16 %v3466, %v3452
        %v3481 = vpack.c.b16 %v3467, %v3453
        %v3482 = vpack.c.b16 %v3468, %v3454
        %v3483 = vpack.c.b16 %v3469, %v3455
        %v3484 = vpack.c.b16 %v3470, %v3456
        %v3485 = vpack.c.b16 %v3471, %v3457
        %v3486 = vpack.c.b16 %v3472, %v3458
        %v3487 = vpack.c.b16 %v3473, %v3459
        %v3488 = vpack.c.b16 %v3474, %v3460
        %v3489 = vpack.c.b16 %v3475, %v3461
        %v3490 = vpack.c.b16 %v3476, %v3462
        %v3491 = vpack.c.b16 %v3477, %v3463
        %v3492 = vpack.c.b16 %v3478, %v3464
        %v3493 = vpack.c.b16 %v3479, %v3465
        %v3508 = vmax.bf16 %v3480, %v3484
        %v3509 = vmax.bf16 %v3481, %v3485
        %v3510 = vmax.bf16 %v3482, %v3486
        %v3511 = vmax.bf16 %v3483, %v3487
        %v3512 = vmax.bf16 %v3508, %v3488
        %v3513 = vmax.bf16 %v3509, %v3489
        %v3514 = vmax.bf16 %v3510, %v3490
        %v3515 = vmax.bf16 %v3511, %v3491
        %v3516 = vmax.bf16 %v3512, %v3492
        %v3517 = vmax.bf16 %v3513, %v3493
        %v3518 = vmax.bf16 %v3516, %v3517
        %v3519 = vmax.bf16 %v3514, %v3515
        %v3520 = vmax.bf16 %v3518, %v3519
        %3521 = vmax.xlane.bf16.xlu0 %v3520
        %v3522 = vpop.xlane.xlu0 %3521
        %v3523 = vpack.c.bf16 %v3437, %v3436
        %v3524 = vld [vmem:[#allocation6] sm:$0xf]
        %v3525 = vld [vmem:[#allocation6 + $0x4] sm:$0xf]
        %v3526 = vld [vmem:[#allocation7] sm:$0xf]
        %v3527 = vld [vmem:[#allocation7 + $0x4] sm:$0xf]
        %v3529 = vunpack.c.l.b16 %v3522
        %v3530 = vunpack.c.h.b16 %v3522
        %v3531 = vlaneseq
        %v3532 = vand.u32 %v3531, 127
        %v3533 = vlaneseq
        %v3534 = vshrl.u32 %v3533, 7
        %v3535 = vsub.s32 %v3532, %v3534
        %v3536 = vrot.slane %v3529, %v3535
        %v3537 = vadd.s32 %v3532, 4294967288
        %v3538 = vlaneseq
        %v3539 = vshrl.u32 %v3538, 7
        %v3540 = vsub.s32 %v3537, %v3539
        %v3541 = vrot.slane %v3530, %v3540
        %vm3542 = vcmask 130112
        %v3543 = vsel %vm3542, %v3541, %v3536
        %v3544 = vpack.c.b16 %v3543, %v3543
        %v3547 = vunpack.c.l.b16 %v3526
        %v3548 = vunpack.c.l.b16 %v3527
        %v3549 = vpack.c.b16 %v3548, %v3547
        %vm3551 = vcmask 130048
        %v3553 = vsel %vm3551, %v3544, 0
        %3555 = vmatprep.subr.bf16.mxu0 0
        %3556 = vmatpush1.bf16.msra.mxu0 %v3549
        %3557 = vmatprep.subr.bf16.mxu0 0
        %3558 = vmatpush1.bf16.msra.mxu0 0
        %3559 = vmatprep.subr.bf16.mxu0 0
        %3560 = vmatpush1.bf16.msra.mxu0 0
        %3561 = vmatprep.subr.bf16.mxu0 0
        %3562 = vmatpush1.bf16.msra.mxu0 0
        %3563 = vmatprep.subr.bf16.mxu0 0
        %3564 = vmatpush1.bf16.msra.mxu0 0
        %3565 = vmatprep.subr.bf16.mxu0 0
        %3566 = vmatpush1.bf16.msra.mxu0 0
        %3567 = vmatprep.subr.bf16.mxu0 0
        %3568 = vmatpush1.bf16.msra.mxu0 0
        %3569 = vmatprep.subr.bf16.mxu0 0
        %3570 = vmatpush1.bf16.msra.mxu0 0
        %3571 = vmatprep.subr.bf16.mxu0 0
        %3572 = vmatpush1.bf16.msra.mxu0 0
        %3573 = vmatprep.subr.bf16.mxu0 0
        %3574 = vmatpush1.bf16.msra.mxu0 0
        %3575 = vmatprep.subr.bf16.mxu0 0
        %3576 = vmatpush1.bf16.msra.mxu0 0
        %3577 = vmatprep.subr.bf16.mxu0 0
        %3578 = vmatpush1.bf16.msra.mxu0 0
        %3579 = vmatprep.subr.bf16.mxu0 0
        %3580 = vmatpush1.bf16.msra.mxu0 0
        %3581 = vmatprep.subr.bf16.mxu0 0
        %3582 = vmatpush1.bf16.msra.mxu0 0
        %3583 = vmatprep.subr.bf16.mxu0 0
        %3584 = vmatpush1.bf16.msra.mxu0 0
        %3585 = vmatprep.subr.bf16.mxu0 0
        %3586 = vmatpush1.bf16.msra.mxu0 0
        %3587 = vmatprep.mubr.bf16.mxu0 0
        %3588 = vmatmul.mubr.bf16.gmra.mrb[0].mxu0 %v3553
        %v3589 = vpop.f32.mrb[0].mxu0
        %v3590 = vadd.f32 0.0, %v3589
        %v3591 = vpop.f32.mrb[0].mxu0
        %v3592 = vpop.f32.mrb[0].mxu0
        %v3593 = vpop.f32.mrb[0].mxu0
        %3594 = vdwg.mxu0
        %v3596 = vunpack.c.l.b16 %v3523
        %v3597 = vunpack.c.h.b16 %v3523
        %v3598 = vlaneseq
        %v3599 = vshrl.u32 %v3598, 7
        %v3600 = vsub.s32 %v3532, %v3599
        %v3601 = vrot.slane %v3596, %v3600
        %v3602 = vlaneseq
        %v3603 = vshrl.u32 %v3602, 7
        %v3604 = vsub.s32 %v3537, %v3603
        %v3605 = vrot.slane %v3597, %v3604
        %v3606 = vsel %vm3542, %v3605, %v3601
        %v3607 = vpack.c.b16 %v3606, %v3606
        %v3610 = vunpack.c.l.b16 %v3524
        %v3611 = vunpack.c.l.b16 %v3525
        %v3612 = vpack.c.b16 %v3611, %v3610
        %v3615 = vsel %vm3551, %v3607, 0
        %3617 = vmatprep.subr.bf16.mxu0 0
        %3618 = vmatpush1.bf16.msra.mxu0 %v3612
        %3619 = vmatprep.subr.bf16.mxu0 0
        %3620 = vmatpush1.bf16.msra.mxu0 0
        %3621 = vmatprep.subr.bf16.mxu0 0
        %3622 = vmatpush1.bf16.msra.mxu0 0
        %3623 = vmatprep.subr.bf16.mxu0 0
        %3624 = vmatpush1.bf16.msra.mxu0 0
        %3625 = vmatprep.subr.bf16.mxu0 0
        %3626 = vmatpush1.bf16.msra.mxu0 0
        %3627 = vmatprep.subr.bf16.mxu0 0
        %3628 = vmatpush1.bf16.msra.mxu0 0
        %3629 = vmatprep.subr.bf16.mxu0 0
        %3630 = vmatpush1.bf16.msra.mxu0 0
        %3631 = vmatprep.subr.bf16.mxu0 0
        %3632 = vmatpush1.bf16.msra.mxu0 0
        %3633 = vmatprep.subr.bf16.mxu0 0
        %3634 = vmatpush1.bf16.msra.mxu0 0
        %3635 = vmatprep.subr.bf16.mxu0 0
        %3636 = vmatpush1.bf16.msra.mxu0 0
        %3637 = vmatprep.subr.bf16.mxu0 0
        %3638 = vmatpush1.bf16.msra.mxu0 0
        %3639 = vmatprep.subr.bf16.mxu0 0
        %3640 = vmatpush1.bf16.msra.mxu0 0
        %3641 = vmatprep.subr.bf16.mxu0 0
        %3642 = vmatpush1.bf16.msra.mxu0 0
        %3643 = vmatprep.subr.bf16.mxu0 0
        %3644 = vmatpush1.bf16.msra.mxu0 0
        %3645 = vmatprep.subr.bf16.mxu0 0
        %3646 = vmatpush1.bf16.msra.mxu0 0
        %3647 = vmatprep.subr.bf16.mxu0 0
        %3648 = vmatpush1.bf16.msra.mxu0 0
        %3649 = vmatprep.mubr.bf16.mxu0 0
        %3650 = vmatmul.mubr.bf16.gmra.mrb[0].mxu0 %v3615
        %v3651 = vpop.f32.mrb[0].mxu0
        %v3652 = vadd.f32 %v3590, %v3651
        %v3653 = vpop.f32.mrb[0].mxu0
        %v3654 = vpop.f32.mrb[0].mxu0
        %v3655 = vpop.f32.mrb[0].mxu0
        %3656 = vdwg.mxu0
        %v3657 = vxor.u32 %v3652, 2147483648
        %v3658 = vmul.f32 %v3657, 1.442695
        %v3659 = vpow.pop %v3658
        %v3660 = vadd.f32 %v3659, 1.0
        %v3661 = vrcp.pop %v3660
        %v3662 = vmul.f32 1.0, %v3661
        %v3663 = vpack.c.bf16 %v3662, %v3662
        %v3665 = vsel %vm3551, %v3663, 0
        %3667 = vmatprep.subr.bf16.mxu0 %v3481
        %3668 = vmatpush1.bf16.msra.mxu0 %v3480
        %3669 = vmatprep.subr.bf16.mxu0 0
        %3670 = vmatpush1.bf16.msra.mxu0 0
        %3671 = vmatprep.subr.bf16.mxu0 0
        %3672 = vmatpush1.bf16.msra.mxu0 0
        %3673 = vmatprep.subr.bf16.mxu0 0
        %3674 = vmatpush1.bf16.msra.mxu0 0
        %3675 = vmatprep.subr.bf16.mxu0 0
        %3676 = vmatpush1.bf16.msra.mxu0 0
        %3677 = vmatprep.subr.bf16.mxu0 0
        %3678 = vmatpush1.bf16.msra.mxu0 0
        %3679 = vmatprep.subr.bf16.mxu0 0
        %3680 = vmatpush1.bf16.msra.mxu0 0
        %3681 = vmatprep.subr.bf16.mxu0 0
        %3682 = vmatpush1.bf16.msra.mxu0 0
        %3683 = vmatprep.subr.bf16.mxu0 0
        %3684 = vmatpush1.bf16.msra.mxu0 0
        %3685 = vmatprep.subr.bf16.mxu0 0
        %3686 = vmatpush1.bf16.msra.mxu0 0
        %3687 = vmatprep.subr.bf16.mxu0 0
        %3688 = vmatpush1.bf16.msra.mxu0 0
        %3689 = vmatprep.subr.bf16.mxu0 0
        %3690 = vmatpush1.bf16.msra.mxu0 0
        %3691 = vmatprep.subr.bf16.mxu0 0
        %3692 = vmatpush1.bf16.msra.mxu0 0
        %3693 = vmatprep.subr.bf16.mxu0 0
        %3694 = vmatpush1.bf16.msra.mxu0 0
        %3695 = vmatprep.subr.bf16.mxu0 0
        %3696 = vmatpush1.bf16.msra.mxu0 0
        %3697 = vmatprep.subr.bf16.mxu0 0
        %3698 = vmatpush1.bf16.msra.mxu0 0
        %3699 = vmatprep.mubr.bf16.mxu0 0
        %3700 = vmatmul.mubr.bf16.gmra.mrb[0].mxu0 %v3665
        %v3701 = vpop.f32.mrb[0].mxu0
        %v3702 = vadd.f32 0.0, %v3701
        %v3703 = vpop.f32.mrb[0].mxu0
        %v3704 = vadd.f32 0.0, %v3703
        %v3705 = vpop.f32.mrb[0].mxu0
        %v3706 = vpop.f32.mrb[0].mxu0
        %3707 = vdwg.mxu0
        %3708 = vmatprep.subr.bf16.mxu0 %v3483
        %3709 = vmatpush1.bf16.msra.mxu0 %v3482
        %3710 = vmatprep.subr.bf16.mxu0 0
        %3711 = vmatpush1.bf16.msra.mxu0 0
        %3712 = vmatprep.subr.bf16.mxu0 0
        %3713 = vmatpush1.bf16.msra.mxu0 0
        %3714 = vmatprep.subr.bf16.mxu0 0
        %3715 = vmatpush1.bf16.msra.mxu0 0
        %3716 = vmatprep.subr.bf16.mxu0 0
        %3717 = vmatpush1.bf16.msra.mxu0 0
        %3718 = vmatprep.subr.bf16.mxu0 0
        %3719 = vmatpush1.bf16.msra.mxu0 0
        %3720 = vmatprep.subr.bf16.mxu0 0
        %3721 = vmatpush1.bf16.msra.mxu0 0
        %3722 = vmatprep.subr.bf16.mxu0 0
        %3723 = vmatpush1.bf16.msra.mxu0 0
        %3724 = vmatprep.subr.bf16.mxu0 0
        %3725 = vmatpush1.bf16.msra.mxu0 0
        %3726 = vmatprep.subr.bf16.mxu0 0
        %3727 = vmatpush1.bf16.msra.mxu0 0
        %3728 = vmatprep.subr.bf16.mxu0 0
        %3729 = vmatpush1.bf16.msra.mxu0 0
        %3730 = vmatprep.subr.bf16.mxu0 0
        %3731 = vmatpush1.bf16.msra.mxu0 0
        %3732 = vmatprep.subr.bf16.mxu0 0
        %3733 = vmatpush1.bf16.msra.mxu0 0
        %3734 = vmatprep.subr.bf16.mxu0 0
        %3735 = vmatpush1.bf16.msra.mxu0 0
        %3736 = vmatprep.subr.bf16.mxu0 0
        %3737 = vmatpush1.bf16.msra.mxu0 0
        %3738 = vmatprep.subr.bf16.mxu0 0
        %3739 = vmatpush1.bf16.msra.mxu0 0
        %3740 = vmatprep.mubr.bf16.mxu0 0
        %3741 = vmatmul.mubr.bf16.gmra.mrb[0].mxu0 %v3665
        %v3742 = vpop.f32.mrb[0].mxu0
        %v3743 = vadd.f32 0.0, %v3742
        %v3744 = vpop.f32.mrb[0].mxu0
        %v3745 = vadd.f32 0.0, %v3744
        %v3746 = vpop.f32.mrb[0].mxu0
        %v3747 = vpop.f32.mrb[0].mxu0
        %3748 = vdwg.mxu0
        %3749 = vmatprep.subr.bf16.mxu0 %v3485
        %3750 = vmatpush1.bf16.msra.mxu0 %v3484
        %3751 = vmatprep.subr.bf16.mxu0 0
        %3752 = vmatpush1.bf16.msra.mxu0 0
        %3753 = vmatprep.subr.bf16.mxu0 0
        %3754 = vmatpush1.bf16.msra.mxu0 0
        %3755 = vmatprep.subr.bf16.mxu0 0
        %3756 = vmatpush1.bf16.msra.mxu0 0
        %3757 = vmatprep.subr.bf16.mxu0 0
        %3758 = vmatpush1.bf16.msra.mxu0 0
        %3759 = vmatprep.subr.bf16.mxu0 0
        %3760 = vmatpush1.bf16.msra.mxu0 0
        %3761 = vmatprep.subr.bf16.mxu0 0
        %3762 = vmatpush1.bf16.msra.mxu0 0
        %3763 = vmatprep.subr.bf16.mxu0 0
        %3764 = vmatpush1.bf16.msra.mxu0 0
        %3765 = vmatprep.subr.bf16.mxu0 0
        %3766 = vmatpush1.bf16.msra.mxu0 0
        %3767 = vmatprep.subr.bf16.mxu0 0
        %3768 = vmatpush1.bf16.msra.mxu0 0
        %3769 = vmatprep.subr.bf16.mxu0 0
        %3770 = vmatpush1.bf16.msra.mxu0 0
        %3771 = vmatprep.subr.bf16.mxu0 0
        %3772 = vmatpush1.bf16.msra.mxu0 0
        %3773 = vmatprep.subr.bf16.mxu0 0
        %3774 = vmatpush1.bf16.msra.mxu0 0
        %3775 = vmatprep.subr.bf16.mxu0 0
        %3776 = vmatpush1.bf16.msra.mxu0 0
        %3777 = vmatprep.subr.bf16.mxu0 0
        %3778 = vmatpush1.bf16.msra.mxu0 0
        %3779 = vmatprep.subr.bf16.mxu0 0
        %3780 = vmatpush1.bf16.msra.mxu0 0
        %3781 = vmatprep.mubr.bf16.mxu0 0
        %3782 = vmatmul.mubr.bf16.gmra.mrb[0].mxu0 %v3665
        %v3783 = vpop.f32.mrb[0].mxu0
        %v3784 = vadd.f32 0.0, %v3783
        %v3785 = vpop.f32.mrb[0].mxu0
        %v3786 = vadd.f32 0.0, %v3785
        %v3787 = vpop.f32.mrb[0].mxu0
        %v3788 = vpop.f32.mrb[0].mxu0
        %3789 = vdwg.mxu0
        %3790 = vmatprep.subr.bf16.mxu0 %v3487
        %3791 = vmatpush1.bf16.msra.mxu0 %v3486
        %3792 = vmatprep.subr.bf16.mxu0 0
        %3793 = vmatpush1.bf16.msra.mxu0 0
        %3794 = vmatprep.subr.bf16.mxu0 0
        %3795 = vmatpush1.bf16.msra.mxu0 0
        %3796 = vmatprep.subr.bf16.mxu0 0
        %3797 = vmatpush1.bf16.msra.mxu0 0
        %3798 = vmatprep.subr.bf16.mxu0 0
        %3799 = vmatpush1.bf16.msra.mxu0 0
        %3800 = vmatprep.subr.bf16.mxu0 0
        %3801 = vmatpush1.bf16.msra.mxu0 0
        %3802 = vmatprep.subr.bf16.mxu0 0
        %3803 = vmatpush1.bf16.msra.mxu0 0
        %3804 = vmatprep.subr.bf16.mxu0 0
        %3805 = vmatpush1.bf16.msra.mxu0 0
        %3806 = vmatprep.subr.bf16.mxu0 0
        %3807 = vmatpush1.bf16.msra.mxu0 0
        %3808 = vmatprep.subr.bf16.mxu0 0
        %3809 = vmatpush1.bf16.msra.mxu0 0
        %3810 = vmatprep.subr.bf16.mxu0 0
        %3811 = vmatpush1.bf16.msra.mxu0 0
        %3812 = vmatprep.subr.bf16.mxu0 0
        %3813 = vmatpush1.bf16.msra.mxu0 0
        %3814 = vmatprep.subr.bf16.mxu0 0
        %3815 = vmatpush1.bf16.msra.mxu0 0
        %3816 = vmatprep.subr.bf16.mxu0 0
        %3817 = vmatpush1.bf16.msra.mxu0 0
        %3818 = vmatprep.subr.bf16.mxu0 0
        %3819 = vmatpush1.bf16.msra.mxu0 0
        %3820 = vmatprep.subr.bf16.mxu0 0
        %3821 = vmatpush1.bf16.msra.mxu0 0
        %3822 = vmatprep.mubr.bf16.mxu0 0
        %3823 = vmatmul.mubr.bf16.gmra.mrb[0].mxu0 %v3665
        %v3824 = vpop.f32.mrb[0].mxu0
        %v3825 = vadd.f32 0.0, %v3824
        %v3826 = vpop.f32.mrb[0].mxu0
        %v3827 = vadd.f32 0.0, %v3826
        %v3828 = vpop.f32.mrb[0].mxu0
        %v3829 = vpop.f32.mrb[0].mxu0
        %3830 = vdwg.mxu0
        %3831 = vmatprep.subr.bf16.mxu0 %v3489
        %3832 = vmatpush1.bf16.msra.mxu0 %v3488
        %3833 = vmatprep.subr.bf16.mxu0 0
        %3834 = vmatpush1.bf16.msra.mxu0 0
        %3835 = vmatprep.subr.bf16.mxu0 0
        %3836 = vmatpush1.bf16.msra.mxu0 0
        %3837 = vmatprep.subr.bf16.mxu0 0
        %3838 = vmatpush1.bf16.msra.mxu0 0
        %3839 = vmatprep.subr.bf16.mxu0 0
        %3840 = vmatpush1.bf16.msra.mxu0 0
        %3841 = vmatprep.subr.bf16.mxu0 0
        %3842 = vmatpush1.bf16.msra.mxu0 0
        %3843 = vmatprep.subr.bf16.mxu0 0
        %3844 = vmatpush1.bf16.msra.mxu0 0
        %3845 = vmatprep.subr.bf16.mxu0 0
        %3846 = vmatpush1.bf16.msra.mxu0 0
        %3847 = vmatprep.subr.bf16.mxu0 0
        %3848 = vmatpush1.bf16.msra.mxu0 0
        %3849 = vmatprep.subr.bf16.mxu0 0
        %3850 = vmatpush1.bf16.msra.mxu0 0
        %3851 = vmatprep.subr.bf16.mxu0 0
        %3852 = vmatpush1.bf16.msra.mxu0 0
        %3853 = vmatprep.subr.bf16.mxu0 0
        %3854 = vmatpush1.bf16.msra.mxu0 0
        %3855 = vmatprep.subr.bf16.mxu0 0
        %3856 = vmatpush1.bf16.msra.mxu0 0
        %3857 = vmatprep.subr.bf16.mxu0 0
        %3858 = vmatpush1.bf16.msra.mxu0 0
        %3859 = vmatprep.subr.bf16.mxu0 0
        %3860 = vmatpush1.bf16.msra.mxu0 0
        %3861 = vmatprep.subr.bf16.mxu0 0
        %3862 = vmatpush1.bf16.msra.mxu0 0
        %3863 = vmatprep.mubr.bf16.mxu0 0
        %3864 = vmatmul.mubr.bf16.gmra.mrb[0].mxu0 %v3665
        %v3865 = vpop.f32.mrb[0].mxu0
        %v3866 = vadd.f32 0.0, %v3865
        %v3867 = vpop.f32.mrb[0].mxu0
        %v3868 = vadd.f32 0.0, %v3867
        %v3869 = vpop.f32.mrb[0].mxu0
        %v3870 = vpop.f32.mrb[0].mxu0
        %3871 = vdwg.mxu0
        %3872 = vmatprep.subr.bf16.mxu0 %v3491
        %3873 = vmatpush1.bf16.msra.mxu0 %v3490
        %3874 = vmatprep.subr.bf16.mxu0 0
        %3875 = vmatpush1.bf16.msra.mxu0 0
        %3876 = vmatprep.subr.bf16.mxu0 0
        %3877 = vmatpush1.bf16.msra.mxu0 0
        %3878 = vmatprep.subr.bf16.mxu0 0
        %3879 = vmatpush1.bf16.msra.mxu0 0
        %3880 = vmatprep.subr.bf16.mxu0 0
        %3881 = vmatpush1.bf16.msra.mxu0 0
        %3882 = vmatprep.subr.bf16.mxu0 0
        %3883 = vmatpush1.bf16.msra.mxu0 0
        %3884 = vmatprep.subr.bf16.mxu0 0
        %3885 = vmatpush1.bf16.msra.mxu0 0
        %3886 = vmatprep.subr.bf16.mxu0 0
        %3887 = vmatpush1.bf16.msra.mxu0 0
        %3888 = vmatprep.subr.bf16.mxu0 0
        %3889 = vmatpush1.bf16.msra.mxu0 0
        %3890 = vmatprep.subr.bf16.mxu0 0
        %3891 = vmatpush1.bf16.msra.mxu0 0
        %3892 = vmatprep.subr.bf16.mxu0 0
        %3893 = vmatpush1.bf16.msra.mxu0 0
        %3894 = vmatprep.subr.bf16.mxu0 0
        %3895 = vmatpush1.bf16.msra.mxu0 0
        %3896 = vmatprep.subr.bf16.mxu0 0
        %3897 = vmatpush1.bf16.msra.mxu0 0
        %3898 = vmatprep.subr.bf16.mxu0 0
        %3899 = vmatpush1.bf16.msra.mxu0 0
        %3900 = vmatprep.subr.bf16.mxu0 0
        %3901 = vmatpush1.bf16.msra.mxu0 0
        %3902 = vmatprep.subr.bf16.mxu0 0
        %3903 = vmatpush1.bf16.msra.mxu0 0
        %3904 = vmatprep.mubr.bf16.mxu0 0
        %3905 = vmatmul.mubr.bf16.gmra.mrb[0].mxu0 %v3665
        %v3906 = vpop.f32.mrb[0].mxu0
        %v3907 = vadd.f32 0.0, %v3906
        %v3908 = vpop.f32.mrb[0].mxu0
        %v3909 = vadd.f32 0.0, %v3908
        %v3910 = vpop.f32.mrb[0].mxu0
        %v3911 = vpop.f32.mrb[0].mxu0
        %3912 = vdwg.mxu0
        %3913 = vmatprep.subr.bf16.mxu0 %v3493
        %3914 = vmatpush1.bf16.msra.mxu0 %v3492
        %3915 = vmatprep.subr.bf16.mxu0 0
        %3916 = vmatpush1.bf16.msra.mxu0 0
        %3917 = vmatprep.subr.bf16.mxu0 0
        %3918 = vmatpush1.bf16.msra.mxu0 0
        %3919 = vmatprep.subr.bf16.mxu0 0
        %3920 = vmatpush1.bf16.msra.mxu0 0
        %3921 = vmatprep.subr.bf16.mxu0 0
        %3922 = vmatpush1.bf16.msra.mxu0 0
        %3923 = vmatprep.subr.bf16.mxu0 0
        %3924 = vmatpush1.bf16.msra.mxu0 0
        %3925 = vmatprep.subr.bf16.mxu0 0
        %3926 = vmatpush1.bf16.msra.mxu0 0
        %3927 = vmatprep.subr.bf16.mxu0 0
        %3928 = vmatpush1.bf16.msra.mxu0 0
        %3929 = vmatprep.subr.bf16.mxu0 0
        %3930 = vmatpush1.bf16.msra.mxu0 0
        %3931 = vmatprep.subr.bf16.mxu0 0
        %3932 = vmatpush1.bf16.msra.mxu0 0
        %3933 = vmatprep.subr.bf16.mxu0 0
        %3934 = vmatpush1.bf16.msra.mxu0 0
        %3935 = vmatprep.subr.bf16.mxu0 0
        %3936 = vmatpush1.bf16.msra.mxu0 0
        %3937 = vmatprep.subr.bf16.mxu0 0
        %3938 = vmatpush1.bf16.msra.mxu0 0
        %3939 = vmatprep.subr.bf16.mxu0 0
        %3940 = vmatpush1.bf16.msra.mxu0 0
        %3941 = vmatprep.subr.bf16.mxu0 0
        %3942 = vmatpush1.bf16.msra.mxu0 0
        %3943 = vmatprep.subr.bf16.mxu0 0
        %3944 = vmatpush1.bf16.msra.mxu0 0
        %3945 = vmatprep.mubr.bf16.mxu0 0
        %3946 = vmatmul.mubr.bf16.gmra.mrb[0].mxu0 %v3665
        %v3947 = vpop.f32.mrb[0].mxu0
        %v3948 = vadd.f32 0.0, %v3947
        %v3949 = vpop.f32.mrb[0].mxu0
        %v3950 = vadd.f32 0.0, %v3949
        %v3951 = vpop.f32.mrb[0].mxu0
        %v3952 = vpop.f32.mrb[0].mxu0
        %3953 = vdwg.mxu0
        %v3954 = vmul.f32 %v3702, 0.0625
        %v3955 = vmul.f32 %v3704, 0.0625
        %v3956 = vmul.f32 %v3743, 0.0625
        %v3957 = vmul.f32 %v3745, 0.0625
        %v3958 = vmul.f32 %v3784, 0.0625
        %v3959 = vmul.f32 %v3786, 0.0625
        %v3960 = vmul.f32 %v3825, 0.0625
        %v3961 = vmul.f32 %v3827, 0.0625
        %v3962 = vmul.f32 %v3866, 0.0625
        %v3963 = vmul.f32 %v3868, 0.0625
        %v3964 = vmul.f32 %v3907, 0.0625
        %v3965 = vmul.f32 %v3909, 0.0625
        %v3966 = vmul.f32 %v3948, 0.0625
        %v3967 = vmul.f32 %v3950, 0.0625
        %v3968 = vpack.c.bf16 %v3954, %v3954
        %v3969 = vpack.c.bf16 %v3955, %v3955
        %v3970 = vpack.c.bf16 %v3956, %v3956
        %v3971 = vpack.c.bf16 %v3957, %v3957
        %v3972 = vpack.c.bf16 %v3958, %v3958
        %v3973 = vpack.c.bf16 %v3959, %v3959
        %v3974 = vpack.c.bf16 %v3960, %v3960
        %v3975 = vpack.c.bf16 %v3961, %v3961
        %v3976 = vpack.c.bf16 %v3962, %v3962
        %v3977 = vpack.c.bf16 %v3963, %v3963
        %v3978 = vpack.c.bf16 %v3964, %v3964
        %v3979 = vpack.c.bf16 %v3965, %v3965
        %v3980 = vpack.c.bf16 %v3966, %v3966
        %v3981 = vpack.c.bf16 %v3967, %v3967
        %v3982 = vld [vmem:[#allocation9] sm:$0xff]
        %v3983 = vld [vmem:[#allocation9 + $0x8] sm:$0xff]
        %v3984 = vld [vmem:[#allocation9 + $0x10] sm:$0xff]
        %v3985 = vld [vmem:[#allocation9 + $0x18] sm:$0xff]
        %v3986 = vld [vmem:[#allocation9 + $0x20] sm:$0xff]
        %v3987 = vld [vmem:[#allocation9 + $0x28] sm:$0xff]
        %v3988 = vld [vmem:[#allocation9 + $0x30] sm:$0xff]
        %v3989 = vld [vmem:[#allocation9 + $0x38] sm:$0xff]
        %v3990 = vld [vmem:[#allocation9 + $0x40] sm:$0xff]
        %v3991 = vld [vmem:[#allocation9 + $0x48] sm:$0xff]
        %v3992 = vld [vmem:[#allocation9 + $0x50] sm:$0xff]
        %v3993 = vld [vmem:[#allocation9 + $0x58] sm:$0xff]
        %v3994 = vld [vmem:[#allocation9 + $0x60] sm:$0xff]
        %v3995 = vld [vmem:[#allocation9 + $0x68] sm:$0xff]
        %v3996 = vld [vmem:[#allocation9 + $0x70] sm:$0xff]
        %v3997 = vld [vmem:[#allocation9 + $0x78] sm:$0xff]
        %v3998 = vld [vmem:[#allocation9 + $0x80] sm:$0xff]
        %v3999 = vld [vmem:[#allocation9 + $0x88] sm:$0xff]
        %v4000 = vld [vmem:[#allocation9 + $0x90] sm:$0xff]
        %v4001 = vld [vmem:[#allocation9 + $0x98] sm:$0xff]
        %v4002 = vld [vmem:[#allocation9 + $0xa0] sm:$0xff]
        %v4003 = vld [vmem:[#allocation9 + $0xa8] sm:$0xff]
        %v4004 = vld [vmem:[#allocation9 + $0xb0] sm:$0xff]
        %v4005 = vld [vmem:[#allocation9 + $0xb8] sm:$0xff]
        %v4006 = vld [vmem:[#allocation9 + $0xc0] sm:$0xff]
        %v4007 = vld [vmem:[#allocation9 + $0xc8] sm:$0xff]
        %v4008 = vld [vmem:[#allocation9 + $0xd0] sm:$0xff]
        %v4009 = vld [vmem:[#allocation9 + $0xd8] sm:$0xff]
        %v4010 = vld [vmem:[#allocation9 + $0xe0] sm:$0xff]
        %v4011 = vld [vmem:[#allocation9 + $0xe8] sm:$0xff]
        %v4012 = vld [vmem:[#allocation9 + $0xf0] sm:$0xff]
        %v4013 = vld [vmem:[#allocation9 + $0xf8] sm:$0xff]
        %v4014 = vld [vmem:[#allocation9 + $0x100] sm:$0xff]
        %v4015 = vld [vmem:[#allocation9 + $0x108] sm:$0xff]
        %v4016 = vld [vmem:[#allocation9 + $0x110] sm:$0xff]
        %v4017 = vld [vmem:[#allocation9 + $0x118] sm:$0xff]
        %v4018 = vld [vmem:[#allocation9 + $0x120] sm:$0xff]
        %v4019 = vld [vmem:[#allocation9 + $0x128] sm:$0xff]
        %v4020 = vld [vmem:[#allocation9 + $0x130] sm:$0xff]
        %v4021 = vld [vmem:[#allocation9 + $0x138] sm:$0xff]
        %v4022 = vld [vmem:[#allocation9 + $0x140] sm:$0xff]
        %v4023 = vld [vmem:[#allocation9 + $0x148] sm:$0xff]
        %v4024 = vld [vmem:[#allocation9 + $0x150] sm:$0xff]
        %v4025 = vld [vmem:[#allocation9 + $0x158] sm:$0xff]
        %v4026 = vld [vmem:[#allocation9 + $0x160] sm:$0xff]
        %v4027 = vld [vmem:[#allocation9 + $0x168] sm:$0xff]
        %v4028 = vld [vmem:[#allocation9 + $0x170] sm:$0xff]
        %v4029 = vld [vmem:[#allocation9 + $0x178] sm:$0xff]
        %v4030 = vld [vmem:[#allocation9 + $0x180] sm:$0xff]
        %v4031 = vld [vmem:[#allocation9 + $0x188] sm:$0xff]
        %v4032 = vld [vmem:[#allocation9 + $0x190] sm:$0xff]
        %v4033 = vld [vmem:[#allocation9 + $0x198] sm:$0xff]
        %v4034 = vld [vmem:[#allocation9 + $0x1a0] sm:$0xff]
        %v4035 = vld [vmem:[#allocation9 + $0x1a8] sm:$0xff]
        %v4036 = vld [vmem:[#allocation9 + $0x1b0] sm:$0xff]
        %v4037 = vld [vmem:[#allocation9 + $0x1b8] sm:$0xff]
        %v4038 = vld [vmem:[#allocation9 + $0x1c0] sm:$0xff]
        %v4039 = vld [vmem:[#allocation9 + $0x1c8] sm:$0xff]
        %v4040 = vld [vmem:[#allocation9 + $0x1d0] sm:$0xff]
        %v4041 = vld [vmem:[#allocation9 + $0x1d8] sm:$0xff]
        %v4042 = vld [vmem:[#allocation9 + $0x1e0] sm:$0xff]
        %v4043 = vld [vmem:[#allocation9 + $0x1e8] sm:$0xff]
        %v4044 = vld [vmem:[#allocation9 + $0x1f0] sm:$0xff]
        %v4045 = vld [vmem:[#allocation9 + $0x1f8] sm:$0xff]
        %v4046 = vld [vmem:[#allocation9 + $0x200] sm:$0xff]
        %v4047 = vld [vmem:[#allocation9 + $0x208] sm:$0xff]
        %v4048 = vld [vmem:[#allocation9 + $0x210] sm:$0xff]
        %v4049 = vld [vmem:[#allocation9 + $0x218] sm:$0xff]
        %v4050 = vld [vmem:[#allocation9 + $0x220] sm:$0xff]
        %v4051 = vld [vmem:[#allocation9 + $0x228] sm:$0xff]
        %v4052 = vld [vmem:[#allocation9 + $0x230] sm:$0xff]
        %v4053 = vld [vmem:[#allocation9 + $0x238] sm:$0xff]
        %v4054 = vld [vmem:[#allocation9 + $0x240] sm:$0xff]
        %v4055 = vld [vmem:[#allocation9 + $0x248] sm:$0xff]
        %v4056 = vld [vmem:[#allocation9 + $0x250] sm:$0xff]
        %v4057 = vld [vmem:[#allocation9 + $0x258] sm:$0xff]
        %v4058 = vld [vmem:[#allocation9 + $0x260] sm:$0xff]
        %v4059 = vld [vmem:[#allocation9 + $0x268] sm:$0xff]
        %v4060 = vld [vmem:[#allocation9 + $0x270] sm:$0xff]
        %v4061 = vld [vmem:[#allocation9 + $0x278] sm:$0xff]
        %v4062 = vld [vmem:[#allocation9 + $0x280] sm:$0xff]
        %v4063 = vld [vmem:[#allocation9 + $0x288] sm:$0xff]
        %v4064 = vld [vmem:[#allocation9 + $0x290] sm:$0xff]
        %v4065 = vld [vmem:[#allocation9 + $0x298] sm:$0xff]
        %v4066 = vld [vmem:[#allocation9 + $0x2a0] sm:$0xff]
        %v4067 = vld [vmem:[#allocation9 + $0x2a8] sm:$0xff]
        %v4068 = vld [vmem:[#allocation9 + $0x2b0] sm:$0xff]
        %v4069 = vld [vmem:[#allocation9 + $0x2b8] sm:$0xff]
        %v4070 = vld [vmem:[#allocation9 + $0x2c0] sm:$0xff]
        %v4071 = vld [vmem:[#allocation9 + $0x2c8] sm:$0xff]
        %v4072 = vld [vmem:[#allocation9 + $0x2d0] sm:$0xff]
        %v4073 = vld [vmem:[#allocation9 + $0x2d8] sm:$0xff]
        %v4074 = vld [vmem:[#allocation9 + $0x2e0] sm:$0xff]
        %v4075 = vld [vmem:[#allocation9 + $0x2e8] sm:$0xff]
        %v4076 = vld [vmem:[#allocation9 + $0x2f0] sm:$0xff]
        %v4077 = vld [vmem:[#allocation9 + $0x2f8] sm:$0xff]
        %v4078 = vld [vmem:[#allocation9 + $0x300] sm:$0xff]
        %v4079 = vld [vmem:[#allocation9 + $0x308] sm:$0xff]
        %v4080 = vld [vmem:[#allocation9 + $0x310] sm:$0xff]
        %v4081 = vld [vmem:[#allocation9 + $0x318] sm:$0xff]
        %v4082 = vld [vmem:[#allocation9 + $0x320] sm:$0xff]
        %v4083 = vld [vmem:[#allocation9 + $0x328] sm:$0xff]
        %v4084 = vld [vmem:[#allocation9 + $0x330] sm:$0xff]
        %v4085 = vld [vmem:[#allocation9 + $0x338] sm:$0xff]
        %v4086 = vld [vmem:[#allocation9 + $0x340] sm:$0xff]
        %v4087 = vld [vmem:[#allocation9 + $0x348] sm:$0xff]
        %v4088 = vld [vmem:[#allocation9 + $0x350] sm:$0xff]
        %v4089 = vld [vmem:[#allocation9 + $0x358] sm:$0xff]
        %v4090 = vld [vmem:[#allocation9 + $0x360] sm:$0xff]
        %v4091 = vld [vmem:[#allocation9 + $0x368] sm:$0xff]
        %v4092 = vld [vmem:[#allocation9 + $0x370] sm:$0xff]
        %v4093 = vld [vmem:[#allocation9 + $0x378] sm:$0xff]
        %v4094 = vld [vmem:[#allocation9 + $0x380] sm:$0xff]
        %v4095 = vld [vmem:[#allocation9 + $0x388] sm:$0xff]
        %v4096 = vld [vmem:[#allocation9 + $0x390] sm:$0xff]
        %v4097 = vld [vmem:[#allocation9 + $0x398] sm:$0xff]
        %v4098 = vld [vmem:[#allocation9 + $0x3a0] sm:$0xff]
        %v4099 = vld [vmem:[#allocation9 + $0x3a8] sm:$0xff]
        %v4100 = vld [vmem:[#allocation9 + $0x3b0] sm:$0xff]
        %v4101 = vld [vmem:[#allocation9 + $0x3b8] sm:$0xff]
        %v4102 = vld [vmem:[#allocation9 + $0x3c0] sm:$0xff]
        %v4103 = vld [vmem:[#allocation9 + $0x3c8] sm:$0xff]
        %v4104 = vld [vmem:[#allocation9 + $0x3d0] sm:$0xff]
        %v4105 = vld [vmem:[#allocation9 + $0x3d8] sm:$0xff]
        %v4106 = vld [vmem:[#allocation9 + $0x3e0] sm:$0xff]
        %v4107 = vld [vmem:[#allocation9 + $0x3e8] sm:$0xff]
        %v4108 = vld [vmem:[#allocation9 + $0x3f0] sm:$0xff]
        %v4109 = vld [vmem:[#allocation9 + $0x3f8] sm:$0xff]
        %v4110 = vld [vmem:[#allocation9 + $0x400] sm:$0xff]
        %v4111 = vld [vmem:[#allocation9 + $0x408] sm:$0xff]
        %v4112 = vld [vmem:[#allocation9 + $0x410] sm:$0xff]
        %v4113 = vld [vmem:[#allocation9 + $0x418] sm:$0xff]
        %v4114 = vld [vmem:[#allocation9 + $0x420] sm:$0xff]
        %v4115 = vld [vmem:[#allocation9 + $0x428] sm:$0xff]
        %v4116 = vld [vmem:[#allocation9 + $0x430] sm:$0xff]
        %v4117 = vld [vmem:[#allocation9 + $0x438] sm:$0xff]
        %v4118 = vld [vmem:[#allocation9 + $0x440] sm:$0xff]
        %v4119 = vld [vmem:[#allocation9 + $0x448] sm:$0xff]
        %v4120 = vld [vmem:[#allocation9 + $0x450] sm:$0xff]
        %v4121 = vld [vmem:[#allocation9 + $0x458] sm:$0xff]
        %v4122 = vld [vmem:[#allocation9 + $0x460] sm:$0xff]
        %v4123 = vld [vmem:[#allocation9 + $0x468] sm:$0xff]
        %v4124 = vld [vmem:[#allocation9 + $0x470] sm:$0xff]
        %v4125 = vld [vmem:[#allocation9 + $0x478] sm:$0xff]
        %v4126 = vld [vmem:[#allocation9 + $0x480] sm:$0xff]
        %v4127 = vld [vmem:[#allocation9 + $0x488] sm:$0xff]
        %v4128 = vld [vmem:[#allocation9 + $0x490] sm:$0xff]
        %v4129 = vld [vmem:[#allocation9 + $0x498] sm:$0xff]
        %v4130 = vld [vmem:[#allocation9 + $0x4a0] sm:$0xff]
        %v4131 = vld [vmem:[#allocation9 + $0x4a8] sm:$0xff]
        %v4132 = vld [vmem:[#allocation9 + $0x4b0] sm:$0xff]
        %v4133 = vld [vmem:[#allocation9 + $0x4b8] sm:$0xff]
        %v4134 = vld [vmem:[#allocation9 + $0x4c0] sm:$0xff]
        %v4135 = vld [vmem:[#allocation9 + $0x4c8] sm:$0xff]
        %v4136 = vld [vmem:[#allocation9 + $0x4d0] sm:$0xff]
        %v4137 = vld [vmem:[#allocation9 + $0x4d8] sm:$0xff]
        %v4138 = vld [vmem:[#allocation9 + $0x4e0] sm:$0xff]
        %v4139 = vld [vmem:[#allocation9 + $0x4e8] sm:$0xff]
        %v4140 = vld [vmem:[#allocation9 + $0x4f0] sm:$0xff]
        %v4141 = vld [vmem:[#allocation9 + $0x4f8] sm:$0xff]
        %v4142 = vld [vmem:[#allocation9 + $0x500] sm:$0xff]
        %v4143 = vld [vmem:[#allocation9 + $0x508] sm:$0xff]
        %v4144 = vld [vmem:[#allocation9 + $0x510] sm:$0xff]
        %v4145 = vld [vmem:[#allocation9 + $0x518] sm:$0xff]
        %v4146 = vld [vmem:[#allocation9 + $0x520] sm:$0xff]
        %v4147 = vld [vmem:[#allocation9 + $0x528] sm:$0xff]
        %v4148 = vld [vmem:[#allocation9 + $0x530] sm:$0xff]
        %v4149 = vld [vmem:[#allocation9 + $0x538] sm:$0xff]
        %v4150 = vld [vmem:[#allocation9 + $0x540] sm:$0xff]
        %v4151 = vld [vmem:[#allocation9 + $0x548] sm:$0xff]
        %v4152 = vld [vmem:[#allocation9 + $0x550] sm:$0xff]
        %v4153 = vld [vmem:[#allocation9 + $0x558] sm:$0xff]
        %v4154 = vld [vmem:[#allocation9 + $0x560] sm:$0xff]
        %v4155 = vld [vmem:[#allocation9 + $0x568] sm:$0xff]
        %v4156 = vld [vmem:[#allocation9 + $0x570] sm:$0xff]
        %v4157 = vld [vmem:[#allocation9 + $0x578] sm:$0xff]
        %v4158 = vld [vmem:[#allocation9 + $0x580] sm:$0xff]
        %v4159 = vld [vmem:[#allocation9 + $0x588] sm:$0xff]
        %v4160 = vld [vmem:[#allocation9 + $0x590] sm:$0xff]
        %v4161 = vld [vmem:[#allocation9 + $0x598] sm:$0xff]
        %v4162 = vld [vmem:[#allocation9 + $0x5a0] sm:$0xff]
        %v4163 = vld [vmem:[#allocation9 + $0x5a8] sm:$0xff]
        %v4164 = vld [vmem:[#allocation9 + $0x5b0] sm:$0xff]
        %v4165 = vld [vmem:[#allocation9 + $0x5b8] sm:$0xff]
        %v4166 = vld [vmem:[#allocation9 + $0x5c0] sm:$0xff]
        %v4167 = vld [vmem:[#allocation9 + $0x5c8] sm:$0xff]
        %v4168 = vld [vmem:[#allocation9 + $0x5d0] sm:$0xff]
        %v4169 = vld [vmem:[#allocation9 + $0x5d8] sm:$0xff]
        %v4170 = vld [vmem:[#allocation9 + $0x5e0] sm:$0xff]
        %v4171 = vld [vmem:[#allocation9 + $0x5e8] sm:$0xff]
        %v4172 = vld [vmem:[#allocation9 + $0x5f0] sm:$0xff]
        %v4173 = vld [vmem:[#allocation9 + $0x5f8] sm:$0xff]
        %v4174 = vld [vmem:[#allocation9 + $0x600] sm:$0xff]
        %v4175 = vld [vmem:[#allocation9 + $0x608] sm:$0xff]
        %v4176 = vld [vmem:[#allocation9 + $0x610] sm:$0xff]
        %v4177 = vld [vmem:[#allocation9 + $0x618] sm:$0xff]
        %v4178 = vld [vmem:[#allocation9 + $0x620] sm:$0xff]
        %v4179 = vld [vmem:[#allocation9 + $0x628] sm:$0xff]
        %v4180 = vld [vmem:[#allocation9 + $0x630] sm:$0xff]
        %v4181 = vld [vmem:[#allocation9 + $0x638] sm:$0xff]
        %v4182 = vld [vmem:[#allocation9 + $0x640] sm:$0xff]
        %v4183 = vld [vmem:[#allocation9 + $0x648] sm:$0xff]
        %v4184 = vld [vmem:[#allocation9 + $0x650] sm:$0xff]
        %v4185 = vld [vmem:[#allocation9 + $0x658] sm:$0xff]
        %v4186 = vld [vmem:[#allocation9 + $0x660] sm:$0xff]
        %v4187 = vld [vmem:[#allocation9 + $0x668] sm:$0xff]
        %v4188 = vld [vmem:[#allocation9 + $0x670] sm:$0xff]
        %v4189 = vld [vmem:[#allocation9 + $0x678] sm:$0xff]
        %v4190 = vld [vmem:[#allocation9 + $0x680] sm:$0xff]
        %v4191 = vld [vmem:[#allocation9 + $0x688] sm:$0xff]
        %v4192 = vld [vmem:[#allocation9 + $0x690] sm:$0xff]
        %v4193 = vld [vmem:[#allocation9 + $0x698] sm:$0xff]
        %v4194 = vld [vmem:[#allocation9 + $0x6a0] sm:$0xff]
        %v4195 = vld [vmem:[#allocation9 + $0x6a8] sm:$0xff]
        %v4196 = vld [vmem:[#allocation9 + $0x6b0] sm:$0xff]
        %v4197 = vld [vmem:[#allocation9 + $0x6b8] sm:$0xff]
        %v4198 = vld [vmem:[#allocation9 + $0x6c0] sm:$0xff]
        %v4199 = vld [vmem:[#allocation9 + $0x6c8] sm:$0xff]
        %v4200 = vld [vmem:[#allocation9 + $0x6d0] sm:$0xff]
        %v4201 = vld [vmem:[#allocation9 + $0x6d8] sm:$0xff]
        %v4202 = vld [vmem:[#allocation9 + $0x6e0] sm:$0xff]
        %v4203 = vld [vmem:[#allocation9 + $0x6e8] sm:$0xff]
        %v4204 = vld [vmem:[#allocation9 + $0x6f0] sm:$0xff]
        %v4205 = vld [vmem:[#allocation9 + $0x6f8] sm:$0xff]
        %v4206 = vld [vmem:[#allocation9 + $0x700] sm:$0xff]
        %v4207 = vld [vmem:[#allocation9 + $0x708] sm:$0xff]
        %v4208 = vld [vmem:[#allocation9 + $0x710] sm:$0xff]
        %v4209 = vld [vmem:[#allocation9 + $0x718] sm:$0xff]
        %v4210 = vld [vmem:[#allocation9 + $0x720] sm:$0xff]
        %v4211 = vld [vmem:[#allocation9 + $0x728] sm:$0xff]
        %v4212 = vld [vmem:[#allocation9 + $0x730] sm:$0xff]
        %v4213 = vld [vmem:[#allocation9 + $0x738] sm:$0xff]
        %v4214 = vld [vmem:[#allocation9 + $0x740] sm:$0xff]
        %v4215 = vld [vmem:[#allocation9 + $0x748] sm:$0xff]
        %v4216 = vld [vmem:[#allocation9 + $0x750] sm:$0xff]
        %v4217 = vld [vmem:[#allocation9 + $0x758] sm:$0xff]
        %v4218 = vld [vmem:[#allocation9 + $0x760] sm:$0xff]
        %v4219 = vld [vmem:[#allocation9 + $0x768] sm:$0xff]
        %v4220 = vld [vmem:[#allocation9 + $0x770] sm:$0xff]
        %v4221 = vld [vmem:[#allocation9 + $0x778] sm:$0xff]
        %v4222 = vld [vmem:[#allocation9 + $0x780] sm:$0xff]
        %v4223 = vld [vmem:[#allocation9 + $0x788] sm:$0xff]
        %v4224 = vld [vmem:[#allocation9 + $0x790] sm:$0xff]
        %v4225 = vld [vmem:[#allocation9 + $0x798] sm:$0xff]
        %v4226 = vld [vmem:[#allocation9 + $0x7a0] sm:$0xff]
        %v4227 = vld [vmem:[#allocation9 + $0x7a8] sm:$0xff]
        %v4228 = vld [vmem:[#allocation9 + $0x7b0] sm:$0xff]
        %v4229 = vld [vmem:[#allocation9 + $0x7b8] sm:$0xff]
        %v4230 = vld [vmem:[#allocation9 + $0x7c0] sm:$0xff]
        %v4231 = vld [vmem:[#allocation9 + $0x7c8] sm:$0xff]
        %v4232 = vld [vmem:[#allocation9 + $0x7d0] sm:$0xff]
        %v4233 = vld [vmem:[#allocation9 + $0x7d8] sm:$0xff]
        %v4234 = vld [vmem:[#allocation9 + $0x7e0] sm:$0xff]
        %v4235 = vld [vmem:[#allocation9 + $0x7e8] sm:$0xff]
        %v4236 = vld [vmem:[#allocation9 + $0x7f0] sm:$0xff]
        %v4237 = vld [vmem:[#allocation9 + $0x7f8] sm:$0xff]
        %v4238 = vld [vmem:[#allocation9 + $0x800] sm:$0xff]
        %v4239 = vld [vmem:[#allocation9 + $0x808] sm:$0xff]
        %v4240 = vld [vmem:[#allocation9 + $0x810] sm:$0xff]
        %v4241 = vld [vmem:[#allocation9 + $0x818] sm:$0xff]
        %v4242 = vld [vmem:[#allocation9 + $0x820] sm:$0xff]
        %v4243 = vld [vmem:[#allocation9 + $0x828] sm:$0xff]
        %v4244 = vld [vmem:[#allocation9 + $0x830] sm:$0xff]
        %v4245 = vld [vmem:[#allocation9 + $0x838] sm:$0xff]
        %v4246 = vld [vmem:[#allocation9 + $0x840] sm:$0xff]
        %v4247 = vld [vmem:[#allocation9 + $0x848] sm:$0xff]
        %v4248 = vld [vmem:[#allocation9 + $0x850] sm:$0xff]
        %v4249 = vld [vmem:[#allocation9 + $0x858] sm:$0xff]
        %v4250 = vld [vmem:[#allocation9 + $0x860] sm:$0xff]
        %v4251 = vld [vmem:[#allocation9 + $0x868] sm:$0xff]
        %v4252 = vld [vmem:[#allocation9 + $0x870] sm:$0xff]
        %v4253 = vld [vmem:[#allocation9 + $0x878] sm:$0xff]
        %v4254 = vld [vmem:[#allocation9 + $0x880] sm:$0xff]
        %v4255 = vld [vmem:[#allocation9 + $0x888] sm:$0xff]
        %v4256 = vld [vmem:[#allocation9 + $0x890] sm:$0xff]
        %v4257 = vld [vmem:[#allocation9 + $0x898] sm:$0xff]
        %v4258 = vld [vmem:[#allocation9 + $0x8a0] sm:$0xff]
        %v4259 = vld [vmem:[#allocation9 + $0x8a8] sm:$0xff]
        %v4260 = vld [vmem:[#allocation9 + $0x8b0] sm:$0xff]
        %v4261 = vld [vmem:[#allocation9 + $0x8b8] sm:$0xff]
        %v4262 = vld [vmem:[#allocation9 + $0x8c0] sm:$0xff]
        %v4263 = vld [vmem:[#allocation9 + $0x8c8] sm:$0xff]
        %v4264 = vld [vmem:[#allocation9 + $0x8d0] sm:$0xff]
        %v4265 = vld [vmem:[#allocation9 + $0x8d8] sm:$0xff]
        %v4266 = vld [vmem:[#allocation9 + $0x8e0] sm:$0xff]
        %v4267 = vld [vmem:[#allocation9 + $0x8e8] sm:$0xff]
        %v4268 = vld [vmem:[#allocation9 + $0x8f0] sm:$0xff]
        %v4269 = vld [vmem:[#allocation9 + $0x8f8] sm:$0xff]
        %v4270 = vld [vmem:[#allocation9 + $0x900] sm:$0xff]
        %v4271 = vld [vmem:[#allocation9 + $0x908] sm:$0xff]
        %v4272 = vld [vmem:[#allocation9 + $0x910] sm:$0xff]
        %v4273 = vld [vmem:[#allocation9 + $0x918] sm:$0xff]
        %v4274 = vld [vmem:[#allocation9 + $0x920] sm:$0xff]
        %v4275 = vld [vmem:[#allocation9 + $0x928] sm:$0xff]
        %v4276 = vld [vmem:[#allocation9 + $0x930] sm:$0xff]
        %v4277 = vld [vmem:[#allocation9 + $0x938] sm:$0xff]
        %v4278 = vld [vmem:[#allocation9 + $0x940] sm:$0xff]
        %v4279 = vld [vmem:[#allocation9 + $0x948] sm:$0xff]
        %v4280 = vld [vmem:[#allocation9 + $0x950] sm:$0xff]
        %v4281 = vld [vmem:[#allocation9 + $0x958] sm:$0xff]
        %v4282 = vld [vmem:[#allocation9 + $0x960] sm:$0xff]
        %v4283 = vld [vmem:[#allocation9 + $0x968] sm:$0xff]
        %v4284 = vld [vmem:[#allocation9 + $0x970] sm:$0xff]
        %v4285 = vld [vmem:[#allocation9 + $0x978] sm:$0xff]
        %v4286 = vld [vmem:[#allocation9 + $0x980] sm:$0xff]
        %v4287 = vld [vmem:[#allocation9 + $0x988] sm:$0xff]
        %v4288 = vld [vmem:[#allocation9 + $0x990] sm:$0xff]
        %v4289 = vld [vmem:[#allocation9 + $0x998] sm:$0xff]
        %v4290 = vld [vmem:[#allocation9 + $0x9a0] sm:$0xff]
        %v4291 = vld [vmem:[#allocation9 + $0x9a8] sm:$0xff]
        %v4292 = vld [vmem:[#allocation9 + $0x9b0] sm:$0xff]
        %v4293 = vld [vmem:[#allocation9 + $0x9b8] sm:$0xff]
        %v4294 = vld [vmem:[#allocation9 + $0x9c0] sm:$0xff]
        %v4295 = vld [vmem:[#allocation9 + $0x9c8] sm:$0xff]
        %v4296 = vld [vmem:[#allocation9 + $0x9d0] sm:$0xff]
        %v4297 = vld [vmem:[#allocation9 + $0x9d8] sm:$0xff]
        %v4298 = vld [vmem:[#allocation9 + $0x9e0] sm:$0xff]
        %v4299 = vld [vmem:[#allocation9 + $0x9e8] sm:$0xff]
        %v4300 = vld [vmem:[#allocation9 + $0x9f0] sm:$0xff]
        %v4301 = vld [vmem:[#allocation9 + $0x9f8] sm:$0xff]
        %v4302 = vld [vmem:[#allocation9 + $0xa00] sm:$0xff]
        %v4303 = vld [vmem:[#allocation9 + $0xa08] sm:$0xff]
        %v4304 = vld [vmem:[#allocation9 + $0xa10] sm:$0xff]
        %v4305 = vld [vmem:[#allocation9 + $0xa18] sm:$0xff]
        %v4306 = vld [vmem:[#allocation9 + $0xa20] sm:$0xff]
        %v4307 = vld [vmem:[#allocation9 + $0xa28] sm:$0xff]
        %v4308 = vld [vmem:[#allocation9 + $0xa30] sm:$0xff]
        %v4309 = vld [vmem:[#allocation9 + $0xa38] sm:$0xff]
        %v4310 = vld [vmem:[#allocation9 + $0xa40] sm:$0xff]
        %v4311 = vld [vmem:[#allocation9 + $0xa48] sm:$0xff]
        %v4312 = vld [vmem:[#allocation9 + $0xa50] sm:$0xff]
        %v4313 = vld [vmem:[#allocation9 + $0xa58] sm:$0xff]
        %v4314 = vld [vmem:[#allocation9 + $0xa60] sm:$0xff]
        %v4315 = vld [vmem:[#allocation9 + $0xa68] sm:$0xff]
        %v4316 = vld [vmem:[#allocation9 + $0xa70] sm:$0xff]
        %v4317 = vld [vmem:[#allocation9 + $0xa78] sm:$0xff]
        %v4318 = vld [vmem:[#allocation9 + $0xa80] sm:$0xff]
        %v4319 = vld [vmem:[#allocation9 + $0xa88] sm:$0xff]
        %v4320 = vld [vmem:[#allocation9 + $0xa90] sm:$0xff]
        %v4321 = vld [vmem:[#allocation9 + $0xa98] sm:$0xff]
        %v4322 = vld [vmem:[#allocation9 + $0xaa0] sm:$0xff]
        %v4323 = vld [vmem:[#allocation9 + $0xaa8] sm:$0xff]
        %v4324 = vld [vmem:[#allocation9 + $0xab0] sm:$0xff]
        %v4325 = vld [vmem:[#allocation9 + $0xab8] sm:$0xff]
        %v4326 = vld [vmem:[#allocation9 + $0xac0] sm:$0xff]
        %v4327 = vld [vmem:[#allocation9 + $0xac8] sm:$0xff]
        %v4328 = vld [vmem:[#allocation9 + $0xad0] sm:$0xff]
        %v4329 = vld [vmem:[#allocation9 + $0xad8] sm:$0xff]
        %v4330 = vld [vmem:[#allocation9 + $0xae0] sm:$0xff]
        %v4331 = vld [vmem:[#allocation9 + $0xae8] sm:$0xff]
        %v4332 = vld [vmem:[#allocation9 + $0xaf0] sm:$0xff]
        %v4333 = vld [vmem:[#allocation9 + $0xaf8] sm:$0xff]
        %v4334 = vld [vmem:[#allocation9 + $0xb00] sm:$0xff]
        %v4335 = vld [vmem:[#allocation9 + $0xb08] sm:$0xff]
        %v4336 = vld [vmem:[#allocation9 + $0xb10] sm:$0xff]
        %v4337 = vld [vmem:[#allocation9 + $0xb18] sm:$0xff]
        %v4338 = vld [vmem:[#allocation9 + $0xb20] sm:$0xff]
        %v4339 = vld [vmem:[#allocation9 + $0xb28] sm:$0xff]
        %v4340 = vld [vmem:[#allocation9 + $0xb30] sm:$0xff]
        %v4341 = vld [vmem:[#allocation9 + $0xb38] sm:$0xff]
        %v4342 = vld [vmem:[#allocation9 + $0xb40] sm:$0xff]
        %v4343 = vld [vmem:[#allocation9 + $0xb48] sm:$0xff]
        %v4344 = vld [vmem:[#allocation9 + $0xb50] sm:$0xff]
        %v4345 = vld [vmem:[#allocation9 + $0xb58] sm:$0xff]
        %v4346 = vld [vmem:[#allocation9 + $0xb60] sm:$0xff]
        %v4347 = vld [vmem:[#allocation9 + $0xb68] sm:$0xff]
        %v4348 = vld [vmem:[#allocation9 + $0xb70] sm:$0xff]
        %v4349 = vld [vmem:[#allocation9 + $0xb78] sm:$0xff]
        %v4350 = vld [vmem:[#allocation9 + $0xb80] sm:$0xff]
        %v4351 = vld [vmem:[#allocation9 + $0xb88] sm:$0xff]
        %v4352 = vld [vmem:[#allocation9 + $0xb90] sm:$0xff]
        %v4353 = vld [vmem:[#allocation9 + $0xb98] sm:$0xff]
        %v4354 = vld [vmem:[#allocation9 + $0xba0] sm:$0xff]
        %v4355 = vld [vmem:[#allocation9 + $0xba8] sm:$0xff]
        %v4356 = vld [vmem:[#allocation9 + $0xbb0] sm:$0xff]
        %v4357 = vld [vmem:[#allocation9 + $0xbb8] sm:$0xff]
        %v4358 = vld [vmem:[#allocation9 + $0xbc0] sm:$0xff]
        %v4359 = vld [vmem:[#allocation9 + $0xbc8] sm:$0xff]
        %v4360 = vld [vmem:[#allocation9 + $0xbd0] sm:$0xff]
        %v4361 = vld [vmem:[#allocation9 + $0xbd8] sm:$0xff]
        %v4362 = vld [vmem:[#allocation9 + $0xbe0] sm:$0xff]
        %v4363 = vld [vmem:[#allocation9 + $0xbe8] sm:$0xff]
        %v4364 = vld [vmem:[#allocation9 + $0xbf0] sm:$0xff]
        %v4365 = vld [vmem:[#allocation9 + $0xbf8] sm:$0xff]
        %v4366 = vld [vmem:[#allocation9 + $0xc00] sm:$0xff]
        %v4367 = vld [vmem:[#allocation9 + $0xc08] sm:$0xff]
        %v4368 = vld [vmem:[#allocation9 + $0xc10] sm:$0xff]
        %v4369 = vld [vmem:[#allocation9 + $0xc18] sm:$0xff]
        %v4370 = vld [vmem:[#allocation9 + $0xc20] sm:$0xff]
        %v4371 = vld [vmem:[#allocation9 + $0xc28] sm:$0xff]
        %v4372 = vld [vmem:[#allocation9 + $0xc30] sm:$0xff]
        %v4373 = vld [vmem:[#allocation9 + $0xc38] sm:$0xff]
        %v4374 = vld [vmem:[#allocation9 + $0xc40] sm:$0xff]
        %v4375 = vld [vmem:[#allocation9 + $0xc48] sm:$0xff]
        %v4376 = vld [vmem:[#allocation9 + $0xc50] sm:$0xff]
        %v4377 = vld [vmem:[#allocation9 + $0xc58] sm:$0xff]
        %v4378 = vld [vmem:[#allocation9 + $0xc60] sm:$0xff]
        %v4379 = vld [vmem:[#allocation9 + $0xc68] sm:$0xff]
        %v4380 = vld [vmem:[#allocation9 + $0xc70] sm:$0xff]
        %v4381 = vld [vmem:[#allocation9 + $0xc78] sm:$0xff]
        %v4382 = vld [vmem:[#allocation9 + $0xc80] sm:$0xff]
        %v4383 = vld [vmem:[#allocation9 + $0xc88] sm:$0xff]
        %v4384 = vld [vmem:[#allocation9 + $0xc90] sm:$0xff]
        %v4385 = vld [vmem:[#allocation9 + $0xc98] sm:$0xff]
        %v4386 = vld [vmem:[#allocation9 + $0xca0] sm:$0xff]
        %v4387 = vld [vmem:[#allocation9 + $0xca8] sm:$0xff]
        %v4388 = vld [vmem:[#allocation9 + $0xcb0] sm:$0xff]
        %v4389 = vld [vmem:[#allocation9 + $0xcb8] sm:$0xff]
        %v4390 = vld [vmem:[#allocation9 + $0xcc0] sm:$0xff]
        %v4391 = vld [vmem:[#allocation9 + $0xcc8] sm:$0xff]
        %v4392 = vld [vmem:[#allocation9 + $0xcd0] sm:$0xff]
        %v4393 = vld [vmem:[#allocation9 + $0xcd8] sm:$0xff]
        %v4394 = vld [vmem:[#allocation9 + $0xce0] sm:$0xff]
        %v4395 = vld [vmem:[#allocation9 + $0xce8] sm:$0xff]
        %v4396 = vld [vmem:[#allocation9 + $0xcf0] sm:$0xff]
        %v4397 = vld [vmem:[#allocation9 + $0xcf8] sm:$0xff]
        %v4398 = vld [vmem:[#allocation9 + $0xd00] sm:$0xff]
        %v4399 = vld [vmem:[#allocation9 + $0xd08] sm:$0xff]
        %v4400 = vld [vmem:[#allocation9 + $0xd10] sm:$0xff]
        %v4401 = vld [vmem:[#allocation9 + $0xd18] sm:$0xff]
        %v4402 = vld [vmem:[#allocation9 + $0xd20] sm:$0xff]
        %v4403 = vld [vmem:[#allocation9 + $0xd28] sm:$0xff]
        %v4404 = vld [vmem:[#allocation9 + $0xd30] sm:$0xff]
        %v4405 = vld [vmem:[#allocation9 + $0xd38] sm:$0xff]
        %v4406 = vld [vmem:[#allocation9 + $0xd40] sm:$0xff]
        %v4407 = vld [vmem:[#allocation9 + $0xd48] sm:$0xff]
        %v4408 = vld [vmem:[#allocation9 + $0xd50] sm:$0xff]
        %v4409 = vld [vmem:[#allocation9 + $0xd58] sm:$0xff]
        %v4410 = vld [vmem:[#allocation9 + $0xd60] sm:$0xff]
        %v4411 = vld [vmem:[#allocation9 + $0xd68] sm:$0xff]
        %v4412 = vld [vmem:[#allocation9 + $0xd70] sm:$0xff]
        %v4413 = vld [vmem:[#allocation9 + $0xd78] sm:$0xff]
        %v4414 = vld [vmem:[#allocation9 + $0xd80] sm:$0xff]
        %v4415 = vld [vmem:[#allocation9 + $0xd88] sm:$0xff]
        %v4416 = vld [vmem:[#allocation9 + $0xd90] sm:$0xff]
        %v4417 = vld [vmem:[#allocation9 + $0xd98] sm:$0xff]
        %v4418 = vld [vmem:[#allocation9 + $0xda0] sm:$0xff]
        %v4419 = vld [vmem:[#allocation9 + $0xda8] sm:$0xff]
        %v4420 = vld [vmem:[#allocation9 + $0xdb0] sm:$0xff]
        %v4421 = vld [vmem:[#allocation9 + $0xdb8] sm:$0xff]
        %v4422 = vld [vmem:[#allocation9 + $0xdc0] sm:$0xff]
        %v4423 = vld [vmem:[#allocation9 + $0xdc8] sm:$0xff]
        %v4424 = vld [vmem:[#allocation9 + $0xdd0] sm:$0xff]
        %v4425 = vld [vmem:[#allocation9 + $0xdd8] sm:$0xff]
        %v4426 = vld [vmem:[#allocation9 + $0xde0] sm:$0xff]
        %v4427 = vld [vmem:[#allocation9 + $0xde8] sm:$0xff]
        %v4428 = vld [vmem:[#allocation9 + $0xdf0] sm:$0xff]
        %v4429 = vld [vmem:[#allocation9 + $0xdf8] sm:$0xff]
        %v4430 = vld [vmem:[#allocation9 + $0xe00] sm:$0xff]
        %v4431 = vld [vmem:[#allocation9 + $0xe08] sm:$0xff]
        %v4432 = vld [vmem:[#allocation9 + $0xe10] sm:$0xff]
        %v4433 = vld [vmem:[#allocation9 + $0xe18] sm:$0xff]
        %v4434 = vld [vmem:[#allocation9 + $0xe20] sm:$0xff]
        %v4435 = vld [vmem:[#allocation9 + $0xe28] sm:$0xff]
        %v4436 = vld [vmem:[#allocation9 + $0xe30] sm:$0xff]
        %v4437 = vld [vmem:[#allocation9 + $0xe38] sm:$0xff]
        %v4438 = vld [vmem:[#allocation9 + $0xe40] sm:$0xff]
        %v4439 = vld [vmem:[#allocation9 + $0xe48] sm:$0xff]
        %v4440 = vld [vmem:[#allocation9 + $0xe50] sm:$0xff]
        %v4441 = vld [vmem:[#allocation9 + $0xe58] sm:$0xff]
        %v4442 = vld [vmem:[#allocation9 + $0xe60] sm:$0xff]
        %v4443 = vld [vmem:[#allocation9 + $0xe68] sm:$0xff]
        %v4444 = vld [vmem:[#allocation9 + $0xe70] sm:$0xff]
        %v4445 = vld [vmem:[#allocation9 + $0xe78] sm:$0xff]
        %v4446 = vld [vmem:[#allocation9 + $0xe80] sm:$0xff]
        %v4447 = vld [vmem:[#allocation9 + $0xe88] sm:$0xff]
        %v4448 = vld [vmem:[#allocation9 + $0xe90] sm:$0xff]
        %v4449 = vld [vmem:[#allocation9 + $0xe98] sm:$0xff]
        %v4450 = vld [vmem:[#allocation9 + $0xea0] sm:$0xff]
        %v4451 = vld [vmem:[#allocation9 + $0xea8] sm:$0xff]
        %v4452 = vld [vmem:[#allocation9 + $0xeb0] sm:$0xff]
        %v4453 = vld [vmem:[#allocation9 + $0xeb8] sm:$0xff]
        %v4454 = vld [vmem:[#allocation9 + $0xec0] sm:$0xff]
        %v4455 = vld [vmem:[#allocation9 + $0xec8] sm:$0xff]
        %v4456 = vld [vmem:[#allocation9 + $0xed0] sm:$0xff]
        %v4457 = vld [vmem:[#allocation9 + $0xed8] sm:$0xff]
        %v4458 = vld [vmem:[#allocation9 + $0xee0] sm:$0xff]
        %v4459 = vld [vmem:[#allocation9 + $0xee8] sm:$0xff]
        %v4460 = vld [vmem:[#allocation9 + $0xef0] sm:$0xff]
        %v4461 = vld [vmem:[#allocation9 + $0xef8] sm:$0xff]
        %v4462 = vld [vmem:[#allocation9 + $0xf00] sm:$0xff]
        %v4463 = vld [vmem:[#allocation9 + $0xf08] sm:$0xff]
        %v4464 = vld [vmem:[#allocation9 + $0xf10] sm:$0xff]
        %v4465 = vld [vmem:[#allocation9 + $0xf18] sm:$0xff]
        %v4466 = vld [vmem:[#allocation9 + $0xf20] sm:$0xff]
        %v4467 = vld [vmem:[#allocation9 + $0xf28] sm:$0xff]
        %v4468 = vld [vmem:[#allocation9 + $0xf30] sm:$0xff]
        %v4469 = vld [vmem:[#allocation9 + $0xf38] sm:$0xff]
        %v4470 = vld [vmem:[#allocation9 + $0xf40] sm:$0xff]
        %v4471 = vld [vmem:[#allocation9 + $0xf48] sm:$0xff]
        %v4472 = vld [vmem:[#allocation9 + $0xf50] sm:$0xff]
        %v4473 = vld [vmem:[#allocation9 + $0xf58] sm:$0xff]
        %v4474 = vld [vmem:[#allocation9 + $0xf60] sm:$0xff]
        %v4475 = vld [vmem:[#allocation9 + $0xf68] sm:$0xff]
        %v4476 = vld [vmem:[#allocation9 + $0xf70] sm:$0xff]
        %v4477 = vld [vmem:[#allocation9 + $0xf78] sm:$0xff]
        %v4478 = vld [vmem:[#allocation9 + $0xf80] sm:$0xff]
        %v4479 = vld [vmem:[#allocation9 + $0xf88] sm:$0xff]
        %v4480 = vld [vmem:[#allocation9 + $0xf90] sm:$0xff]
        %v4481 = vld [vmem:[#allocation9 + $0xf98] sm:$0xff]
        %v4482 = vld [vmem:[#allocation9 + $0xfa0] sm:$0xff]
        %v4483 = vld [vmem:[#allocation9 + $0xfa8] sm:$0xff]
        %v4484 = vld [vmem:[#allocation9 + $0xfb0] sm:$0xff]
        %v4485 = vld [vmem:[#allocation9 + $0xfb8] sm:$0xff]
        %v4486 = vld [vmem:[#allocation9 + $0xfc0] sm:$0xff]
        %v4487 = vld [vmem:[#allocation9 + $0xfc8] sm:$0xff]
        %v4488 = vld [vmem:[#allocation9 + $0xfd0] sm:$0xff]
        %v4489 = vld [vmem:[#allocation9 + $0xfd8] sm:$0xff]
        %v4490 = vld [vmem:[#allocation9 + $0xfe0] sm:$0xff]
        %v4491 = vld [vmem:[#allocation9 + $0xfe8] sm:$0xff]
        %v4492 = vld [vmem:[#allocation9 + $0xff0] sm:$0xff]
        %v4493 = vld [vmem:[#allocation9 + $0xff8] sm:$0xff]
        %v4494 = vld [vmem:[#allocation9 + $0x1000] sm:$0xff]
        %v4495 = vld [vmem:[#allocation9 + $0x1008] sm:$0xff]
        %v4496 = vld [vmem:[#allocation9 + $0x1010] sm:$0xff]
        %v4497 = vld [vmem:[#allocation9 + $0x1018] sm:$0xff]
        %v4498 = vld [vmem:[#allocation9 + $0x1020] sm:$0xff]
        %v4499 = vld [vmem:[#allocation9 + $0x1028] sm:$0xff]
        %v4500 = vld [vmem:[#allocation9 + $0x1030] sm:$0xff]
        %v4501 = vld [vmem:[#allocation9 + $0x1038] sm:$0xff]
        %v4502 = vld [vmem:[#allocation9 + $0x1040] sm:$0xff]
        %v4503 = vld [vmem:[#allocation9 + $0x1048] sm:$0xff]
        %v4504 = vld [vmem:[#allocation9 + $0x1050] sm:$0xff]
        %v4505 = vld [vmem:[#allocation9 + $0x1058] sm:$0xff]
        %v4506 = vld [vmem:[#allocation9 + $0x1060] sm:$0xff]
        %v4507 = vld [vmem:[#allocation9 + $0x1068] sm:$0xff]
        %v4508 = vld [vmem:[#allocation9 + $0x1070] sm:$0xff]
        %v4509 = vld [vmem:[#allocation9 + $0x1078] sm:$0xff]
        %v4510 = vld [vmem:[#allocation9 + $0x1080] sm:$0xff]
        %v4511 = vld [vmem:[#allocation9 + $0x1088] sm:$0xff]
        %v4512 = vld [vmem:[#allocation9 + $0x1090] sm:$0xff]
        %v4513 = vld [vmem:[#allocation9 + $0x1098] sm:$0xff]
        %v4514 = vld [vmem:[#allocation9 + $0x10a0] sm:$0xff]
        %v4515 = vld [vmem:[#allocation9 + $0x10a8] sm:$0xff]
        %v4516 = vld [vmem:[#allocation9 + $0x10b0] sm:$0xff]
        %v4517 = vld [vmem:[#allocation9 + $0x10b8] sm:$0xff]
        %v4518 = vld [vmem:[#allocation9 + $0x10c0] sm:$0xff]
        %v4519 = vld [vmem:[#allocation9 + $0x10c8] sm:$0xff]
        %v4520 = vld [vmem:[#allocation9 + $0x10d0] sm:$0xff]
        %v4521 = vld [vmem:[#allocation9 + $0x10d8] sm:$0xff]
        %v4522 = vld [vmem:[#allocation9 + $0x10e0] sm:$0xff]
        %v4523 = vld [vmem:[#allocation9 + $0x10e8] sm:$0xff]
        %v4524 = vld [vmem:[#allocation9 + $0x10f0] sm:$0xff]
        %v4525 = vld [vmem:[#allocation9 + $0x10f8] sm:$0xff]
        %v4526 = vld [vmem:[#allocation9 + $0x1100] sm:$0xff]
        %v4527 = vld [vmem:[#allocation9 + $0x1108] sm:$0xff]
        %v4528 = vld [vmem:[#allocation9 + $0x1110] sm:$0xff]
        %v4529 = vld [vmem:[#allocation9 + $0x1118] sm:$0xff]
        %v4530 = vld [vmem:[#allocation9 + $0x1120] sm:$0xff]
        %v4531 = vld [vmem:[#allocation9 + $0x1128] sm:$0xff]
        %v4532 = vld [vmem:[#allocation9 + $0x1130] sm:$0xff]
        %v4533 = vld [vmem:[#allocation9 + $0x1138] sm:$0xff]
        %v4534 = vld [vmem:[#allocation9 + $0x1140] sm:$0xff]
        %v4535 = vld [vmem:[#allocation9 + $0x1148] sm:$0xff]
        %v4536 = vld [vmem:[#allocation9 + $0x1150] sm:$0xff]
        %v4537 = vld [vmem:[#allocation9 + $0x1158] sm:$0xff]
        %v4538 = vld [vmem:[#allocation9 + $0x1160] sm:$0xff]
        %v4539 = vld [vmem:[#allocation9 + $0x1168] sm:$0xff]
        %v4540 = vld [vmem:[#allocation9 + $0x1170] sm:$0xff]
        %v4541 = vld [vmem:[#allocation9 + $0x1178] sm:$0xff]
        %v4542 = vld [vmem:[#allocation9 + $0x1180] sm:$0xff]
        %v4543 = vld [vmem:[#allocation9 + $0x1188] sm:$0xff]
        %v4544 = vld [vmem:[#allocation9 + $0x1190] sm:$0xff]
        %v4545 = vld [vmem:[#allocation9 + $0x1198] sm:$0xff]
        %v4546 = vld [vmem:[#allocation9 + $0x11a0] sm:$0xff]
        %v4547 = vld [vmem:[#allocation9 + $0x11a8] sm:$0xff]
        %v4548 = vld [vmem:[#allocation9 + $0x11b0] sm:$0xff]
        %v4549 = vld [vmem:[#allocation9 + $0x11b8] sm:$0xff]
        %v4550 = vld [vmem:[#allocation9 + $0x11c0] sm:$0xff]
        %v4551 = vld [vmem:[#allocation9 + $0x11c8] sm:$0xff]
        %v4552 = vld [vmem:[#allocation9 + $0x11d0] sm:$0xff]
        %v4553 = vld [vmem:[#allocation9 + $0x11d8] sm:$0xff]
        %v4554 = vld [vmem:[#allocation9 + $0x11e0] sm:$0xff]
        %v4555 = vld [vmem:[#allocation9 + $0x11e8] sm:$0xff]
        %v4556 = vld [vmem:[#allocation9 + $0x11f0] sm:$0xff]
        %v4557 = vld [vmem:[#allocation9 + $0x11f8] sm:$0xff]
        %v4558 = vld [vmem:[#allocation9 + $0x1200] sm:$0xff]
        %v4559 = vld [vmem:[#allocation9 + $0x1208] sm:$0xff]
        %v4560 = vld [vmem:[#allocation9 + $0x1210] sm:$0xff]
        %v4561 = vld [vmem:[#allocation9 + $0x1218] sm:$0xff]
        %v4562 = vld [vmem:[#allocation9 + $0x1220] sm:$0xff]
        %v4563 = vld [vmem:[#allocation9 + $0x1228] sm:$0xff]
        %v4564 = vld [vmem:[#allocation9 + $0x1230] sm:$0xff]
        %v4565 = vld [vmem:[#allocation9 + $0x1238] sm:$0xff]
        %v4566 = vld [vmem:[#allocation9 + $0x1240] sm:$0xff]
        %v4567 = vld [vmem:[#allocation9 + $0x1248] sm:$0xff]
        %v4568 = vld [vmem:[#allocation9 + $0x1250] sm:$0xff]
        %v4569 = vld [vmem:[#allocation9 + $0x1258] sm:$0xff]
        %v4570 = vld [vmem:[#allocation9 + $0x1260] sm:$0xff]
        %v4571 = vld [vmem:[#allocation9 + $0x1268] sm:$0xff]
        %v4572 = vld [vmem:[#allocation9 + $0x1270] sm:$0xff]
        %v4573 = vld [vmem:[#allocation9 + $0x1278] sm:$0xff]
        %v4574 = vld [vmem:[#allocation9 + $0x1280] sm:$0xff]
        %v4575 = vld [vmem:[#allocation9 + $0x1288] sm:$0xff]
        %v4576 = vld [vmem:[#allocation9 + $0x1290] sm:$0xff]
        %v4577 = vld [vmem:[#allocation9 + $0x1298] sm:$0xff]
        %v4578 = vld [vmem:[#allocation9 + $0x12a0] sm:$0xff]
        %v4579 = vld [vmem:[#allocation9 + $0x12a8] sm:$0xff]
        %v4580 = vld [vmem:[#allocation9 + $0x12b0] sm:$0xff]
        %v4581 = vld [vmem:[#allocation9 + $0x12b8] sm:$0xff]
        %v4582 = vld [vmem:[#allocation9 + $0x12c0] sm:$0xff]
        %v4583 = vld [vmem:[#allocation9 + $0x12c8] sm:$0xff]
        %v4584 = vld [vmem:[#allocation9 + $0x12d0] sm:$0xff]
        %v4585 = vld [vmem:[#allocation9 + $0x12d8] sm:$0xff]
        %v4586 = vld [vmem:[#allocation9 + $0x12e0] sm:$0xff]
        %v4587 = vld [vmem:[#allocation9 + $0x12e8] sm:$0xff]
        %v4588 = vld [vmem:[#allocation9 + $0x12f0] sm:$0xff]
        %v4589 = vld [vmem:[#allocation9 + $0x12f8] sm:$0xff]
        %v4590 = vld [vmem:[#allocation9 + $0x1300] sm:$0xff]
        %v4591 = vld [vmem:[#allocation9 + $0x1308] sm:$0xff]
        %v4592 = vld [vmem:[#allocation9 + $0x1310] sm:$0xff]
        %v4593 = vld [vmem:[#allocation9 + $0x1318] sm:$0xff]
        %v4594 = vld [vmem:[#allocation9 + $0x1320] sm:$0xff]
        %v4595 = vld [vmem:[#allocation9 + $0x1328] sm:$0xff]
        %v4596 = vld [vmem:[#allocation9 + $0x1330] sm:$0xff]
        %v4597 = vld [vmem:[#allocation9 + $0x1338] sm:$0xff]
        %v4598 = vld [vmem:[#allocation9 + $0x1340] sm:$0xff]
        %v4599 = vld [vmem:[#allocation9 + $0x1348] sm:$0xff]
        %v4600 = vld [vmem:[#allocation9 + $0x1350] sm:$0xff]
        %v4601 = vld [vmem:[#allocation9 + $0x1358] sm:$0xff]
        %v4602 = vld [vmem:[#allocation9 + $0x1360] sm:$0xff]
        %v4603 = vld [vmem:[#allocation9 + $0x1368] sm:$0xff]
        %v4604 = vld [vmem:[#allocation9 + $0x1370] sm:$0xff]
        %v4605 = vld [vmem:[#allocation9 + $0x1378] sm:$0xff]
        %v4606 = vld [vmem:[#allocation9 + $0x1380] sm:$0xff]
        %v4607 = vld [vmem:[#allocation9 + $0x1388] sm:$0xff]
        %v4608 = vld [vmem:[#allocation9 + $0x1390] sm:$0xff]
        %v4609 = vld [vmem:[#allocation9 + $0x1398] sm:$0xff]
        %v4610 = vld [vmem:[#allocation9 + $0x13a0] sm:$0xff]
        %v4611 = vld [vmem:[#allocation9 + $0x13a8] sm:$0xff]
        %v4612 = vld [vmem:[#allocation9 + $0x13b0] sm:$0xff]
        %v4613 = vld [vmem:[#allocation9 + $0x13b8] sm:$0xff]
        %v4614 = vld [vmem:[#allocation9 + $0x13c0] sm:$0xff]
        %v4615 = vld [vmem:[#allocation9 + $0x13c8] sm:$0xff]
        %v4616 = vld [vmem:[#allocation9 + $0x13d0] sm:$0xff]
        %v4617 = vld [vmem:[#allocation9 + $0x13d8] sm:$0xff]
        %v4618 = vld [vmem:[#allocation9 + $0x13e0] sm:$0xff]
        %v4619 = vld [vmem:[#allocation9 + $0x13e8] sm:$0xff]
        %v4620 = vld [vmem:[#allocation9 + $0x13f0] sm:$0xff]
        %v4621 = vld [vmem:[#allocation9 + $0x13f8] sm:$0xff]
        %v4622 = vld [vmem:[#allocation9 + $0x1400] sm:$0xff]
        %v4623 = vld [vmem:[#allocation9 + $0x1408] sm:$0xff]
        %v4624 = vld [vmem:[#allocation9 + $0x1410] sm:$0xff]
        %v4625 = vld [vmem:[#allocation9 + $0x1418] sm:$0xff]
        %v4626 = vld [vmem:[#allocation9 + $0x1420] sm:$0xff]
        %v4627 = vld [vmem:[#allocation9 + $0x1428] sm:$0xff]
        %v4628 = vld [vmem:[#allocation9 + $0x1430] sm:$0xff]
        %v4629 = vld [vmem:[#allocation9 + $0x1438] sm:$0xff]
        %v4630 = vld [vmem:[#allocation9 + $0x1440] sm:$0xff]
        %v4631 = vld [vmem:[#allocation9 + $0x1448] sm:$0xff]
        %v4632 = vld [vmem:[#allocation9 + $0x1450] sm:$0xff]
        %v4633 = vld [vmem:[#allocation9 + $0x1458] sm:$0xff]
        %v4634 = vld [vmem:[#allocation9 + $0x1460] sm:$0xff]
        %v4635 = vld [vmem:[#allocation9 + $0x1468] sm:$0xff]
        %v4636 = vld [vmem:[#allocation9 + $0x1470] sm:$0xff]
        %v4637 = vld [vmem:[#allocation9 + $0x1478] sm:$0xff]
        %v4638 = vld [vmem:[#allocation9 + $0x1480] sm:$0xff]
        %v4639 = vld [vmem:[#allocation9 + $0x1488] sm:$0xff]
        %v4640 = vld [vmem:[#allocation9 + $0x1490] sm:$0xff]
        %v4641 = vld [vmem:[#allocation9 + $0x1498] sm:$0xff]
        %v4642 = vld [vmem:[#allocation9 + $0x14a0] sm:$0xff]
        %v4643 = vld [vmem:[#allocation9 + $0x14a8] sm:$0xff]
        %v4644 = vld [vmem:[#allocation9 + $0x14b0] sm:$0xff]
        %v4645 = vld [vmem:[#allocation9 + $0x14b8] sm:$0xff]
        %v4646 = vld [vmem:[#allocation9 + $0x14c0] sm:$0xff]
        %v4647 = vld [vmem:[#allocation9 + $0x14c8] sm:$0xff]
        %v4648 = vld [vmem:[#allocation9 + $0x14d0] sm:$0xff]
        %v4649 = vld [vmem:[#allocation9 + $0x14d8] sm:$0xff]
        %v4650 = vld [vmem:[#allocation9 + $0x14e0] sm:$0xff]
        %v4651 = vld [vmem:[#allocation9 + $0x14e8] sm:$0xff]
        %v4652 = vld [vmem:[#allocation9 + $0x14f0] sm:$0xff]
        %v4653 = vld [vmem:[#allocation9 + $0x14f8] sm:$0xff]
        %v4654 = vld [vmem:[#allocation9 + $0x1500] sm:$0xff]
        %v4655 = vld [vmem:[#allocation9 + $0x1508] sm:$0xff]
        %v4656 = vld [vmem:[#allocation9 + $0x1510] sm:$0xff]
        %v4657 = vld [vmem:[#allocation9 + $0x1518] sm:$0xff]
        %v4658 = vld [vmem:[#allocation9 + $0x1520] sm:$0xff]
        %v4659 = vld [vmem:[#allocation9 + $0x1528] sm:$0xff]
        %v4660 = vld [vmem:[#allocation9 + $0x1530] sm:$0xff]
        %v4661 = vld [vmem:[#allocation9 + $0x1538] sm:$0xff]
        %v4662 = vld [vmem:[#allocation9 + $0x1540] sm:$0xff]
        %v4663 = vld [vmem:[#allocation9 + $0x1548] sm:$0xff]
        %v4664 = vld [vmem:[#allocation9 + $0x1550] sm:$0xff]
        %v4665 = vld [vmem:[#allocation9 + $0x1558] sm:$0xff]
        %v4666 = vld [vmem:[#allocation9 + $0x1560] sm:$0xff]
        %v4667 = vld [vmem:[#allocation9 + $0x1568] sm:$0xff]
        %v4668 = vld [vmem:[#allocation9 + $0x1570] sm:$0xff]
        %v4669 = vld [vmem:[#allocation9 + $0x1578] sm:$0xff]
        %v4670 = vld [vmem:[#allocation9 + $0x1580] sm:$0xff]
        %v4671 = vld [vmem:[#allocation9 + $0x1588] sm:$0xff]
        %v4672 = vld [vmem:[#allocation9 + $0x1590] sm:$0xff]
        %v4673 = vld [vmem:[#allocation9 + $0x1598] sm:$0xff]
        %v4674 = vld [vmem:[#allocation9 + $0x15a0] sm:$0xff]
        %v4675 = vld [vmem:[#allocation9 + $0x15a8] sm:$0xff]
        %v4676 = vld [vmem:[#allocation9 + $0x15b0] sm:$0xff]
        %v4677 = vld [vmem:[#allocation9 + $0x15b8] sm:$0xff]
        %v4678 = vld [vmem:[#allocation9 + $0x15c0] sm:$0xff]
        %v4679 = vld [vmem:[#allocation9 + $0x15c8] sm:$0xff]
        %v4680 = vld [vmem:[#allocation9 + $0x15d0] sm:$0xff]
        %v4681 = vld [vmem:[#allocation9 + $0x15d8] sm:$0xff]
        %v4682 = vld [vmem:[#allocation9 + $0x15e0] sm:$0xff]
        %v4683 = vld [vmem:[#allocation9 + $0x15e8] sm:$0xff]
        %v4684 = vld [vmem:[#allocation9 + $0x15f0] sm:$0xff]
        %v4685 = vld [vmem:[#allocation9 + $0x15f8] sm:$0xff]
        %v4686 = vld [vmem:[#allocation9 + $0x1600] sm:$0xff]
        %v4687 = vld [vmem:[#allocation9 + $0x1608] sm:$0xff]
        %v4688 = vld [vmem:[#allocation9 + $0x1610] sm:$0xff]
        %v4689 = vld [vmem:[#allocation9 + $0x1618] sm:$0xff]
        %v4690 = vld [vmem:[#allocation9 + $0x1620] sm:$0xff]
        %v4691 = vld [vmem:[#allocation9 + $0x1628] sm:$0xff]
        %v4692 = vld [vmem:[#allocation9 + $0x1630] sm:$0xff]
        %v4693 = vld [vmem:[#allocation9 + $0x1638] sm:$0xff]
        %v4694 = vld [vmem:[#allocation9 + $0x1640] sm:$0xff]
        %v4695 = vld [vmem:[#allocation9 + $0x1648] sm:$0xff]
        %v4696 = vld [vmem:[#allocation9 + $0x1650] sm:$0xff]
        %v4697 = vld [vmem:[#allocation9 + $0x1658] sm:$0xff]
        %v4698 = vld [vmem:[#allocation9 + $0x1660] sm:$0xff]
        %v4699 = vld [vmem:[#allocation9 + $0x1668] sm:$0xff]
        %v4700 = vld [vmem:[#allocation9 + $0x1670] sm:$0xff]
        %v4701 = vld [vmem:[#allocation9 + $0x1678] sm:$0xff]
        %v4702 = vld [vmem:[#allocation9 + $0x1680] sm:$0xff]
        %v4703 = vld [vmem:[#allocation9 + $0x1688] sm:$0xff]
        %v4704 = vld [vmem:[#allocation9 + $0x1690] sm:$0xff]
        %v4705 = vld [vmem:[#allocation9 + $0x1698] sm:$0xff]
        %v4706 = vld [vmem:[#allocation9 + $0x16a0] sm:$0xff]
        %v4707 = vld [vmem:[#allocation9 + $0x16a8] sm:$0xff]
        %v4708 = vld [vmem:[#allocation9 + $0x16b0] sm:$0xff]
        %v4709 = vld [vmem:[#allocation9 + $0x16b8] sm:$0xff]
        %v4710 = vld [vmem:[#allocation9 + $0x16c0] sm:$0xff]
        %v4711 = vld [vmem:[#allocation9 + $0x16c8] sm:$0xff]
        %v4712 = vld [vmem:[#allocation9 + $0x16d0] sm:$0xff]
        %v4713 = vld [vmem:[#allocation9 + $0x16d8] sm:$0xff]
        %v4714 = vld [vmem:[#allocation9 + $0x16e0] sm:$0xff]
        %v4715 = vld [vmem:[#allocation9 + $0x16e8] sm:$0xff]
        %v4716 = vld [vmem:[#allocation9 + $0x16f0] sm:$0xff]
        %v4717 = vld [vmem:[#allocation9 + $0x16f8] sm:$0xff]
        %v4718 = vld [vmem:[#allocation9 + $0x1700] sm:$0xff]
        %v4719 = vld [vmem:[#allocation9 + $0x1708] sm:$0xff]
        %v4720 = vld [vmem:[#allocation9 + $0x1710] sm:$0xff]
        %v4721 = vld [vmem:[#allocation9 + $0x1718] sm:$0xff]
        %v4722 = vld [vmem:[#allocation9 + $0x1720] sm:$0xff]
        %v4723 = vld [vmem:[#allocation9 + $0x1728] sm:$0xff]
        %v4724 = vld [vmem:[#allocation9 + $0x1730] sm:$0xff]
        %v4725 = vld [vmem:[#allocation9 + $0x1738] sm:$0xff]
        %v4726 = vld [vmem:[#allocation9 + $0x1740] sm:$0xff]
        %v4727 = vld [vmem:[#allocation9 + $0x1748] sm:$0xff]
        %v4728 = vld [vmem:[#allocation9 + $0x1750] sm:$0xff]
        %v4729 = vld [vmem:[#allocation9 + $0x1758] sm:$0xff]
        %v4730 = vld [vmem:[#allocation9 + $0x1760] sm:$0xff]
        %v4731 = vld [vmem:[#allocation9 + $0x1768] sm:$0xff]
        %v4732 = vld [vmem:[#allocation9 + $0x1770] sm:$0xff]
        %v4733 = vld [vmem:[#allocation9 + $0x1778] sm:$0xff]
        %v4734 = vld [vmem:[#allocation9 + $0x1780] sm:$0xff]
        %v4735 = vld [vmem:[#allocation9 + $0x1788] sm:$0xff]
        %v4736 = vld [vmem:[#allocation9 + $0x1790] sm:$0xff]
        %v4737 = vld [vmem:[#allocation9 + $0x1798] sm:$0xff]
        %v4738 = vld [vmem:[#allocation9 + $0x17a0] sm:$0xff]
        %v4739 = vld [vmem:[#allocation9 + $0x17a8] sm:$0xff]
        %v4740 = vld [vmem:[#allocation9 + $0x17b0] sm:$0xff]
        %v4741 = vld [vmem:[#allocation9 + $0x17b8] sm:$0xff]
        %v4742 = vld [vmem:[#allocation9 + $0x17c0] sm:$0xff]
        %v4743 = vld [vmem:[#allocation9 + $0x17c8] sm:$0xff]
        %v4744 = vld [vmem:[#allocation9 + $0x17d0] sm:$0xff]
        %v4745 = vld [vmem:[#allocation9 + $0x17d8] sm:$0xff]
        %v4746 = vld [vmem:[#allocation9 + $0x17e0] sm:$0xff]
        %v4747 = vld [vmem:[#allocation9 + $0x17e8] sm:$0xff]
        %v4748 = vld [vmem:[#allocation9 + $0x17f0] sm:$0xff]
        %v4749 = vld [vmem:[#allocation9 + $0x17f8] sm:$0xff]
        %v4750 = vld [vmem:[#allocation9 + $0x1800] sm:$0xff]
        %v4751 = vld [vmem:[#allocation9 + $0x1808] sm:$0xff]
        %v4752 = vld [vmem:[#allocation9 + $0x1810] sm:$0xff]
        %v4753 = vld [vmem:[#allocation9 + $0x1818] sm:$0xff]
        %v4754 = vld [vmem:[#allocation9 + $0x1820] sm:$0xff]
        %v4755 = vld [vmem:[#allocation9 + $0x1828] sm:$0xff]
        %v4756 = vld [vmem:[#allocation9 + $0x1830] sm:$0xff]
        %v4757 = vld [vmem:[#allocation9 + $0x1838] sm:$0xff]
        %v4758 = vld [vmem:[#allocation9 + $0x1840] sm:$0xff]
        %v4759 = vld [vmem:[#allocation9 + $0x1848] sm:$0xff]
        %v4760 = vld [vmem:[#allocation9 + $0x1850] sm:$0xff]
        %v4761 = vld [vmem:[#allocation9 + $0x1858] sm:$0xff]
        %v4762 = vld [vmem:[#allocation9 + $0x1860] sm:$0xff]
        %v4763 = vld [vmem:[#allocation9 + $0x1868] sm:$0xff]
        %v4764 = vld [vmem:[#allocation9 + $0x1870] sm:$0xff]
        %v4765 = vld [vmem:[#allocation9 + $0x1878] sm:$0xff]
        %v4766 = vld [vmem:[#allocation9 + $0x1880] sm:$0xff]
        %v4767 = vld [vmem:[#allocation9 + $0x1888] sm:$0xff]
        %v4768 = vld [vmem:[#allocation9 + $0x1890] sm:$0xff]
        %v4769 = vld [vmem:[#allocation9 + $0x1898] sm:$0xff]
        %v4770 = vld [vmem:[#allocation9 + $0x18a0] sm:$0xff]
        %v4771 = vld [vmem:[#allocation9 + $0x18a8] sm:$0xff]
        %v4772 = vld [vmem:[#allocation9 + $0x18b0] sm:$0xff]
        %v4773 = vld [vmem:[#allocation9 + $0x18b8] sm:$0xff]
        %v4774 = vld [vmem:[#allocation9 + $0x18c0] sm:$0xff]
        %v4775 = vld [vmem:[#allocation9 + $0x18c8] sm:$0xff]
        %v4776 = vld [vmem:[#allocation9 + $0x18d0] sm:$0xff]
        %v4777 = vld [vmem:[#allocation9 + $0x18d8] sm:$0xff]
        %v4778 = vld [vmem:[#allocation9 + $0x18e0] sm:$0xff]
        %v4779 = vld [vmem:[#allocation9 + $0x18e8] sm:$0xff]
        %v4780 = vld [vmem:[#allocation9 + $0x18f0] sm:$0xff]
        %v4781 = vld [vmem:[#allocation9 + $0x18f8] sm:$0xff]
        %v4782 = vld [vmem:[#allocation9 + $0x1900] sm:$0xff]
        %v4783 = vld [vmem:[#allocation9 + $0x1908] sm:$0xff]
        %v4784 = vld [vmem:[#allocation9 + $0x1910] sm:$0xff]
        %v4785 = vld [vmem:[#allocation9 + $0x1918] sm:$0xff]
        %v4786 = vld [vmem:[#allocation9 + $0x1920] sm:$0xff]
        %v4787 = vld [vmem:[#allocation9 + $0x1928] sm:$0xff]
        %v4788 = vld [vmem:[#allocation9 + $0x1930] sm:$0xff]
        %v4789 = vld [vmem:[#allocation9 + $0x1938] sm:$0xff]
        %v4790 = vld [vmem:[#allocation9 + $0x1940] sm:$0xff]
        %v4791 = vld [vmem:[#allocation9 + $0x1948] sm:$0xff]
        %v4792 = vld [vmem:[#allocation9 + $0x1950] sm:$0xff]
        %v4793 = vld [vmem:[#allocation9 + $0x1958] sm:$0xff]
        %v4794 = vld [vmem:[#allocation9 + $0x1960] sm:$0xff]
        %v4795 = vld [vmem:[#allocation9 + $0x1968] sm:$0xff]
        %v4796 = vld [vmem:[#allocation9 + $0x1970] sm:$0xff]
        %v4797 = vld [vmem:[#allocation9 + $0x1978] sm:$0xff]
        %v4798 = vld [vmem:[#allocation9 + $0x1980] sm:$0xff]
        %v4799 = vld [vmem:[#allocation9 + $0x1988] sm:$0xff]
        %v4800 = vld [vmem:[#allocation9 + $0x1990] sm:$0xff]
        %v4801 = vld [vmem:[#allocation9 + $0x1998] sm:$0xff]
        %v4802 = vld [vmem:[#allocation9 + $0x19a0] sm:$0xff]
        %v4803 = vld [vmem:[#allocation9 + $0x19a8] sm:$0xff]
        %v4804 = vld [vmem:[#allocation9 + $0x19b0] sm:$0xff]
        %v4805 = vld [vmem:[#allocation9 + $0x19b8] sm:$0xff]
        %v4806 = vld [vmem:[#allocation9 + $0x19c0] sm:$0xff]
        %v4807 = vld [vmem:[#allocation9 + $0x19c8] sm:$0xff]
        %v4808 = vld [vmem:[#allocation9 + $0x19d0] sm:$0xff]
        %v4809 = vld [vmem:[#allocation9 + $0x19d8] sm:$0xff]
        %v4810 = vld [vmem:[#allocation9 + $0x19e0] sm:$0xff]
        %v4811 = vld [vmem:[#allocation9 + $0x19e8] sm:$0xff]
        %v4812 = vld [vmem:[#allocation9 + $0x19f0] sm:$0xff]
        %v4813 = vld [vmem:[#allocation9 + $0x19f8] sm:$0xff]
        %v4814 = vld [vmem:[#allocation9 + $0x1a00] sm:$0xff]
        %v4815 = vld [vmem:[#allocation9 + $0x1a08] sm:$0xff]
        %v4816 = vld [vmem:[#allocation9 + $0x1a10] sm:$0xff]
        %v4817 = vld [vmem:[#allocation9 + $0x1a18] sm:$0xff]
        %v4818 = vld [vmem:[#allocation9 + $0x1a20] sm:$0xff]
        %v4819 = vld [vmem:[#allocation9 + $0x1a28] sm:$0xff]
        %v4820 = vld [vmem:[#allocation9 + $0x1a30] sm:$0xff]
        %v4821 = vld [vmem:[#allocation9 + $0x1a38] sm:$0xff]
        %v4822 = vld [vmem:[#allocation9 + $0x1a40] sm:$0xff]
        %v4823 = vld [vmem:[#allocation9 + $0x1a48] sm:$0xff]
        %v4824 = vld [vmem:[#allocation9 + $0x1a50] sm:$0xff]
        %v4825 = vld [vmem:[#allocation9 + $0x1a58] sm:$0xff]
        %v4826 = vld [vmem:[#allocation9 + $0x1a60] sm:$0xff]
        %v4827 = vld [vmem:[#allocation9 + $0x1a68] sm:$0xff]
        %v4828 = vld [vmem:[#allocation9 + $0x1a70] sm:$0xff]
        %v4829 = vld [vmem:[#allocation9 + $0x1a78] sm:$0xff]
        %v4830 = vld [vmem:[#allocation9 + $0x1a80] sm:$0xff]
        %v4831 = vld [vmem:[#allocation9 + $0x1a88] sm:$0xff]
        %v4832 = vld [vmem:[#allocation9 + $0x1a90] sm:$0xff]
        %v4833 = vld [vmem:[#allocation9 + $0x1a98] sm:$0xff]
        %v4834 = vld [vmem:[#allocation9 + $0x1aa0] sm:$0xff]
        %v4835 = vld [vmem:[#allocation9 + $0x1aa8] sm:$0xff]
        %v4836 = vld [vmem:[#allocation9 + $0x1ab0] sm:$0xff]
        %v4837 = vld [vmem:[#allocation9 + $0x1ab8] sm:$0xff]
        %v4838 = vld [vmem:[#allocation9 + $0x1ac0] sm:$0xff]
        %v4839 = vld [vmem:[#allocation9 + $0x1ac8] sm:$0xff]
        %v4840 = vld [vmem:[#allocation9 + $0x1ad0] sm:$0xff]
        %v4841 = vld [vmem:[#allocation9 + $0x1ad8] sm:$0xff]
        %v4842 = vld [vmem:[#allocation9 + $0x1ae0] sm:$0xff]
        %v4843 = vld [vmem:[#allocation9 + $0x1ae8] sm:$0xff]
        %v4844 = vld [vmem:[#allocation9 + $0x1af0] sm:$0xff]
        %v4845 = vld [vmem:[#allocation9 + $0x1af8] sm:$0xff]
        %v4846 = vld [vmem:[#allocation9 + $0x1b00] sm:$0xff]
        %v4847 = vld [vmem:[#allocation9 + $0x1b08] sm:$0xff]
        %v4848 = vld [vmem:[#allocation9 + $0x1b10] sm:$0xff]
        %v4849 = vld [vmem:[#allocation9 + $0x1b18] sm:$0xff]
        %v4850 = vld [vmem:[#allocation9 + $0x1b20] sm:$0xff]
        %v4851 = vld [vmem:[#allocation9 + $0x1b28] sm:$0xff]
        %v4852 = vld [vmem:[#allocation9 + $0x1b30] sm:$0xff]
        %v4853 = vld [vmem:[#allocation9 + $0x1b38] sm:$0xff]
        %v4854 = vld [vmem:[#allocation9 + $0x1b40] sm:$0xff]
        %v4855 = vld [vmem:[#allocation9 + $0x1b48] sm:$0xff]
        %v4856 = vld [vmem:[#allocation9 + $0x1b50] sm:$0xff]
        %v4857 = vld [vmem:[#allocation9 + $0x1b58] sm:$0xff]
        %v4858 = vld [vmem:[#allocation9 + $0x1b60] sm:$0xff]
        %v4859 = vld [vmem:[#allocation9 + $0x1b68] sm:$0xff]
        %v4860 = vld [vmem:[#allocation9 + $0x1b70] sm:$0xff]
        %v4861 = vld [vmem:[#allocation9 + $0x1b78] sm:$0xff]
        %v4862 = vld [vmem:[#allocation9 + $0x1b80] sm:$0xff]
        %v4863 = vld [vmem:[#allocation9 + $0x1b88] sm:$0xff]
        %v4864 = vld [vmem:[#allocation9 + $0x1b90] sm:$0xff]
        %v4865 = vld [vmem:[#allocation9 + $0x1b98] sm:$0xff]
        %v4866 = vld [vmem:[#allocation9 + $0x1ba0] sm:$0xff]
        %v4867 = vld [vmem:[#allocation9 + $0x1ba8] sm:$0xff]
        %v4868 = vld [vmem:[#allocation9 + $0x1bb0] sm:$0xff]
        %v4869 = vld [vmem:[#allocation9 + $0x1bb8] sm:$0xff]
        %v4870 = vld [vmem:[#allocation9 + $0x1bc0] sm:$0xff]
        %v4871 = vld [vmem:[#allocation9 + $0x1bc8] sm:$0xff]
        %v4872 = vld [vmem:[#allocation9 + $0x1bd0] sm:$0xff]
        %v4873 = vld [vmem:[#allocation9 + $0x1bd8] sm:$0xff]
        %v4874 = vld [vmem:[#allocation9 + $0x1be0] sm:$0xff]
        %v4875 = vld [vmem:[#allocation9 + $0x1be8] sm:$0xff]
        %v4876 = vld [vmem:[#allocation9 + $0x1bf0] sm:$0xff]
        %v4877 = vld [vmem:[#allocation9 + $0x1bf8] sm:$0xff]
        %v4878 = vld [vmem:[#allocation10] sm:$0xff]
        %v5775 = vunpack.c.l.b16 %v3982
        %v5776 = vunpack.c.h.b16 %v3982
        %v5777 = vunpack.c.l.b16 %v3983
        %v5778 = vunpack.c.h.b16 %v3983
        %v5779 = vunpack.c.l.b16 %v3984
        %v5780 = vunpack.c.h.b16 %v3984
        %v5781 = vunpack.c.l.b16 %v3985
        %v5782 = vunpack.c.h.b16 %v3985
        %v5783 = vunpack.c.l.b16 %v3986
        %v5784 = vunpack.c.h.b16 %v3986
        %v5785 = vunpack.c.l.b16 %v3987
        %v5786 = vunpack.c.h.b16 %v3987
        %v5787 = vunpack.c.l.b16 %v3988
        %v5788 = vunpack.c.h.b16 %v3988
        %v5789 = vunpack.c.l.b16 %v3989
        %v5790 = vunpack.c.h.b16 %v3989
        %v5791 = vunpack.c.l.b16 %v3990
        %v5792 = vunpack.c.h.b16 %v3990
        %v5793 = vunpack.c.l.b16 %v3991
        %v5794 = vunpack.c.h.b16 %v3991
        %v5795 = vunpack.c.l.b16 %v3992
        %v5796 = vunpack.c.h.b16 %v3992
        %v5797 = vunpack.c.l.b16 %v3993
        %v5798 = vunpack.c.h.b16 %v3993
        %v5799 = vunpack.c.l.b16 %v3994
        %v5800 = vunpack.c.h.b16 %v3994
        %v5801 = vunpack.c.l.b16 %v3995
        %v5802 = vunpack.c.h.b16 %v3995
        %v5803 = vunpack.c.l.b16 %v3996
        %v5804 = vunpack.c.h.b16 %v3996
        %v5805 = vunpack.c.l.b16 %v3997
        %v5806 = vunpack.c.h.b16 %v3997
        %v5807 = vunpack.c.l.b16 %v3998
        %v5808 = vunpack.c.h.b16 %v3998
        %v5809 = vunpack.c.l.b16 %v3999
        %v5810 = vunpack.c.h.b16 %v3999
        %v5811 = vunpack.c.l.b16 %v4000
        %v5812 = vunpack.c.h.b16 %v4000
        %v5813 = vunpack.c.l.b16 %v4001
        %v5814 = vunpack.c.h.b16 %v4001
        %v5815 = vunpack.c.l.b16 %v4002
        %v5816 = vunpack.c.h.b16 %v4002
        %v5817 = vunpack.c.l.b16 %v4003
        %v5818 = vunpack.c.h.b16 %v4003
        %v5819 = vunpack.c.l.b16 %v4004
        %v5820 = vunpack.c.h.b16 %v4004
        %v5821 = vunpack.c.l.b16 %v4005
        %v5822 = vunpack.c.h.b16 %v4005
        %v5823 = vunpack.c.l.b16 %v4006
        %v5824 = vunpack.c.h.b16 %v4006
        %v5825 = vunpack.c.l.b16 %v4007
        %v5826 = vunpack.c.h.b16 %v4007
        %v5827 = vunpack.c.l.b16 %v4008
        %v5828 = vunpack.c.h.b16 %v4008
        %v5829 = vunpack.c.l.b16 %v4009
        %v5830 = vunpack.c.h.b16 %v4009
        %v5831 = vunpack.c.l.b16 %v4010
        %v5832 = vunpack.c.h.b16 %v4010
        %v5833 = vunpack.c.l.b16 %v4011
        %v5834 = vunpack.c.h.b16 %v4011
        %v5835 = vunpack.c.l.b16 %v4012
        %v5836 = vunpack.c.h.b16 %v4012
        %v5837 = vunpack.c.l.b16 %v4013
        %v5838 = vunpack.c.h.b16 %v4013
        %v5839 = vunpack.c.l.b16 %v4014
        %v5840 = vunpack.c.h.b16 %v4014
        %v5841 = vunpack.c.l.b16 %v4015
        %v5842 = vunpack.c.h.b16 %v4015
        %v5843 = vunpack.c.l.b16 %v4016
        %v5844 = vunpack.c.h.b16 %v4016
        %v5845 = vunpack.c.l.b16 %v4017
        %v5846 = vunpack.c.h.b16 %v4017
        %v5847 = vunpack.c.l.b16 %v4018
        %v5848 = vunpack.c.h.b16 %v4018
        %v5849 = vunpack.c.l.b16 %v4019
        %v5850 = vunpack.c.h.b16 %v4019
        %v5851 = vunpack.c.l.b16 %v4020
        %v5852 = vunpack.c.h.b16 %v4020
        %v5853 = vunpack.c.l.b16 %v4021
        %v5854 = vunpack.c.h.b16 %v4021
        %v5855 = vunpack.c.l.b16 %v4022
        %v5856 = vunpack.c.h.b16 %v4022
        %v5857 = vunpack.c.l.b16 %v4023
        %v5858 = vunpack.c.h.b16 %v4023
        %v5859 = vunpack.c.l.b16 %v4024
        %v5860 = vunpack.c.h.b16 %v4024
        %v5861 = vunpack.c.l.b16 %v4025
        %v5862 = vunpack.c.h.b16 %v4025
        %v5863 = vunpack.c.l.b16 %v4026
        %v5864 = vunpack.c.h.b16 %v4026
        %v5865 = vunpack.c.l.b16 %v4027
        %v5866 = vunpack.c.h.b16 %v4027
        %v5867 = vunpack.c.l.b16 %v4028
        %v5868 = vunpack.c.h.b16 %v4028
        %v5869 = vunpack.c.l.b16 %v4029
        %v5870 = vunpack.c.h.b16 %v4029
        %v5871 = vunpack.c.l.b16 %v4030
        %v5872 = vunpack.c.h.b16 %v4030
        %v5873 = vunpack.c.l.b16 %v4031
        %v5874 = vunpack.c.h.b16 %v4031
        %v5875 = vunpack.c.l.b16 %v4032
        %v5876 = vunpack.c.h.b16 %v4032
        %v5877 = vunpack.c.l.b16 %v4033
        %v5878 = vunpack.c.h.b16 %v4033
        %v5879 = vunpack.c.l.b16 %v4034
        %v5880 = vunpack.c.h.b16 %v4034
        %v5881 = vunpack.c.l.b16 %v4035
        %v5882 = vunpack.c.h.b16 %v4035
        %v5883 = vunpack.c.l.b16 %v4036
        %v5884 = vunpack.c.h.b16 %v4036
        %v5885 = vunpack.c.l.b16 %v4037
        %v5886 = vunpack.c.h.b16 %v4037
        %v5887 = vunpack.c.l.b16 %v4038
        %v5888 = vunpack.c.h.b16 %v4038
        %v5889 = vunpack.c.l.b16 %v4039
        %v5890 = vunpack.c.h.b16 %v4039
        %v5891 = vunpack.c.l.b16 %v4040
        %v5892 = vunpack.c.h.b16 %v4040
        %v5893 = vunpack.c.l.b16 %v4041
        %v5894 = vunpack.c.h.b16 %v4041
        %v5895 = vunpack.c.l.b16 %v4042
        %v5896 = vunpack.c.h.b16 %v4042
        %v5897 = vunpack.c.l.b16 %v4043
        %v5898 = vunpack.c.h.b16 %v4043
        %v5899 = vunpack.c.l.b16 %v4044
        %v5900 = vunpack.c.h.b16 %v4044
        %v5901 = vunpack.c.l.b16 %v4045
        %v5902 = vunpack.c.h.b16 %v4045
        %v5903 = vunpack.c.l.b16 %v4046
        %v5904 = vunpack.c.h.b16 %v4046
        %v5905 = vunpack.c.l.b16 %v4047
        %v5906 = vunpack.c.h.b16 %v4047
        %v5907 = vunpack.c.l.b16 %v4048
        %v5908 = vunpack.c.h.b16 %v4048
        %v5909 = vunpack.c.l.b16 %v4049
        %v5910 = vunpack.c.h.b16 %v4049
        %v5911 = vunpack.c.l.b16 %v4050
        %v5912 = vunpack.c.h.b16 %v4050
        %v5913 = vunpack.c.l.b16 %v4051
        %v5914 = vunpack.c.h.b16 %v4051
        %v5915 = vunpack.c.l.b16 %v4052
        %v5916 = vunpack.c.h.b16 %v4052
        %v5917 = vunpack.c.l.b16 %v4053
        %v5918 = vunpack.c.h.b16 %v4053
        %v5919 = vunpack.c.l.b16 %v4054
        %v5920 = vunpack.c.h.b16 %v4054
        %v5921 = vunpack.c.l.b16 %v4055
        %v5922 = vunpack.c.h.b16 %v4055
        %v5923 = vunpack.c.l.b16 %v4056
        %v5924 = vunpack.c.h.b16 %v4056
        %v5925 = vunpack.c.l.b16 %v4057
        %v5926 = vunpack.c.h.b16 %v4057
        %v5927 = vunpack.c.l.b16 %v4058
        %v5928 = vunpack.c.h.b16 %v4058
        %v5929 = vunpack.c.l.b16 %v4059
        %v5930 = vunpack.c.h.b16 %v4059
        %v5931 = vunpack.c.l.b16 %v4060
        %v5932 = vunpack.c.h.b16 %v4060
        %v5933 = vunpack.c.l.b16 %v4061
        %v5934 = vunpack.c.h.b16 %v4061
        %v5935 = vunpack.c.l.b16 %v4062
        %v5936 = vunpack.c.h.b16 %v4062
        %v5937 = vunpack.c.l.b16 %v4063
        %v5938 = vunpack.c.h.b16 %v4063
        %v5939 = vunpack.c.l.b16 %v4064
        %v5940 = vunpack.c.h.b16 %v4064
        %v5941 = vunpack.c.l.b16 %v4065
        %v5942 = vunpack.c.h.b16 %v4065
        %v5943 = vunpack.c.l.b16 %v4066
        %v5944 = vunpack.c.h.b16 %v4066
        %v5945 = vunpack.c.l.b16 %v4067
        %v5946 = vunpack.c.h.b16 %v4067
        %v5947 = vunpack.c.l.b16 %v4068
        %v5948 = vunpack.c.h.b16 %v4068
        %v5949 = vunpack.c.l.b16 %v4069
        %v5950 = vunpack.c.h.b16 %v4069
        %v5951 = vunpack.c.l.b16 %v4070
        %v5952 = vunpack.c.h.b16 %v4070
        %v5953 = vunpack.c.l.b16 %v4071
        %v5954 = vunpack.c.h.b16 %v4071
        %v5955 = vunpack.c.l.b16 %v4072
        %v5956 = vunpack.c.h.b16 %v4072
        %v5957 = vunpack.c.l.b16 %v4073
        %v5958 = vunpack.c.h.b16 %v4073
        %v5959 = vunpack.c.l.b16 %v4074
        %v5960 = vunpack.c.h.b16 %v4074
        %v5961 = vunpack.c.l.b16 %v4075
        %v5962 = vunpack.c.h.b16 %v4075
        %v5963 = vunpack.c.l.b16 %v4076
        %v5964 = vunpack.c.h.b16 %v4076
        %v5965 = vunpack.c.l.b16 %v4077
        %v5966 = vunpack.c.h.b16 %v4077
        %v5967 = vunpack.c.l.b16 %v4078
        %v5968 = vunpack.c.h.b16 %v4078
        %v5969 = vunpack.c.l.b16 %v4079
        %v5970 = vunpack.c.h.b16 %v4079
        %v5971 = vunpack.c.l.b16 %v4080
        %v5972 = vunpack.c.h.b16 %v4080
        %v5973 = vunpack.c.l.b16 %v4081
        %v5974 = vunpack.c.h.b16 %v4081
        %v5975 = vunpack.c.l.b16 %v4082
        %v5976 = vunpack.c.h.b16 %v4082
        %v5977 = vunpack.c.l.b16 %v4083
        %v5978 = vunpack.c.h.b16 %v4083
        %v5979 = vunpack.c.l.b16 %v4084
        %v5980 = vunpack.c.h.b16 %v4084
        %v5981 = vunpack.c.l.b16 %v4085
        %v5982 = vunpack.c.h.b16 %v4085
        %v5983 = vunpack.c.l.b16 %v4086
        %v5984 = vunpack.c.h.b16 %v4086
        %v5985 = vunpack.c.l.b16 %v4087
        %v5986 = vunpack.c.h.b16 %v4087
        %v5987 = vunpack.c.l.b16 %v4088
        %v5988 = vunpack.c.h.b16 %v4088
        %v5989 = vunpack.c.l.b16 %v4089
        %v5990 = vunpack.c.h.b16 %v4089
        %v5991 = vunpack.c.l.b16 %v4090
        %v5992 = vunpack.c.h.b16 %v4090
        %v5993 = vunpack.c.l.b16 %v4091
        %v5994 = vunpack.c.h.b16 %v4091
        %v5995 = vunpack.c.l.b16 %v4092
        %v5996 = vunpack.c.h.b16 %v4092
        %v5997 = vunpack.c.l.b16 %v4093
        %v5998 = vunpack.c.h.b16 %v4093
        %v5999 = vunpack.c.l.b16 %v4094
        %v6000 = vunpack.c.h.b16 %v4094
        %v6001 = vunpack.c.l.b16 %v4095
        %v6002 = vunpack.c.h.b16 %v4095
        %v6003 = vunpack.c.l.b16 %v4096
        %v6004 = vunpack.c.h.b16 %v4096
        %v6005 = vunpack.c.l.b16 %v4097
        %v6006 = vunpack.c.h.b16 %v4097
        %v6007 = vunpack.c.l.b16 %v4098
        %v6008 = vunpack.c.h.b16 %v4098
        %v6009 = vunpack.c.l.b16 %v4099
        %v6010 = vunpack.c.h.b16 %v4099
        %v6011 = vunpack.c.l.b16 %v4100
        %v6012 = vunpack.c.h.b16 %v4100
        %v6013 = vunpack.c.l.b16 %v4101
        %v6014 = vunpack.c.h.b16 %v4101
        %v6015 = vunpack.c.l.b16 %v4102
        %v6016 = vunpack.c.h.b16 %v4102
        %v6017 = vunpack.c.l.b16 %v4103
        %v6018 = vunpack.c.h.b16 %v4103
        %v6019 = vunpack.c.l.b16 %v4104
        %v6020 = vunpack.c.h.b16 %v4104
        %v6021 = vunpack.c.l.b16 %v4105
        %v6022 = vunpack.c.h.b16 %v4105
        %v6023 = vunpack.c.l.b16 %v4106
        %v6024 = vunpack.c.h.b16 %v4106
        %v6025 = vunpack.c.l.b16 %v4107
        %v6026 = vunpack.c.h.b16 %v4107
        %v6027 = vunpack.c.l.b16 %v4108
        %v6028 = vunpack.c.h.b16 %v4108
        %v6029 = vunpack.c.l.b16 %v4109
        %v6030 = vunpack.c.h.b16 %v4109
        %v6031 = vunpack.c.l.b16 %v4110
        %v6032 = vunpack.c.h.b16 %v4110
        %v6033 = vunpack.c.l.b16 %v4111
        %v6034 = vunpack.c.h.b16 %v4111
        %v6035 = vunpack.c.l.b16 %v4112
        %v6036 = vunpack.c.h.b16 %v4112
        %v6037 = vunpack.c.l.b16 %v4113
        %v6038 = vunpack.c.h.b16 %v4113
        %v6039 = vunpack.c.l.b16 %v4114
        %v6040 = vunpack.c.h.b16 %v4114
        %v6041 = vunpack.c.l.b16 %v4115
        %v6042 = vunpack.c.h.b16 %v4115
        %v6043 = vunpack.c.l.b16 %v4116
        %v6044 = vunpack.c.h.b16 %v4116
        %v6045 = vunpack.c.l.b16 %v4117
        %v6046 = vunpack.c.h.b16 %v4117
        %v6047 = vunpack.c.l.b16 %v4118
        %v6048 = vunpack.c.h.b16 %v4118
        %v6049 = vunpack.c.l.b16 %v4119
        %v6050 = vunpack.c.h.b16 %v4119
        %v6051 = vunpack.c.l.b16 %v4120
        %v6052 = vunpack.c.h.b16 %v4120
        %v6053 = vunpack.c.l.b16 %v4121
        %v6054 = vunpack.c.h.b16 %v4121
        %v6055 = vunpack.c.l.b16 %v4122
        %v6056 = vunpack.c.h.b16 %v4122
        %v6057 = vunpack.c.l.b16 %v4123
        %v6058 = vunpack.c.h.b16 %v4123
        %v6059 = vunpack.c.l.b16 %v4124
        %v6060 = vunpack.c.h.b16 %v4124
        %v6061 = vunpack.c.l.b16 %v4125
        %v6062 = vunpack.c.h.b16 %v4125
        %v6063 = vunpack.c.l.b16 %v4126
        %v6064 = vunpack.c.h.b16 %v4126
        %v6065 = vunpack.c.l.b16 %v4127
        %v6066 = vunpack.c.h.b16 %v4127
        %v6067 = vunpack.c.l.b16 %v4128
        %v6068 = vunpack.c.h.b16 %v4128
        %v6069 = vunpack.c.l.b16 %v4129
        %v6070 = vunpack.c.h.b16 %v4129
        %v6071 = vunpack.c.l.b16 %v4130
        %v6072 = vunpack.c.h.b16 %v4130
        %v6073 = vunpack.c.l.b16 %v4131
        %v6074 = vunpack.c.h.b16 %v4131
        %v6075 = vunpack.c.l.b16 %v4132
        %v6076 = vunpack.c.h.b16 %v4132
        %v6077 = vunpack.c.l.b16 %v4133
        %v6078 = vunpack.c.h.b16 %v4133
        %v6079 = vunpack.c.l.b16 %v4134
        %v6080 = vunpack.c.h.b16 %v4134
        %v6081 = vunpack.c.l.b16 %v4135
        %v6082 = vunpack.c.h.b16 %v4135
        %v6083 = vunpack.c.l.b16 %v4136
        %v6084 = vunpack.c.h.b16 %v4136
        %v6085 = vunpack.c.l.b16 %v4137
        %v6086 = vunpack.c.h.b16 %v4137
        %v6087 = vunpack.c.l.b16 %v4138
        %v6088 = vunpack.c.h.b16 %v4138
        %v6089 = vunpack.c.l.b16 %v4139
        %v6090 = vunpack.c.h.b16 %v4139
        %v6091 = vunpack.c.l.b16 %v4140
        %v6092 = vunpack.c.h.b16 %v4140
        %v6093 = vunpack.c.l.b16 %v4141
        %v6094 = vunpack.c.h.b16 %v4141
        %v6095 = vunpack.c.l.b16 %v4142
        %v6096 = vunpack.c.h.b16 %v4142
        %v6097 = vunpack.c.l.b16 %v4143
        %v6098 = vunpack.c.h.b16 %v4143
        %v6099 = vunpack.c.l.b16 %v4144
        %v6100 = vunpack.c.h.b16 %v4144
        %v6101 = vunpack.c.l.b16 %v4145
        %v6102 = vunpack.c.h.b16 %v4145
        %v6103 = vunpack.c.l.b16 %v4146
        %v6104 = vunpack.c.h.b16 %v4146
        %v6105 = vunpack.c.l.b16 %v4147
        %v6106 = vunpack.c.h.b16 %v4147
        %v6107 = vunpack.c.l.b16 %v4148
        %v6108 = vunpack.c.h.b16 %v4148
        %v6109 = vunpack.c.l.b16 %v4149
        %v6110 = vunpack.c.h.b16 %v4149
        %v6111 = vunpack.c.l.b16 %v4150
        %v6112 = vunpack.c.h.b16 %v4150
        %v6113 = vunpack.c.l.b16 %v4151
        %v6114 = vunpack.c.h.b16 %v4151
        %v6115 = vunpack.c.l.b16 %v4152
        %v6116 = vunpack.c.h.b16 %v4152
        %v6117 = vunpack.c.l.b16 %v4153
        %v6118 = vunpack.c.h.b16 %v4153
        %v6119 = vunpack.c.l.b16 %v4154
        %v6120 = vunpack.c.h.b16 %v4154
        %v6121 = vunpack.c.l.b16 %v4155
        %v6122 = vunpack.c.h.b16 %v4155
        %v6123 = vunpack.c.l.b16 %v4156
        %v6124 = vunpack.c.h.b16 %v4156
        %v6125 = vunpack.c.l.b16 %v4157
        %v6126 = vunpack.c.h.b16 %v4157
        %v6127 = vunpack.c.l.b16 %v4158
        %v6128 = vunpack.c.h.b16 %v4158
        %v6129 = vunpack.c.l.b16 %v4159
        %v6130 = vunpack.c.h.b16 %v4159
        %v6131 = vunpack.c.l.b16 %v4160
        %v6132 = vunpack.c.h.b16 %v4160
        %v6133 = vunpack.c.l.b16 %v4161
        %v6134 = vunpack.c.h.b16 %v4161
        %v6135 = vunpack.c.l.b16 %v4162
        %v6136 = vunpack.c.h.b16 %v4162
        %v6137 = vunpack.c.l.b16 %v4163
        %v6138 = vunpack.c.h.b16 %v4163
        %v6139 = vunpack.c.l.b16 %v4164
        %v6140 = vunpack.c.h.b16 %v4164
        %v6141 = vunpack.c.l.b16 %v4165
        %v6142 = vunpack.c.h.b16 %v4165
        %v6143 = vunpack.c.l.b16 %v4166
        %v6144 = vunpack.c.h.b16 %v4166
        %v6145 = vunpack.c.l.b16 %v4167
        %v6146 = vunpack.c.h.b16 %v4167
        %v6147 = vunpack.c.l.b16 %v4168
        %v6148 = vunpack.c.h.b16 %v4168
        %v6149 = vunpack.c.l.b16 %v4169
        %v6150 = vunpack.c.h.b16 %v4169
        %v6151 = vunpack.c.l.b16 %v4170
        %v6152 = vunpack.c.h.b16 %v4170
        %v6153 = vunpack.c.l.b16 %v4171
        %v6154 = vunpack.c.h.b16 %v4171
        %v6155 = vunpack.c.l.b16 %v4172
        %v6156 = vunpack.c.h.b16 %v4172
        %v6157 = vunpack.c.l.b16 %v4173
        %v6158 = vunpack.c.h.b16 %v4173
        %v6159 = vunpack.c.l.b16 %v4174
        %v6160 = vunpack.c.h.b16 %v4174
        %v6161 = vunpack.c.l.b16 %v4175
        %v6162 = vunpack.c.h.b16 %v4175
        %v6163 = vunpack.c.l.b16 %v4176
        %v6164 = vunpack.c.h.b16 %v4176
        %v6165 = vunpack.c.l.b16 %v4177
        %v6166 = vunpack.c.h.b16 %v4177
        %v6167 = vunpack.c.l.b16 %v4178
        %v6168 = vunpack.c.h.b16 %v4178
        %v6169 = vunpack.c.l.b16 %v4179
        %v6170 = vunpack.c.h.b16 %v4179
        %v6171 = vunpack.c.l.b16 %v4180
        %v6172 = vunpack.c.h.b16 %v4180
        %v6173 = vunpack.c.l.b16 %v4181
        %v6174 = vunpack.c.h.b16 %v4181
        %v6175 = vunpack.c.l.b16 %v4182
        %v6176 = vunpack.c.h.b16 %v4182
        %v6177 = vunpack.c.l.b16 %v4183
        %v6178 = vunpack.c.h.b16 %v4183
        %v6179 = vunpack.c.l.b16 %v4184
        %v6180 = vunpack.c.h.b16 %v4184
        %v6181 = vunpack.c.l.b16 %v4185
        %v6182 = vunpack.c.h.b16 %v4185
        %v6183 = vunpack.c.l.b16 %v4186
        %v6184 = vunpack.c.h.b16 %v4186
        %v6185 = vunpack.c.l.b16 %v4187
        %v6186 = vunpack.c.h.b16 %v4187
        %v6187 = vunpack.c.l.b16 %v4188
        %v6188 = vunpack.c.h.b16 %v4188
        %v6189 = vunpack.c.l.b16 %v4189
        %v6190 = vunpack.c.h.b16 %v4189
        %v6191 = vunpack.c.l.b16 %v4190
        %v6192 = vunpack.c.h.b16 %v4190
        %v6193 = vunpack.c.l.b16 %v4191
        %v6194 = vunpack.c.h.b16 %v4191
        %v6195 = vunpack.c.l.b16 %v4192
        %v6196 = vunpack.c.h.b16 %v4192
        %v6197 = vunpack.c.l.b16 %v4193
        %v6198 = vunpack.c.h.b16 %v4193
        %v6199 = vunpack.c.l.b16 %v4194
        %v6200 = vunpack.c.h.b16 %v4194
        %v6201 = vunpack.c.l.b16 %v4195
        %v6202 = vunpack.c.h.b16 %v4195
        %v6203 = vunpack.c.l.b16 %v4196
        %v6204 = vunpack.c.h.b16 %v4196
        %v6205 = vunpack.c.l.b16 %v4197
        %v6206 = vunpack.c.h.b16 %v4197
        %v6207 = vunpack.c.l.b16 %v4198
        %v6208 = vunpack.c.h.b16 %v4198
        %v6209 = vunpack.c.l.b16 %v4199
        %v6210 = vunpack.c.h.b16 %v4199
        %v6211 = vunpack.c.l.b16 %v4200
        %v6212 = vunpack.c.h.b16 %v4200
        %v6213 = vunpack.c.l.b16 %v4201
        %v6214 = vunpack.c.h.b16 %v4201
        %v6215 = vunpack.c.l.b16 %v4202
        %v6216 = vunpack.c.h.b16 %v4202
        %v6217 = vunpack.c.l.b16 %v4203
        %v6218 = vunpack.c.h.b16 %v4203
        %v6219 = vunpack.c.l.b16 %v4204
        %v6220 = vunpack.c.h.b16 %v4204
        %v6221 = vunpack.c.l.b16 %v4205
        %v6222 = vunpack.c.h.b16 %v4205
        %v6223 = vunpack.c.l.b16 %v4206
        %v6224 = vunpack.c.h.b16 %v4206
        %v6225 = vunpack.c.l.b16 %v4207
        %v6226 = vunpack.c.h.b16 %v4207
        %v6227 = vunpack.c.l.b16 %v4208
        %v6228 = vunpack.c.h.b16 %v4208
        %v6229 = vunpack.c.l.b16 %v4209
        %v6230 = vunpack.c.h.b16 %v4209
        %v6231 = vunpack.c.l.b16 %v4210
        %v6232 = vunpack.c.h.b16 %v4210
        %v6233 = vunpack.c.l.b16 %v4211
        %v6234 = vunpack.c.h.b16 %v4211
        %v6235 = vunpack.c.l.b16 %v4212
        %v6236 = vunpack.c.h.b16 %v4212
        %v6237 = vunpack.c.l.b16 %v4213
        %v6238 = vunpack.c.h.b16 %v4213
        %v6239 = vunpack.c.l.b16 %v4214
        %v6240 = vunpack.c.h.b16 %v4214
        %v6241 = vunpack.c.l.b16 %v4215
        %v6242 = vunpack.c.h.b16 %v4215
        %v6243 = vunpack.c.l.b16 %v4216
        %v6244 = vunpack.c.h.b16 %v4216
        %v6245 = vunpack.c.l.b16 %v4217
        %v6246 = vunpack.c.h.b16 %v4217
        %v6247 = vunpack.c.l.b16 %v4218
        %v6248 = vunpack.c.h.b16 %v4218
        %v6249 = vunpack.c.l.b16 %v4219
        %v6250 = vunpack.c.h.b16 %v4219
        %v6251 = vunpack.c.l.b16 %v4220
        %v6252 = vunpack.c.h.b16 %v4220
        %v6253 = vunpack.c.l.b16 %v4221
        %v6254 = vunpack.c.h.b16 %v4221
        %v6255 = vunpack.c.l.b16 %v4222
        %v6256 = vunpack.c.h.b16 %v4222
        %v6257 = vunpack.c.l.b16 %v4223
        %v6258 = vunpack.c.h.b16 %v4223
        %v6259 = vunpack.c.l.b16 %v4224
        %v6260 = vunpack.c.h.b16 %v4224
        %v6261 = vunpack.c.l.b16 %v4225
        %v6262 = vunpack.c.h.b16 %v4225
        %v6263 = vunpack.c.l.b16 %v4226
        %v6264 = vunpack.c.h.b16 %v4226
        %v6265 = vunpack.c.l.b16 %v4227
        %v6266 = vunpack.c.h.b16 %v4227
        %v6267 = vunpack.c.l.b16 %v4228
        %v6268 = vunpack.c.h.b16 %v4228
        %v6269 = vunpack.c.l.b16 %v4229
        %v6270 = vunpack.c.h.b16 %v4229
        %v6271 = vunpack.c.l.b16 %v4230
        %v6272 = vunpack.c.h.b16 %v4230
        %v6273 = vunpack.c.l.b16 %v4231
        %v6274 = vunpack.c.h.b16 %v4231
        %v6275 = vunpack.c.l.b16 %v4232
        %v6276 = vunpack.c.h.b16 %v4232
        %v6277 = vunpack.c.l.b16 %v4233
        %v6278 = vunpack.c.h.b16 %v4233
        %v6279 = vunpack.c.l.b16 %v4234
        %v6280 = vunpack.c.h.b16 %v4234
        %v6281 = vunpack.c.l.b16 %v4235
        %v6282 = vunpack.c.h.b16 %v4235
        %v6283 = vunpack.c.l.b16 %v4236
        %v6284 = vunpack.c.h.b16 %v4236
        %v6285 = vunpack.c.l.b16 %v4237
        %v6286 = vunpack.c.h.b16 %v4237
        %v6287 = vunpack.c.l.b16 %v4238
        %v6288 = vunpack.c.h.b16 %v4238
        %v6289 = vunpack.c.l.b16 %v4239
        %v6290 = vunpack.c.h.b16 %v4239
        %v6291 = vunpack.c.l.b16 %v4240
        %v6292 = vunpack.c.h.b16 %v4240
        %v6293 = vunpack.c.l.b16 %v4241
        %v6294 = vunpack.c.h.b16 %v4241
        %v6295 = vunpack.c.l.b16 %v4242
        %v6296 = vunpack.c.h.b16 %v4242
        %v6297 = vunpack.c.l.b16 %v4243
        %v6298 = vunpack.c.h.b16 %v4243
        %v6299 = vunpack.c.l.b16 %v4244
        %v6300 = vunpack.c.h.b16 %v4244
        %v6301 = vunpack.c.l.b16 %v4245
        %v6302 = vunpack.c.h.b16 %v4245
        %v6303 = vunpack.c.l.b16 %v4246
        %v6304 = vunpack.c.h.b16 %v4246
        %v6305 = vunpack.c.l.b16 %v4247
        %v6306 = vunpack.c.h.b16 %v4247
        %v6307 = vunpack.c.l.b16 %v4248
        %v6308 = vunpack.c.h.b16 %v4248
        %v6309 = vunpack.c.l.b16 %v4249
        %v6310 = vunpack.c.h.b16 %v4249
        %v6311 = vunpack.c.l.b16 %v4250
        %v6312 = vunpack.c.h.b16 %v4250
        %v6313 = vunpack.c.l.b16 %v4251
        %v6314 = vunpack.c.h.b16 %v4251
        %v6315 = vunpack.c.l.b16 %v4252
        %v6316 = vunpack.c.h.b16 %v4252
        %v6317 = vunpack.c.l.b16 %v4253
        %v6318 = vunpack.c.h.b16 %v4253
        %v6319 = vunpack.c.l.b16 %v4254
        %v6320 = vunpack.c.h.b16 %v4254
        %v6321 = vunpack.c.l.b16 %v4255
        %v6322 = vunpack.c.h.b16 %v4255
        %v6323 = vunpack.c.l.b16 %v4256
        %v6324 = vunpack.c.h.b16 %v4256
        %v6325 = vunpack.c.l.b16 %v4257
        %v6326 = vunpack.c.h.b16 %v4257
        %v6327 = vunpack.c.l.b16 %v4258
        %v6328 = vunpack.c.h.b16 %v4258
        %v6329 = vunpack.c.l.b16 %v4259
        %v6330 = vunpack.c.h.b16 %v4259
        %v6331 = vunpack.c.l.b16 %v4260
        %v6332 = vunpack.c.h.b16 %v4260
        %v6333 = vunpack.c.l.b16 %v4261
        %v6334 = vunpack.c.h.b16 %v4261
        %v6335 = vunpack.c.l.b16 %v4262
        %v6336 = vunpack.c.h.b16 %v4262
        %v6337 = vunpack.c.l.b16 %v4263
        %v6338 = vunpack.c.h.b16 %v4263
        %v6339 = vunpack.c.l.b16 %v4264
        %v6340 = vunpack.c.h.b16 %v4264
        %v6341 = vunpack.c.l.b16 %v4265
        %v6342 = vunpack.c.h.b16 %v4265
        %v6343 = vunpack.c.l.b16 %v4266
        %v6344 = vunpack.c.h.b16 %v4266
        %v6345 = vunpack.c.l.b16 %v4267
        %v6346 = vunpack.c.h.b16 %v4267
        %v6347 = vunpack.c.l.b16 %v4268
        %v6348 = vunpack.c.h.b16 %v4268
        %v6349 = vunpack.c.l.b16 %v4269
        %v6350 = vunpack.c.h.b16 %v4269
        %v6351 = vunpack.c.l.b16 %v4270
        %v6352 = vunpack.c.h.b16 %v4270
        %v6353 = vunpack.c.l.b16 %v4271
        %v6354 = vunpack.c.h.b16 %v4271
        %v6355 = vunpack.c.l.b16 %v4272
        %v6356 = vunpack.c.h.b16 %v4272
        %v6357 = vunpack.c.l.b16 %v4273
        %v6358 = vunpack.c.h.b16 %v4273
        %v6359 = vunpack.c.l.b16 %v4274
        %v6360 = vunpack.c.h.b16 %v4274
        %v6361 = vunpack.c.l.b16 %v4275
        %v6362 = vunpack.c.h.b16 %v4275
        %v6363 = vunpack.c.l.b16 %v4276
        %v6364 = vunpack.c.h.b16 %v4276
        %v6365 = vunpack.c.l.b16 %v4277
        %v6366 = vunpack.c.h.b16 %v4277
        %v6367 = vunpack.c.l.b16 %v4278
        %v6368 = vunpack.c.h.b16 %v4278
        %v6369 = vunpack.c.l.b16 %v4279
        %v6370 = vunpack.c.h.b16 %v4279
        %v6371 = vunpack.c.l.b16 %v4280
        %v6372 = vunpack.c.h.b16 %v4280
        %v6373 = vunpack.c.l.b16 %v4281
        %v6374 = vunpack.c.h.b16 %v4281
        %v6375 = vunpack.c.l.b16 %v4282
        %v6376 = vunpack.c.h.b16 %v4282
        %v6377 = vunpack.c.l.b16 %v4283
        %v6378 = vunpack.c.h.b16 %v4283
        %v6379 = vunpack.c.l.b16 %v4284
        %v6380 = vunpack.c.h.b16 %v4284
        %v6381 = vunpack.c.l.b16 %v4285
        %v6382 = vunpack.c.h.b16 %v4285
        %v6383 = vunpack.c.l.b16 %v4286
        %v6384 = vunpack.c.h.b16 %v4286
        %v6385 = vunpack.c.l.b16 %v4287
        %v6386 = vunpack.c.h.b16 %v4287
        %v6387 = vunpack.c.l.b16 %v4288
        %v6388 = vunpack.c.h.b16 %v4288
        %v6389 = vunpack.c.l.b16 %v4289
        %v6390 = vunpack.c.h.b16 %v4289
        %v6391 = vunpack.c.l.b16 %v4290
        %v6392 = vunpack.c.h.b16 %v4290
        %v6393 = vunpack.c.l.b16 %v4291
        %v6394 = vunpack.c.h.b16 %v4291
        %v6395 = vunpack.c.l.b16 %v4292
        %v6396 = vunpack.c.h.b16 %v4292
        %v6397 = vunpack.c.l.b16 %v4293
        %v6398 = vunpack.c.h.b16 %v4293
        %v6399 = vunpack.c.l.b16 %v4294
        %v6400 = vunpack.c.h.b16 %v4294
        %v6401 = vunpack.c.l.b16 %v4295
        %v6402 = vunpack.c.h.b16 %v4295
        %v6403 = vunpack.c.l.b16 %v4296
        %v6404 = vunpack.c.h.b16 %v4296
        %v6405 = vunpack.c.l.b16 %v4297
        %v6406 = vunpack.c.h.b16 %v4297
        %v6407 = vunpack.c.l.b16 %v4298
        %v6408 = vunpack.c.h.b16 %v4298
        %v6409 = vunpack.c.l.b16 %v4299
        %v6410 = vunpack.c.h.b16 %v4299
        %v6411 = vunpack.c.l.b16 %v4300
        %v6412 = vunpack.c.h.b16 %v4300
        %v6413 = vunpack.c.l.b16 %v4301
        %v6414 = vunpack.c.h.b16 %v4301
        %v6415 = vunpack.c.l.b16 %v4302
        %v6416 = vunpack.c.h.b16 %v4302
        %v6417 = vunpack.c.l.b16 %v4303
        %v6418 = vunpack.c.h.b16 %v4303
        %v6419 = vunpack.c.l.b16 %v4304
        %v6420 = vunpack.c.h.b16 %v4304
        %v6421 = vunpack.c.l.b16 %v4305
        %v6422 = vunpack.c.h.b16 %v4305
        %v6423 = vunpack.c.l.b16 %v4306
        %v6424 = vunpack.c.h.b16 %v4306
        %v6425 = vunpack.c.l.b16 %v4307
        %v6426 = vunpack.c.h.b16 %v4307
        %v6427 = vunpack.c.l.b16 %v4308
        %v6428 = vunpack.c.h.b16 %v4308
        %v6429 = vunpack.c.l.b16 %v4309
        %v6430 = vunpack.c.h.b16 %v4309
        %v6431 = vunpack.c.l.b16 %v4310
        %v6432 = vunpack.c.h.b16 %v4310
        %v6433 = vunpack.c.l.b16 %v4311
        %v6434 = vunpack.c.h.b16 %v4311
        %v6435 = vunpack.c.l.b16 %v4312
        %v6436 = vunpack.c.h.b16 %v4312
        %v6437 = vunpack.c.l.b16 %v4313
        %v6438 = vunpack.c.h.b16 %v4313
        %v6439 = vunpack.c.l.b16 %v4314
        %v6440 = vunpack.c.h.b16 %v4314
        %v6441 = vunpack.c.l.b16 %v4315
        %v6442 = vunpack.c.h.b16 %v4315
        %v6443 = vunpack.c.l.b16 %v4316
        %v6444 = vunpack.c.h.b16 %v4316
        %v6445 = vunpack.c.l.b16 %v4317
        %v6446 = vunpack.c.h.b16 %v4317
        %v6447 = vunpack.c.l.b16 %v4318
        %v6448 = vunpack.c.h.b16 %v4318
        %v6449 = vunpack.c.l.b16 %v4319
        %v6450 = vunpack.c.h.b16 %v4319
        %v6451 = vunpack.c.l.b16 %v4320
        %v6452 = vunpack.c.h.b16 %v4320
        %v6453 = vunpack.c.l.b16 %v4321
        %v6454 = vunpack.c.h.b16 %v4321
        %v6455 = vunpack.c.l.b16 %v4322
        %v6456 = vunpack.c.h.b16 %v4322
        %v6457 = vunpack.c.l.b16 %v4323
        %v6458 = vunpack.c.h.b16 %v4323
        %v6459 = vunpack.c.l.b16 %v4324
        %v6460 = vunpack.c.h.b16 %v4324
        %v6461 = vunpack.c.l.b16 %v4325
        %v6462 = vunpack.c.h.b16 %v4325
        %v6463 = vunpack.c.l.b16 %v4326
        %v6464 = vunpack.c.h.b16 %v4326
        %v6465 = vunpack.c.l.b16 %v4327
        %v6466 = vunpack.c.h.b16 %v4327
        %v6467 = vunpack.c.l.b16 %v4328
        %v6468 = vunpack.c.h.b16 %v4328
        %v6469 = vunpack.c.l.b16 %v4329
        %v6470 = vunpack.c.h.b16 %v4329
        %v6471 = vunpack.c.l.b16 %v4330
        %v6472 = vunpack.c.h.b16 %v4330
        %v6473 = vunpack.c.l.b16 %v4331
        %v6474 = vunpack.c.h.b16 %v4331
        %v6475 = vunpack.c.l.b16 %v4332
        %v6476 = vunpack.c.h.b16 %v4332
        %v6477 = vunpack.c.l.b16 %v4333
        %v6478 = vunpack.c.h.b16 %v4333
        %v6479 = vunpack.c.l.b16 %v4334
        %v6480 = vunpack.c.h.b16 %v4334
        %v6481 = vunpack.c.l.b16 %v4335
        %v6482 = vunpack.c.h.b16 %v4335
        %v6483 = vunpack.c.l.b16 %v4336
        %v6484 = vunpack.c.h.b16 %v4336
        %v6485 = vunpack.c.l.b16 %v4337
        %v6486 = vunpack.c.h.b16 %v4337
        %v6487 = vunpack.c.l.b16 %v4338
        %v6488 = vunpack.c.h.b16 %v4338
        %v6489 = vunpack.c.l.b16 %v4339
        %v6490 = vunpack.c.h.b16 %v4339
        %v6491 = vunpack.c.l.b16 %v4340
        %v6492 = vunpack.c.h.b16 %v4340
        %v6493 = vunpack.c.l.b16 %v4341
        %v6494 = vunpack.c.h.b16 %v4341
        %v6495 = vunpack.c.l.b16 %v4342
        %v6496 = vunpack.c.h.b16 %v4342
        %v6497 = vunpack.c.l.b16 %v4343
        %v6498 = vunpack.c.h.b16 %v4343
        %v6499 = vunpack.c.l.b16 %v4344
        %v6500 = vunpack.c.h.b16 %v4344
        %v6501 = vunpack.c.l.b16 %v4345
        %v6502 = vunpack.c.h.b16 %v4345
        %v6503 = vunpack.c.l.b16 %v4346
        %v6504 = vunpack.c.h.b16 %v4346
        %v6505 = vunpack.c.l.b16 %v4347
        %v6506 = vunpack.c.h.b16 %v4347
        %v6507 = vunpack.c.l.b16 %v4348
        %v6508 = vunpack.c.h.b16 %v4348
        %v6509 = vunpack.c.l.b16 %v4349
        %v6510 = vunpack.c.h.b16 %v4349
        %v6511 = vunpack.c.l.b16 %v4350
        %v6512 = vunpack.c.h.b16 %v4350
        %v6513 = vunpack.c.l.b16 %v4351
        %v6514 = vunpack.c.h.b16 %v4351
        %v6515 = vunpack.c.l.b16 %v4352
        %v6516 = vunpack.c.h.b16 %v4352
        %v6517 = vunpack.c.l.b16 %v4353
        %v6518 = vunpack.c.h.b16 %v4353
        %v6519 = vunpack.c.l.b16 %v4354
        %v6520 = vunpack.c.h.b16 %v4354
        %v6521 = vunpack.c.l.b16 %v4355
        %v6522 = vunpack.c.h.b16 %v4355
        %v6523 = vunpack.c.l.b16 %v4356
        %v6524 = vunpack.c.h.b16 %v4356
        %v6525 = vunpack.c.l.b16 %v4357
        %v6526 = vunpack.c.h.b16 %v4357
        %v6527 = vunpack.c.l.b16 %v4358
        %v6528 = vunpack.c.h.b16 %v4358
        %v6529 = vunpack.c.l.b16 %v4359
        %v6530 = vunpack.c.h.b16 %v4359
        %v6531 = vunpack.c.l.b16 %v4360
        %v6532 = vunpack.c.h.b16 %v4360
        %v6533 = vunpack.c.l.b16 %v4361
        %v6534 = vunpack.c.h.b16 %v4361
        %v6535 = vunpack.c.l.b16 %v4362
        %v6536 = vunpack.c.h.b16 %v4362
        %v6537 = vunpack.c.l.b16 %v4363
        %v6538 = vunpack.c.h.b16 %v4363
        %v6539 = vunpack.c.l.b16 %v4364
        %v6540 = vunpack.c.h.b16 %v4364
        %v6541 = vunpack.c.l.b16 %v4365
        %v6542 = vunpack.c.h.b16 %v4365
        %v6543 = vunpack.c.l.b16 %v4366
        %v6544 = vunpack.c.h.b16 %v4366
        %v6545 = vunpack.c.l.b16 %v4367
        %v6546 = vunpack.c.h.b16 %v4367
        %v6547 = vunpack.c.l.b16 %v4368
        %v6548 = vunpack.c.h.b16 %v4368
        %v6549 = vunpack.c.l.b16 %v4369
        %v6550 = vunpack.c.h.b16 %v4369
        %v6551 = vunpack.c.l.b16 %v4370
        %v6552 = vunpack.c.h.b16 %v4370
        %v6553 = vunpack.c.l.b16 %v4371
        %v6554 = vunpack.c.h.b16 %v4371
        %v6555 = vunpack.c.l.b16 %v4372
        %v6556 = vunpack.c.h.b16 %v4372
        %v6557 = vunpack.c.l.b16 %v4373
        %v6558 = vunpack.c.h.b16 %v4373
        %v6559 = vunpack.c.l.b16 %v4374
        %v6560 = vunpack.c.h.b16 %v4374
        %v6561 = vunpack.c.l.b16 %v4375
        %v6562 = vunpack.c.h.b16 %v4375
        %v6563 = vunpack.c.l.b16 %v4376
        %v6564 = vunpack.c.h.b16 %v4376
        %v6565 = vunpack.c.l.b16 %v4377
        %v6566 = vunpack.c.h.b16 %v4377
        %v6567 = vunpack.c.l.b16 %v4378
        %v6568 = vunpack.c.h.b16 %v4378
        %v6569 = vunpack.c.l.b16 %v4379
        %v6570 = vunpack.c.h.b16 %v4379
        %v6571 = vunpack.c.l.b16 %v4380
        %v6572 = vunpack.c.h.b16 %v4380
        %v6573 = vunpack.c.l.b16 %v4381
        %v6574 = vunpack.c.h.b16 %v4381
        %v6575 = vunpack.c.l.b16 %v4382
        %v6576 = vunpack.c.h.b16 %v4382
        %v6577 = vunpack.c.l.b16 %v4383
        %v6578 = vunpack.c.h.b16 %v4383
        %v6579 = vunpack.c.l.b16 %v4384
        %v6580 = vunpack.c.h.b16 %v4384
        %v6581 = vunpack.c.l.b16 %v4385
        %v6582 = vunpack.c.h.b16 %v4385
        %v6583 = vunpack.c.l.b16 %v4386
        %v6584 = vunpack.c.h.b16 %v4386
        %v6585 = vunpack.c.l.b16 %v4387
        %v6586 = vunpack.c.h.b16 %v4387
        %v6587 = vunpack.c.l.b16 %v4388
        %v6588 = vunpack.c.h.b16 %v4388
        %v6589 = vunpack.c.l.b16 %v4389
        %v6590 = vunpack.c.h.b16 %v4389
        %v6591 = vunpack.c.l.b16 %v4390
        %v6592 = vunpack.c.h.b16 %v4390
        %v6593 = vunpack.c.l.b16 %v4391
        %v6594 = vunpack.c.h.b16 %v4391
        %v6595 = vunpack.c.l.b16 %v4392
        %v6596 = vunpack.c.h.b16 %v4392
        %v6597 = vunpack.c.l.b16 %v4393
        %v6598 = vunpack.c.h.b16 %v4393
        %v6599 = vunpack.c.l.b16 %v4394
        %v6600 = vunpack.c.h.b16 %v4394
        %v6601 = vunpack.c.l.b16 %v4395
        %v6602 = vunpack.c.h.b16 %v4395
        %v6603 = vunpack.c.l.b16 %v4396
        %v6604 = vunpack.c.h.b16 %v4396
        %v6605 = vunpack.c.l.b16 %v4397
        %v6606 = vunpack.c.h.b16 %v4397
        %v6607 = vunpack.c.l.b16 %v4398
        %v6608 = vunpack.c.h.b16 %v4398
        %v6609 = vunpack.c.l.b16 %v4399
        %v6610 = vunpack.c.h.b16 %v4399
        %v6611 = vunpack.c.l.b16 %v4400
        %v6612 = vunpack.c.h.b16 %v4400
        %v6613 = vunpack.c.l.b16 %v4401
        %v6614 = vunpack.c.h.b16 %v4401
        %v6615 = vunpack.c.l.b16 %v4402
        %v6616 = vunpack.c.h.b16 %v4402
        %v6617 = vunpack.c.l.b16 %v4403
        %v6618 = vunpack.c.h.b16 %v4403
        %v6619 = vunpack.c.l.b16 %v4404
        %v6620 = vunpack.c.h.b16 %v4404
        %v6621 = vunpack.c.l.b16 %v4405
        %v6622 = vunpack.c.h.b16 %v4405
        %v6623 = vunpack.c.l.b16 %v4406
        %v6624 = vunpack.c.h.b16 %v4406
        %v6625 = vunpack.c.l.b16 %v4407
        %v6626 = vunpack.c.h.b16 %v4407
        %v6627 = vunpack.c.l.b16 %v4408
        %v6628 = vunpack.c.h.b16 %v4408
        %v6629 = vunpack.c.l.b16 %v4409
        %v6630 = vunpack.c.h.b16 %v4409
        %v6631 = vunpack.c.l.b16 %v4410
        %v6632 = vunpack.c.h.b16 %v4410
        %v6633 = vunpack.c.l.b16 %v4411
        %v6634 = vunpack.c.h.b16 %v4411
        %v6635 = vunpack.c.l.b16 %v4412
        %v6636 = vunpack.c.h.b16 %v4412
        %v6637 = vunpack.c.l.b16 %v4413
        %v6638 = vunpack.c.h.b16 %v4413
        %v6639 = vunpack.c.l.b16 %v4414
        %v6640 = vunpack.c.h.b16 %v4414
        %v6641 = vunpack.c.l.b16 %v4415
        %v6642 = vunpack.c.h.b16 %v4415
        %v6643 = vunpack.c.l.b16 %v4416
        %v6644 = vunpack.c.h.b16 %v4416
        %v6645 = vunpack.c.l.b16 %v4417
        %v6646 = vunpack.c.h.b16 %v4417
        %v6647 = vunpack.c.l.b16 %v4418
        %v6648 = vunpack.c.h.b16 %v4418
        %v6649 = vunpack.c.l.b16 %v4419
        %v6650 = vunpack.c.h.b16 %v4419
        %v6651 = vunpack.c.l.b16 %v4420
        %v6652 = vunpack.c.h.b16 %v4420
        %v6653 = vunpack.c.l.b16 %v4421
        %v6654 = vunpack.c.h.b16 %v4421
        %v6655 = vunpack.c.l.b16 %v4422
        %v6656 = vunpack.c.h.b16 %v4422
        %v6657 = vunpack.c.l.b16 %v4423
        %v6658 = vunpack.c.h.b16 %v4423
        %v6659 = vunpack.c.l.b16 %v4424
        %v6660 = vunpack.c.h.b16 %v4424
        %v6661 = vunpack.c.l.b16 %v4425
        %v6662 = vunpack.c.h.b16 %v4425
        %v6663 = vunpack.c.l.b16 %v4426
        %v6664 = vunpack.c.h.b16 %v4426
        %v6665 = vunpack.c.l.b16 %v4427
        %v6666 = vunpack.c.h.b16 %v4427
        %v6667 = vunpack.c.l.b16 %v4428
        %v6668 = vunpack.c.h.b16 %v4428
        %v6669 = vunpack.c.l.b16 %v4429
        %v6670 = vunpack.c.h.b16 %v4429
        %v6671 = vunpack.c.l.b16 %v4430
        %v6672 = vunpack.c.h.b16 %v4430
        %v6673 = vunpack.c.l.b16 %v4431
        %v6674 = vunpack.c.h.b16 %v4431
        %v6675 = vunpack.c.l.b16 %v4432
        %v6676 = vunpack.c.h.b16 %v4432
        %v6677 = vunpack.c.l.b16 %v4433
        %v6678 = vunpack.c.h.b16 %v4433
        %v6679 = vunpack.c.l.b16 %v4434
        %v6680 = vunpack.c.h.b16 %v4434
        %v6681 = vunpack.c.l.b16 %v4435
        %v6682 = vunpack.c.h.b16 %v4435
        %v6683 = vunpack.c.l.b16 %v4436
        %v6684 = vunpack.c.h.b16 %v4436
        %v6685 = vunpack.c.l.b16 %v4437
        %v6686 = vunpack.c.h.b16 %v4437
        %v6687 = vunpack.c.l.b16 %v4438
        %v6688 = vunpack.c.h.b16 %v4438
        %v6689 = vunpack.c.l.b16 %v4439
        %v6690 = vunpack.c.h.b16 %v4439
        %v6691 = vunpack.c.l.b16 %v4440
        %v6692 = vunpack.c.h.b16 %v4440
        %v6693 = vunpack.c.l.b16 %v4441
        %v6694 = vunpack.c.h.b16 %v4441
        %v6695 = vunpack.c.l.b16 %v4442
        %v6696 = vunpack.c.h.b16 %v4442
        %v6697 = vunpack.c.l.b16 %v4443
        %v6698 = vunpack.c.h.b16 %v4443
        %v6699 = vunpack.c.l.b16 %v4444
        %v6700 = vunpack.c.h.b16 %v4444
        %v6701 = vunpack.c.l.b16 %v4445
        %v6702 = vunpack.c.h.b16 %v4445
        %v6703 = vunpack.c.l.b16 %v4446
        %v6704 = vunpack.c.h.b16 %v4446
        %v6705 = vunpack.c.l.b16 %v4447
        %v6706 = vunpack.c.h.b16 %v4447
        %v6707 = vunpack.c.l.b16 %v4448
        %v6708 = vunpack.c.h.b16 %v4448
        %v6709 = vunpack.c.l.b16 %v4449
        %v6710 = vunpack.c.h.b16 %v4449
        %v6711 = vunpack.c.l.b16 %v4450
        %v6712 = vunpack.c.h.b16 %v4450
        %v6713 = vunpack.c.l.b16 %v4451
        %v6714 = vunpack.c.h.b16 %v4451
        %v6715 = vunpack.c.l.b16 %v4452
        %v6716 = vunpack.c.h.b16 %v4452
        %v6717 = vunpack.c.l.b16 %v4453
        %v6718 = vunpack.c.h.b16 %v4453
        %v6719 = vunpack.c.l.b16 %v4454
        %v6720 = vunpack.c.h.b16 %v4454
        %v6721 = vunpack.c.l.b16 %v4455
        %v6722 = vunpack.c.h.b16 %v4455
        %v6723 = vunpack.c.l.b16 %v4456
        %v6724 = vunpack.c.h.b16 %v4456
        %v6725 = vunpack.c.l.b16 %v4457
        %v6726 = vunpack.c.h.b16 %v4457
        %v6727 = vunpack.c.l.b16 %v4458
        %v6728 = vunpack.c.h.b16 %v4458
        %v6729 = vunpack.c.l.b16 %v4459
        %v6730 = vunpack.c.h.b16 %v4459
        %v6731 = vunpack.c.l.b16 %v4460
        %v6732 = vunpack.c.h.b16 %v4460
        %v6733 = vunpack.c.l.b16 %v4461
        %v6734 = vunpack.c.h.b16 %v4461
        %v6735 = vunpack.c.l.b16 %v4462
        %v6736 = vunpack.c.h.b16 %v4462
        %v6737 = vunpack.c.l.b16 %v4463
        %v6738 = vunpack.c.h.b16 %v4463
        %v6739 = vunpack.c.l.b16 %v4464
        %v6740 = vunpack.c.h.b16 %v4464
        %v6741 = vunpack.c.l.b16 %v4465
        %v6742 = vunpack.c.h.b16 %v4465
        %v6743 = vunpack.c.l.b16 %v4466
        %v6744 = vunpack.c.h.b16 %v4466
        %v6745 = vunpack.c.l.b16 %v4467
        %v6746 = vunpack.c.h.b16 %v4467
        %v6747 = vunpack.c.l.b16 %v4468
        %v6748 = vunpack.c.h.b16 %v4468
        %v6749 = vunpack.c.l.b16 %v4469
        %v6750 = vunpack.c.h.b16 %v4469
        %v6751 = vunpack.c.l.b16 %v4470
        %v6752 = vunpack.c.h.b16 %v4470
        %v6753 = vunpack.c.l.b16 %v4471
        %v6754 = vunpack.c.h.b16 %v4471
        %v6755 = vunpack.c.l.b16 %v4472
        %v6756 = vunpack.c.h.b16 %v4472
        %v6757 = vunpack.c.l.b16 %v4473
        %v6758 = vunpack.c.h.b16 %v4473
        %v6759 = vunpack.c.l.b16 %v4474
        %v6760 = vunpack.c.h.b16 %v4474
        %v6761 = vunpack.c.l.b16 %v4475
        %v6762 = vunpack.c.h.b16 %v4475
        %v6763 = vunpack.c.l.b16 %v4476
        %v6764 = vunpack.c.h.b16 %v4476
        %v6765 = vunpack.c.l.b16 %v4477
        %v6766 = vunpack.c.h.b16 %v4477
        %v6767 = vunpack.c.l.b16 %v4478
        %v6768 = vunpack.c.h.b16 %v4478
        %v6769 = vunpack.c.l.b16 %v4479
        %v6770 = vunpack.c.h.b16 %v4479
        %v6771 = vunpack.c.l.b16 %v4480
        %v6772 = vunpack.c.h.b16 %v4480
        %v6773 = vunpack.c.l.b16 %v4481
        %v6774 = vunpack.c.h.b16 %v4481
        %v6775 = vunpack.c.l.b16 %v4482
        %v6776 = vunpack.c.h.b16 %v4482
        %v6777 = vunpack.c.l.b16 %v4483
        %v6778 = vunpack.c.h.b16 %v4483
        %v6779 = vunpack.c.l.b16 %v4484
        %v6780 = vunpack.c.h.b16 %v4484
        %v6781 = vunpack.c.l.b16 %v4485
        %v6782 = vunpack.c.h.b16 %v4485
        %v6783 = vunpack.c.l.b16 %v4486
        %v6784 = vunpack.c.h.b16 %v4486
        %v6785 = vunpack.c.l.b16 %v4487
        %v6786 = vunpack.c.h.b16 %v4487
        %v6787 = vunpack.c.l.b16 %v4488
        %v6788 = vunpack.c.h.b16 %v4488
        %v6789 = vunpack.c.l.b16 %v4489
        %v6790 = vunpack.c.h.b16 %v4489
        %v6791 = vunpack.c.l.b16 %v4490
        %v6792 = vunpack.c.h.b16 %v4490
        %v6793 = vunpack.c.l.b16 %v4491
        %v6794 = vunpack.c.h.b16 %v4491
        %v6795 = vunpack.c.l.b16 %v4492
        %v6796 = vunpack.c.h.b16 %v4492
        %v6797 = vunpack.c.l.b16 %v4493
        %v6798 = vunpack.c.h.b16 %v4493
        %v6799 = vunpack.c.l.b16 %v4494
        %v6800 = vunpack.c.h.b16 %v4494
        %v6801 = vunpack.c.l.b16 %v4495
        %v6802 = vunpack.c.h.b16 %v4495
        %v6803 = vunpack.c.l.b16 %v4496
        %v6804 = vunpack.c.h.b16 %v4496
        %v6805 = vunpack.c.l.b16 %v4497
        %v6806 = vunpack.c.h.b16 %v4497
        %v6807 = vunpack.c.l.b16 %v4498
        %v6808 = vunpack.c.h.b16 %v4498
        %v6809 = vunpack.c.l.b16 %v4499
        %v6810 = vunpack.c.h.b16 %v4499
        %v6811 = vunpack.c.l.b16 %v4500
        %v6812 = vunpack.c.h.b16 %v4500
        %v6813 = vunpack.c.l.b16 %v4501
        %v6814 = vunpack.c.h.b16 %v4501
        %v6815 = vunpack.c.l.b16 %v4502
        %v6816 = vunpack.c.h.b16 %v4502
        %v6817 = vunpack.c.l.b16 %v4503
        %v6818 = vunpack.c.h.b16 %v4503
        %v6819 = vunpack.c.l.b16 %v4504
        %v6820 = vunpack.c.h.b16 %v4504
        %v6821 = vunpack.c.l.b16 %v4505
        %v6822 = vunpack.c.h.b16 %v4505
        %v6823 = vunpack.c.l.b16 %v4506
        %v6824 = vunpack.c.h.b16 %v4506
        %v6825 = vunpack.c.l.b16 %v4507
        %v6826 = vunpack.c.h.b16 %v4507
        %v6827 = vunpack.c.l.b16 %v4508
        %v6828 = vunpack.c.h.b16 %v4508
        %v6829 = vunpack.c.l.b16 %v4509
        %v6830 = vunpack.c.h.b16 %v4509
        %v6831 = vunpack.c.l.b16 %v4510
        %v6832 = vunpack.c.h.b16 %v4510
        %v6833 = vunpack.c.l.b16 %v4511
        %v6834 = vunpack.c.h.b16 %v4511
        %v6835 = vunpack.c.l.b16 %v4512
        %v6836 = vunpack.c.h.b16 %v4512
        %v6837 = vunpack.c.l.b16 %v4513
        %v6838 = vunpack.c.h.b16 %v4513
        %v6839 = vunpack.c.l.b16 %v4514
        %v6840 = vunpack.c.h.b16 %v4514
        %v6841 = vunpack.c.l.b16 %v4515
        %v6842 = vunpack.c.h.b16 %v4515
        %v6843 = vunpack.c.l.b16 %v4516
        %v6844 = vunpack.c.h.b16 %v4516
        %v6845 = vunpack.c.l.b16 %v4517
        %v6846 = vunpack.c.h.b16 %v4517
        %v6847 = vunpack.c.l.b16 %v4518
        %v6848 = vunpack.c.h.b16 %v4518
        %v6849 = vunpack.c.l.b16 %v4519
        %v6850 = vunpack.c.h.b16 %v4519
        %v6851 = vunpack.c.l.b16 %v4520
        %v6852 = vunpack.c.h.b16 %v4520
        %v6853 = vunpack.c.l.b16 %v4521
        %v6854 = vunpack.c.h.b16 %v4521
        %v6855 = vunpack.c.l.b16 %v4522
        %v6856 = vunpack.c.h.b16 %v4522
        %v6857 = vunpack.c.l.b16 %v4523
        %v6858 = vunpack.c.h.b16 %v4523
        %v6859 = vunpack.c.l.b16 %v4524
        %v6860 = vunpack.c.h.b16 %v4524
        %v6861 = vunpack.c.l.b16 %v4525
        %v6862 = vunpack.c.h.b16 %v4525
        %v6863 = vunpack.c.l.b16 %v4526
        %v6864 = vunpack.c.h.b16 %v4526
        %v6865 = vunpack.c.l.b16 %v4527
        %v6866 = vunpack.c.h.b16 %v4527
        %v6867 = vunpack.c.l.b16 %v4528
        %v6868 = vunpack.c.h.b16 %v4528
        %v6869 = vunpack.c.l.b16 %v4529
        %v6870 = vunpack.c.h.b16 %v4529
        %v6871 = vunpack.c.l.b16 %v4530
        %v6872 = vunpack.c.h.b16 %v4530
        %v6873 = vunpack.c.l.b16 %v4531
        %v6874 = vunpack.c.h.b16 %v4531
        %v6875 = vunpack.c.l.b16 %v4532
        %v6876 = vunpack.c.h.b16 %v4532
        %v6877 = vunpack.c.l.b16 %v4533
        %v6878 = vunpack.c.h.b16 %v4533
        %v6879 = vunpack.c.l.b16 %v4534
        %v6880 = vunpack.c.h.b16 %v4534
        %v6881 = vunpack.c.l.b16 %v4535
        %v6882 = vunpack.c.h.b16 %v4535
        %v6883 = vunpack.c.l.b16 %v4536
        %v6884 = vunpack.c.h.b16 %v4536
        %v6885 = vunpack.c.l.b16 %v4537
        %v6886 = vunpack.c.h.b16 %v4537
        %v6887 = vunpack.c.l.b16 %v4538
        %v6888 = vunpack.c.h.b16 %v4538
        %v6889 = vunpack.c.l.b16 %v4539
        %v6890 = vunpack.c.h.b16 %v4539
        %v6891 = vunpack.c.l.b16 %v4540
        %v6892 = vunpack.c.h.b16 %v4540
        %v6893 = vunpack.c.l.b16 %v4541
        %v6894 = vunpack.c.h.b16 %v4541
        %v6895 = vunpack.c.l.b16 %v4542
        %v6896 = vunpack.c.h.b16 %v4542
        %v6897 = vunpack.c.l.b16 %v4543
        %v6898 = vunpack.c.h.b16 %v4543
        %v6899 = vunpack.c.l.b16 %v4544
        %v6900 = vunpack.c.h.b16 %v4544
        %v6901 = vunpack.c.l.b16 %v4545
        %v6902 = vunpack.c.h.b16 %v4545
        %v6903 = vunpack.c.l.b16 %v4546
        %v6904 = vunpack.c.h.b16 %v4546
        %v6905 = vunpack.c.l.b16 %v4547
        %v6906 = vunpack.c.h.b16 %v4547
        %v6907 = vunpack.c.l.b16 %v4548
        %v6908 = vunpack.c.h.b16 %v4548
        %v6909 = vunpack.c.l.b16 %v4549
        %v6910 = vunpack.c.h.b16 %v4549
        %v6911 = vunpack.c.l.b16 %v4550
        %v6912 = vunpack.c.h.b16 %v4550
        %v6913 = vunpack.c.l.b16 %v4551
        %v6914 = vunpack.c.h.b16 %v4551
        %v6915 = vunpack.c.l.b16 %v4552
        %v6916 = vunpack.c.h.b16 %v4552
        %v6917 = vunpack.c.l.b16 %v4553
        %v6918 = vunpack.c.h.b16 %v4553
        %v6919 = vunpack.c.l.b16 %v4554
        %v6920 = vunpack.c.h.b16 %v4554
        %v6921 = vunpack.c.l.b16 %v4555
        %v6922 = vunpack.c.h.b16 %v4555
        %v6923 = vunpack.c.l.b16 %v4556
        %v6924 = vunpack.c.h.b16 %v4556
        %v6925 = vunpack.c.l.b16 %v4557
        %v6926 = vunpack.c.h.b16 %v4557
        %v6927 = vunpack.c.l.b16 %v4558
        %v6928 = vunpack.c.h.b16 %v4558
        %v6929 = vunpack.c.l.b16 %v4559
        %v6930 = vunpack.c.h.b16 %v4559
        %v6931 = vunpack.c.l.b16 %v4560
        %v6932 = vunpack.c.h.b16 %v4560
        %v6933 = vunpack.c.l.b16 %v4561
        %v6934 = vunpack.c.h.b16 %v4561
        %v6935 = vunpack.c.l.b16 %v4562
        %v6936 = vunpack.c.h.b16 %v4562
        %v6937 = vunpack.c.l.b16 %v4563
        %v6938 = vunpack.c.h.b16 %v4563
        %v6939 = vunpack.c.l.b16 %v4564
        %v6940 = vunpack.c.h.b16 %v4564
        %v6941 = vunpack.c.l.b16 %v4565
        %v6942 = vunpack.c.h.b16 %v4565
        %v6943 = vunpack.c.l.b16 %v4566
        %v6944 = vunpack.c.h.b16 %v4566
        %v6945 = vunpack.c.l.b16 %v4567
        %v6946 = vunpack.c.h.b16 %v4567
        %v6947 = vunpack.c.l.b16 %v4568
        %v6948 = vunpack.c.h.b16 %v4568
        %v6949 = vunpack.c.l.b16 %v4569
        %v6950 = vunpack.c.h.b16 %v4569
        %v6951 = vunpack.c.l.b16 %v4570
        %v6952 = vunpack.c.h.b16 %v4570
        %v6953 = vunpack.c.l.b16 %v4571
        %v6954 = vunpack.c.h.b16 %v4571
        %v6955 = vunpack.c.l.b16 %v4572
        %v6956 = vunpack.c.h.b16 %v4572
        %v6957 = vunpack.c.l.b16 %v4573
        %v6958 = vunpack.c.h.b16 %v4573
        %v6959 = vunpack.c.l.b16 %v4574
        %v6960 = vunpack.c.h.b16 %v4574
        %v6961 = vunpack.c.l.b16 %v4575
        %v6962 = vunpack.c.h.b16 %v4575
        %v6963 = vunpack.c.l.b16 %v4576
        %v6964 = vunpack.c.h.b16 %v4576
        %v6965 = vunpack.c.l.b16 %v4577
        %v6966 = vunpack.c.h.b16 %v4577
        %v6967 = vunpack.c.l.b16 %v4578
        %v6968 = vunpack.c.h.b16 %v4578
        %v6969 = vunpack.c.l.b16 %v4579
        %v6970 = vunpack.c.h.b16 %v4579
        %v6971 = vunpack.c.l.b16 %v4580
        %v6972 = vunpack.c.h.b16 %v4580
        %v6973 = vunpack.c.l.b16 %v4581
        %v6974 = vunpack.c.h.b16 %v4581
        %v6975 = vunpack.c.l.b16 %v4582
        %v6976 = vunpack.c.h.b16 %v4582
        %v6977 = vunpack.c.l.b16 %v4583
        %v6978 = vunpack.c.h.b16 %v4583
        %v6979 = vunpack.c.l.b16 %v4584
        %v6980 = vunpack.c.h.b16 %v4584
        %v6981 = vunpack.c.l.b16 %v4585
        %v6982 = vunpack.c.h.b16 %v4585
        %v6983 = vunpack.c.l.b16 %v4586
        %v6984 = vunpack.c.h.b16 %v4586
        %v6985 = vunpack.c.l.b16 %v4587
        %v6986 = vunpack.c.h.b16 %v4587
        %v6987 = vunpack.c.l.b16 %v4588
        %v6988 = vunpack.c.h.b16 %v4588
        %v6989 = vunpack.c.l.b16 %v4589
        %v6990 = vunpack.c.h.b16 %v4589
        %v6991 = vunpack.c.l.b16 %v4590
        %v6992 = vunpack.c.h.b16 %v4590
        %v6993 = vunpack.c.l.b16 %v4591
        %v6994 = vunpack.c.h.b16 %v4591
        %v6995 = vunpack.c.l.b16 %v4592
        %v6996 = vunpack.c.h.b16 %v4592
        %v6997 = vunpack.c.l.b16 %v4593
        %v6998 = vunpack.c.h.b16 %v4593
        %v6999 = vunpack.c.l.b16 %v4594
        %v7000 = vunpack.c.h.b16 %v4594
        %v7001 = vunpack.c.l.b16 %v4595
        %v7002 = vunpack.c.h.b16 %v4595
        %v7003 = vunpack.c.l.b16 %v4596
        %v7004 = vunpack.c.h.b16 %v4596
        %v7005 = vunpack.c.l.b16 %v4597
        %v7006 = vunpack.c.h.b16 %v4597
        %v7007 = vunpack.c.l.b16 %v4598
        %v7008 = vunpack.c.h.b16 %v4598
        %v7009 = vunpack.c.l.b16 %v4599
        %v7010 = vunpack.c.h.b16 %v4599
        %v7011 = vunpack.c.l.b16 %v4600
        %v7012 = vunpack.c.h.b16 %v4600
        %v7013 = vunpack.c.l.b16 %v4601
        %v7014 = vunpack.c.h.b16 %v4601
        %v7015 = vunpack.c.l.b16 %v4602
        %v7016 = vunpack.c.h.b16 %v4602
        %v7017 = vunpack.c.l.b16 %v4603
        %v7018 = vunpack.c.h.b16 %v4603
        %v7019 = vunpack.c.l.b16 %v4604
        %v7020 = vunpack.c.h.b16 %v4604
        %v7021 = vunpack.c.l.b16 %v4605
        %v7022 = vunpack.c.h.b16 %v4605
        %v7023 = vunpack.c.l.b16 %v4606
        %v7024 = vunpack.c.h.b16 %v4606
        %v7025 = vunpack.c.l.b16 %v4607
        %v7026 = vunpack.c.h.b16 %v4607
        %v7027 = vunpack.c.l.b16 %v4608
        %v7028 = vunpack.c.h.b16 %v4608
        %v7029 = vunpack.c.l.b16 %v4609
        %v7030 = vunpack.c.h.b16 %v4609
        %v7031 = vunpack.c.l.b16 %v4610
        %v7032 = vunpack.c.h.b16 %v4610
        %v7033 = vunpack.c.l.b16 %v4611
        %v7034 = vunpack.c.h.b16 %v4611
        %v7035 = vunpack.c.l.b16 %v4612
        %v7036 = vunpack.c.h.b16 %v4612
        %v7037 = vunpack.c.l.b16 %v4613
        %v7038 = vunpack.c.h.b16 %v4613
        %v7039 = vunpack.c.l.b16 %v4614
        %v7040 = vunpack.c.h.b16 %v4614
        %v7041 = vunpack.c.l.b16 %v4615
        %v7042 = vunpack.c.h.b16 %v4615
        %v7043 = vunpack.c.l.b16 %v4616
        %v7044 = vunpack.c.h.b16 %v4616
        %v7045 = vunpack.c.l.b16 %v4617
        %v7046 = vunpack.c.h.b16 %v4617
        %v7047 = vunpack.c.l.b16 %v4618
        %v7048 = vunpack.c.h.b16 %v4618
        %v7049 = vunpack.c.l.b16 %v4619
        %v7050 = vunpack.c.h.b16 %v4619
        %v7051 = vunpack.c.l.b16 %v4620
        %v7052 = vunpack.c.h.b16 %v4620
        %v7053 = vunpack.c.l.b16 %v4621
        %v7054 = vunpack.c.h.b16 %v4621
        %v7055 = vunpack.c.l.b16 %v4622
        %v7056 = vunpack.c.h.b16 %v4622
        %v7057 = vunpack.c.l.b16 %v4623
        %v7058 = vunpack.c.h.b16 %v4623
        %v7059 = vunpack.c.l.b16 %v4624
        %v7060 = vunpack.c.h.b16 %v4624
        %v7061 = vunpack.c.l.b16 %v4625
        %v7062 = vunpack.c.h.b16 %v4625
        %v7063 = vunpack.c.l.b16 %v4626
        %v7064 = vunpack.c.h.b16 %v4626
        %v7065 = vunpack.c.l.b16 %v4627
        %v7066 = vunpack.c.h.b16 %v4627
        %v7067 = vunpack.c.l.b16 %v4628
        %v7068 = vunpack.c.h.b16 %v4628
        %v7069 = vunpack.c.l.b16 %v4629
        %v7070 = vunpack.c.h.b16 %v4629
        %v7071 = vunpack.c.l.b16 %v4630
        %v7072 = vunpack.c.h.b16 %v4630
        %v7073 = vunpack.c.l.b16 %v4631
        %v7074 = vunpack.c.h.b16 %v4631
        %v7075 = vunpack.c.l.b16 %v4632
        %v7076 = vunpack.c.h.b16 %v4632
        %v7077 = vunpack.c.l.b16 %v4633
        %v7078 = vunpack.c.h.b16 %v4633
        %v7079 = vunpack.c.l.b16 %v4634
        %v7080 = vunpack.c.h.b16 %v4634
        %v7081 = vunpack.c.l.b16 %v4635
        %v7082 = vunpack.c.h.b16 %v4635
        %v7083 = vunpack.c.l.b16 %v4636
        %v7084 = vunpack.c.h.b16 %v4636
        %v7085 = vunpack.c.l.b16 %v4637
        %v7086 = vunpack.c.h.b16 %v4637
        %v7087 = vunpack.c.l.b16 %v4638
        %v7088 = vunpack.c.h.b16 %v4638
        %v7089 = vunpack.c.l.b16 %v4639
        %v7090 = vunpack.c.h.b16 %v4639
        %v7091 = vunpack.c.l.b16 %v4640
        %v7092 = vunpack.c.h.b16 %v4640
        %v7093 = vunpack.c.l.b16 %v4641
        %v7094 = vunpack.c.h.b16 %v4641
        %v7095 = vunpack.c.l.b16 %v4642
        %v7096 = vunpack.c.h.b16 %v4642
        %v7097 = vunpack.c.l.b16 %v4643
        %v7098 = vunpack.c.h.b16 %v4643
        %v7099 = vunpack.c.l.b16 %v4644
        %v7100 = vunpack.c.h.b16 %v4644
        %v7101 = vunpack.c.l.b16 %v4645
        %v7102 = vunpack.c.h.b16 %v4645
        %v7103 = vunpack.c.l.b16 %v4646
        %v7104 = vunpack.c.h.b16 %v4646
        %v7105 = vunpack.c.l.b16 %v4647
        %v7106 = vunpack.c.h.b16 %v4647
        %v7107 = vunpack.c.l.b16 %v4648
        %v7108 = vunpack.c.h.b16 %v4648
        %v7109 = vunpack.c.l.b16 %v4649
        %v7110 = vunpack.c.h.b16 %v4649
        %v7111 = vunpack.c.l.b16 %v4650
        %v7112 = vunpack.c.h.b16 %v4650
        %v7113 = vunpack.c.l.b16 %v4651
        %v7114 = vunpack.c.h.b16 %v4651
        %v7115 = vunpack.c.l.b16 %v4652
        %v7116 = vunpack.c.h.b16 %v4652
        %v7117 = vunpack.c.l.b16 %v4653
        %v7118 = vunpack.c.h.b16 %v4653
        %v7119 = vunpack.c.l.b16 %v4654
        %v7120 = vunpack.c.h.b16 %v4654
        %v7121 = vunpack.c.l.b16 %v4655
        %v7122 = vunpack.c.h.b16 %v4655
        %v7123 = vunpack.c.l.b16 %v4656
        %v7124 = vunpack.c.h.b16 %v4656
        %v7125 = vunpack.c.l.b16 %v4657
        %v7126 = vunpack.c.h.b16 %v4657
        %v7127 = vunpack.c.l.b16 %v4658
        %v7128 = vunpack.c.h.b16 %v4658
        %v7129 = vunpack.c.l.b16 %v4659
        %v7130 = vunpack.c.h.b16 %v4659
        %v7131 = vunpack.c.l.b16 %v4660
        %v7132 = vunpack.c.h.b16 %v4660
        %v7133 = vunpack.c.l.b16 %v4661
        %v7134 = vunpack.c.h.b16 %v4661
        %v7135 = vunpack.c.l.b16 %v4662
        %v7136 = vunpack.c.h.b16 %v4662
        %v7137 = vunpack.c.l.b16 %v4663
        %v7138 = vunpack.c.h.b16 %v4663
        %v7139 = vunpack.c.l.b16 %v4664
        %v7140 = vunpack.c.h.b16 %v4664
        %v7141 = vunpack.c.l.b16 %v4665
        %v7142 = vunpack.c.h.b16 %v4665
        %v7143 = vunpack.c.l.b16 %v4666
        %v7144 = vunpack.c.h.b16 %v4666
        %v7145 = vunpack.c.l.b16 %v4667
        %v7146 = vunpack.c.h.b16 %v4667
        %v7147 = vunpack.c.l.b16 %v4668
        %v7148 = vunpack.c.h.b16 %v4668
        %v7149 = vunpack.c.l.b16 %v4669
        %v7150 = vunpack.c.h.b16 %v4669
        %v7151 = vunpack.c.l.b16 %v4670
        %v7152 = vunpack.c.h.b16 %v4670
        %v7153 = vunpack.c.l.b16 %v4671
        %v7154 = vunpack.c.h.b16 %v4671
        %v7155 = vunpack.c.l.b16 %v4672
        %v7156 = vunpack.c.h.b16 %v4672
        %v7157 = vunpack.c.l.b16 %v4673
        %v7158 = vunpack.c.h.b16 %v4673
        %v7159 = vunpack.c.l.b16 %v4674
        %v7160 = vunpack.c.h.b16 %v4674
        %v7161 = vunpack.c.l.b16 %v4675
        %v7162 = vunpack.c.h.b16 %v4675
        %v7163 = vunpack.c.l.b16 %v4676
        %v7164 = vunpack.c.h.b16 %v4676
        %v7165 = vunpack.c.l.b16 %v4677
        %v7166 = vunpack.c.h.b16 %v4677
        %v7167 = vunpack.c.l.b16 %v4678
        %v7168 = vunpack.c.h.b16 %v4678
        %v7169 = vunpack.c.l.b16 %v4679
        %v7170 = vunpack.c.h.b16 %v4679
        %v7171 = vunpack.c.l.b16 %v4680
        %v7172 = vunpack.c.h.b16 %v4680
        %v7173 = vunpack.c.l.b16 %v4681
        %v7174 = vunpack.c.h.b16 %v4681
        %v7175 = vunpack.c.l.b16 %v4682
        %v7176 = vunpack.c.h.b16 %v4682
        %v7177 = vunpack.c.l.b16 %v4683
        %v7178 = vunpack.c.h.b16 %v4683
        %v7179 = vunpack.c.l.b16 %v4684
        %v7180 = vunpack.c.h.b16 %v4684
        %v7181 = vunpack.c.l.b16 %v4685
        %v7182 = vunpack.c.h.b16 %v4685
        %v7183 = vunpack.c.l.b16 %v4686
        %v7184 = vunpack.c.h.b16 %v4686
        %v7185 = vunpack.c.l.b16 %v4687
        %v7186 = vunpack.c.h.b16 %v4687
        %v7187 = vunpack.c.l.b16 %v4688
        %v7188 = vunpack.c.h.b16 %v4688
        %v7189 = vunpack.c.l.b16 %v4689
        %v7190 = vunpack.c.h.b16 %v4689
        %v7191 = vunpack.c.l.b16 %v4690
        %v7192 = vunpack.c.h.b16 %v4690
        %v7193 = vunpack.c.l.b16 %v4691
        %v7194 = vunpack.c.h.b16 %v4691
        %v7195 = vunpack.c.l.b16 %v4692
        %v7196 = vunpack.c.h.b16 %v4692
        %v7197 = vunpack.c.l.b16 %v4693
        %v7198 = vunpack.c.h.b16 %v4693
        %v7199 = vunpack.c.l.b16 %v4694
        %v7200 = vunpack.c.h.b16 %v4694
        %v7201 = vunpack.c.l.b16 %v4695
        %v7202 = vunpack.c.h.b16 %v4695
        %v7203 = vunpack.c.l.b16 %v4696
        %v7204 = vunpack.c.h.b16 %v4696
        %v7205 = vunpack.c.l.b16 %v4697
        %v7206 = vunpack.c.h.b16 %v4697
        %v7207 = vunpack.c.l.b16 %v4698
        %v7208 = vunpack.c.h.b16 %v4698
        %v7209 = vunpack.c.l.b16 %v4699
        %v7210 = vunpack.c.h.b16 %v4699
        %v7211 = vunpack.c.l.b16 %v4700
        %v7212 = vunpack.c.h.b16 %v4700
        %v7213 = vunpack.c.l.b16 %v4701
        %v7214 = vunpack.c.h.b16 %v4701
        %v7215 = vunpack.c.l.b16 %v4702
        %v7216 = vunpack.c.h.b16 %v4702
        %v7217 = vunpack.c.l.b16 %v4703
        %v7218 = vunpack.c.h.b16 %v4703
        %v7219 = vunpack.c.l.b16 %v4704
        %v7220 = vunpack.c.h.b16 %v4704
        %v7221 = vunpack.c.l.b16 %v4705
        %v7222 = vunpack.c.h.b16 %v4705
        %v7223 = vunpack.c.l.b16 %v4706
        %v7224 = vunpack.c.h.b16 %v4706
        %v7225 = vunpack.c.l.b16 %v4707
        %v7226 = vunpack.c.h.b16 %v4707
        %v7227 = vunpack.c.l.b16 %v4708
        %v7228 = vunpack.c.h.b16 %v4708
        %v7229 = vunpack.c.l.b16 %v4709
        %v7230 = vunpack.c.h.b16 %v4709
        %v7231 = vunpack.c.l.b16 %v4710
        %v7232 = vunpack.c.h.b16 %v4710
        %v7233 = vunpack.c.l.b16 %v4711
        %v7234 = vunpack.c.h.b16 %v4711
        %v7235 = vunpack.c.l.b16 %v4712
        %v7236 = vunpack.c.h.b16 %v4712
        %v7237 = vunpack.c.l.b16 %v4713
        %v7238 = vunpack.c.h.b16 %v4713
        %v7239 = vunpack.c.l.b16 %v4714
        %v7240 = vunpack.c.h.b16 %v4714
        %v7241 = vunpack.c.l.b16 %v4715
        %v7242 = vunpack.c.h.b16 %v4715
        %v7243 = vunpack.c.l.b16 %v4716
        %v7244 = vunpack.c.h.b16 %v4716
        %v7245 = vunpack.c.l.b16 %v4717
        %v7246 = vunpack.c.h.b16 %v4717
        %v7247 = vunpack.c.l.b16 %v4718
        %v7248 = vunpack.c.h.b16 %v4718
        %v7249 = vunpack.c.l.b16 %v4719
        %v7250 = vunpack.c.h.b16 %v4719
        %v7251 = vunpack.c.l.b16 %v4720
        %v7252 = vunpack.c.h.b16 %v4720
        %v7253 = vunpack.c.l.b16 %v4721
        %v7254 = vunpack.c.h.b16 %v4721
        %v7255 = vunpack.c.l.b16 %v4722
        %v7256 = vunpack.c.h.b16 %v4722
        %v7257 = vunpack.c.l.b16 %v4723
        %v7258 = vunpack.c.h.b16 %v4723
        %v7259 = vunpack.c.l.b16 %v4724
        %v7260 = vunpack.c.h.b16 %v4724
        %v7261 = vunpack.c.l.b16 %v4725
        %v7262 = vunpack.c.h.b16 %v4725
        %v7263 = vunpack.c.l.b16 %v4726
        %v7264 = vunpack.c.h.b16 %v4726
        %v7265 = vunpack.c.l.b16 %v4727
        %v7266 = vunpack.c.h.b16 %v4727
        %v7267 = vunpack.c.l.b16 %v4728
        %v7268 = vunpack.c.h.b16 %v4728
        %v7269 = vunpack.c.l.b16 %v4729
        %v7270 = vunpack.c.h.b16 %v4729
        %v7271 = vunpack.c.l.b16 %v4730
        %v7272 = vunpack.c.h.b16 %v4730
        %v7273 = vunpack.c.l.b16 %v4731
        %v7274 = vunpack.c.h.b16 %v4731
        %v7275 = vunpack.c.l.b16 %v4732
        %v7276 = vunpack.c.h.b16 %v4732
        %v7277 = vunpack.c.l.b16 %v4733
        %v7278 = vunpack.c.h.b16 %v4733
        %v7279 = vunpack.c.l.b16 %v4734
        %v7280 = vunpack.c.h.b16 %v4734
        %v7281 = vunpack.c.l.b16 %v4735
        %v7282 = vunpack.c.h.b16 %v4735
        %v7283 = vunpack.c.l.b16 %v4736
        %v7284 = vunpack.c.h.b16 %v4736
        %v7285 = vunpack.c.l.b16 %v4737
        %v7286 = vunpack.c.h.b16 %v4737
        %v7287 = vunpack.c.l.b16 %v4738
        %v7288 = vunpack.c.h.b16 %v4738
        %v7289 = vunpack.c.l.b16 %v4739
        %v7290 = vunpack.c.h.b16 %v4739
        %v7291 = vunpack.c.l.b16 %v4740
        %v7292 = vunpack.c.h.b16 %v4740
        %v7293 = vunpack.c.l.b16 %v4741
        %v7294 = vunpack.c.h.b16 %v4741
        %v7295 = vunpack.c.l.b16 %v4742
        %v7296 = vunpack.c.h.b16 %v4742
        %v7297 = vunpack.c.l.b16 %v4743
        %v7298 = vunpack.c.h.b16 %v4743
        %v7299 = vunpack.c.l.b16 %v4744
        %v7300 = vunpack.c.h.b16 %v4744
        %v7301 = vunpack.c.l.b16 %v4745
        %v7302 = vunpack.c.h.b16 %v4745
        %v7303 = vunpack.c.l.b16 %v4746
        %v7304 = vunpack.c.h.b16 %v4746
        %v7305 = vunpack.c.l.b16 %v4747
        %v7306 = vunpack.c.h.b16 %v4747
        %v7307 = vunpack.c.l.b16 %v4748
        %v7308 = vunpack.c.h.b16 %v4748
        %v7309 = vunpack.c.l.b16 %v4749
        %v7310 = vunpack.c.h.b16 %v4749
        %v7311 = vunpack.c.l.b16 %v4750
        %v7312 = vunpack.c.h.b16 %v4750
        %v7313 = vunpack.c.l.b16 %v4751
        %v7314 = vunpack.c.h.b16 %v4751
        %v7315 = vunpack.c.l.b16 %v4752
        %v7316 = vunpack.c.h.b16 %v4752
        %v7317 = vunpack.c.l.b16 %v4753
        %v7318 = vunpack.c.h.b16 %v4753
        %v7319 = vunpack.c.l.b16 %v4754
        %v7320 = vunpack.c.h.b16 %v4754
        %v7321 = vunpack.c.l.b16 %v4755
        %v7322 = vunpack.c.h.b16 %v4755
        %v7323 = vunpack.c.l.b16 %v4756
        %v7324 = vunpack.c.h.b16 %v4756
        %v7325 = vunpack.c.l.b16 %v4757
        %v7326 = vunpack.c.h.b16 %v4757
        %v7327 = vunpack.c.l.b16 %v4758
        %v7328 = vunpack.c.h.b16 %v4758
        %v7329 = vunpack.c.l.b16 %v4759
        %v7330 = vunpack.c.h.b16 %v4759
        %v7331 = vunpack.c.l.b16 %v4760
        %v7332 = vunpack.c.h.b16 %v4760
        %v7333 = vunpack.c.l.b16 %v4761
        %v7334 = vunpack.c.h.b16 %v4761
        %v7335 = vunpack.c.l.b16 %v4762
        %v7336 = vunpack.c.h.b16 %v4762
        %v7337 = vunpack.c.l.b16 %v4763
        %v7338 = vunpack.c.h.b16 %v4763
        %v7339 = vunpack.c.l.b16 %v4764
        %v7340 = vunpack.c.h.b16 %v4764
        %v7341 = vunpack.c.l.b16 %v4765
        %v7342 = vunpack.c.h.b16 %v4765
        %v7343 = vunpack.c.l.b16 %v4766
        %v7344 = vunpack.c.h.b16 %v4766
        %v7345 = vunpack.c.l.b16 %v4767
        %v7346 = vunpack.c.h.b16 %v4767
        %v7347 = vunpack.c.l.b16 %v4768
        %v7348 = vunpack.c.h.b16 %v4768
        %v7349 = vunpack.c.l.b16 %v4769
        %v7350 = vunpack.c.h.b16 %v4769
        %v7351 = vunpack.c.l.b16 %v4770
        %v7352 = vunpack.c.h.b16 %v4770
        %v7353 = vunpack.c.l.b16 %v4771
        %v7354 = vunpack.c.h.b16 %v4771
        %v7355 = vunpack.c.l.b16 %v4772
        %v7356 = vunpack.c.h.b16 %v4772
        %v7357 = vunpack.c.l.b16 %v4773
        %v7358 = vunpack.c.h.b16 %v4773
        %v7359 = vunpack.c.l.b16 %v4774
        %v7360 = vunpack.c.h.b16 %v4774
        %v7361 = vunpack.c.l.b16 %v4775
        %v7362 = vunpack.c.h.b16 %v4775
        %v7363 = vunpack.c.l.b16 %v4776
        %v7364 = vunpack.c.h.b16 %v4776
        %v7365 = vunpack.c.l.b16 %v4777
        %v7366 = vunpack.c.h.b16 %v4777
        %v7367 = vunpack.c.l.b16 %v4778
        %v7368 = vunpack.c.h.b16 %v4778
        %v7369 = vunpack.c.l.b16 %v4779
        %v7370 = vunpack.c.h.b16 %v4779
        %v7371 = vunpack.c.l.b16 %v4780
        %v7372 = vunpack.c.h.b16 %v4780
        %v7373 = vunpack.c.l.b16 %v4781
        %v7374 = vunpack.c.h.b16 %v4781
        %v7375 = vunpack.c.l.b16 %v4782
        %v7376 = vunpack.c.h.b16 %v4782
        %v7377 = vunpack.c.l.b16 %v4783
        %v7378 = vunpack.c.h.b16 %v4783
        %v7379 = vunpack.c.l.b16 %v4784
        %v7380 = vunpack.c.h.b16 %v4784
        %v7381 = vunpack.c.l.b16 %v4785
        %v7382 = vunpack.c.h.b16 %v4785
        %v7383 = vunpack.c.l.b16 %v4786
        %v7384 = vunpack.c.h.b16 %v4786
        %v7385 = vunpack.c.l.b16 %v4787
        %v7386 = vunpack.c.h.b16 %v4787
        %v7387 = vunpack.c.l.b16 %v4788
        %v7388 = vunpack.c.h.b16 %v4788
        %v7389 = vunpack.c.l.b16 %v4789
        %v7390 = vunpack.c.h.b16 %v4789
        %v7391 = vunpack.c.l.b16 %v4790
        %v7392 = vunpack.c.h.b16 %v4790
        %v7393 = vunpack.c.l.b16 %v4791
        %v7394 = vunpack.c.h.b16 %v4791
        %v7395 = vunpack.c.l.b16 %v4792
        %v7396 = vunpack.c.h.b16 %v4792
        %v7397 = vunpack.c.l.b16 %v4793
        %v7398 = vunpack.c.h.b16 %v4793
        %v7399 = vunpack.c.l.b16 %v4794
        %v7400 = vunpack.c.h.b16 %v4794
        %v7401 = vunpack.c.l.b16 %v4795
        %v7402 = vunpack.c.h.b16 %v4795
        %v7403 = vunpack.c.l.b16 %v4796
        %v7404 = vunpack.c.h.b16 %v4796
        %v7405 = vunpack.c.l.b16 %v4797
        %v7406 = vunpack.c.h.b16 %v4797
        %v7407 = vunpack.c.l.b16 %v4798
        %v7408 = vunpack.c.h.b16 %v4798
        %v7409 = vunpack.c.l.b16 %v4799
        %v7410 = vunpack.c.h.b16 %v4799
        %v7411 = vunpack.c.l.b16 %v4800
        %v7412 = vunpack.c.h.b16 %v4800
        %v7413 = vunpack.c.l.b16 %v4801
        %v7414 = vunpack.c.h.b16 %v4801
        %v7415 = vunpack.c.l.b16 %v4802
        %v7416 = vunpack.c.h.b16 %v4802
        %v7417 = vunpack.c.l.b16 %v4803
        %v7418 = vunpack.c.h.b16 %v4803
        %v7419 = vunpack.c.l.b16 %v4804
        %v7420 = vunpack.c.h.b16 %v4804
        %v7421 = vunpack.c.l.b16 %v4805
        %v7422 = vunpack.c.h.b16 %v4805
        %v7423 = vunpack.c.l.b16 %v4806
        %v7424 = vunpack.c.h.b16 %v4806
        %v7425 = vunpack.c.l.b16 %v4807
        %v7426 = vunpack.c.h.b16 %v4807
        %v7427 = vunpack.c.l.b16 %v4808
        %v7428 = vunpack.c.h.b16 %v4808
        %v7429 = vunpack.c.l.b16 %v4809
        %v7430 = vunpack.c.h.b16 %v4809
        %v7431 = vunpack.c.l.b16 %v4810
        %v7432 = vunpack.c.h.b16 %v4810
        %v7433 = vunpack.c.l.b16 %v4811
        %v7434 = vunpack.c.h.b16 %v4811
        %v7435 = vunpack.c.l.b16 %v4812
        %v7436 = vunpack.c.h.b16 %v4812
        %v7437 = vunpack.c.l.b16 %v4813
        %v7438 = vunpack.c.h.b16 %v4813
        %v7439 = vunpack.c.l.b16 %v4814
        %v7440 = vunpack.c.h.b16 %v4814
        %v7441 = vunpack.c.l.b16 %v4815
        %v7442 = vunpack.c.h.b16 %v4815
        %v7443 = vunpack.c.l.b16 %v4816
        %v7444 = vunpack.c.h.b16 %v4816
        %v7445 = vunpack.c.l.b16 %v4817
        %v7446 = vunpack.c.h.b16 %v4817
        %v7447 = vunpack.c.l.b16 %v4818
        %v7448 = vunpack.c.h.b16 %v4818
        %v7449 = vunpack.c.l.b16 %v4819
        %v7450 = vunpack.c.h.b16 %v4819
        %v7451 = vunpack.c.l.b16 %v4820
        %v7452 = vunpack.c.h.b16 %v4820
        %v7453 = vunpack.c.l.b16 %v4821
        %v7454 = vunpack.c.h.b16 %v4821
        %v7455 = vunpack.c.l.b16 %v4822
        %v7456 = vunpack.c.h.b16 %v4822
        %v7457 = vunpack.c.l.b16 %v4823
        %v7458 = vunpack.c.h.b16 %v4823
        %v7459 = vunpack.c.l.b16 %v4824
        %v7460 = vunpack.c.h.b16 %v4824
        %v7461 = vunpack.c.l.b16 %v4825
        %v7462 = vunpack.c.h.b16 %v4825
        %v7463 = vunpack.c.l.b16 %v4826
        %v7464 = vunpack.c.h.b16 %v4826
        %v7465 = vunpack.c.l.b16 %v4827
        %v7466 = vunpack.c.h.b16 %v4827
        %v7467 = vunpack.c.l.b16 %v4828
        %v7468 = vunpack.c.h.b16 %v4828
        %v7469 = vunpack.c.l.b16 %v4829
        %v7470 = vunpack.c.h.b16 %v4829
        %v7471 = vunpack.c.l.b16 %v4830
        %v7472 = vunpack.c.h.b16 %v4830
        %v7473 = vunpack.c.l.b16 %v4831
        %v7474 = vunpack.c.h.b16 %v4831
        %v7475 = vunpack.c.l.b16 %v4832
        %v7476 = vunpack.c.h.b16 %v4832
        %v7477 = vunpack.c.l.b16 %v4833
        %v7478 = vunpack.c.h.b16 %v4833
        %v7479 = vunpack.c.l.b16 %v4834
        %v7480 = vunpack.c.h.b16 %v4834
        %v7481 = vunpack.c.l.b16 %v4835
        %v7482 = vunpack.c.h.b16 %v4835
        %v7483 = vunpack.c.l.b16 %v4836
        %v7484 = vunpack.c.h.b16 %v4836
        %v7485 = vunpack.c.l.b16 %v4837
        %v7486 = vunpack.c.h.b16 %v4837
        %v7487 = vunpack.c.l.b16 %v4838
        %v7488 = vunpack.c.h.b16 %v4838
        %v7489 = vunpack.c.l.b16 %v4839
        %v7490 = vunpack.c.h.b16 %v4839
        %v7491 = vunpack.c.l.b16 %v4840
        %v7492 = vunpack.c.h.b16 %v4840
        %v7493 = vunpack.c.l.b16 %v4841
        %v7494 = vunpack.c.h.b16 %v4841
        %v7495 = vunpack.c.l.b16 %v4842
        %v7496 = vunpack.c.h.b16 %v4842
        %v7497 = vunpack.c.l.b16 %v4843
        %v7498 = vunpack.c.h.b16 %v4843
        %v7499 = vunpack.c.l.b16 %v4844
        %v7500 = vunpack.c.h.b16 %v4844
        %v7501 = vunpack.c.l.b16 %v4845
        %v7502 = vunpack.c.h.b16 %v4845
        %v7503 = vunpack.c.l.b16 %v4846
        %v7504 = vunpack.c.h.b16 %v4846
        %v7505 = vunpack.c.l.b16 %v4847
        %v7506 = vunpack.c.h.b16 %v4847
        %v7507 = vunpack.c.l.b16 %v4848
        %v7508 = vunpack.c.h.b16 %v4848
        %v7509 = vunpack.c.l.b16 %v4849
        %v7510 = vunpack.c.h.b16 %v4849
        %v7511 = vunpack.c.l.b16 %v4850
        %v7512 = vunpack.c.h.b16 %v4850
        %v7513 = vunpack.c.l.b16 %v4851
        %v7514 = vunpack.c.h.b16 %v4851
        %v7515 = vunpack.c.l.b16 %v4852
        %v7516 = vunpack.c.h.b16 %v4852
        %v7517 = vunpack.c.l.b16 %v4853
        %v7518 = vunpack.c.h.b16 %v4853
        %v7519 = vunpack.c.l.b16 %v4854
        %v7520 = vunpack.c.h.b16 %v4854
        %v7521 = vunpack.c.l.b16 %v4855
        %v7522 = vunpack.c.h.b16 %v4855
        %v7523 = vunpack.c.l.b16 %v4856
        %v7524 = vunpack.c.h.b16 %v4856
        %v7525 = vunpack.c.l.b16 %v4857
        %v7526 = vunpack.c.h.b16 %v4857
        %v7527 = vunpack.c.l.b16 %v4858
        %v7528 = vunpack.c.h.b16 %v4858
        %v7529 = vunpack.c.l.b16 %v4859
        %v7530 = vunpack.c.h.b16 %v4859
        %v7531 = vunpack.c.l.b16 %v4860
        %v7532 = vunpack.c.h.b16 %v4860
        %v7533 = vunpack.c.l.b16 %v4861
        %v7534 = vunpack.c.h.b16 %v4861
        %v7535 = vunpack.c.l.b16 %v4862
        %v7536 = vunpack.c.h.b16 %v4862
        %v7537 = vunpack.c.l.b16 %v4863
        %v7538 = vunpack.c.h.b16 %v4863
        %v7539 = vunpack.c.l.b16 %v4864
        %v7540 = vunpack.c.h.b16 %v4864
        %v7541 = vunpack.c.l.b16 %v4865
        %v7542 = vunpack.c.h.b16 %v4865
        %v7543 = vunpack.c.l.b16 %v4866
        %v7544 = vunpack.c.h.b16 %v4866
        %v7545 = vunpack.c.l.b16 %v4867
        %v7546 = vunpack.c.h.b16 %v4867
        %v7547 = vunpack.c.l.b16 %v4868
        %v7548 = vunpack.c.h.b16 %v4868
        %v7549 = vunpack.c.l.b16 %v4869
        %v7550 = vunpack.c.h.b16 %v4869
        %v7551 = vunpack.c.l.b16 %v4870
        %v7552 = vunpack.c.h.b16 %v4870
        %v7553 = vunpack.c.l.b16 %v4871
        %v7554 = vunpack.c.h.b16 %v4871
        %v7555 = vunpack.c.l.b16 %v4872
        %v7556 = vunpack.c.h.b16 %v4872
        %v7557 = vunpack.c.l.b16 %v4873
        %v7558 = vunpack.c.h.b16 %v4873
        %v7559 = vunpack.c.l.b16 %v4874
        %v7560 = vunpack.c.h.b16 %v4874
        %v7561 = vunpack.c.l.b16 %v4875
        %v7562 = vunpack.c.h.b16 %v4875
        %v7563 = vunpack.c.l.b16 %v4876
        %v7564 = vunpack.c.h.b16 %v4876
        %v7565 = vunpack.c.l.b16 %v4877
        %v7566 = vunpack.c.h.b16 %v4877
        %v7567 = vpack.c.b16 %v5783, %v5775
        %v7568 = vpack.c.b16 %v5784, %v5776
        %v7569 = vpack.c.b16 %v5785, %v5777
        %v7570 = vpack.c.b16 %v5786, %v5778
        %v7571 = vpack.c.b16 %v5787, %v5779
        %v7572 = vpack.c.b16 %v5788, %v5780
        %v7573 = vpack.c.b16 %v5789, %v5781
        %v7574 = vpack.c.b16 %v5790, %v5782
        %v7575 = vpack.c.b16 %v5799, %v5791
        %v7576 = vpack.c.b16 %v5800, %v5792
        %v7577 = vpack.c.b16 %v5801, %v5793
        %v7578 = vpack.c.b16 %v5802, %v5794
        %v7579 = vpack.c.b16 %v5803, %v5795
        %v7580 = vpack.c.b16 %v5804, %v5796
        %v7581 = vpack.c.b16 %v5805, %v5797
        %v7582 = vpack.c.b16 %v5806, %v5798
        %v7583 = vpack.c.b16 %v5815, %v5807
        %v7584 = vpack.c.b16 %v5816, %v5808
        %v7585 = vpack.c.b16 %v5817, %v5809
        %v7586 = vpack.c.b16 %v5818, %v5810
        %v7587 = vpack.c.b16 %v5819, %v5811
        %v7588 = vpack.c.b16 %v5820, %v5812
        %v7589 = vpack.c.b16 %v5821, %v5813
        %v7590 = vpack.c.b16 %v5822, %v5814
        %v7591 = vpack.c.b16 %v5831, %v5823
        %v7592 = vpack.c.b16 %v5832, %v5824
        %v7593 = vpack.c.b16 %v5833, %v5825
        %v7594 = vpack.c.b16 %v5834, %v5826
        %v7595 = vpack.c.b16 %v5835, %v5827
        %v7596 = vpack.c.b16 %v5836, %v5828
        %v7597 = vpack.c.b16 %v5837, %v5829
        %v7598 = vpack.c.b16 %v5838, %v5830
        %v7599 = vpack.c.b16 %v5847, %v5839
        %v7600 = vpack.c.b16 %v5848, %v5840
        %v7601 = vpack.c.b16 %v5849, %v5841
        %v7602 = vpack.c.b16 %v5850, %v5842
        %v7603 = vpack.c.b16 %v5851, %v5843
        %v7604 = vpack.c.b16 %v5852, %v5844
        %v7605 = vpack.c.b16 %v5853, %v5845
        %v7606 = vpack.c.b16 %v5854, %v5846
        %v7607 = vpack.c.b16 %v5863, %v5855
        %v7608 = vpack.c.b16 %v5864, %v5856
        %v7609 = vpack.c.b16 %v5865, %v5857
        %v7610 = vpack.c.b16 %v5866, %v5858
        %v7611 = vpack.c.b16 %v5867, %v5859
        %v7612 = vpack.c.b16 %v5868, %v5860
        %v7613 = vpack.c.b16 %v5869, %v5861
        %v7614 = vpack.c.b16 %v5870, %v5862
        %v7615 = vpack.c.b16 %v5879, %v5871
        %v7616 = vpack.c.b16 %v5880, %v5872
        %v7617 = vpack.c.b16 %v5881, %v5873
        %v7618 = vpack.c.b16 %v5882, %v5874
        %v7619 = vpack.c.b16 %v5883, %v5875
        %v7620 = vpack.c.b16 %v5884, %v5876
        %v7621 = vpack.c.b16 %v5885, %v5877
        %v7622 = vpack.c.b16 %v5886, %v5878
        %v7623 = vpack.c.b16 %v5895, %v5887
        %v7624 = vpack.c.b16 %v5896, %v5888
        %v7625 = vpack.c.b16 %v5897, %v5889
        %v7626 = vpack.c.b16 %v5898, %v5890
        %v7627 = vpack.c.b16 %v5899, %v5891
        %v7628 = vpack.c.b16 %v5900, %v5892
        %v7629 = vpack.c.b16 %v5901, %v5893
        %v7630 = vpack.c.b16 %v5902, %v5894
        %v7631 = vpack.c.b16 %v5911, %v5903
        %v7632 = vpack.c.b16 %v5912, %v5904
        %v7633 = vpack.c.b16 %v5913, %v5905
        %v7634 = vpack.c.b16 %v5914, %v5906
        %v7635 = vpack.c.b16 %v5915, %v5907
        %v7636 = vpack.c.b16 %v5916, %v5908
        %v7637 = vpack.c.b16 %v5917, %v5909
        %v7638 = vpack.c.b16 %v5918, %v5910
        %v7639 = vpack.c.b16 %v5927, %v5919
        %v7640 = vpack.c.b16 %v5928, %v5920
        %v7641 = vpack.c.b16 %v5929, %v5921
        %v7642 = vpack.c.b16 %v5930, %v5922
        %v7643 = vpack.c.b16 %v5931, %v5923
        %v7644 = vpack.c.b16 %v5932, %v5924
        %v7645 = vpack.c.b16 %v5933, %v5925
        %v7646 = vpack.c.b16 %v5934, %v5926
        %v7647 = vpack.c.b16 %v5943, %v5935
        %v7648 = vpack.c.b16 %v5944, %v5936
        %v7649 = vpack.c.b16 %v5945, %v5937
        %v7650 = vpack.c.b16 %v5946, %v5938
        %v7651 = vpack.c.b16 %v5947, %v5939
        %v7652 = vpack.c.b16 %v5948, %v5940
        %v7653 = vpack.c.b16 %v5949, %v5941
        %v7654 = vpack.c.b16 %v5950, %v5942
        %v7655 = vpack.c.b16 %v5959, %v5951
        %v7656 = vpack.c.b16 %v5960, %v5952
        %v7657 = vpack.c.b16 %v5961, %v5953
        %v7658 = vpack.c.b16 %v5962, %v5954
        %v7659 = vpack.c.b16 %v5963, %v5955
        %v7660 = vpack.c.b16 %v5964, %v5956
        %v7661 = vpack.c.b16 %v5965, %v5957
        %v7662 = vpack.c.b16 %v5966, %v5958
        %v7663 = vpack.c.b16 %v5975, %v5967
        %v7664 = vpack.c.b16 %v5976, %v5968
        %v7665 = vpack.c.b16 %v5977, %v5969
        %v7666 = vpack.c.b16 %v5978, %v5970
        %v7667 = vpack.c.b16 %v5979, %v5971
        %v7668 = vpack.c.b16 %v5980, %v5972
        %v7669 = vpack.c.b16 %v5981, %v5973
        %v7670 = vpack.c.b16 %v5982, %v5974
        %v7671 = vpack.c.b16 %v5991, %v5983
        %v7672 = vpack.c.b16 %v5992, %v5984
        %v7673 = vpack.c.b16 %v5993, %v5985
        %v7674 = vpack.c.b16 %v5994, %v5986
        %v7675 = vpack.c.b16 %v5995, %v5987
        %v7676 = vpack.c.b16 %v5996, %v5988
        %v7677 = vpack.c.b16 %v5997, %v5989
        %v7678 = vpack.c.b16 %v5998, %v5990
        %v7679 = vpack.c.b16 %v6007, %v5999
        %v7680 = vpack.c.b16 %v6008, %v6000
        %v7681 = vpack.c.b16 %v6009, %v6001
        %v7682 = vpack.c.b16 %v6010, %v6002
        %v7683 = vpack.c.b16 %v6011, %v6003
        %v7684 = vpack.c.b16 %v6012, %v6004
        %v7685 = vpack.c.b16 %v6013, %v6005
        %v7686 = vpack.c.b16 %v6014, %v6006
        %v7687 = vpack.c.b16 %v6023, %v6015
        %v7688 = vpack.c.b16 %v6024, %v6016
        %v7689 = vpack.c.b16 %v6025, %v6017
        %v7690 = vpack.c.b16 %v6026, %v6018
        %v7691 = vpack.c.b16 %v6027, %v6019
        %v7692 = vpack.c.b16 %v6028, %v6020
        %v7693 = vpack.c.b16 %v6029, %v6021
        %v7694 = vpack.c.b16 %v6030, %v6022
        %v7695 = vpack.c.b16 %v6039, %v6031
        %v7696 = vpack.c.b16 %v6040, %v6032
        %v7697 = vpack.c.b16 %v6041, %v6033
        %v7698 = vpack.c.b16 %v6042, %v6034
        %v7699 = vpack.c.b16 %v6043, %v6035
        %v7700 = vpack.c.b16 %v6044, %v6036
        %v7701 = vpack.c.b16 %v6045, %v6037
        %v7702 = vpack.c.b16 %v6046, %v6038
        %v7703 = vpack.c.b16 %v6055, %v6047
        %v7704 = vpack.c.b16 %v6056, %v6048
        %v7705 = vpack.c.b16 %v6057, %v6049
        %v7706 = vpack.c.b16 %v6058, %v6050
        %v7707 = vpack.c.b16 %v6059, %v6051
        %v7708 = vpack.c.b16 %v6060, %v6052
        %v7709 = vpack.c.b16 %v6061, %v6053
        %v7710 = vpack.c.b16 %v6062, %v6054
        %v7711 = vpack.c.b16 %v6071, %v6063
        %v7712 = vpack.c.b16 %v6072, %v6064
        %v7713 = vpack.c.b16 %v6073, %v6065
        %v7714 = vpack.c.b16 %v6074, %v6066
        %v7715 = vpack.c.b16 %v6075, %v6067
        %v7716 = vpack.c.b16 %v6076, %v6068
        %v7717 = vpack.c.b16 %v6077, %v6069
        %v7718 = vpack.c.b16 %v6078, %v6070
        %v7719 = vpack.c.b16 %v6087, %v6079
        %v7720 = vpack.c.b16 %v6088, %v6080
        %v7721 = vpack.c.b16 %v6089, %v6081
        %v7722 = vpack.c.b16 %v6090, %v6082
        %v7723 = vpack.c.b16 %v6091, %v6083
        %v7724 = vpack.c.b16 %v6092, %v6084
        %v7725 = vpack.c.b16 %v6093, %v6085
        %v7726 = vpack.c.b16 %v6094, %v6086
        %v7727 = vpack.c.b16 %v6103, %v6095
        %v7728 = vpack.c.b16 %v6104, %v6096
        %v7729 = vpack.c.b16 %v6105, %v6097
        %v7730 = vpack.c.b16 %v6106, %v6098
        %v7731 = vpack.c.b16 %v6107, %v6099
        %v7732 = vpack.c.b16 %v6108, %v6100
        %v7733 = vpack.c.b16 %v6109, %v6101
        %v7734 = vpack.c.b16 %v6110, %v6102
        %v7735 = vpack.c.b16 %v6119, %v6111
        %v7736 = vpack.c.b16 %v6120, %v6112
        %v7737 = vpack.c.b16 %v6121, %v6113
        %v7738 = vpack.c.b16 %v6122, %v6114
        %v7739 = vpack.c.b16 %v6123, %v6115
        %v7740 = vpack.c.b16 %v6124, %v6116
        %v7741 = vpack.c.b16 %v6125, %v6117
        %v7742 = vpack.c.b16 %v6126, %v6118
        %v7743 = vpack.c.b16 %v6135, %v6127
        %v7744 = vpack.c.b16 %v6136, %v6128
        %v7745 = vpack.c.b16 %v6137, %v6129
        %v7746 = vpack.c.b16 %v6138, %v6130
        %v7747 = vpack.c.b16 %v6139, %v6131
        %v7748 = vpack.c.b16 %v6140, %v6132
        %v7749 = vpack.c.b16 %v6141, %v6133
        %v7750 = vpack.c.b16 %v6142, %v6134
        %v7751 = vpack.c.b16 %v6151, %v6143
        %v7752 = vpack.c.b16 %v6152, %v6144
        %v7753 = vpack.c.b16 %v6153, %v6145
        %v7754 = vpack.c.b16 %v6154, %v6146
        %v7755 = vpack.c.b16 %v6155, %v6147
        %v7756 = vpack.c.b16 %v6156, %v6148
        %v7757 = vpack.c.b16 %v6157, %v6149
        %v7758 = vpack.c.b16 %v6158, %v6150
        %v7759 = vpack.c.b16 %v6167, %v6159
        %v7760 = vpack.c.b16 %v6168, %v6160
        %v7761 = vpack.c.b16 %v6169, %v6161
        %v7762 = vpack.c.b16 %v6170, %v6162
        %v7763 = vpack.c.b16 %v6171, %v6163
        %v7764 = vpack.c.b16 %v6172, %v6164
        %v7765 = vpack.c.b16 %v6173, %v6165
        %v7766 = vpack.c.b16 %v6174, %v6166
        %v7767 = vpack.c.b16 %v6183, %v6175
        %v7768 = vpack.c.b16 %v6184, %v6176
        %v7769 = vpack.c.b16 %v6185, %v6177
        %v7770 = vpack.c.b16 %v6186, %v6178
        %v7771 = vpack.c.b16 %v6187, %v6179
        %v7772 = vpack.c.b16 %v6188, %v6180
        %v7773 = vpack.c.b16 %v6189, %v6181
        %v7774 = vpack.c.b16 %v6190, %v6182
        %v7775 = vpack.c.b16 %v6199, %v6191
        %v7776 = vpack.c.b16 %v6200, %v6192
        %v7777 = vpack.c.b16 %v6201, %v6193
        %v7778 = vpack.c.b16 %v6202, %v6194
        %v7779 = vpack.c.b16 %v6203, %v6195
        %v7780 = vpack.c.b16 %v6204, %v6196
        %v7781 = vpack.c.b16 %v6205, %v6197
        %v7782 = vpack.c.b16 %v6206, %v6198
        %v7783 = vpack.c.b16 %v6215, %v6207
        %v7784 = vpack.c.b16 %v6216, %v6208
        %v7785 = vpack.c.b16 %v6217, %v6209
        %v7786 = vpack.c.b16 %v6218, %v6210
        %v7787 = vpack.c.b16 %v6219, %v6211
        %v7788 = vpack.c.b16 %v6220, %v6212
        %v7789 = vpack.c.b16 %v6221, %v6213
        %v7790 = vpack.c.b16 %v6222, %v6214
        %v7791 = vpack.c.b16 %v6231, %v6223
        %v7792 = vpack.c.b16 %v6232, %v6224
        %v7793 = vpack.c.b16 %v6233, %v6225
        %v7794 = vpack.c.b16 %v6234, %v6226
        %v7795 = vpack.c.b16 %v6235, %v6227
        %v7796 = vpack.c.b16 %v6236, %v6228
        %v7797 = vpack.c.b16 %v6237, %v6229
        %v7798 = vpack.c.b16 %v6238, %v6230
        %v7799 = vpack.c.b16 %v6247, %v6239
        %v7800 = vpack.c.b16 %v6248, %v6240
        %v7801 = vpack.c.b16 %v6249, %v6241
        %v7802 = vpack.c.b16 %v6250, %v6242
        %v7803 = vpack.c.b16 %v6251, %v6243
        %v7804 = vpack.c.b16 %v6252, %v6244
        %v7805 = vpack.c.b16 %v6253, %v6245
        %v7806 = vpack.c.b16 %v6254, %v6246
        %v7807 = vpack.c.b16 %v6263, %v6255
        %v7808 = vpack.c.b16 %v6264, %v6256
        %v7809 = vpack.c.b16 %v6265, %v6257
        %v7810 = vpack.c.b16 %v6266, %v6258
        %v7811 = vpack.c.b16 %v6267, %v6259
        %v7812 = vpack.c.b16 %v6268, %v6260
        %v7813 = vpack.c.b16 %v6269, %v6261
        %v7814 = vpack.c.b16 %v6270, %v6262
        %v7815 = vpack.c.b16 %v6279, %v6271
        %v7816 = vpack.c.b16 %v6280, %v6272
        %v7817 = vpack.c.b16 %v6281, %v6273
        %v7818 = vpack.c.b16 %v6282, %v6274
        %v7819 = vpack.c.b16 %v6283, %v6275
        %v7820 = vpack.c.b16 %v6284, %v6276
        %v7821 = vpack.c.b16 %v6285, %v6277
        %v7822 = vpack.c.b16 %v6286, %v6278
        %v7823 = vpack.c.b16 %v6295, %v6287
        %v7824 = vpack.c.b16 %v6296, %v6288
        %v7825 = vpack.c.b16 %v6297, %v6289
        %v7826 = vpack.c.b16 %v6298, %v6290
        %v7827 = vpack.c.b16 %v6299, %v6291
        %v7828 = vpack.c.b16 %v6300, %v6292
        %v7829 = vpack.c.b16 %v6301, %v6293
        %v7830 = vpack.c.b16 %v6302, %v6294
        %v7831 = vpack.c.b16 %v6311, %v6303
        %v7832 = vpack.c.b16 %v6312, %v6304
        %v7833 = vpack.c.b16 %v6313, %v6305
        %v7834 = vpack.c.b16 %v6314, %v6306
        %v7835 = vpack.c.b16 %v6315, %v6307
        %v7836 = vpack.c.b16 %v6316, %v6308
        %v7837 = vpack.c.b16 %v6317, %v6309
        %v7838 = vpack.c.b16 %v6318, %v6310
        %v7839 = vpack.c.b16 %v6327, %v6319
        %v7840 = vpack.c.b16 %v6328, %v6320
        %v7841 = vpack.c.b16 %v6329, %v6321
        %v7842 = vpack.c.b16 %v6330, %v6322
        %v7843 = vpack.c.b16 %v6331, %v6323
        %v7844 = vpack.c.b16 %v6332, %v6324
        %v7845 = vpack.c.b16 %v6333, %v6325
        %v7846 = vpack.c.b16 %v6334, %v6326
        %v7847 = vpack.c.b16 %v6343, %v6335
        %v7848 = vpack.c.b16 %v6344, %v6336
        %v7849 = vpack.c.b16 %v6345, %v6337
        %v7850 = vpack.c.b16 %v6346, %v6338
        %v7851 = vpack.c.b16 %v6347, %v6339
        %v7852 = vpack.c.b16 %v6348, %v6340
        %v7853 = vpack.c.b16 %v6349, %v6341
        %v7854 = vpack.c.b16 %v6350, %v6342
        %v7855 = vpack.c.b16 %v6359, %v6351
        %v7856 = vpack.c.b16 %v6360, %v6352
        %v7857 = vpack.c.b16 %v6361, %v6353
        %v7858 = vpack.c.b16 %v6362, %v6354
        %v7859 = vpack.c.b16 %v6363, %v6355
        %v7860 = vpack.c.b16 %v6364, %v6356
        %v7861 = vpack.c.b16 %v6365, %v6357
        %v7862 = vpack.c.b16 %v6366, %v6358
        %v7863 = vpack.c.b16 %v6375, %v6367
        %v7864 = vpack.c.b16 %v6376, %v6368
        %v7865 = vpack.c.b16 %v6377, %v6369
        %v7866 = vpack.c.b16 %v6378, %v6370
        %v7867 = vpack.c.b16 %v6379, %v6371
        %v7868 = vpack.c.b16 %v6380, %v6372
        %v7869 = vpack.c.b16 %v6381, %v6373
        %v7870 = vpack.c.b16 %v6382, %v6374
        %v7871 = vpack.c.b16 %v6391, %v6383
        %v7872 = vpack.c.b16 %v6392, %v6384
        %v7873 = vpack.c.b16 %v6393, %v6385
        %v7874 = vpack.c.b16 %v6394, %v6386
        %v7875 = vpack.c.b16 %v6395, %v6387
        %v7876 = vpack.c.b16 %v6396, %v6388
        %v7877 = vpack.c.b16 %v6397, %v6389
        %v7878 = vpack.c.b16 %v6398, %v6390
        %v7879 = vpack.c.b16 %v6407, %v6399
        %v7880 = vpack.c.b16 %v6408, %v6400
        %v7881 = vpack.c.b16 %v6409, %v6401
        %v7882 = vpack.c.b16 %v6410, %v6402
        %v7883 = vpack.c.b16 %v6411, %v6403
        %v7884 = vpack.c.b16 %v6412, %v6404
        %v7885 = vpack.c.b16 %v6413, %v6405
        %v7886 = vpack.c.b16 %v6414, %v6406
        %v7887 = vpack.c.b16 %v6423, %v6415
        %v7888 = vpack.c.b16 %v6424, %v6416
        %v7889 = vpack.c.b16 %v6425, %v6417
        %v7890 = vpack.c.b16 %v6426, %v6418
        %v7891 = vpack.c.b16 %v6427, %v6419
        %v7892 = vpack.c.b16 %v6428, %v6420
        %v7893 = vpack.c.b16 %v6429, %v6421
        %v7894 = vpack.c.b16 %v6430, %v6422
        %v7895 = vpack.c.b16 %v6439, %v6431
        %v7896 = vpack.c.b16 %v6440, %v6432
        %v7897 = vpack.c.b16 %v6441, %v6433
        %v7898 = vpack.c.b16 %v6442, %v6434
        %v7899 = vpack.c.b16 %v6443, %v6435
        %v7900 = vpack.c.b16 %v6444, %v6436
        %v7901 = vpack.c.b16 %v6445, %v6437
        %v7902 = vpack.c.b16 %v6446, %v6438
        %v7903 = vpack.c.b16 %v6455, %v6447
        %v7904 = vpack.c.b16 %v6456, %v6448
        %v7905 = vpack.c.b16 %v6457, %v6449
        %v7906 = vpack.c.b16 %v6458, %v6450
        %v7907 = vpack.c.b16 %v6459, %v6451
        %v7908 = vpack.c.b16 %v6460, %v6452
        %v7909 = vpack.c.b16 %v6461, %v6453
        %v7910 = vpack.c.b16 %v6462, %v6454
        %v7911 = vpack.c.b16 %v6471, %v6463
        %v7912 = vpack.c.b16 %v6472, %v6464
        %v7913 = vpack.c.b16 %v6473, %v6465
        %v7914 = vpack.c.b16 %v6474, %v6466
        %v7915 = vpack.c.b16 %v6475, %v6467
        %v7916 = vpack.c.b16 %v6476, %v6468
        %v7917 = vpack.c.b16 %v6477, %v6469
        %v7918 = vpack.c.b16 %v6478, %v6470
        %v7919 = vpack.c.b16 %v6487, %v6479
        %v7920 = vpack.c.b16 %v6488, %v6480
        %v7921 = vpack.c.b16 %v6489, %v6481
        %v7922 = vpack.c.b16 %v6490, %v6482
        %v7923 = vpack.c.b16 %v6491, %v6483
        %v7924 = vpack.c.b16 %v6492, %v6484
        %v7925 = vpack.c.b16 %v6493, %v6485
        %v7926 = vpack.c.b16 %v6494, %v6486
        %v7927 = vpack.c.b16 %v6503, %v6495
        %v7928 = vpack.c.b16 %v6504, %v6496
        %v7929 = vpack.c.b16 %v6505, %v6497
        %v7930 = vpack.c.b16 %v6506, %v6498
        %v7931 = vpack.c.b16 %v6507, %v6499
        %v7932 = vpack.c.b16 %v6508, %v6500
        %v7933 = vpack.c.b16 %v6509, %v6501
        %v7934 = vpack.c.b16 %v6510, %v6502
        %v7935 = vpack.c.b16 %v6519, %v6511
        %v7936 = vpack.c.b16 %v6520, %v6512
        %v7937 = vpack.c.b16 %v6521, %v6513
        %v7938 = vpack.c.b16 %v6522, %v6514
        %v7939 = vpack.c.b16 %v6523, %v6515
        %v7940 = vpack.c.b16 %v6524, %v6516
        %v7941 = vpack.c.b16 %v6525, %v6517
        %v7942 = vpack.c.b16 %v6526, %v6518
        %v7943 = vpack.c.b16 %v6535, %v6527
        %v7944 = vpack.c.b16 %v6536, %v6528
        %v7945 = vpack.c.b16 %v6537, %v6529
        %v7946 = vpack.c.b16 %v6538, %v6530
        %v7947 = vpack.c.b16 %v6539, %v6531
        %v7948 = vpack.c.b16 %v6540, %v6532
        %v7949 = vpack.c.b16 %v6541, %v6533
        %v7950 = vpack.c.b16 %v6542, %v6534
        %v7951 = vpack.c.b16 %v6551, %v6543
        %v7952 = vpack.c.b16 %v6552, %v6544
        %v7953 = vpack.c.b16 %v6553, %v6545
        %v7954 = vpack.c.b16 %v6554, %v6546
        %v7955 = vpack.c.b16 %v6555, %v6547
        %v7956 = vpack.c.b16 %v6556, %v6548
        %v7957 = vpack.c.b16 %v6557, %v6549
        %v7958 = vpack.c.b16 %v6558, %v6550
        %v7959 = vpack.c.b16 %v6567, %v6559
        %v7960 = vpack.c.b16 %v6568, %v6560
        %v7961 = vpack.c.b16 %v6569, %v6561
        %v7962 = vpack.c.b16 %v6570, %v6562
        %v7963 = vpack.c.b16 %v6571, %v6563
        %v7964 = vpack.c.b16 %v6572, %v6564
        %v7965 = vpack.c.b16 %v6573, %v6565
        %v7966 = vpack.c.b16 %v6574, %v6566
        %v7967 = vpack.c.b16 %v6583, %v6575
        %v7968 = vpack.c.b16 %v6584, %v6576
        %v7969 = vpack.c.b16 %v6585, %v6577
        %v7970 = vpack.c.b16 %v6586, %v6578
        %v7971 = vpack.c.b16 %v6587, %v6579
        %v7972 = vpack.c.b16 %v6588, %v6580
        %v7973 = vpack.c.b16 %v6589, %v6581
        %v7974 = vpack.c.b16 %v6590, %v6582
        %v7975 = vpack.c.b16 %v6599, %v6591
        %v7976 = vpack.c.b16 %v6600, %v6592
        %v7977 = vpack.c.b16 %v6601, %v6593
        %v7978 = vpack.c.b16 %v6602, %v6594
        %v7979 = vpack.c.b16 %v6603, %v6595
        %v7980 = vpack.c.b16 %v6604, %v6596
        %v7981 = vpack.c.b16 %v6605, %v6597
        %v7982 = vpack.c.b16 %v6606, %v6598
        %v7983 = vpack.c.b16 %v6615, %v6607
        %v7984 = vpack.c.b16 %v6616, %v6608
        %v7985 = vpack.c.b16 %v6617, %v6609
        %v7986 = vpack.c.b16 %v6618, %v6610
        %v7987 = vpack.c.b16 %v6619, %v6611
        %v7988 = vpack.c.b16 %v6620, %v6612
        %v7989 = vpack.c.b16 %v6621, %v6613
        %v7990 = vpack.c.b16 %v6622, %v6614
        %v7991 = vpack.c.b16 %v6631, %v6623
        %v7992 = vpack.c.b16 %v6632, %v6624
        %v7993 = vpack.c.b16 %v6633, %v6625
        %v7994 = vpack.c.b16 %v6634, %v6626
        %v7995 = vpack.c.b16 %v6635, %v6627
        %v7996 = vpack.c.b16 %v6636, %v6628
        %v7997 = vpack.c.b16 %v6637, %v6629
        %v7998 = vpack.c.b16 %v6638, %v6630
        %v7999 = vpack.c.b16 %v6647, %v6639
        %v8000 = vpack.c.b16 %v6648, %v6640
        %v8001 = vpack.c.b16 %v6649, %v6641
        %v8002 = vpack.c.b16 %v6650, %v6642
        %v8003 = vpack.c.b16 %v6651, %v6643
        %v8004 = vpack.c.b16 %v6652, %v6644
        %v8005 = vpack.c.b16 %v6653, %v6645
        %v8006 = vpack.c.b16 %v6654, %v6646
        %v8007 = vpack.c.b16 %v6663, %v6655
        %v8008 = vpack.c.b16 %v6664, %v6656
        %v8009 = vpack.c.b16 %v6665, %v6657
        %v8010 = vpack.c.b16 %v6666, %v6658
        %v8011 = vpack.c.b16 %v6667, %v6659
        %v8012 = vpack.c.b16 %v6668, %v6660
        %v8013 = vpack.c.b16 %v6669, %v6661
        %v8014 = vpack.c.b16 %v6670, %v6662
        %v8015 = vpack.c.b16 %v6679, %v6671
        %v8016 = vpack.c.b16 %v6680, %v6672
        %v8017 = vpack.c.b16 %v6681, %v6673
        %v8018 = vpack.c.b16 %v6682, %v6674
        %v8019 = vpack.c.b16 %v6683, %v6675
        %v8020 = vpack.c.b16 %v6684, %v6676
        %v8021 = vpack.c.b16 %v6685, %v6677
        %v8022 = vpack.c.b16 %v6686, %v6678
        %v8023 = vpack.c.b16 %v6695, %v6687
        %v8024 = vpack.c.b16 %v6696, %v6688
        %v8025 = vpack.c.b16 %v6697, %v6689
        %v8026 = vpack.c.b16 %v6698, %v6690
        %v8027 = vpack.c.b16 %v6699, %v6691
        %v8028 = vpack.c.b16 %v6700, %v6692
        %v8029 = vpack.c.b16 %v6701, %v6693
        %v8030 = vpack.c.b16 %v6702, %v6694
        %v8031 = vpack.c.b16 %v6711, %v6703
        %v8032 = vpack.c.b16 %v6712, %v6704
        %v8033 = vpack.c.b16 %v6713, %v6705
        %v8034 = vpack.c.b16 %v6714, %v6706
        %v8035 = vpack.c.b16 %v6715, %v6707
        %v8036 = vpack.c.b16 %v6716, %v6708
        %v8037 = vpack.c.b16 %v6717, %v6709
        %v8038 = vpack.c.b16 %v6718, %v6710
        %v8039 = vpack.c.b16 %v6727, %v6719
        %v8040 = vpack.c.b16 %v6728, %v6720
        %v8041 = vpack.c.b16 %v6729, %v6721
        %v8042 = vpack.c.b16 %v6730, %v6722
        %v8043 = vpack.c.b16 %v6731, %v6723
        %v8044 = vpack.c.b16 %v6732, %v6724
        %v8045 = vpack.c.b16 %v6733, %v6725
        %v8046 = vpack.c.b16 %v6734, %v6726
        %v8047 = vpack.c.b16 %v6743, %v6735
        %v8048 = vpack.c.b16 %v6744, %v6736
        %v8049 = vpack.c.b16 %v6745, %v6737
        %v8050 = vpack.c.b16 %v6746, %v6738
        %v8051 = vpack.c.b16 %v6747, %v6739
        %v8052 = vpack.c.b16 %v6748, %v6740
        %v8053 = vpack.c.b16 %v6749, %v6741
        %v8054 = vpack.c.b16 %v6750, %v6742
        %v8055 = vpack.c.b16 %v6759, %v6751
        %v8056 = vpack.c.b16 %v6760, %v6752
        %v8057 = vpack.c.b16 %v6761, %v6753
        %v8058 = vpack.c.b16 %v6762, %v6754
        %v8059 = vpack.c.b16 %v6763, %v6755
        %v8060 = vpack.c.b16 %v6764, %v6756
        %v8061 = vpack.c.b16 %v6765, %v6757
        %v8062 = vpack.c.b16 %v6766, %v6758
        %v8063 = vpack.c.b16 %v6775, %v6767
        %v8064 = vpack.c.b16 %v6776, %v6768
        %v8065 = vpack.c.b16 %v6777, %v6769
        %v8066 = vpack.c.b16 %v6778, %v6770
        %v8067 = vpack.c.b16 %v6779, %v6771
        %v8068 = vpack.c.b16 %v6780, %v6772
        %v8069 = vpack.c.b16 %v6781, %v6773
        %v8070 = vpack.c.b16 %v6782, %v6774
        %v8071 = vpack.c.b16 %v6791, %v6783
        %v8072 = vpack.c.b16 %v6792, %v6784
        %v8073 = vpack.c.b16 %v6793, %v6785
        %v8074 = vpack.c.b16 %v6794, %v6786
        %v8075 = vpack.c.b16 %v6795, %v6787
        %v8076 = vpack.c.b16 %v6796, %v6788
        %v8077 = vpack.c.b16 %v6797, %v6789
        %v8078 = vpack.c.b16 %v6798, %v6790
        %v8079 = vpack.c.b16 %v6807, %v6799
        %v8080 = vpack.c.b16 %v6808, %v6800
        %v8081 = vpack.c.b16 %v6809, %v6801
        %v8082 = vpack.c.b16 %v6810, %v6802
        %v8083 = vpack.c.b16 %v6811, %v6803
        %v8084 = vpack.c.b16 %v6812, %v6804
        %v8085 = vpack.c.b16 %v6813, %v6805
        %v8086 = vpack.c.b16 %v6814, %v6806
        %v8087 = vpack.c.b16 %v6823, %v6815
        %v8088 = vpack.c.b16 %v6824, %v6816
        %v8089 = vpack.c.b16 %v6825, %v6817
        %v8090 = vpack.c.b16 %v6826, %v6818
        %v8091 = vpack.c.b16 %v6827, %v6819
        %v8092 = vpack.c.b16 %v6828, %v6820
        %v8093 = vpack.c.b16 %v6829, %v6821
        %v8094 = vpack.c.b16 %v6830, %v6822
        %v8095 = vpack.c.b16 %v6839, %v6831
        %v8096 = vpack.c.b16 %v6840, %v6832
        %v8097 = vpack.c.b16 %v6841, %v6833
        %v8098 = vpack.c.b16 %v6842, %v6834
        %v8099 = vpack.c.b16 %v6843, %v6835
        %v8100 = vpack.c.b16 %v6844, %v6836
        %v8101 = vpack.c.b16 %v6845, %v6837
        %v8102 = vpack.c.b16 %v6846, %v6838
        %v8103 = vpack.c.b16 %v6855, %v6847
        %v8104 = vpack.c.b16 %v6856, %v6848
        %v8105 = vpack.c.b16 %v6857, %v6849
        %v8106 = vpack.c.b16 %v6858, %v6850
        %v8107 = vpack.c.b16 %v6859, %v6851
        %v8108 = vpack.c.b16 %v6860, %v6852
        %v8109 = vpack.c.b16 %v6861, %v6853
        %v8110 = vpack.c.b16 %v6862, %v6854
        %v8111 = vpack.c.b16 %v6871, %v6863
        %v8112 = vpack.c.b16 %v6872, %v6864
        %v8113 = vpack.c.b16 %v6873, %v6865
        %v8114 = vpack.c.b16 %v6874, %v6866
        %v8115 = vpack.c.b16 %v6875, %v6867
        %v8116 = vpack.c.b16 %v6876, %v6868
        %v8117 = vpack.c.b16 %v6877, %v6869
        %v8118 = vpack.c.b16 %v6878, %v6870
        %v8119 = vpack.c.b16 %v6887, %v6879
        %v8120 = vpack.c.b16 %v6888, %v6880
        %v8121 = vpack.c.b16 %v6889, %v6881
        %v8122 = vpack.c.b16 %v6890, %v6882
        %v8123 = vpack.c.b16 %v6891, %v6883
        %v8124 = vpack.c.b16 %v6892, %v6884
        %v8125 = vpack.c.b16 %v6893, %v6885
        %v8126 = vpack.c.b16 %v6894, %v6886
        %v8127 = vpack.c.b16 %v6903, %v6895
        %v8128 = vpack.c.b16 %v6904, %v6896
        %v8129 = vpack.c.b16 %v6905, %v6897
        %v8130 = vpack.c.b16 %v6906, %v6898
        %v8131 = vpack.c.b16 %v6907, %v6899
        %v8132 = vpack.c.b16 %v6908, %v6900
        %v8133 = vpack.c.b16 %v6909, %v6901
        %v8134 = vpack.c.b16 %v6910, %v6902
        %v8135 = vpack.c.b16 %v6919, %v6911
        %v8136 = vpack.c.b16 %v6920, %v6912
        %v8137 = vpack.c.b16 %v6921, %v6913
        %v8138 = vpack.c.b16 %v6922, %v6914
        %v8139 = vpack.c.b16 %v6923, %v6915
        %v8140 = vpack.c.b16 %v6924, %v6916
        %v8141 = vpack.c.b16 %v6925, %v6917
        %v8142 = vpack.c.b16 %v6926, %v6918
        %v8143 = vpack.c.b16 %v6935, %v6927
        %v8144 = vpack.c.b16 %v6936, %v6928
        %v8145 = vpack.c.b16 %v6937, %v6929
        %v8146 = vpack.c.b16 %v6938, %v6930
        %v8147 = vpack.c.b16 %v6939, %v6931
        %v8148 = vpack.c.b16 %v6940, %v6932
        %v8149 = vpack.c.b16 %v6941, %v6933
        %v8150 = vpack.c.b16 %v6942, %v6934
        %v8151 = vpack.c.b16 %v6951, %v6943
        %v8152 = vpack.c.b16 %v6952, %v6944
        %v8153 = vpack.c.b16 %v6953, %v6945
        %v8154 = vpack.c.b16 %v6954, %v6946
        %v8155 = vpack.c.b16 %v6955, %v6947
        %v8156 = vpack.c.b16 %v6956, %v6948
        %v8157 = vpack.c.b16 %v6957, %v6949
        %v8158 = vpack.c.b16 %v6958, %v6950
        %v8159 = vpack.c.b16 %v6967, %v6959
        %v8160 = vpack.c.b16 %v6968, %v6960
        %v8161 = vpack.c.b16 %v6969, %v6961
        %v8162 = vpack.c.b16 %v6970, %v6962
        %v8163 = vpack.c.b16 %v6971, %v6963
        %v8164 = vpack.c.b16 %v6972, %v6964
        %v8165 = vpack.c.b16 %v6973, %v6965
        %v8166 = vpack.c.b16 %v6974, %v6966
        %v8167 = vpack.c.b16 %v6983, %v6975
        %v8168 = vpack.c.b16 %v6984, %v6976
        %v8169 = vpack.c.b16 %v6985, %v6977
        %v8170 = vpack.c.b16 %v6986, %v6978
        %v8171 = vpack.c.b16 %v6987, %v6979
        %v8172 = vpack.c.b16 %v6988, %v6980
        %v8173 = vpack.c.b16 %v6989, %v6981
        %v8174 = vpack.c.b16 %v6990, %v6982
        %v8175 = vpack.c.b16 %v6999, %v6991
        %v8176 = vpack.c.b16 %v7000, %v6992
        %v8177 = vpack.c.b16 %v7001, %v6993
        %v8178 = vpack.c.b16 %v7002, %v6994
        %v8179 = vpack.c.b16 %v7003, %v6995
        %v8180 = vpack.c.b16 %v7004, %v6996
        %v8181 = vpack.c.b16 %v7005, %v6997
        %v8182 = vpack.c.b16 %v7006, %v6998
        %v8183 = vpack.c.b16 %v7015, %v7007
        %v8184 = vpack.c.b16 %v7016, %v7008
        %v8185 = vpack.c.b16 %v7017, %v7009
        %v8186 = vpack.c.b16 %v7018, %v7010
        %v8187 = vpack.c.b16 %v7019, %v7011
        %v8188 = vpack.c.b16 %v7020, %v7012
        %v8189 = vpack.c.b16 %v7021, %v7013
        %v8190 = vpack.c.b16 %v7022, %v7014
        %v8191 = vpack.c.b16 %v7031, %v7023
        %v8192 = vpack.c.b16 %v7032, %v7024
        %v8193 = vpack.c.b16 %v7033, %v7025
        %v8194 = vpack.c.b16 %v7034, %v7026
        %v8195 = vpack.c.b16 %v7035, %v7027
        %v8196 = vpack.c.b16 %v7036, %v7028
        %v8197 = vpack.c.b16 %v7037, %v7029
        %v8198 = vpack.c.b16 %v7038, %v7030
        %v8199 = vpack.c.b16 %v7047, %v7039
        %v8200 = vpack.c.b16 %v7048, %v7040
        %v8201 = vpack.c.b16 %v7049, %v7041
        %v8202 = vpack.c.b16 %v7050, %v7042
        %v8203 = vpack.c.b16 %v7051, %v7043
        %v8204 = vpack.c.b16 %v7052, %v7044
        %v8205 = vpack.c.b16 %v7053, %v7045
        %v8206 = vpack.c.b16 %v7054, %v7046
        %v8207 = vpack.c.b16 %v7063, %v7055
        %v8208 = vpack.c.b16 %v7064, %v7056
        %v8209 = vpack.c.b16 %v7065, %v7057
        %v8210 = vpack.c.b16 %v7066, %v7058
        %v8211 = vpack.c.b16 %v7067, %v7059
        %v8212 = vpack.c.b16 %v7068, %v7060
        %v8213 = vpack.c.b16 %v7069, %v7061
        %v8214 = vpack.c.b16 %v7070, %v7062
        %v8215 = vpack.c.b16 %v7079, %v7071
        %v8216 = vpack.c.b16 %v7080, %v7072
        %v8217 = vpack.c.b16 %v7081, %v7073
        %v8218 = vpack.c.b16 %v7082, %v7074
        %v8219 = vpack.c.b16 %v7083, %v7075
        %v8220 = vpack.c.b16 %v7084, %v7076
        %v8221 = vpack.c.b16 %v7085, %v7077
        %v8222 = vpack.c.b16 %v7086, %v7078
        %v8223 = vpack.c.b16 %v7095, %v7087
        %v8224 = vpack.c.b16 %v7096, %v7088
        %v8225 = vpack.c.b16 %v7097, %v7089
        %v8226 = vpack.c.b16 %v7098, %v7090
        %v8227 = vpack.c.b16 %v7099, %v7091
        %v8228 = vpack.c.b16 %v7100, %v7092
        %v8229 = vpack.c.b16 %v7101, %v7093
        %v8230 = vpack.c.b16 %v7102, %v7094
        %v8231 = vpack.c.b16 %v7111, %v7103
        %v8232 = vpack.c.b16 %v7112, %v7104
        %v8233 = vpack.c.b16 %v7113, %v7105
        %v8234 = vpack.c.b16 %v7114, %v7106
        %v8235 = vpack.c.b16 %v7115, %v7107
        %v8236 = vpack.c.b16 %v7116, %v7108
        %v8237 = vpack.c.b16 %v7117, %v7109
        %v8238 = vpack.c.b16 %v7118, %v7110
        %v8239 = vpack.c.b16 %v7127, %v7119
        %v8240 = vpack.c.b16 %v7128, %v7120
        %v8241 = vpack.c.b16 %v7129, %v7121
        %v8242 = vpack.c.b16 %v7130, %v7122
        %v8243 = vpack.c.b16 %v7131, %v7123
        %v8244 = vpack.c.b16 %v7132, %v7124
        %v8245 = vpack.c.b16 %v7133, %v7125
        %v8246 = vpack.c.b16 %v7134, %v7126
        %v8247 = vpack.c.b16 %v7143, %v7135
        %v8248 = vpack.c.b16 %v7144, %v7136
        %v8249 = vpack.c.b16 %v7145, %v7137
        %v8250 = vpack.c.b16 %v7146, %v7138
        %v8251 = vpack.c.b16 %v7147, %v7139
        %v8252 = vpack.c.b16 %v7148, %v7140
        %v8253 = vpack.c.b16 %v7149, %v7141
        %v8254 = vpack.c.b16 %v7150, %v7142
        %v8255 = vpack.c.b16 %v7159, %v7151
        %v8256 = vpack.c.b16 %v7160, %v7152
        %v8257 = vpack.c.b16 %v7161, %v7153
        %v8258 = vpack.c.b16 %v7162, %v7154
        %v8259 = vpack.c.b16 %v7163, %v7155
        %v8260 = vpack.c.b16 %v7164, %v7156
        %v8261 = vpack.c.b16 %v7165, %v7157
        %v8262 = vpack.c.b16 %v7166, %v7158
        %v8263 = vpack.c.b16 %v7175, %v7167
        %v8264 = vpack.c.b16 %v7176, %v7168
        %v8265 = vpack.c.b16 %v7177, %v7169
        %v8266 = vpack.c.b16 %v7178, %v7170
        %v8267 = vpack.c.b16 %v7179, %v7171
        %v8268 = vpack.c.b16 %v7180, %v7172
        %v8269 = vpack.c.b16 %v7181, %v7173
        %v8270 = vpack.c.b16 %v7182, %v7174
        %v8271 = vpack.c.b16 %v7191, %v7183
        %v8272 = vpack.c.b16 %v7192, %v7184
        %v8273 = vpack.c.b16 %v7193, %v7185
        %v8274 = vpack.c.b16 %v7194, %v7186
        %v8275 = vpack.c.b16 %v7195, %v7187
        %v8276 = vpack.c.b16 %v7196, %v7188
        %v8277 = vpack.c.b16 %v7197, %v7189
        %v8278 = vpack.c.b16 %v7198, %v7190
        %v8279 = vpack.c.b16 %v7207, %v7199
        %v8280 = vpack.c.b16 %v7208, %v7200
        %v8281 = vpack.c.b16 %v7209, %v7201
        %v8282 = vpack.c.b16 %v7210, %v7202
        %v8283 = vpack.c.b16 %v7211, %v7203
        %v8284 = vpack.c.b16 %v7212, %v7204
        %v8285 = vpack.c.b16 %v7213, %v7205
        %v8286 = vpack.c.b16 %v7214, %v7206
        %v8287 = vpack.c.b16 %v7223, %v7215
        %v8288 = vpack.c.b16 %v7224, %v7216
        %v8289 = vpack.c.b16 %v7225, %v7217
        %v8290 = vpack.c.b16 %v7226, %v7218
        %v8291 = vpack.c.b16 %v7227, %v7219
        %v8292 = vpack.c.b16 %v7228, %v7220
        %v8293 = vpack.c.b16 %v7229, %v7221
        %v8294 = vpack.c.b16 %v7230, %v7222
        %v8295 = vpack.c.b16 %v7239, %v7231
        %v8296 = vpack.c.b16 %v7240, %v7232
        %v8297 = vpack.c.b16 %v7241, %v7233
        %v8298 = vpack.c.b16 %v7242, %v7234
        %v8299 = vpack.c.b16 %v7243, %v7235
        %v8300 = vpack.c.b16 %v7244, %v7236
        %v8301 = vpack.c.b16 %v7245, %v7237
        %v8302 = vpack.c.b16 %v7246, %v7238
        %v8303 = vpack.c.b16 %v7255, %v7247
        %v8304 = vpack.c.b16 %v7256, %v7248
        %v8305 = vpack.c.b16 %v7257, %v7249
        %v8306 = vpack.c.b16 %v7258, %v7250
        %v8307 = vpack.c.b16 %v7259, %v7251
        %v8308 = vpack.c.b16 %v7260, %v7252
        %v8309 = vpack.c.b16 %v7261, %v7253
        %v8310 = vpack.c.b16 %v7262, %v7254
        %v8311 = vpack.c.b16 %v7271, %v7263
        %v8312 = vpack.c.b16 %v7272, %v7264
        %v8313 = vpack.c.b16 %v7273, %v7265
        %v8314 = vpack.c.b16 %v7274, %v7266
        %v8315 = vpack.c.b16 %v7275, %v7267
        %v8316 = vpack.c.b16 %v7276, %v7268
        %v8317 = vpack.c.b16 %v7277, %v7269
        %v8318 = vpack.c.b16 %v7278, %v7270
        %v8319 = vpack.c.b16 %v7287, %v7279
        %v8320 = vpack.c.b16 %v7288, %v7280
        %v8321 = vpack.c.b16 %v7289, %v7281
        %v8322 = vpack.c.b16 %v7290, %v7282
        %v8323 = vpack.c.b16 %v7291, %v7283
        %v8324 = vpack.c.b16 %v7292, %v7284
        %v8325 = vpack.c.b16 %v7293, %v7285
        %v8326 = vpack.c.b16 %v7294, %v7286
        %v8327 = vpack.c.b16 %v7303, %v7295
        %v8328 = vpack.c.b16 %v7304, %v7296
        %v8329 = vpack.c.b16 %v7305, %v7297
        %v8330 = vpack.c.b16 %v7306, %v7298
        %v8331 = vpack.c.b16 %v7307, %v7299
        %v8332 = vpack.c.b16 %v7308, %v7300
        %v8333 = vpack.c.b16 %v7309, %v7301
        %v8334 = vpack.c.b16 %v7310, %v7302
        %v8335 = vpack.c.b16 %v7319, %v7311
        %v8336 = vpack.c.b16 %v7320, %v7312
        %v8337 = vpack.c.b16 %v7321, %v7313
        %v8338 = vpack.c.b16 %v7322, %v7314
        %v8339 = vpack.c.b16 %v7323, %v7315
        %v8340 = vpack.c.b16 %v7324, %v7316
        %v8341 = vpack.c.b16 %v7325, %v7317
        %v8342 = vpack.c.b16 %v7326, %v7318
        %v8343 = vpack.c.b16 %v7335, %v7327
        %v8344 = vpack.c.b16 %v7336, %v7328
        %v8345 = vpack.c.b16 %v7337, %v7329
        %v8346 = vpack.c.b16 %v7338, %v7330
        %v8347 = vpack.c.b16 %v7339, %v7331
        %v8348 = vpack.c.b16 %v7340, %v7332
        %v8349 = vpack.c.b16 %v7341, %v7333
        %v8350 = vpack.c.b16 %v7342, %v7334
        %v8351 = vpack.c.b16 %v7351, %v7343
        %v8352 = vpack.c.b16 %v7352, %v7344
        %v8353 = vpack.c.b16 %v7353, %v7345
        %v8354 = vpack.c.b16 %v7354, %v7346
        %v8355 = vpack.c.b16 %v7355, %v7347
        %v8356 = vpack.c.b16 %v7356, %v7348
        %v8357 = vpack.c.b16 %v7357, %v7349
        %v8358 = vpack.c.b16 %v7358, %v7350
        %v8359 = vpack.c.b16 %v7367, %v7359
        %v8360 = vpack.c.b16 %v7368, %v7360
        %v8361 = vpack.c.b16 %v7369, %v7361
        %v8362 = vpack.c.b16 %v7370, %v7362
        %v8363 = vpack.c.b16 %v7371, %v7363
        %v8364 = vpack.c.b16 %v7372, %v7364
        %v8365 = vpack.c.b16 %v7373, %v7365
        %v8366 = vpack.c.b16 %v7374, %v7366
        %v8367 = vpack.c.b16 %v7383, %v7375
        %v8368 = vpack.c.b16 %v7384, %v7376
        %v8369 = vpack.c.b16 %v7385, %v7377
        %v8370 = vpack.c.b16 %v7386, %v7378
        %v8371 = vpack.c.b16 %v7387, %v7379
        %v8372 = vpack.c.b16 %v7388, %v7380
        %v8373 = vpack.c.b16 %v7389, %v7381
        %v8374 = vpack.c.b16 %v7390, %v7382
        %v8375 = vpack.c.b16 %v7399, %v7391
        %v8376 = vpack.c.b16 %v7400, %v7392
        %v8377 = vpack.c.b16 %v7401, %v7393
        %v8378 = vpack.c.b16 %v7402, %v7394
        %v8379 = vpack.c.b16 %v7403, %v7395
        %v8380 = vpack.c.b16 %v7404, %v7396
        %v8381 = vpack.c.b16 %v7405, %v7397
        %v8382 = vpack.c.b16 %v7406, %v7398
        %v8383 = vpack.c.b16 %v7415, %v7407
        %v8384 = vpack.c.b16 %v7416, %v7408
        %v8385 = vpack.c.b16 %v7417, %v7409
        %v8386 = vpack.c.b16 %v7418, %v7410
        %v8387 = vpack.c.b16 %v7419, %v7411
        %v8388 = vpack.c.b16 %v7420, %v7412
        %v8389 = vpack.c.b16 %v7421, %v7413
        %v8390 = vpack.c.b16 %v7422, %v7414
        %v8391 = vpack.c.b16 %v7431, %v7423
        %v8392 = vpack.c.b16 %v7432, %v7424
        %v8393 = vpack.c.b16 %v7433, %v7425
        %v8394 = vpack.c.b16 %v7434, %v7426
        %v8395 = vpack.c.b16 %v7435, %v7427
        %v8396 = vpack.c.b16 %v7436, %v7428
        %v8397 = vpack.c.b16 %v7437, %v7429
        %v8398 = vpack.c.b16 %v7438, %v7430
        %v8399 = vpack.c.b16 %v7447, %v7439
        %v8400 = vpack.c.b16 %v7448, %v7440
        %v8401 = vpack.c.b16 %v7449, %v7441
        %v8402 = vpack.c.b16 %v7450, %v7442
        %v8403 = vpack.c.b16 %v7451, %v7443
        %v8404 = vpack.c.b16 %v7452, %v7444
        %v8405 = vpack.c.b16 %v7453, %v7445
        %v8406 = vpack.c.b16 %v7454, %v7446
        %v8407 = vpack.c.b16 %v7463, %v7455
        %v8408 = vpack.c.b16 %v7464, %v7456
        %v8409 = vpack.c.b16 %v7465, %v7457
        %v8410 = vpack.c.b16 %v7466, %v7458
        %v8411 = vpack.c.b16 %v7467, %v7459
        %v8412 = vpack.c.b16 %v7468, %v7460
        %v8413 = vpack.c.b16 %v7469, %v7461
        %v8414 = vpack.c.b16 %v7470, %v7462
        %v8415 = vpack.c.b16 %v7479, %v7471
        %v8416 = vpack.c.b16 %v7480, %v7472
        %v8417 = vpack.c.b16 %v7481, %v7473
        %v8418 = vpack.c.b16 %v7482, %v7474
        %v8419 = vpack.c.b16 %v7483, %v7475
        %v8420 = vpack.c.b16 %v7484, %v7476
        %v8421 = vpack.c.b16 %v7485, %v7477
        %v8422 = vpack.c.b16 %v7486, %v7478
        %v8423 = vpack.c.b16 %v7495, %v7487
        %v8424 = vpack.c.b16 %v7496, %v7488
        %v8425 = vpack.c.b16 %v7497, %v7489
        %v8426 = vpack.c.b16 %v7498, %v7490
        %v8427 = vpack.c.b16 %v7499, %v7491
        %v8428 = vpack.c.b16 %v7500, %v7492
        %v8429 = vpack.c.b16 %v7501, %v7493
        %v8430 = vpack.c.b16 %v7502, %v7494
        %v8431 = vpack.c.b16 %v7511, %v7503
        %v8432 = vpack.c.b16 %v7512, %v7504
        %v8433 = vpack.c.b16 %v7513, %v7505
        %v8434 = vpack.c.b16 %v7514, %v7506
        %v8435 = vpack.c.b16 %v7515, %v7507
        %v8436 = vpack.c.b16 %v7516, %v7508
        %v8437 = vpack.c.b16 %v7517, %v7509
        %v8438 = vpack.c.b16 %v7518, %v7510
        %v8439 = vpack.c.b16 %v7527, %v7519
        %v8440 = vpack.c.b16 %v7528, %v7520
        %v8441 = vpack.c.b16 %v7529, %v7521
        %v8442 = vpack.c.b16 %v7530, %v7522
        %v8443 = vpack.c.b16 %v7531, %v7523
        %v8444 = vpack.c.b16 %v7532, %v7524
        %v8445 = vpack.c.b16 %v7533, %v7525
        %v8446 = vpack.c.b16 %v7534, %v7526
        %v8447 = vpack.c.b16 %v7543, %v7535
        %v8448 = vpack.c.b16 %v7544, %v7536
        %v8449 = vpack.c.b16 %v7545, %v7537
        %v8450 = vpack.c.b16 %v7546, %v7538
        %v8451 = vpack.c.b16 %v7547, %v7539
        %v8452 = vpack.c.b16 %v7548, %v7540
        %v8453 = vpack.c.b16 %v7549, %v7541
        %v8454 = vpack.c.b16 %v7550, %v7542
        %v8455 = vpack.c.b16 %v7559, %v7551
        %v8456 = vpack.c.b16 %v7560, %v7552
        %v8457 = vpack.c.b16 %v7561, %v7553
        %v8458 = vpack.c.b16 %v7562, %v7554
        %v8459 = vpack.c.b16 %v7563, %v7555
        %v8460 = vpack.c.b16 %v7564, %v7556
        %v8461 = vpack.c.b16 %v7565, %v7557
        %v8462 = vpack.c.b16 %v7566, %v7558
        %v9360 = vlaneseq
        %v9361 = vshrl.u32 %v9360, 7
        %v9362 = vsub.s32 0, %v9361
        %v9363 = vrot.slane %v4878, %v9362
        %v9364 = vlaneseq
        %v9365 = vshrl.u32 %v9364, 7
        %v9366 = vsub.s32 1, %v9365
        %v9367 = vrot.slane %v4878, %v9366
        %v9368 = vlaneseq
        %v9369 = vshrl.u32 %v9368, 7
        %v9370 = vsub.s32 2, %v9369
        %v9371 = vrot.slane %v4878, %v9370
        %v9372 = vlaneseq
        %v9373 = vshrl.u32 %v9372, 7
        %v9374 = vsub.s32 3, %v9373
        %v9375 = vrot.slane %v4878, %v9374
        %v9376 = vlaneseq
        %v9377 = vshrl.u32 %v9376, 7
        %v9378 = vsub.s32 4, %v9377
        %v9379 = vrot.slane %v4878, %v9378
        %v9380 = vlaneseq
        %v9381 = vshrl.u32 %v9380, 7
        %v9382 = vsub.s32 5, %v9381
        %v9383 = vrot.slane %v4878, %v9382
        %v9384 = vlaneseq
        %v9385 = vshrl.u32 %v9384, 7
        %v9386 = vsub.s32 6, %v9385
        %v9387 = vrot.slane %v4878, %v9386
        %v9388 = vlaneseq
        %v9389 = vshrl.u32 %v9388, 7
        %v9390 = vsub.s32 7, %v9389
        %v9391 = vrot.slane %v4878, %v9390
        %9400 = vmatprep.subr.bf16.mxu0 %v7568
        %9401 = vmatpush1.bf16.msra.mxu0 %v7567
        %9402 = vmatprep.subr.bf16.mxu0 %v7576
        %9403 = vmatpush1.bf16.msra.mxu0 %v7575
        %9404 = vmatprep.subr.bf16.mxu0 %v7584
        %9405 = vmatpush1.bf16.msra.mxu0 %v7583
        %9406 = vmatprep.subr.bf16.mxu0 %v7592
        %9407 = vmatpush1.bf16.msra.mxu0 %v7591
        %9408 = vmatprep.subr.bf16.mxu0 %v7600
        %9409 = vmatpush1.bf16.msra.mxu0 %v7599
        %9410 = vmatprep.subr.bf16.mxu0 %v7608
        %9411 = vmatpush1.bf16.msra.mxu0 %v7607
        %9412 = vmatprep.subr.bf16.mxu0 %v7616
        %9413 = vmatpush1.bf16.msra.mxu0 %v7615
        %9414 = vmatprep.subr.bf16.mxu0 %v7624
        %9415 = vmatpush1.bf16.msra.mxu0 %v7623
        %9416 = vmatprep.subr.bf16.mxu0 %v7632
        %9417 = vmatpush1.bf16.msra.mxu0 %v7631
        %9418 = vmatprep.subr.bf16.mxu0 %v7640
        %9419 = vmatpush1.bf16.msra.mxu0 %v7639
        %9420 = vmatprep.subr.bf16.mxu0 %v7648
        %9421 = vmatpush1.bf16.msra.mxu0 %v7647
        %9422 = vmatprep.subr.bf16.mxu0 %v7656
        %9423 = vmatpush1.bf16.msra.mxu0 %v7655
        %9424 = vmatprep.subr.bf16.mxu0 %v7664
        %9425 = vmatpush1.bf16.msra.mxu0 %v7663
        %9426 = vmatprep.subr.bf16.mxu0 %v7672
        %9427 = vmatpush1.bf16.msra.mxu0 %v7671
        %9428 = vmatprep.subr.bf16.mxu0 %v7680
        %9429 = vmatpush1.bf16.msra.mxu0 %v7679
        %9430 = vmatprep.subr.bf16.mxu0 %v7688
        %9431 = vmatpush1.bf16.msra.mxu0 %v7687
        %9432 = vmatprep.mubr.bf16.mxu0 %v3969
        %9433 = vmatmul.mubr.bf16.gmra.mrb[0].mxu0 %v3968
        %v9434 = vpop.f32.mrb[0].mxu0
        %v9435 = vadd.f32 %v9363, %v9434
        %v9436 = vpop.f32.mrb[0].mxu0
        %v9437 = vadd.f32 %v9367, %v9436
        %v9438 = vpop.f32.mrb[0].mxu0
        %v9439 = vpop.f32.mrb[0].mxu0
        %9440 = vdwg.mxu0
        %9441 = vmatprep.subr.bf16.mxu0 %v7696
        %9442 = vmatpush1.bf16.msra.mxu0 %v7695
        %9443 = vmatprep.subr.bf16.mxu0 %v7704
        %9444 = vmatpush1.bf16.msra.mxu0 %v7703
        %9445 = vmatprep.subr.bf16.mxu0 %v7712
        %9446 = vmatpush1.bf16.msra.mxu0 %v7711
        %9447 = vmatprep.subr.bf16.mxu0 %v7720
        %9448 = vmatpush1.bf16.msra.mxu0 %v7719
        %9449 = vmatprep.subr.bf16.mxu0 %v7728
        %9450 = vmatpush1.bf16.msra.mxu0 %v7727
        %9451 = vmatprep.subr.bf16.mxu0 %v7736
        %9452 = vmatpush1.bf16.msra.mxu0 %v7735
        %9453 = vmatprep.subr.bf16.mxu0 %v7744
        %9454 = vmatpush1.bf16.msra.mxu0 %v7743
        %9455 = vmatprep.subr.bf16.mxu0 %v7752
        %9456 = vmatpush1.bf16.msra.mxu0 %v7751
        %9457 = vmatprep.subr.bf16.mxu0 %v7760
        %9458 = vmatpush1.bf16.msra.mxu0 %v7759
        %9459 = vmatprep.subr.bf16.mxu0 %v7768
        %9460 = vmatpush1.bf16.msra.mxu0 %v7767
        %9461 = vmatprep.subr.bf16.mxu0 %v7776
        %9462 = vmatpush1.bf16.msra.mxu0 %v7775
        %9463 = vmatprep.subr.bf16.mxu0 %v7784
        %9464 = vmatpush1.bf16.msra.mxu0 %v7783
        %9465 = vmatprep.subr.bf16.mxu0 %v7792
        %9466 = vmatpush1.bf16.msra.mxu0 %v7791
        %9467 = vmatprep.subr.bf16.mxu0 %v7800
        %9468 = vmatpush1.bf16.msra.mxu0 %v7799
        %9469 = vmatprep.subr.bf16.mxu0 %v7808
        %9470 = vmatpush1.bf16.msra.mxu0 %v7807
        %9471 = vmatprep.subr.bf16.mxu0 %v7816
        %9472 = vmatpush1.bf16.msra.mxu0 %v7815
        %9473 = vmatprep.mubr.bf16.mxu0 %v3971
        %9474 = vmatmul.mubr.bf16.gmra.mrb[0].mxu0 %v3970
        %v9475 = vpop.f32.mrb[0].mxu0
        %v9476 = vadd.f32 %v9435, %v9475
        %v9477 = vpop.f32.mrb[0].mxu0
        %v9478 = vadd.f32 %v9437, %v9477
        %v9479 = vpop.f32.mrb[0].mxu0
        %v9480 = vpop.f32.mrb[0].mxu0
        %9481 = vdwg.mxu0
        %9482 = vmatprep.subr.bf16.mxu0 %v7824
        %9483 = vmatpush1.bf16.msra.mxu0 %v7823
        %9484 = vmatprep.subr.bf16.mxu0 %v7832
        %9485 = vmatpush1.bf16.msra.mxu0 %v7831
        %9486 = vmatprep.subr.bf16.mxu0 %v7840
        %9487 = vmatpush1.bf16.msra.mxu0 %v7839
        %9488 = vmatprep.subr.bf16.mxu0 %v7848
        %9489 = vmatpush1.bf16.msra.mxu0 %v7847
        %9490 = vmatprep.subr.bf16.mxu0 %v7856
        %9491 = vmatpush1.bf16.msra.mxu0 %v7855
        %9492 = vmatprep.subr.bf16.mxu0 %v7864
        %9493 = vmatpush1.bf16.msra.mxu0 %v7863
        %9494 = vmatprep.subr.bf16.mxu0 %v7872
        %9495 = vmatpush1.bf16.msra.mxu0 %v7871
        %9496 = vmatprep.subr.bf16.mxu0 %v7880
        %9497 = vmatpush1.bf16.msra.mxu0 %v7879
        %9498 = vmatprep.subr.bf16.mxu0 %v7888
        %9499 = vmatpush1.bf16.msra.mxu0 %v7887
        %9500 = vmatprep.subr.bf16.mxu0 %v7896
        %9501 = vmatpush1.bf16.msra.mxu0 %v7895
        %9502 = vmatprep.subr.bf16.mxu0 %v7904
        %9503 = vmatpush1.bf16.msra.mxu0 %v7903
        %9504 = vmatprep.subr.bf16.mxu0 %v7912
        %9505 = vmatpush1.bf16.msra.mxu0 %v7911
        %9506 = vmatprep.subr.bf16.mxu0 %v7920
        %9507 = vmatpush1.bf16.msra.mxu0 %v7919
        %9508 = vmatprep.subr.bf16.mxu0 %v7928
        %9509 = vmatpush1.bf16.msra.mxu0 %v7927
        %9510 = vmatprep.subr.bf16.mxu0 %v7936
        %9511 = vmatpush1.bf16.msra.mxu0 %v7935
        %9512 = vmatprep.subr.bf16.mxu0 %v7944
        %9513 = vmatpush1.bf16.msra.mxu0 %v7943
        %9514 = vmatprep.mubr.bf16.mxu0 %v3973
        %9515 = vmatmul.mubr.bf16.gmra.mrb[0].mxu0 %v3972
        %v9516 = vpop.f32.mrb[0].mxu0
        %v9517 = vadd.f32 %v9476, %v9516
        %v9518 = vpop.f32.mrb[0].mxu0
        %v9519 = vadd.f32 %v9478, %v9518
        %v9520 = vpop.f32.mrb[0].mxu0
        %v9521 = vpop.f32.mrb[0].mxu0
        %9522 = vdwg.mxu0
        %9523 = vmatprep.subr.bf16.mxu0 %v7952
        %9524 = vmatpush1.bf16.msra.mxu0 %v7951
        %9525 = vmatprep.subr.bf16.mxu0 %v7960
        %9526 = vmatpush1.bf16.msra.mxu0 %v7959
        %9527 = vmatprep.subr.bf16.mxu0 %v7968
        %9528 = vmatpush1.bf16.msra.mxu0 %v7967
        %9529 = vmatprep.subr.bf16.mxu0 %v7976
        %9530 = vmatpush1.bf16.msra.mxu0 %v7975
        %9531 = vmatprep.subr.bf16.mxu0 %v7984
        %9532 = vmatpush1.bf16.msra.mxu0 %v7983
        %9533 = vmatprep.subr.bf16.mxu0 %v7992
        %9534 = vmatpush1.bf16.msra.mxu0 %v7991
        %9535 = vmatprep.subr.bf16.mxu0 %v8000
        %9536 = vmatpush1.bf16.msra.mxu0 %v7999
        %9537 = vmatprep.subr.bf16.mxu0 %v8008
        %9538 = vmatpush1.bf16.msra.mxu0 %v8007
        %9539 = vmatprep.subr.bf16.mxu0 %v8016
        %9540 = vmatpush1.bf16.msra.mxu0 %v8015
        %9541 = vmatprep.subr.bf16.mxu0 %v8024
        %9542 = vmatpush1.bf16.msra.mxu0 %v8023
        %9543 = vmatprep.subr.bf16.mxu0 %v8032
        %9544 = vmatpush1.bf16.msra.mxu0 %v8031
        %9545 = vmatprep.subr.bf16.mxu0 %v8040
        %9546 = vmatpush1.bf16.msra.mxu0 %v8039
        %9547 = vmatprep.subr.bf16.mxu0 %v8048
        %9548 = vmatpush1.bf16.msra.mxu0 %v8047
        %9549 = vmatprep.subr.bf16.mxu0 %v8056
        %9550 = vmatpush1.bf16.msra.mxu0 %v8055
        %9551 = vmatprep.subr.bf16.mxu0 %v8064
        %9552 = vmatpush1.bf16.msra.mxu0 %v8063
        %9553 = vmatprep.subr.bf16.mxu0 %v8072
        %9554 = vmatpush1.bf16.msra.mxu0 %v8071
        %9555 = vmatprep.mubr.bf16.mxu0 %v3975
        %9556 = vmatmul.mubr.bf16.gmra.mrb[0].mxu0 %v3974
        %v9557 = vpop.f32.mrb[0].mxu0
        %v9558 = vadd.f32 %v9517, %v9557
        %v9559 = vpop.f32.mrb[0].mxu0
        %v9560 = vadd.f32 %v9519, %v9559
        %v9561 = vpop.f32.mrb[0].mxu0
        %v9562 = vpop.f32.mrb[0].mxu0
        %9563 = vdwg.mxu0
        %9564 = vmatprep.subr.bf16.mxu0 %v8080
        %9565 = vmatpush1.bf16.msra.mxu0 %v8079
        %9566 = vmatprep.subr.bf16.mxu0 %v8088
        %9567 = vmatpush1.bf16.msra.mxu0 %v8087
        %9568 = vmatprep.subr.bf16.mxu0 %v8096
        %9569 = vmatpush1.bf16.msra.mxu0 %v8095
        %9570 = vmatprep.subr.bf16.mxu0 %v8104
        %9571 = vmatpush1.bf16.msra.mxu0 %v8103
        %9572 = vmatprep.subr.bf16.mxu0 %v8112
        %9573 = vmatpush1.bf16.msra.mxu0 %v8111
        %9574 = vmatprep.subr.bf16.mxu0 %v8120
        %9575 = vmatpush1.bf16.msra.mxu0 %v8119
        %9576 = vmatprep.subr.bf16.mxu0 %v8128
        %9577 = vmatpush1.bf16.msra.mxu0 %v8127
        %9578 = vmatprep.subr.bf16.mxu0 %v8136
        %9579 = vmatpush1.bf16.msra.mxu0 %v8135
        %9580 = vmatprep.subr.bf16.mxu0 %v8144
        %9581 = vmatpush1.bf16.msra.mxu0 %v8143
        %9582 = vmatprep.subr.bf16.mxu0 %v8152
        %9583 = vmatpush1.bf16.msra.mxu0 %v8151
        %9584 = vmatprep.subr.bf16.mxu0 %v8160
        %9585 = vmatpush1.bf16.msra.mxu0 %v8159
        %9586 = vmatprep.subr.bf16.mxu0 %v8168
        %9587 = vmatpush1.bf16.msra.mxu0 %v8167
        %9588 = vmatprep.subr.bf16.mxu0 %v8176
        %9589 = vmatpush1.bf16.msra.mxu0 %v8175
        %9590 = vmatprep.subr.bf16.mxu0 %v8184
        %9591 = vmatpush1.bf16.msra.mxu0 %v8183
        %9592 = vmatprep.subr.bf16.mxu0 %v8192
        %9593 = vmatpush1.bf16.msra.mxu0 %v8191
        %9594 = vmatprep.subr.bf16.mxu0 %v8200
        %9595 = vmatpush1.bf16.msra.mxu0 %v8199
        %9596 = vmatprep.mubr.bf16.mxu0 %v3977
        %9597 = vmatmul.mubr.bf16.gmra.mrb[0].mxu0 %v3976
        %v9598 = vpop.f32.mrb[0].mxu0
        %v9599 = vadd.f32 %v9558, %v9598
        %v9600 = vpop.f32.mrb[0].mxu0
        %v9601 = vadd.f32 %v9560, %v9600
        %v9602 = vpop.f32.mrb[0].mxu0
        %v9603 = vpop.f32.mrb[0].mxu0
        %9604 = vdwg.mxu0
        %9605 = vmatprep.subr.bf16.mxu0 %v8208
        %9606 = vmatpush1.bf16.msra.mxu0 %v8207
        %9607 = vmatprep.subr.bf16.mxu0 %v8216
        %9608 = vmatpush1.bf16.msra.mxu0 %v8215
        %9609 = vmatprep.subr.bf16.mxu0 %v8224
        %9610 = vmatpush1.bf16.msra.mxu0 %v8223
        %9611 = vmatprep.subr.bf16.mxu0 %v8232
        %9612 = vmatpush1.bf16.msra.mxu0 %v8231
        %9613 = vmatprep.subr.bf16.mxu0 %v8240
        %9614 = vmatpush1.bf16.msra.mxu0 %v8239
        %9615 = vmatprep.subr.bf16.mxu0 %v8248
        %9616 = vmatpush1.bf16.msra.mxu0 %v8247
        %9617 = vmatprep.subr.bf16.mxu0 %v8256
        %9618 = vmatpush1.bf16.msra.mxu0 %v8255
        %9619 = vmatprep.subr.bf16.mxu0 %v8264
        %9620 = vmatpush1.bf16.msra.mxu0 %v8263
        %9621 = vmatprep.subr.bf16.mxu0 %v8272
        %9622 = vmatpush1.bf16.msra.mxu0 %v8271
        %9623 = vmatprep.subr.bf16.mxu0 %v8280
        %9624 = vmatpush1.bf16.msra.mxu0 %v8279
        %9625 = vmatprep.subr.bf16.mxu0 %v8288
        %9626 = vmatpush1.bf16.msra.mxu0 %v8287
        %9627 = vmatprep.subr.bf16.mxu0 %v8296
        %9628 = vmatpush1.bf16.msra.mxu0 %v8295
        %9629 = vmatprep.subr.bf16.mxu0 %v8304
        %9630 = vmatpush1.bf16.msra.mxu0 %v8303
        %9631 = vmatprep.subr.bf16.mxu0 %v8312
        %9632 = vmatpush1.bf16.msra.mxu0 %v8311
        %9633 = vmatprep.subr.bf16.mxu0 %v8320
        %9634 = vmatpush1.bf16.msra.mxu0 %v8319
        %9635 = vmatprep.subr.bf16.mxu0 %v8328
        %9636 = vmatpush1.bf16.msra.mxu0 %v8327
        %9637 = vmatprep.mubr.bf16.mxu0 %v3979
        %9638 = vmatmul.mubr.bf16.gmra.mrb[0].mxu0 %v3978
        %v9639 = vpop.f32.mrb[0].mxu0
        %v9640 = vadd.f32 %v9599, %v9639
        %v9641 = vpop.f32.mrb[0].mxu0
        %v9642 = vadd.f32 %v9601, %v9641
        %v9643 = vpop.f32.mrb[0].mxu0
        %v9644 = vpop.f32.mrb[0].mxu0
        %9645 = vdwg.mxu0
        %9646 = vmatprep.subr.bf16.mxu0 %v8336
        %9647 = vmatpush1.bf16.msra.mxu0 %v8335
        %9648 = vmatprep.subr.bf16.mxu0 %v8344
        %9649 = vmatpush1.bf16.msra.mxu0 %v8343
        %9650 = vmatprep.subr.bf16.mxu0 %v8352
        %9651 = vmatpush1.bf16.msra.mxu0 %v8351
        %9652 = vmatprep.subr.bf16.mxu0 %v8360
        %9653 = vmatpush1.bf16.msra.mxu0 %v8359
        %9654 = vmatprep.subr.bf16.mxu0 %v8368
        %9655 = vmatpush1.bf16.msra.mxu0 %v8367
        %9656 = vmatprep.subr.bf16.mxu0 %v8376
        %9657 = vmatpush1.bf16.msra.mxu0 %v8375
        %9658 = vmatprep.subr.bf16.mxu0 %v8384
        %9659 = vmatpush1.bf16.msra.mxu0 %v8383
        %9660 = vmatprep.subr.bf16.mxu0 %v8392
        %9661 = vmatpush1.bf16.msra.mxu0 %v8391
        %9662 = vmatprep.subr.bf16.mxu0 %v8400
        %9663 = vmatpush1.bf16.msra.mxu0 %v8399
        %9664 = vmatprep.subr.bf16.mxu0 %v8408
        %9665 = vmatpush1.bf16.msra.mxu0 %v8407
        %9666 = vmatprep.subr.bf16.mxu0 %v8416
        %9667 = vmatpush1.bf16.msra.mxu0 %v8415
        %9668 = vmatprep.subr.bf16.mxu0 %v8424
        %9669 = vmatpush1.bf16.msra.mxu0 %v8423
        %9670 = vmatprep.subr.bf16.mxu0 %v8432
        %9671 = vmatpush1.bf16.msra.mxu0 %v8431
        %9672 = vmatprep.subr.bf16.mxu0 %v8440
        %9673 = vmatpush1.bf16.msra.mxu0 %v8439
        %9674 = vmatprep.subr.bf16.mxu0 %v8448
        %9675 = vmatpush1.bf16.msra.mxu0 %v8447
        %9676 = vmatprep.subr.bf16.mxu0 %v8456
        %9677 = vmatpush1.bf16.msra.mxu0 %v8455
        %9678 = vmatprep.mubr.bf16.mxu0 %v3981
        %9679 = vmatmul.mubr.bf16.gmra.mrb[0].mxu0 %v3980
        %v9680 = vpop.f32.mrb[0].mxu0
        %v9681 = vadd.f32 %v9640, %v9680
        %v9682 = vpop.f32.mrb[0].mxu0
        %v9683 = vadd.f32 %v9642, %v9682
        %v9684 = vpop.f32.mrb[0].mxu0
        %v9685 = vpop.f32.mrb[0].mxu0
        %9686 = vdwg.mxu0
        %9687 = vmatprep.subr.bf16.mxu0 %v7570
        %9688 = vmatpush1.bf16.msra.mxu0 %v7569
        %9689 = vmatprep.subr.bf16.mxu0 %v7578
        %9690 = vmatpush1.bf16.msra.mxu0 %v7577
        %9691 = vmatprep.subr.bf16.mxu0 %v7586
        %9692 = vmatpush1.bf16.msra.mxu0 %v7585
        %9693 = vmatprep.subr.bf16.mxu0 %v7594
        %9694 = vmatpush1.bf16.msra.mxu0 %v7593
        %9695 = vmatprep.subr.bf16.mxu0 %v7602
        %9696 = vmatpush1.bf16.msra.mxu0 %v7601
        %9697 = vmatprep.subr.bf16.mxu0 %v7610
        %9698 = vmatpush1.bf16.msra.mxu0 %v7609
        %9699 = vmatprep.subr.bf16.mxu0 %v7618
        %9700 = vmatpush1.bf16.msra.mxu0 %v7617
        %9701 = vmatprep.subr.bf16.mxu0 %v7626
        %9702 = vmatpush1.bf16.msra.mxu0 %v7625
        %9703 = vmatprep.subr.bf16.mxu0 %v7634
        %9704 = vmatpush1.bf16.msra.mxu0 %v7633
        %9705 = vmatprep.subr.bf16.mxu0 %v7642
        %9706 = vmatpush1.bf16.msra.mxu0 %v7641
        %9707 = vmatprep.subr.bf16.mxu0 %v7650
        %9708 = vmatpush1.bf16.msra.mxu0 %v7649
        %9709 = vmatprep.subr.bf16.mxu0 %v7658
        %9710 = vmatpush1.bf16.msra.mxu0 %v7657
        %9711 = vmatprep.subr.bf16.mxu0 %v7666
        %9712 = vmatpush1.bf16.msra.mxu0 %v7665
        %9713 = vmatprep.subr.bf16.mxu0 %v7674
        %9714 = vmatpush1.bf16.msra.mxu0 %v7673
        %9715 = vmatprep.subr.bf16.mxu0 %v7682
        %9716 = vmatpush1.bf16.msra.mxu0 %v7681
        %9717 = vmatprep.subr.bf16.mxu0 %v7690
        %9718 = vmatpush1.bf16.msra.mxu0 %v7689
        %9719 = vmatprep.mubr.bf16.mxu0 %v3969
        %9720 = vmatmul.mubr.bf16.gmra.mrb[0].mxu0 %v3968
        %v9721 = vpop.f32.mrb[0].mxu0
        %v9722 = vadd.f32 %v9371, %v9721
        %v9723 = vpop.f32.mrb[0].mxu0
        %v9724 = vadd.f32 %v9375, %v9723
        %v9725 = vpop.f32.mrb[0].mxu0
        %v9726 = vpop.f32.mrb[0].mxu0
        %9727 = vdwg.mxu0
        %9728 = vmatprep.subr.bf16.mxu0 %v7698
        %9729 = vmatpush1.bf16.msra.mxu0 %v7697
        %9730 = vmatprep.subr.bf16.mxu0 %v7706
        %9731 = vmatpush1.bf16.msra.mxu0 %v7705
        %9732 = vmatprep.subr.bf16.mxu0 %v7714
        %9733 = vmatpush1.bf16.msra.mxu0 %v7713
        %9734 = vmatprep.subr.bf16.mxu0 %v7722
        %9735 = vmatpush1.bf16.msra.mxu0 %v7721
        %9736 = vmatprep.subr.bf16.mxu0 %v7730
        %9737 = vmatpush1.bf16.msra.mxu0 %v7729
        %9738 = vmatprep.subr.bf16.mxu0 %v7738
        %9739 = vmatpush1.bf16.msra.mxu0 %v7737
        %9740 = vmatprep.subr.bf16.mxu0 %v7746
        %9741 = vmatpush1.bf16.msra.mxu0 %v7745
        %9742 = vmatprep.subr.bf16.mxu0 %v7754
        %9743 = vmatpush1.bf16.msra.mxu0 %v7753
        %9744 = vmatprep.subr.bf16.mxu0 %v7762
        %9745 = vmatpush1.bf16.msra.mxu0 %v7761
        %9746 = vmatprep.subr.bf16.mxu0 %v7770
        %9747 = vmatpush1.bf16.msra.mxu0 %v7769
        %9748 = vmatprep.subr.bf16.mxu0 %v7778
        %9749 = vmatpush1.bf16.msra.mxu0 %v7777
        %9750 = vmatprep.subr.bf16.mxu0 %v7786
        %9751 = vmatpush1.bf16.msra.mxu0 %v7785
        %9752 = vmatprep.subr.bf16.mxu0 %v7794
        %9753 = vmatpush1.bf16.msra.mxu0 %v7793
        %9754 = vmatprep.subr.bf16.mxu0 %v7802
        %9755 = vmatpush1.bf16.msra.mxu0 %v7801
        %9756 = vmatprep.subr.bf16.mxu0 %v7810
        %9757 = vmatpush1.bf16.msra.mxu0 %v7809
        %9758 = vmatprep.subr.bf16.mxu0 %v7818
        %9759 = vmatpush1.bf16.msra.mxu0 %v7817
        %9760 = vmatprep.mubr.bf16.mxu0 %v3971
        %9761 = vmatmul.mubr.bf16.gmra.mrb[0].mxu0 %v3970
        %v9762 = vpop.f32.mrb[0].mxu0
        %v9763 = vadd.f32 %v9722, %v9762
        %v9764 = vpop.f32.mrb[0].mxu0
        %v9765 = vadd.f32 %v9724, %v9764
        %v9766 = vpop.f32.mrb[0].mxu0
        %v9767 = vpop.f32.mrb[0].mxu0
        %9768 = vdwg.mxu0
        %9769 = vmatprep.subr.bf16.mxu0 %v7826
        %9770 = vmatpush1.bf16.msra.mxu0 %v7825
        %9771 = vmatprep.subr.bf16.mxu0 %v7834
        %9772 = vmatpush1.bf16.msra.mxu0 %v7833
        %9773 = vmatprep.subr.bf16.mxu0 %v7842
        %9774 = vmatpush1.bf16.msra.mxu0 %v7841
        %9775 = vmatprep.subr.bf16.mxu0 %v7850
        %9776 = vmatpush1.bf16.msra.mxu0 %v7849
        %9777 = vmatprep.subr.bf16.mxu0 %v7858
        %9778 = vmatpush1.bf16.msra.mxu0 %v7857
        %9779 = vmatprep.subr.bf16.mxu0 %v7866
        %9780 = vmatpush1.bf16.msra.mxu0 %v7865
        %9781 = vmatprep.subr.bf16.mxu0 %v7874
        %9782 = vmatpush1.bf16.msra.mxu0 %v7873
        %9783 = vmatprep.subr.bf16.mxu0 %v7882
        %9784 = vmatpush1.bf16.msra.mxu0 %v7881
        %9785 = vmatprep.subr.bf16.mxu0 %v7890
        %9786 = vmatpush1.bf16.msra.mxu0 %v7889
        %9787 = vmatprep.subr.bf16.mxu0 %v7898
        %9788 = vmatpush1.bf16.msra.mxu0 %v7897
        %9789 = vmatprep.subr.bf16.mxu0 %v7906
        %9790 = vmatpush1.bf16.msra.mxu0 %v7905
        %9791 = vmatprep.subr.bf16.mxu0 %v7914
        %9792 = vmatpush1.bf16.msra.mxu0 %v7913
        %9793 = vmatprep.subr.bf16.mxu0 %v7922
        %9794 = vmatpush1.bf16.msra.mxu0 %v7921
        %9795 = vmatprep.subr.bf16.mxu0 %v7930
        %9796 = vmatpush1.bf16.msra.mxu0 %v7929
        %9797 = vmatprep.subr.bf16.mxu0 %v7938
        %9798 = vmatpush1.bf16.msra.mxu0 %v7937
        %9799 = vmatprep.subr.bf16.mxu0 %v7946
        %9800 = vmatpush1.bf16.msra.mxu0 %v7945
        %9801 = vmatprep.mubr.bf16.mxu0 %v3973
        %9802 = vmatmul.mubr.bf16.gmra.mrb[0].mxu0 %v3972
        %v9803 = vpop.f32.mrb[0].mxu0
        %v9804 = vadd.f32 %v9763, %v9803
        %v9805 = vpop.f32.mrb[0].mxu0
        %v9806 = vadd.f32 %v9765, %v9805
        %v9807 = vpop.f32.mrb[0].mxu0
        %v9808 = vpop.f32.mrb[0].mxu0
        %9809 = vdwg.mxu0
        %9810 = vmatprep.subr.bf16.mxu0 %v7954
        %9811 = vmatpush1.bf16.msra.mxu0 %v7953
        %9812 = vmatprep.subr.bf16.mxu0 %v7962
        %9813 = vmatpush1.bf16.msra.mxu0 %v7961
        %9814 = vmatprep.subr.bf16.mxu0 %v7970
        %9815 = vmatpush1.bf16.msra.mxu0 %v7969
        %9816 = vmatprep.subr.bf16.mxu0 %v7978
        %9817 = vmatpush1.bf16.msra.mxu0 %v7977
        %9818 = vmatprep.subr.bf16.mxu0 %v7986
        %9819 = vmatpush1.bf16.msra.mxu0 %v7985
        %9820 = vmatprep.subr.bf16.mxu0 %v7994
        %9821 = vmatpush1.bf16.msra.mxu0 %v7993
        %9822 = vmatprep.subr.bf16.mxu0 %v8002
        %9823 = vmatpush1.bf16.msra.mxu0 %v8001
        %9824 = vmatprep.subr.bf16.mxu0 %v8010
        %9825 = vmatpush1.bf16.msra.mxu0 %v8009
        %9826 = vmatprep.subr.bf16.mxu0 %v8018
        %9827 = vmatpush1.bf16.msra.mxu0 %v8017
        %9828 = vmatprep.subr.bf16.mxu0 %v8026
        %9829 = vmatpush1.bf16.msra.mxu0 %v8025
        %9830 = vmatprep.subr.bf16.mxu0 %v8034
        %9831 = vmatpush1.bf16.msra.mxu0 %v8033
        %9832 = vmatprep.subr.bf16.mxu0 %v8042
        %9833 = vmatpush1.bf16.msra.mxu0 %v8041
        %9834 = vmatprep.subr.bf16.mxu0 %v8050
        %9835 = vmatpush1.bf16.msra.mxu0 %v8049
        %9836 = vmatprep.subr.bf16.mxu0 %v8058
        %9837 = vmatpush1.bf16.msra.mxu0 %v8057
        %9838 = vmatprep.subr.bf16.mxu0 %v8066
        %9839 = vmatpush1.bf16.msra.mxu0 %v8065
        %9840 = vmatprep.subr.bf16.mxu0 %v8074
        %9841 = vmatpush1.bf16.msra.mxu0 %v8073
        %9842 = vmatprep.mubr.bf16.mxu0 %v3975
        %9843 = vmatmul.mubr.bf16.gmra.mrb[0].mxu0 %v3974
        %v9844 = vpop.f32.mrb[0].mxu0
        %v9845 = vadd.f32 %v9804, %v9844
        %v9846 = vpop.f32.mrb[0].mxu0
        %v9847 = vadd.f32 %v9806, %v9846
        %v9848 = vpop.f32.mrb[0].mxu0
        %v9849 = vpop.f32.mrb[0].mxu0
        %9850 = vdwg.mxu0
        %9851 = vmatprep.subr.bf16.mxu0 %v8082
        %9852 = vmatpush1.bf16.msra.mxu0 %v8081
        %9853 = vmatprep.subr.bf16.mxu0 %v8090
        %9854 = vmatpush1.bf16.msra.mxu0 %v8089
        %9855 = vmatprep.subr.bf16.mxu0 %v8098
        %9856 = vmatpush1.bf16.msra.mxu0 %v8097
        %9857 = vmatprep.subr.bf16.mxu0 %v8106
        %9858 = vmatpush1.bf16.msra.mxu0 %v8105
        %9859 = vmatprep.subr.bf16.mxu0 %v8114
        %9860 = vmatpush1.bf16.msra.mxu0 %v8113
        %9861 = vmatprep.subr.bf16.mxu0 %v8122
        %9862 = vmatpush1.bf16.msra.mxu0 %v8121
        %9863 = vmatprep.subr.bf16.mxu0 %v8130
        %9864 = vmatpush1.bf16.msra.mxu0 %v8129
        %9865 = vmatprep.subr.bf16.mxu0 %v8138
        %9866 = vmatpush1.bf16.msra.mxu0 %v8137
        %9867 = vmatprep.subr.bf16.mxu0 %v8146
        %9868 = vmatpush1.bf16.msra.mxu0 %v8145
        %9869 = vmatprep.subr.bf16.mxu0 %v8154
        %9870 = vmatpush1.bf16.msra.mxu0 %v8153
        %9871 = vmatprep.subr.bf16.mxu0 %v8162
        %9872 = vmatpush1.bf16.msra.mxu0 %v8161
        %9873 = vmatprep.subr.bf16.mxu0 %v8170
        %9874 = vmatpush1.bf16.msra.mxu0 %v8169
        %9875 = vmatprep.subr.bf16.mxu0 %v8178
        %9876 = vmatpush1.bf16.msra.mxu0 %v8177
        %9877 = vmatprep.subr.bf16.mxu0 %v8186
        %9878 = vmatpush1.bf16.msra.mxu0 %v8185
        %9879 = vmatprep.subr.bf16.mxu0 %v8194
        %9880 = vmatpush1.bf16.msra.mxu0 %v8193
        %9881 = vmatprep.subr.bf16.mxu0 %v8202
        %9882 = vmatpush1.bf16.msra.mxu0 %v8201
        %9883 = vmatprep.mubr.bf16.mxu0 %v3977
        %9884 = vmatmul.mubr.bf16.gmra.mrb[0].mxu0 %v3976
        %v9885 = vpop.f32.mrb[0].mxu0
        %v9886 = vadd.f32 %v9845, %v9885
        %v9887 = vpop.f32.mrb[0].mxu0
        %v9888 = vadd.f32 %v9847, %v9887
        %v9889 = vpop.f32.mrb[0].mxu0
        %v9890 = vpop.f32.mrb[0].mxu0
        %9891 = vdwg.mxu0
        %9892 = vmatprep.subr.bf16.mxu0 %v8210
        %9893 = vmatpush1.bf16.msra.mxu0 %v8209
        %9894 = vmatprep.subr.bf16.mxu0 %v8218
        %9895 = vmatpush1.bf16.msra.mxu0 %v8217
        %9896 = vmatprep.subr.bf16.mxu0 %v8226
        %9897 = vmatpush1.bf16.msra.mxu0 %v8225
        %9898 = vmatprep.subr.bf16.mxu0 %v8234
        %9899 = vmatpush1.bf16.msra.mxu0 %v8233
        %9900 = vmatprep.subr.bf16.mxu0 %v8242
        %9901 = vmatpush1.bf16.msra.mxu0 %v8241
        %9902 = vmatprep.subr.bf16.mxu0 %v8250
        %9903 = vmatpush1.bf16.msra.mxu0 %v8249
        %9904 = vmatprep.subr.bf16.mxu0 %v8258
        %9905 = vmatpush1.bf16.msra.mxu0 %v8257
        %9906 = vmatprep.subr.bf16.mxu0 %v8266
        %9907 = vmatpush1.bf16.msra.mxu0 %v8265
        %9908 = vmatprep.subr.bf16.mxu0 %v8274
        %9909 = vmatpush1.bf16.msra.mxu0 %v8273
        %9910 = vmatprep.subr.bf16.mxu0 %v8282
        %9911 = vmatpush1.bf16.msra.mxu0 %v8281
        %9912 = vmatprep.subr.bf16.mxu0 %v8290
        %9913 = vmatpush1.bf16.msra.mxu0 %v8289
        %9914 = vmatprep.subr.bf16.mxu0 %v8298
        %9915 = vmatpush1.bf16.msra.mxu0 %v8297
        %9916 = vmatprep.subr.bf16.mxu0 %v8306
        %9917 = vmatpush1.bf16.msra.mxu0 %v8305
        %9918 = vmatprep.subr.bf16.mxu0 %v8314
        %9919 = vmatpush1.bf16.msra.mxu0 %v8313
        %9920 = vmatprep.subr.bf16.mxu0 %v8322
        %9921 = vmatpush1.bf16.msra.mxu0 %v8321
        %9922 = vmatprep.subr.bf16.mxu0 %v8330
        %9923 = vmatpush1.bf16.msra.mxu0 %v8329
        %9924 = vmatprep.mubr.bf16.mxu0 %v3979
        %9925 = vmatmul.mubr.bf16.gmra.mrb[0].mxu0 %v3978
        %v9926 = vpop.f32.mrb[0].mxu0
        %v9927 = vadd.f32 %v9886, %v9926
        %v9928 = vpop.f32.mrb[0].mxu0
        %v9929 = vadd.f32 %v9888, %v9928
        %v9930 = vpop.f32.mrb[0].mxu0
        %v9931 = vpop.f32.mrb[0].mxu0
        %9932 = vdwg.mxu0
        %9933 = vmatprep.subr.bf16.mxu0 %v8338
        %9934 = vmatpush1.bf16.msra.mxu0 %v8337
        %9935 = vmatprep.subr.bf16.mxu0 %v8346
        %9936 = vmatpush1.bf16.msra.mxu0 %v8345
        %9937 = vmatprep.subr.bf16.mxu0 %v8354
        %9938 = vmatpush1.bf16.msra.mxu0 %v8353
        %9939 = vmatprep.subr.bf16.mxu0 %v8362
        %9940 = vmatpush1.bf16.msra.mxu0 %v8361
        %9941 = vmatprep.subr.bf16.mxu0 %v8370
        %9942 = vmatpush1.bf16.msra.mxu0 %v8369
        %9943 = vmatprep.subr.bf16.mxu0 %v8378
        %9944 = vmatpush1.bf16.msra.mxu0 %v8377
        %9945 = vmatprep.subr.bf16.mxu0 %v8386
        %9946 = vmatpush1.bf16.msra.mxu0 %v8385
        %9947 = vmatprep.subr.bf16.mxu0 %v8394
        %9948 = vmatpush1.bf16.msra.mxu0 %v8393
        %9949 = vmatprep.subr.bf16.mxu0 %v8402
        %9950 = vmatpush1.bf16.msra.mxu0 %v8401
        %9951 = vmatprep.subr.bf16.mxu0 %v8410
        %9952 = vmatpush1.bf16.msra.mxu0 %v8409
        %9953 = vmatprep.subr.bf16.mxu0 %v8418
        %9954 = vmatpush1.bf16.msra.mxu0 %v8417
        %9955 = vmatprep.subr.bf16.mxu0 %v8426
        %9956 = vmatpush1.bf16.msra.mxu0 %v8425
        %9957 = vmatprep.subr.bf16.mxu0 %v8434
        %9958 = vmatpush1.bf16.msra.mxu0 %v8433
        %9959 = vmatprep.subr.bf16.mxu0 %v8442
        %9960 = vmatpush1.bf16.msra.mxu0 %v8441
        %9961 = vmatprep.subr.bf16.mxu0 %v8450
        %9962 = vmatpush1.bf16.msra.mxu0 %v8449
        %9963 = vmatprep.subr.bf16.mxu0 %v8458
        %9964 = vmatpush1.bf16.msra.mxu0 %v8457
        %9965 = vmatprep.mubr.bf16.mxu0 %v3981
        %9966 = vmatmul.mubr.bf16.gmra.mrb[0].mxu0 %v3980
        %v9967 = vpop.f32.mrb[0].mxu0
        %v9968 = vadd.f32 %v9927, %v9967
        %v9969 = vpop.f32.mrb[0].mxu0
        %v9970 = vadd.f32 %v9929, %v9969
        %v9971 = vpop.f32.mrb[0].mxu0
        %v9972 = vpop.f32.mrb[0].mxu0
        %9973 = vdwg.mxu0
        %9974 = vmatprep.subr.bf16.mxu0 %v7572
        %9975 = vmatpush1.bf16.msra.mxu0 %v7571
        %9976 = vmatprep.subr.bf16.mxu0 %v7580
        %9977 = vmatpush1.bf16.msra.mxu0 %v7579
        %9978 = vmatprep.subr.bf16.mxu0 %v7588
        %9979 = vmatpush1.bf16.msra.mxu0 %v7587
        %9980 = vmatprep.subr.bf16.mxu0 %v7596
        %9981 = vmatpush1.bf16.msra.mxu0 %v7595
        %9982 = vmatprep.subr.bf16.mxu0 %v7604
        %9983 = vmatpush1.bf16.msra.mxu0 %v7603
        %9984 = vmatprep.subr.bf16.mxu0 %v7612
        %9985 = vmatpush1.bf16.msra.mxu0 %v7611
        %9986 = vmatprep.subr.bf16.mxu0 %v7620
        %9987 = vmatpush1.bf16.msra.mxu0 %v7619
        %9988 = vmatprep.subr.bf16.mxu0 %v7628
        %9989 = vmatpush1.bf16.msra.mxu0 %v7627
        %9990 = vmatprep.subr.bf16.mxu0 %v7636
        %9991 = vmatpush1.bf16.msra.mxu0 %v7635
        %9992 = vmatprep.subr.bf16.mxu0 %v7644
        %9993 = vmatpush1.bf16.msra.mxu0 %v7643
        %9994 = vmatprep.subr.bf16.mxu0 %v7652
        %9995 = vmatpush1.bf16.msra.mxu0 %v7651
        %9996 = vmatprep.subr.bf16.mxu0 %v7660
        %9997 = vmatpush1.bf16.msra.mxu0 %v7659
        %9998 = vmatprep.subr.bf16.mxu0 %v7668
        %9999 = vmatpush1.bf16.msra.mxu0 %v7667
        %10000 = vmatprep.subr.bf16.mxu0 %v7676
        %10001 = vmatpush1.bf16.msra.mxu0 %v7675
        %10002 = vmatprep.subr.bf16.mxu0 %v7684
        %10003 = vmatpush1.bf16.msra.mxu0 %v7683
        %10004 = vmatprep.subr.bf16.mxu0 %v7692
        %10005 = vmatpush1.bf16.msra.mxu0 %v7691
        %10006 = vmatprep.mubr.bf16.mxu0 %v3969
        %10007 = vmatmul.mubr.bf16.gmra.mrb[0].mxu0 %v3968
        %v10008 = vpop.f32.mrb[0].mxu0
        %v10009 = vadd.f32 %v9379, %v10008
        %v10010 = vpop.f32.mrb[0].mxu0
        %v10011 = vadd.f32 %v9383, %v10010
        %v10012 = vpop.f32.mrb[0].mxu0
        %v10013 = vpop.f32.mrb[0].mxu0
        %10014 = vdwg.mxu0
        %10015 = vmatprep.subr.bf16.mxu0 %v7700
        %10016 = vmatpush1.bf16.msra.mxu0 %v7699
        %10017 = vmatprep.subr.bf16.mxu0 %v7708
        %10018 = vmatpush1.bf16.msra.mxu0 %v7707
        %10019 = vmatprep.subr.bf16.mxu0 %v7716
        %10020 = vmatpush1.bf16.msra.mxu0 %v7715
        %10021 = vmatprep.subr.bf16.mxu0 %v7724
        %10022 = vmatpush1.bf16.msra.mxu0 %v7723
        %10023 = vmatprep.subr.bf16.mxu0 %v7732
        %10024 = vmatpush1.bf16.msra.mxu0 %v7731
        %10025 = vmatprep.subr.bf16.mxu0 %v7740
        %10026 = vmatpush1.bf16.msra.mxu0 %v7739
        %10027 = vmatprep.subr.bf16.mxu0 %v7748
        %10028 = vmatpush1.bf16.msra.mxu0 %v7747
        %10029 = vmatprep.subr.bf16.mxu0 %v7756
        %10030 = vmatpush1.bf16.msra.mxu0 %v7755
        %10031 = vmatprep.subr.bf16.mxu0 %v7764
        %10032 = vmatpush1.bf16.msra.mxu0 %v7763
        %10033 = vmatprep.subr.bf16.mxu0 %v7772
        %10034 = vmatpush1.bf16.msra.mxu0 %v7771
        %10035 = vmatprep.subr.bf16.mxu0 %v7780
        %10036 = vmatpush1.bf16.msra.mxu0 %v7779
        %10037 = vmatprep.subr.bf16.mxu0 %v7788
        %10038 = vmatpush1.bf16.msra.mxu0 %v7787
        %10039 = vmatprep.subr.bf16.mxu0 %v7796
        %10040 = vmatpush1.bf16.msra.mxu0 %v7795
        %10041 = vmatprep.subr.bf16.mxu0 %v7804
        %10042 = vmatpush1.bf16.msra.mxu0 %v7803
        %10043 = vmatprep.subr.bf16.mxu0 %v7812
        %10044 = vmatpush1.bf16.msra.mxu0 %v7811
        %10045 = vmatprep.subr.bf16.mxu0 %v7820
        %10046 = vmatpush1.bf16.msra.mxu0 %v7819
        %10047 = vmatprep.mubr.bf16.mxu0 %v3971
        %10048 = vmatmul.mubr.bf16.gmra.mrb[0].mxu0 %v3970
        %v10049 = vpop.f32.mrb[0].mxu0
        %v10050 = vadd.f32 %v10009, %v10049
        %v10051 = vpop.f32.mrb[0].mxu0
        %v10052 = vadd.f32 %v10011, %v10051
        %v10053 = vpop.f32.mrb[0].mxu0
        %v10054 = vpop.f32.mrb[0].mxu0
        %10055 = vdwg.mxu0
        %10056 = vmatprep.subr.bf16.mxu0 %v7828
        %10057 = vmatpush1.bf16.msra.mxu0 %v7827
        %10058 = vmatprep.subr.bf16.mxu0 %v7836
        %10059 = vmatpush1.bf16.msra.mxu0 %v7835
        %10060 = vmatprep.subr.bf16.mxu0 %v7844
        %10061 = vmatpush1.bf16.msra.mxu0 %v7843
        %10062 = vmatprep.subr.bf16.mxu0 %v7852
        %10063 = vmatpush1.bf16.msra.mxu0 %v7851
        %10064 = vmatprep.subr.bf16.mxu0 %v7860
        %10065 = vmatpush1.bf16.msra.mxu0 %v7859
        %10066 = vmatprep.subr.bf16.mxu0 %v7868
        %10067 = vmatpush1.bf16.msra.mxu0 %v7867
        %10068 = vmatprep.subr.bf16.mxu0 %v7876
        %10069 = vmatpush1.bf16.msra.mxu0 %v7875
        %10070 = vmatprep.subr.bf16.mxu0 %v7884
        %10071 = vmatpush1.bf16.msra.mxu0 %v7883
        %10072 = vmatprep.subr.bf16.mxu0 %v7892
        %10073 = vmatpush1.bf16.msra.mxu0 %v7891
        %10074 = vmatprep.subr.bf16.mxu0 %v7900
        %10075 = vmatpush1.bf16.msra.mxu0 %v7899
        %10076 = vmatprep.subr.bf16.mxu0 %v7908
        %10077 = vmatpush1.bf16.msra.mxu0 %v7907
        %10078 = vmatprep.subr.bf16.mxu0 %v7916
        %10079 = vmatpush1.bf16.msra.mxu0 %v7915
        %10080 = vmatprep.subr.bf16.mxu0 %v7924
        %10081 = vmatpush1.bf16.msra.mxu0 %v7923
        %10082 = vmatprep.subr.bf16.mxu0 %v7932
        %10083 = vmatpush1.bf16.msra.mxu0 %v7931
        %10084 = vmatprep.subr.bf16.mxu0 %v7940
        %10085 = vmatpush1.bf16.msra.mxu0 %v7939
        %10086 = vmatprep.subr.bf16.mxu0 %v7948
        %10087 = vmatpush1.bf16.msra.mxu0 %v7947
        %10088 = vmatprep.mubr.bf16.mxu0 %v3973
        %10089 = vmatmul.mubr.bf16.gmra.mrb[0].mxu0 %v3972
        %v10090 = vpop.f32.mrb[0].mxu0
        %v10091 = vadd.f32 %v10050, %v10090
        %v10092 = vpop.f32.mrb[0].mxu0
        %v10093 = vadd.f32 %v10052, %v10092
        %v10094 = vpop.f32.mrb[0].mxu0
        %v10095 = vpop.f32.mrb[0].mxu0
        %10096 = vdwg.mxu0
        %10097 = vmatprep.subr.bf16.mxu0 %v7956
        %10098 = vmatpush1.bf16.msra.mxu0 %v7955
        %10099 = vmatprep.subr.bf16.mxu0 %v7964
        %10100 = vmatpush1.bf16.msra.mxu0 %v7963
        %10101 = vmatprep.subr.bf16.mxu0 %v7972
        %10102 = vmatpush1.bf16.msra.mxu0 %v7971
        %10103 = vmatprep.subr.bf16.mxu0 %v7980
        %10104 = vmatpush1.bf16.msra.mxu0 %v7979
        %10105 = vmatprep.subr.bf16.mxu0 %v7988
        %10106 = vmatpush1.bf16.msra.mxu0 %v7987
        %10107 = vmatprep.subr.bf16.mxu0 %v7996
        %10108 = vmatpush1.bf16.msra.mxu0 %v7995
        %10109 = vmatprep.subr.bf16.mxu0 %v8004
        %10110 = vmatpush1.bf16.msra.mxu0 %v8003
        %10111 = vmatprep.subr.bf16.mxu0 %v8012
        %10112 = vmatpush1.bf16.msra.mxu0 %v8011
        %10113 = vmatprep.subr.bf16.mxu0 %v8020
        %10114 = vmatpush1.bf16.msra.mxu0 %v8019
        %10115 = vmatprep.subr.bf16.mxu0 %v8028
        %10116 = vmatpush1.bf16.msra.mxu0 %v8027
        %10117 = vmatprep.subr.bf16.mxu0 %v8036
        %10118 = vmatpush1.bf16.msra.mxu0 %v8035
        %10119 = vmatprep.subr.bf16.mxu0 %v8044
        %10120 = vmatpush1.bf16.msra.mxu0 %v8043
        %10121 = vmatprep.subr.bf16.mxu0 %v8052
        %10122 = vmatpush1.bf16.msra.mxu0 %v8051
        %10123 = vmatprep.subr.bf16.mxu0 %v8060
        %10124 = vmatpush1.bf16.msra.mxu0 %v8059
        %10125 = vmatprep.subr.bf16.mxu0 %v8068
        %10126 = vmatpush1.bf16.msra.mxu0 %v8067
        %10127 = vmatprep.subr.bf16.mxu0 %v8076
        %10128 = vmatpush1.bf16.msra.mxu0 %v8075
        %10129 = vmatprep.mubr.bf16.mxu0 %v3975
        %10130 = vmatmul.mubr.bf16.gmra.mrb[0].mxu0 %v3974
        %v10131 = vpop.f32.mrb[0].mxu0
        %v10132 = vadd.f32 %v10091, %v10131
        %v10133 = vpop.f32.mrb[0].mxu0
        %v10134 = vadd.f32 %v10093, %v10133
        %v10135 = vpop.f32.mrb[0].mxu0
        %v10136 = vpop.f32.mrb[0].mxu0
        %10137 = vdwg.mxu0
        %10138 = vmatprep.subr.bf16.mxu0 %v8084
        %10139 = vmatpush1.bf16.msra.mxu0 %v8083
        %10140 = vmatprep.subr.bf16.mxu0 %v8092
        %10141 = vmatpush1.bf16.msra.mxu0 %v8091
        %10142 = vmatprep.subr.bf16.mxu0 %v8100
        %10143 = vmatpush1.bf16.msra.mxu0 %v8099
        %10144 = vmatprep.subr.bf16.mxu0 %v8108
        %10145 = vmatpush1.bf16.msra.mxu0 %v8107
        %10146 = vmatprep.subr.bf16.mxu0 %v8116
        %10147 = vmatpush1.bf16.msra.mxu0 %v8115
        %10148 = vmatprep.subr.bf16.mxu0 %v8124
        %10149 = vmatpush1.bf16.msra.mxu0 %v8123
        %10150 = vmatprep.subr.bf16.mxu0 %v8132
        %10151 = vmatpush1.bf16.msra.mxu0 %v8131
        %10152 = vmatprep.subr.bf16.mxu0 %v8140
        %10153 = vmatpush1.bf16.msra.mxu0 %v8139
        %10154 = vmatprep.subr.bf16.mxu0 %v8148
        %10155 = vmatpush1.bf16.msra.mxu0 %v8147
        %10156 = vmatprep.subr.bf16.mxu0 %v8156
        %10157 = vmatpush1.bf16.msra.mxu0 %v8155
        %10158 = vmatprep.subr.bf16.mxu0 %v8164
        %10159 = vmatpush1.bf16.msra.mxu0 %v8163
        %10160 = vmatprep.subr.bf16.mxu0 %v8172
        %10161 = vmatpush1.bf16.msra.mxu0 %v8171
        %10162 = vmatprep.subr.bf16.mxu0 %v8180
        %10163 = vmatpush1.bf16.msra.mxu0 %v8179
        %10164 = vmatprep.subr.bf16.mxu0 %v8188
        %10165 = vmatpush1.bf16.msra.mxu0 %v8187
        %10166 = vmatprep.subr.bf16.mxu0 %v8196
        %10167 = vmatpush1.bf16.msra.mxu0 %v8195
        %10168 = vmatprep.subr.bf16.mxu0 %v8204
        %10169 = vmatpush1.bf16.msra.mxu0 %v8203
        %10170 = vmatprep.mubr.bf16.mxu0 %v3977
        %10171 = vmatmul.mubr.bf16.gmra.mrb[0].mxu0 %v3976
        %v10172 = vpop.f32.mrb[0].mxu0
        %v10173 = vadd.f32 %v10132, %v10172
        %v10174 = vpop.f32.mrb[0].mxu0
        %v10175 = vadd.f32 %v10134, %v10174
        %v10176 = vpop.f32.mrb[0].mxu0
        %v10177 = vpop.f32.mrb[0].mxu0
        %10178 = vdwg.mxu0
        %10179 = vmatprep.subr.bf16.mxu0 %v8212
        %10180 = vmatpush1.bf16.msra.mxu0 %v8211
        %10181 = vmatprep.subr.bf16.mxu0 %v8220
        %10182 = vmatpush1.bf16.msra.mxu0 %v8219
        %10183 = vmatprep.subr.bf16.mxu0 %v8228
        %10184 = vmatpush1.bf16.msra.mxu0 %v8227
        %10185 = vmatprep.subr.bf16.mxu0 %v8236
        %10186 = vmatpush1.bf16.msra.mxu0 %v8235
        %10187 = vmatprep.subr.bf16.mxu0 %v8244
        %10188 = vmatpush1.bf16.msra.mxu0 %v8243
        %10189 = vmatprep.subr.bf16.mxu0 %v8252
        %10190 = vmatpush1.bf16.msra.mxu0 %v8251
        %10191 = vmatprep.subr.bf16.mxu0 %v8260
        %10192 = vmatpush1.bf16.msra.mxu0 %v8259
        %10193 = vmatprep.subr.bf16.mxu0 %v8268
        %10194 = vmatpush1.bf16.msra.mxu0 %v8267
        %10195 = vmatprep.subr.bf16.mxu0 %v8276
        %10196 = vmatpush1.bf16.msra.mxu0 %v8275
        %10197 = vmatprep.subr.bf16.mxu0 %v8284
        %10198 = vmatpush1.bf16.msra.mxu0 %v8283
        %10199 = vmatprep.subr.bf16.mxu0 %v8292
        %10200 = vmatpush1.bf16.msra.mxu0 %v8291
        %10201 = vmatprep.subr.bf16.mxu0 %v8300
        %10202 = vmatpush1.bf16.msra.mxu0 %v8299
        %10203 = vmatprep.subr.bf16.mxu0 %v8308
        %10204 = vmatpush1.bf16.msra.mxu0 %v8307
        %10205 = vmatprep.subr.bf16.mxu0 %v8316
        %10206 = vmatpush1.bf16.msra.mxu0 %v8315
        %10207 = vmatprep.subr.bf16.mxu0 %v8324
        %10208 = vmatpush1.bf16.msra.mxu0 %v8323
        %10209 = vmatprep.subr.bf16.mxu0 %v8332
        %10210 = vmatpush1.bf16.msra.mxu0 %v8331
        %10211 = vmatprep.mubr.bf16.mxu0 %v3979
        %10212 = vmatmul.mubr.bf16.gmra.mrb[0].mxu0 %v3978
        %v10213 = vpop.f32.mrb[0].mxu0
        %v10214 = vadd.f32 %v10173, %v10213
        %v10215 = vpop.f32.mrb[0].mxu0
        %v10216 = vadd.f32 %v10175, %v10215
        %v10217 = vpop.f32.mrb[0].mxu0
        %v10218 = vpop.f32.mrb[0].mxu0
        %10219 = vdwg.mxu0
        %10220 = vmatprep.subr.bf16.mxu0 %v8340
        %10221 = vmatpush1.bf16.msra.mxu0 %v8339
        %10222 = vmatprep.subr.bf16.mxu0 %v8348
        %10223 = vmatpush1.bf16.msra.mxu0 %v8347
        %10224 = vmatprep.subr.bf16.mxu0 %v8356
        %10225 = vmatpush1.bf16.msra.mxu0 %v8355
        %10226 = vmatprep.subr.bf16.mxu0 %v8364
        %10227 = vmatpush1.bf16.msra.mxu0 %v8363
        %10228 = vmatprep.subr.bf16.mxu0 %v8372
        %10229 = vmatpush1.bf16.msra.mxu0 %v8371
        %10230 = vmatprep.subr.bf16.mxu0 %v8380
        %10231 = vmatpush1.bf16.msra.mxu0 %v8379
        %10232 = vmatprep.subr.bf16.mxu0 %v8388
        %10233 = vmatpush1.bf16.msra.mxu0 %v8387
        %10234 = vmatprep.subr.bf16.mxu0 %v8396
        %10235 = vmatpush1.bf16.msra.mxu0 %v8395
        %10236 = vmatprep.subr.bf16.mxu0 %v8404
        %10237 = vmatpush1.bf16.msra.mxu0 %v8403
        %10238 = vmatprep.subr.bf16.mxu0 %v8412
        %10239 = vmatpush1.bf16.msra.mxu0 %v8411
        %10240 = vmatprep.subr.bf16.mxu0 %v8420
        %10241 = vmatpush1.bf16.msra.mxu0 %v8419
        %10242 = vmatprep.subr.bf16.mxu0 %v8428
        %10243 = vmatpush1.bf16.msra.mxu0 %v8427
        %10244 = vmatprep.subr.bf16.mxu0 %v8436
        %10245 = vmatpush1.bf16.msra.mxu0 %v8435
        %10246 = vmatprep.subr.bf16.mxu0 %v8444
        %10247 = vmatpush1.bf16.msra.mxu0 %v8443
        %10248 = vmatprep.subr.bf16.mxu0 %v8452
        %10249 = vmatpush1.bf16.msra.mxu0 %v8451
        %10250 = vmatprep.subr.bf16.mxu0 %v8460
        %10251 = vmatpush1.bf16.msra.mxu0 %v8459
        %10252 = vmatprep.mubr.bf16.mxu0 %v3981
        %10253 = vmatmul.mubr.bf16.gmra.mrb[0].mxu0 %v3980
        %v10254 = vpop.f32.mrb[0].mxu0
        %v10255 = vadd.f32 %v10214, %v10254
        %v10256 = vpop.f32.mrb[0].mxu0
        %v10257 = vadd.f32 %v10216, %v10256
        %v10258 = vpop.f32.mrb[0].mxu0
        %v10259 = vpop.f32.mrb[0].mxu0
        %10260 = vdwg.mxu0
        %10261 = vmatprep.subr.bf16.mxu0 %v7574
        %10262 = vmatpush1.bf16.msra.mxu0 %v7573
        %10263 = vmatprep.subr.bf16.mxu0 %v7582
        %10264 = vmatpush1.bf16.msra.mxu0 %v7581
        %10265 = vmatprep.subr.bf16.mxu0 %v7590
        %10266 = vmatpush1.bf16.msra.mxu0 %v7589
        %10267 = vmatprep.subr.bf16.mxu0 %v7598
        %10268 = vmatpush1.bf16.msra.mxu0 %v7597
        %10269 = vmatprep.subr.bf16.mxu0 %v7606
        %10270 = vmatpush1.bf16.msra.mxu0 %v7605
        %10271 = vmatprep.subr.bf16.mxu0 %v7614
        %10272 = vmatpush1.bf16.msra.mxu0 %v7613
        %10273 = vmatprep.subr.bf16.mxu0 %v7622
        %10274 = vmatpush1.bf16.msra.mxu0 %v7621
        %10275 = vmatprep.subr.bf16.mxu0 %v7630
        %10276 = vmatpush1.bf16.msra.mxu0 %v7629
        %10277 = vmatprep.subr.bf16.mxu0 %v7638
        %10278 = vmatpush1.bf16.msra.mxu0 %v7637
        %10279 = vmatprep.subr.bf16.mxu0 %v7646
        %10280 = vmatpush1.bf16.msra.mxu0 %v7645
        %10281 = vmatprep.subr.bf16.mxu0 %v7654
        %10282 = vmatpush1.bf16.msra.mxu0 %v7653
        %10283 = vmatprep.subr.bf16.mxu0 %v7662
        %10284 = vmatpush1.bf16.msra.mxu0 %v7661
        %10285 = vmatprep.subr.bf16.mxu0 %v7670
        %10286 = vmatpush1.bf16.msra.mxu0 %v7669
        %10287 = vmatprep.subr.bf16.mxu0 %v7678
        %10288 = vmatpush1.bf16.msra.mxu0 %v7677
        %10289 = vmatprep.subr.bf16.mxu0 %v7686
        %10290 = vmatpush1.bf16.msra.mxu0 %v7685
        %10291 = vmatprep.subr.bf16.mxu0 %v7694
        %10292 = vmatpush1.bf16.msra.mxu0 %v7693
        %10293 = vmatprep.mubr.bf16.mxu0 %v3969
        %10294 = vmatmul.mubr.bf16.gmra.mrb[0].mxu0 %v3968
        %v10295 = vpop.f32.mrb[0].mxu0
        %v10296 = vadd.f32 %v9387, %v10295
        %v10297 = vpop.f32.mrb[0].mxu0
        %v10298 = vadd.f32 %v9391, %v10297
        %v10299 = vpop.f32.mrb[0].mxu0
        %v10300 = vpop.f32.mrb[0].mxu0
        %10301 = vdwg.mxu0
        %10302 = vmatprep.subr.bf16.mxu0 %v7702
        %10303 = vmatpush1.bf16.msra.mxu0 %v7701
        %10304 = vmatprep.subr.bf16.mxu0 %v7710
        %10305 = vmatpush1.bf16.msra.mxu0 %v7709
        %10306 = vmatprep.subr.bf16.mxu0 %v7718
        %10307 = vmatpush1.bf16.msra.mxu0 %v7717
        %10308 = vmatprep.subr.bf16.mxu0 %v7726
        %10309 = vmatpush1.bf16.msra.mxu0 %v7725
        %10310 = vmatprep.subr.bf16.mxu0 %v7734
        %10311 = vmatpush1.bf16.msra.mxu0 %v7733
        %10312 = vmatprep.subr.bf16.mxu0 %v7742
        %10313 = vmatpush1.bf16.msra.mxu0 %v7741
        %10314 = vmatprep.subr.bf16.mxu0 %v7750
        %10315 = vmatpush1.bf16.msra.mxu0 %v7749
        %10316 = vmatprep.subr.bf16.mxu0 %v7758
        %10317 = vmatpush1.bf16.msra.mxu0 %v7757
        %10318 = vmatprep.subr.bf16.mxu0 %v7766
        %10319 = vmatpush1.bf16.msra.mxu0 %v7765
        %10320 = vmatprep.subr.bf16.mxu0 %v7774
        %10321 = vmatpush1.bf16.msra.mxu0 %v7773
        %10322 = vmatprep.subr.bf16.mxu0 %v7782
        %10323 = vmatpush1.bf16.msra.mxu0 %v7781
        %10324 = vmatprep.subr.bf16.mxu0 %v7790
        %10325 = vmatpush1.bf16.msra.mxu0 %v7789
        %10326 = vmatprep.subr.bf16.mxu0 %v7798
        %10327 = vmatpush1.bf16.msra.mxu0 %v7797
        %10328 = vmatprep.subr.bf16.mxu0 %v7806
        %10329 = vmatpush1.bf16.msra.mxu0 %v7805
        %10330 = vmatprep.subr.bf16.mxu0 %v7814
        %10331 = vmatpush1.bf16.msra.mxu0 %v7813
        %10332 = vmatprep.subr.bf16.mxu0 %v7822
        %10333 = vmatpush1.bf16.msra.mxu0 %v7821
        %10334 = vmatprep.mubr.bf16.mxu0 %v3971
        %10335 = vmatmul.mubr.bf16.gmra.mrb[0].mxu0 %v3970
        %v10336 = vpop.f32.mrb[0].mxu0
        %v10337 = vadd.f32 %v10296, %v10336
        %v10338 = vpop.f32.mrb[0].mxu0
        %v10339 = vadd.f32 %v10298, %v10338
        %v10340 = vpop.f32.mrb[0].mxu0
        %v10341 = vpop.f32.mrb[0].mxu0
        %10342 = vdwg.mxu0
        %10343 = vmatprep.subr.bf16.mxu0 %v7830
        %10344 = vmatpush1.bf16.msra.mxu0 %v7829
        %10345 = vmatprep.subr.bf16.mxu0 %v7838
        %10346 = vmatpush1.bf16.msra.mxu0 %v7837
        %10347 = vmatprep.subr.bf16.mxu0 %v7846
        %10348 = vmatpush1.bf16.msra.mxu0 %v7845
        %10349 = vmatprep.subr.bf16.mxu0 %v7854
        %10350 = vmatpush1.bf16.msra.mxu0 %v7853
        %10351 = vmatprep.subr.bf16.mxu0 %v7862
        %10352 = vmatpush1.bf16.msra.mxu0 %v7861
        %10353 = vmatprep.subr.bf16.mxu0 %v7870
        %10354 = vmatpush1.bf16.msra.mxu0 %v7869
        %10355 = vmatprep.subr.bf16.mxu0 %v7878
        %10356 = vmatpush1.bf16.msra.mxu0 %v7877
        %10357 = vmatprep.subr.bf16.mxu0 %v7886
        %10358 = vmatpush1.bf16.msra.mxu0 %v7885
        %10359 = vmatprep.subr.bf16.mxu0 %v7894
        %10360 = vmatpush1.bf16.msra.mxu0 %v7893
        %10361 = vmatprep.subr.bf16.mxu0 %v7902
        %10362 = vmatpush1.bf16.msra.mxu0 %v7901
        %10363 = vmatprep.subr.bf16.mxu0 %v7910
        %10364 = vmatpush1.bf16.msra.mxu0 %v7909
        %10365 = vmatprep.subr.bf16.mxu0 %v7918
        %10366 = vmatpush1.bf16.msra.mxu0 %v7917
        %10367 = vmatprep.subr.bf16.mxu0 %v7926
        %10368 = vmatpush1.bf16.msra.mxu0 %v7925
        %10369 = vmatprep.subr.bf16.mxu0 %v7934
        %10370 = vmatpush1.bf16.msra.mxu0 %v7933
        %10371 = vmatprep.subr.bf16.mxu0 %v7942
        %10372 = vmatpush1.bf16.msra.mxu0 %v7941
        %10373 = vmatprep.subr.bf16.mxu0 %v7950
        %10374 = vmatpush1.bf16.msra.mxu0 %v7949
        %10375 = vmatprep.mubr.bf16.mxu0 %v3973
        %10376 = vmatmul.mubr.bf16.gmra.mrb[0].mxu0 %v3972
        %v10377 = vpop.f32.mrb[0].mxu0
        %v10378 = vadd.f32 %v10337, %v10377
        %v10379 = vpop.f32.mrb[0].mxu0
        %v10380 = vadd.f32 %v10339, %v10379
        %v10381 = vpop.f32.mrb[0].mxu0
        %v10382 = vpop.f32.mrb[0].mxu0
        %10383 = vdwg.mxu0
        %10384 = vmatprep.subr.bf16.mxu0 %v7958
        %10385 = vmatpush1.bf16.msra.mxu0 %v7957
        %10386 = vmatprep.subr.bf16.mxu0 %v7966
        %10387 = vmatpush1.bf16.msra.mxu0 %v7965
        %10388 = vmatprep.subr.bf16.mxu0 %v7974
        %10389 = vmatpush1.bf16.msra.mxu0 %v7973
        %10390 = vmatprep.subr.bf16.mxu0 %v7982
        %10391 = vmatpush1.bf16.msra.mxu0 %v7981
        %10392 = vmatprep.subr.bf16.mxu0 %v7990
        %10393 = vmatpush1.bf16.msra.mxu0 %v7989
        %10394 = vmatprep.subr.bf16.mxu0 %v7998
        %10395 = vmatpush1.bf16.msra.mxu0 %v7997
        %10396 = vmatprep.subr.bf16.mxu0 %v8006
        %10397 = vmatpush1.bf16.msra.mxu0 %v8005
        %10398 = vmatprep.subr.bf16.mxu0 %v8014
        %10399 = vmatpush1.bf16.msra.mxu0 %v8013
        %10400 = vmatprep.subr.bf16.mxu0 %v8022
        %10401 = vmatpush1.bf16.msra.mxu0 %v8021
        %10402 = vmatprep.subr.bf16.mxu0 %v8030
        %10403 = vmatpush1.bf16.msra.mxu0 %v8029
        %10404 = vmatprep.subr.bf16.mxu0 %v8038
        %10405 = vmatpush1.bf16.msra.mxu0 %v8037
        %10406 = vmatprep.subr.bf16.mxu0 %v8046
        %10407 = vmatpush1.bf16.msra.mxu0 %v8045
        %10408 = vmatprep.subr.bf16.mxu0 %v8054
        %10409 = vmatpush1.bf16.msra.mxu0 %v8053
        %10410 = vmatprep.subr.bf16.mxu0 %v8062
        %10411 = vmatpush1.bf16.msra.mxu0 %v8061
        %10412 = vmatprep.subr.bf16.mxu0 %v8070
        %10413 = vmatpush1.bf16.msra.mxu0 %v8069
        %10414 = vmatprep.subr.bf16.mxu0 %v8078
        %10415 = vmatpush1.bf16.msra.mxu0 %v8077
        %10416 = vmatprep.mubr.bf16.mxu0 %v3975
        %10417 = vmatmul.mubr.bf16.gmra.mrb[0].mxu0 %v3974
        %v10418 = vpop.f32.mrb[0].mxu0
        %v10419 = vadd.f32 %v10378, %v10418
        %v10420 = vpop.f32.mrb[0].mxu0
        %v10421 = vadd.f32 %v10380, %v10420
        %v10422 = vpop.f32.mrb[0].mxu0
        %v10423 = vpop.f32.mrb[0].mxu0
        %10424 = vdwg.mxu0
        %10425 = vmatprep.subr.bf16.mxu0 %v8086
        %10426 = vmatpush1.bf16.msra.mxu0 %v8085
        %10427 = vmatprep.subr.bf16.mxu0 %v8094
        %10428 = vmatpush1.bf16.msra.mxu0 %v8093
        %10429 = vmatprep.subr.bf16.mxu0 %v8102
        %10430 = vmatpush1.bf16.msra.mxu0 %v8101
        %10431 = vmatprep.subr.bf16.mxu0 %v8110
        %10432 = vmatpush1.bf16.msra.mxu0 %v8109
        %10433 = vmatprep.subr.bf16.mxu0 %v8118
        %10434 = vmatpush1.bf16.msra.mxu0 %v8117
        %10435 = vmatprep.subr.bf16.mxu0 %v8126
        %10436 = vmatpush1.bf16.msra.mxu0 %v8125
        %10437 = vmatprep.subr.bf16.mxu0 %v8134
        %10438 = vmatpush1.bf16.msra.mxu0 %v8133
        %10439 = vmatprep.subr.bf16.mxu0 %v8142
        %10440 = vmatpush1.bf16.msra.mxu0 %v8141
        %10441 = vmatprep.subr.bf16.mxu0 %v8150
        %10442 = vmatpush1.bf16.msra.mxu0 %v8149
        %10443 = vmatprep.subr.bf16.mxu0 %v8158
        %10444 = vmatpush1.bf16.msra.mxu0 %v8157
        %10445 = vmatprep.subr.bf16.mxu0 %v8166
        %10446 = vmatpush1.bf16.msra.mxu0 %v8165
        %10447 = vmatprep.subr.bf16.mxu0 %v8174
        %10448 = vmatpush1.bf16.msra.mxu0 %v8173
        %10449 = vmatprep.subr.bf16.mxu0 %v8182
        %10450 = vmatpush1.bf16.msra.mxu0 %v8181
        %10451 = vmatprep.subr.bf16.mxu0 %v8190
        %10452 = vmatpush1.bf16.msra.mxu0 %v8189
        %10453 = vmatprep.subr.bf16.mxu0 %v8198
        %10454 = vmatpush1.bf16.msra.mxu0 %v8197
        %10455 = vmatprep.subr.bf16.mxu0 %v8206
        %10456 = vmatpush1.bf16.msra.mxu0 %v8205
        %10457 = vmatprep.mubr.bf16.mxu0 %v3977
        %10458 = vmatmul.mubr.bf16.gmra.mrb[0].mxu0 %v3976
        %v10459 = vpop.f32.mrb[0].mxu0
        %v10460 = vadd.f32 %v10419, %v10459
        %v10461 = vpop.f32.mrb[0].mxu0
        %v10462 = vadd.f32 %v10421, %v10461
        %v10463 = vpop.f32.mrb[0].mxu0
        %v10464 = vpop.f32.mrb[0].mxu0
        %10465 = vdwg.mxu0
        %10466 = vmatprep.subr.bf16.mxu0 %v8214
        %10467 = vmatpush1.bf16.msra.mxu0 %v8213
        %10468 = vmatprep.subr.bf16.mxu0 %v8222
        %10469 = vmatpush1.bf16.msra.mxu0 %v8221
        %10470 = vmatprep.subr.bf16.mxu0 %v8230
        %10471 = vmatpush1.bf16.msra.mxu0 %v8229
        %10472 = vmatprep.subr.bf16.mxu0 %v8238
        %10473 = vmatpush1.bf16.msra.mxu0 %v8237
        %10474 = vmatprep.subr.bf16.mxu0 %v8246
        %10475 = vmatpush1.bf16.msra.mxu0 %v8245
        %10476 = vmatprep.subr.bf16.mxu0 %v8254
        %10477 = vmatpush1.bf16.msra.mxu0 %v8253
        %10478 = vmatprep.subr.bf16.mxu0 %v8262
        %10479 = vmatpush1.bf16.msra.mxu0 %v8261
        %10480 = vmatprep.subr.bf16.mxu0 %v8270
        %10481 = vmatpush1.bf16.msra.mxu0 %v8269
        %10482 = vmatprep.subr.bf16.mxu0 %v8278
        %10483 = vmatpush1.bf16.msra.mxu0 %v8277
        %10484 = vmatprep.subr.bf16.mxu0 %v8286
        %10485 = vmatpush1.bf16.msra.mxu0 %v8285
        %10486 = vmatprep.subr.bf16.mxu0 %v8294
        %10487 = vmatpush1.bf16.msra.mxu0 %v8293
        %10488 = vmatprep.subr.bf16.mxu0 %v8302
        %10489 = vmatpush1.bf16.msra.mxu0 %v8301
        %10490 = vmatprep.subr.bf16.mxu0 %v8310
        %10491 = vmatpush1.bf16.msra.mxu0 %v8309
        %10492 = vmatprep.subr.bf16.mxu0 %v8318
        %10493 = vmatpush1.bf16.msra.mxu0 %v8317
        %10494 = vmatprep.subr.bf16.mxu0 %v8326
        %10495 = vmatpush1.bf16.msra.mxu0 %v8325
        %10496 = vmatprep.subr.bf16.mxu0 %v8334
        %10497 = vmatpush1.bf16.msra.mxu0 %v8333
        %10498 = vmatprep.mubr.bf16.mxu0 %v3979
        %10499 = vmatmul.mubr.bf16.gmra.mrb[0].mxu0 %v3978
        %v10500 = vpop.f32.mrb[0].mxu0
        %v10501 = vadd.f32 %v10460, %v10500
        %v10502 = vpop.f32.mrb[0].mxu0
        %v10503 = vadd.f32 %v10462, %v10502
        %v10504 = vpop.f32.mrb[0].mxu0
        %v10505 = vpop.f32.mrb[0].mxu0
        %10506 = vdwg.mxu0
        %10507 = vmatprep.subr.bf16.mxu0 %v8342
        %10508 = vmatpush1.bf16.msra.mxu0 %v8341
        %10509 = vmatprep.subr.bf16.mxu0 %v8350
        %10510 = vmatpush1.bf16.msra.mxu0 %v8349
        %10511 = vmatprep.subr.bf16.mxu0 %v8358
        %10512 = vmatpush1.bf16.msra.mxu0 %v8357
        %10513 = vmatprep.subr.bf16.mxu0 %v8366
        %10514 = vmatpush1.bf16.msra.mxu0 %v8365
        %10515 = vmatprep.subr.bf16.mxu0 %v8374
        %10516 = vmatpush1.bf16.msra.mxu0 %v8373
        %10517 = vmatprep.subr.bf16.mxu0 %v8382
        %10518 = vmatpush1.bf16.msra.mxu0 %v8381
        %10519 = vmatprep.subr.bf16.mxu0 %v8390
        %10520 = vmatpush1.bf16.msra.mxu0 %v8389
        %10521 = vmatprep.subr.bf16.mxu0 %v8398
        %10522 = vmatpush1.bf16.msra.mxu0 %v8397
        %10523 = vmatprep.subr.bf16.mxu0 %v8406
        %10524 = vmatpush1.bf16.msra.mxu0 %v8405
        %10525 = vmatprep.subr.bf16.mxu0 %v8414
        %10526 = vmatpush1.bf16.msra.mxu0 %v8413
        %10527 = vmatprep.subr.bf16.mxu0 %v8422
        %10528 = vmatpush1.bf16.msra.mxu0 %v8421
        %10529 = vmatprep.subr.bf16.mxu0 %v8430
        %10530 = vmatpush1.bf16.msra.mxu0 %v8429
        %10531 = vmatprep.subr.bf16.mxu0 %v8438
        %10532 = vmatpush1.bf16.msra.mxu0 %v8437
        %10533 = vmatprep.subr.bf16.mxu0 %v8446
        %10534 = vmatpush1.bf16.msra.mxu0 %v8445
        %10535 = vmatprep.subr.bf16.mxu0 %v8454
        %10536 = vmatpush1.bf16.msra.mxu0 %v8453
        %10537 = vmatprep.subr.bf16.mxu0 %v8462
        %10538 = vmatpush1.bf16.msra.mxu0 %v8461
        %10539 = vmatprep.mubr.bf16.mxu0 %v3981
        %10540 = vmatmul.mubr.bf16.gmra.mrb[0].mxu0 %v3980
        %v10541 = vpop.f32.mrb[0].mxu0
        %v10542 = vadd.f32 %v10501, %v10541
        %v10543 = vpop.f32.mrb[0].mxu0
        %v10544 = vadd.f32 %v10503, %v10543
        %v10545 = vpop.f32.mrb[0].mxu0
        %v10546 = vpop.f32.mrb[0].mxu0
        %10547 = vdwg.mxu0
        %v10548 = vmax.f32 %v9681, 0.0
        %v10549 = vmax.f32 %v9683, 0.0
        %v10550 = vmax.f32 %v9968, 0.0
        %v10551 = vmax.f32 %v9970, 0.0
        %v10552 = vmax.f32 %v10255, 0.0
        %v10553 = vmax.f32 %v10257, 0.0
        %v10554 = vmax.f32 %v10542, 0.0
        %v10555 = vmax.f32 %v10544, 0.0
        %v10556 = vpack.c.bf16 %v10548, %v10548
        %v10557 = vpack.c.bf16 %v10549, %v10549
        %v10558 = vpack.c.bf16 %v10550, %v10550
        %v10559 = vpack.c.bf16 %v10551, %v10551
        %v10560 = vpack.c.bf16 %v10552, %v10552
        %v10561 = vpack.c.bf16 %v10553, %v10553
        %v10562 = vpack.c.bf16 %v10554, %v10554
        %v10563 = vpack.c.bf16 %v10555, %v10555
        %v10564 = vld [vmem:[#allocation12] sm:$0xff]
        %v10565 = vld [vmem:[#allocation12 + $0x8] sm:$0xff]
        %v10566 = vld [vmem:[#allocation12 + $0x10] sm:$0xff]
        %v10567 = vld [vmem:[#allocation12 + $0x18] sm:$0xff]
        %v10568 = vld [vmem:[#allocation12 + $0x20] sm:$0xff]
        %v10569 = vld [vmem:[#allocation12 + $0x28] sm:$0xff]
        %v10570 = vld [vmem:[#allocation12 + $0x30] sm:$0xff]
        %v10571 = vld [vmem:[#allocation12 + $0x38] sm:$0xff]
        %v10572 = vld [vmem:[#allocation12 + $0x40] sm:$0xff]
        %v10573 = vld [vmem:[#allocation12 + $0x48] sm:$0xff]
        %v10574 = vld [vmem:[#allocation12 + $0x50] sm:$0xff]
        %v10575 = vld [vmem:[#allocation12 + $0x58] sm:$0xff]
        %v10576 = vld [vmem:[#allocation12 + $0x60] sm:$0xff]
        %v10577 = vld [vmem:[#allocation12 + $0x68] sm:$0xff]
        %v10578 = vld [vmem:[#allocation12 + $0x70] sm:$0xff]
        %v10579 = vld [vmem:[#allocation12 + $0x78] sm:$0xff]
        %v10580 = vld [vmem:[#allocation12 + $0x80] sm:$0xff]
        %v10581 = vld [vmem:[#allocation12 + $0x88] sm:$0xff]
        %v10582 = vld [vmem:[#allocation12 + $0x90] sm:$0xff]
        %v10583 = vld [vmem:[#allocation12 + $0x98] sm:$0xff]
        %v10584 = vld [vmem:[#allocation12 + $0xa0] sm:$0xff]
        %v10585 = vld [vmem:[#allocation12 + $0xa8] sm:$0xff]
        %v10586 = vld [vmem:[#allocation12 + $0xb0] sm:$0xff]
        %v10587 = vld [vmem:[#allocation12 + $0xb8] sm:$0xff]
        %v10588 = vld [vmem:[#allocation12 + $0xc0] sm:$0xff]
        %v10589 = vld [vmem:[#allocation12 + $0xc8] sm:$0xff]
        %v10590 = vld [vmem:[#allocation12 + $0xd0] sm:$0xff]
        %v10591 = vld [vmem:[#allocation12 + $0xd8] sm:$0xff]
        %v10592 = vld [vmem:[#allocation12 + $0xe0] sm:$0xff]
        %v10593 = vld [vmem:[#allocation12 + $0xe8] sm:$0xff]
        %v10594 = vld [vmem:[#allocation12 + $0xf0] sm:$0xff]
        %v10595 = vld [vmem:[#allocation12 + $0xf8] sm:$0xff]
        %v10596 = vld [vmem:[#allocation12 + $0x100] sm:$0xff]
        %v10597 = vld [vmem:[#allocation12 + $0x108] sm:$0xff]
        %v10598 = vld [vmem:[#allocation12 + $0x110] sm:$0xff]
        %v10599 = vld [vmem:[#allocation12 + $0x118] sm:$0xff]
        %v10600 = vld [vmem:[#allocation12 + $0x120] sm:$0xff]
        %v10601 = vld [vmem:[#allocation12 + $0x128] sm:$0xff]
        %v10602 = vld [vmem:[#allocation12 + $0x130] sm:$0xff]
        %v10603 = vld [vmem:[#allocation12 + $0x138] sm:$0xff]
        %v10604 = vld [vmem:[#allocation12 + $0x140] sm:$0xff]
        %v10605 = vld [vmem:[#allocation12 + $0x148] sm:$0xff]
        %v10606 = vld [vmem:[#allocation12 + $0x150] sm:$0xff]
        %v10607 = vld [vmem:[#allocation12 + $0x158] sm:$0xff]
        %v10608 = vld [vmem:[#allocation12 + $0x160] sm:$0xff]
        %v10609 = vld [vmem:[#allocation12 + $0x168] sm:$0xff]
        %v10610 = vld [vmem:[#allocation12 + $0x170] sm:$0xff]
        %v10611 = vld [vmem:[#allocation12 + $0x178] sm:$0xff]
        %v10612 = vld [vmem:[#allocation12 + $0x180] sm:$0xff]
        %v10613 = vld [vmem:[#allocation12 + $0x188] sm:$0xff]
        %v10614 = vld [vmem:[#allocation12 + $0x190] sm:$0xff]
        %v10615 = vld [vmem:[#allocation12 + $0x198] sm:$0xff]
        %v10616 = vld [vmem:[#allocation12 + $0x1a0] sm:$0xff]
        %v10617 = vld [vmem:[#allocation12 + $0x1a8] sm:$0xff]
        %v10618 = vld [vmem:[#allocation12 + $0x1b0] sm:$0xff]
        %v10619 = vld [vmem:[#allocation12 + $0x1b8] sm:$0xff]
        %v10620 = vld [vmem:[#allocation12 + $0x1c0] sm:$0xff]
        %v10621 = vld [vmem:[#allocation12 + $0x1c8] sm:$0xff]
        %v10622 = vld [vmem:[#allocation12 + $0x1d0] sm:$0xff]
        %v10623 = vld [vmem:[#allocation12 + $0x1d8] sm:$0xff]
        %v10624 = vld [vmem:[#allocation12 + $0x1e0] sm:$0xff]
        %v10625 = vld [vmem:[#allocation12 + $0x1e8] sm:$0xff]
        %v10626 = vld [vmem:[#allocation12 + $0x1f0] sm:$0xff]
        %v10627 = vld [vmem:[#allocation12 + $0x1f8] sm:$0xff]
        %v10628 = vld [vmem:[#allocation12 + $0x200] sm:$0xff]
        %v10629 = vld [vmem:[#allocation12 + $0x208] sm:$0xff]
        %v10630 = vld [vmem:[#allocation12 + $0x210] sm:$0xff]
        %v10631 = vld [vmem:[#allocation12 + $0x218] sm:$0xff]
        %v10632 = vld [vmem:[#allocation12 + $0x220] sm:$0xff]
        %v10633 = vld [vmem:[#allocation12 + $0x228] sm:$0xff]
        %v10634 = vld [vmem:[#allocation12 + $0x230] sm:$0xff]
        %v10635 = vld [vmem:[#allocation12 + $0x238] sm:$0xff]
        %v10636 = vld [vmem:[#allocation12 + $0x240] sm:$0xff]
        %v10637 = vld [vmem:[#allocation12 + $0x248] sm:$0xff]
        %v10638 = vld [vmem:[#allocation12 + $0x250] sm:$0xff]
        %v10639 = vld [vmem:[#allocation12 + $0x258] sm:$0xff]
        %v10640 = vld [vmem:[#allocation12 + $0x260] sm:$0xff]
        %v10641 = vld [vmem:[#allocation12 + $0x268] sm:$0xff]
        %v10642 = vld [vmem:[#allocation12 + $0x270] sm:$0xff]
        %v10643 = vld [vmem:[#allocation12 + $0x278] sm:$0xff]
        %v10644 = vld [vmem:[#allocation12 + $0x280] sm:$0xff]
        %v10645 = vld [vmem:[#allocation12 + $0x288] sm:$0xff]
        %v10646 = vld [vmem:[#allocation12 + $0x290] sm:$0xff]
        %v10647 = vld [vmem:[#allocation12 + $0x298] sm:$0xff]
        %v10648 = vld [vmem:[#allocation12 + $0x2a0] sm:$0xff]
        %v10649 = vld [vmem:[#allocation12 + $0x2a8] sm:$0xff]
        %v10650 = vld [vmem:[#allocation12 + $0x2b0] sm:$0xff]
        %v10651 = vld [vmem:[#allocation12 + $0x2b8] sm:$0xff]
        %v10652 = vld [vmem:[#allocation12 + $0x2c0] sm:$0xff]
        %v10653 = vld [vmem:[#allocation12 + $0x2c8] sm:$0xff]
        %v10654 = vld [vmem:[#allocation12 + $0x2d0] sm:$0xff]
        %v10655 = vld [vmem:[#allocation12 + $0x2d8] sm:$0xff]
        %v10656 = vld [vmem:[#allocation12 + $0x2e0] sm:$0xff]
        %v10657 = vld [vmem:[#allocation12 + $0x2e8] sm:$0xff]
        %v10658 = vld [vmem:[#allocation12 + $0x2f0] sm:$0xff]
        %v10659 = vld [vmem:[#allocation12 + $0x2f8] sm:$0xff]
        %v10660 = vld [vmem:[#allocation12 + $0x300] sm:$0xff]
        %v10661 = vld [vmem:[#allocation12 + $0x308] sm:$0xff]
        %v10662 = vld [vmem:[#allocation12 + $0x310] sm:$0xff]
        %v10663 = vld [vmem:[#allocation12 + $0x318] sm:$0xff]
        %v10664 = vld [vmem:[#allocation12 + $0x320] sm:$0xff]
        %v10665 = vld [vmem:[#allocation12 + $0x328] sm:$0xff]
        %v10666 = vld [vmem:[#allocation12 + $0x330] sm:$0xff]
        %v10667 = vld [vmem:[#allocation12 + $0x338] sm:$0xff]
        %v10668 = vld [vmem:[#allocation12 + $0x340] sm:$0xff]
        %v10669 = vld [vmem:[#allocation12 + $0x348] sm:$0xff]
        %v10670 = vld [vmem:[#allocation12 + $0x350] sm:$0xff]
        %v10671 = vld [vmem:[#allocation12 + $0x358] sm:$0xff]
        %v10672 = vld [vmem:[#allocation12 + $0x360] sm:$0xff]
        %v10673 = vld [vmem:[#allocation12 + $0x368] sm:$0xff]
        %v10674 = vld [vmem:[#allocation12 + $0x370] sm:$0xff]
        %v10675 = vld [vmem:[#allocation12 + $0x378] sm:$0xff]
        %v10676 = vld [vmem:[#allocation12 + $0x380] sm:$0xff]
        %v10677 = vld [vmem:[#allocation12 + $0x388] sm:$0xff]
        %v10678 = vld [vmem:[#allocation12 + $0x390] sm:$0xff]
        %v10679 = vld [vmem:[#allocation12 + $0x398] sm:$0xff]
        %v10680 = vld [vmem:[#allocation12 + $0x3a0] sm:$0xff]
        %v10681 = vld [vmem:[#allocation12 + $0x3a8] sm:$0xff]
        %v10682 = vld [vmem:[#allocation12 + $0x3b0] sm:$0xff]
        %v10683 = vld [vmem:[#allocation12 + $0x3b8] sm:$0xff]
        %v10684 = vld [vmem:[#allocation12 + $0x3c0] sm:$0xff]
        %v10685 = vld [vmem:[#allocation12 + $0x3c8] sm:$0xff]
        %v10686 = vld [vmem:[#allocation12 + $0x3d0] sm:$0xff]
        %v10687 = vld [vmem:[#allocation12 + $0x3d8] sm:$0xff]
        %v10688 = vld [vmem:[#allocation12 + $0x3e0] sm:$0xff]
        %v10689 = vld [vmem:[#allocation12 + $0x3e8] sm:$0xff]
        %v10690 = vld [vmem:[#allocation12 + $0x3f0] sm:$0xff]
        %v10691 = vld [vmem:[#allocation12 + $0x3f8] sm:$0xff]
        %v10692 = vld [vmem:[#allocation12 + $0x400] sm:$0xff]
        %v10693 = vld [vmem:[#allocation12 + $0x408] sm:$0xff]
        %v10694 = vld [vmem:[#allocation12 + $0x410] sm:$0xff]
        %v10695 = vld [vmem:[#allocation12 + $0x418] sm:$0xff]
        %v10696 = vld [vmem:[#allocation12 + $0x420] sm:$0xff]
        %v10697 = vld [vmem:[#allocation12 + $0x428] sm:$0xff]
        %v10698 = vld [vmem:[#allocation12 + $0x430] sm:$0xff]
        %v10699 = vld [vmem:[#allocation12 + $0x438] sm:$0xff]
        %v10700 = vld [vmem:[#allocation12 + $0x440] sm:$0xff]
        %v10701 = vld [vmem:[#allocation12 + $0x448] sm:$0xff]
        %v10702 = vld [vmem:[#allocation12 + $0x450] sm:$0xff]
        %v10703 = vld [vmem:[#allocation12 + $0x458] sm:$0xff]
        %v10704 = vld [vmem:[#allocation12 + $0x460] sm:$0xff]
        %v10705 = vld [vmem:[#allocation12 + $0x468] sm:$0xff]
        %v10706 = vld [vmem:[#allocation12 + $0x470] sm:$0xff]
        %v10707 = vld [vmem:[#allocation12 + $0x478] sm:$0xff]
        %v10708 = vld [vmem:[#allocation12 + $0x480] sm:$0xff]
        %v10709 = vld [vmem:[#allocation12 + $0x488] sm:$0xff]
        %v10710 = vld [vmem:[#allocation12 + $0x490] sm:$0xff]
        %v10711 = vld [vmem:[#allocation12 + $0x498] sm:$0xff]
        %v10712 = vld [vmem:[#allocation12 + $0x4a0] sm:$0xff]
        %v10713 = vld [vmem:[#allocation12 + $0x4a8] sm:$0xff]
        %v10714 = vld [vmem:[#allocation12 + $0x4b0] sm:$0xff]
        %v10715 = vld [vmem:[#allocation12 + $0x4b8] sm:$0xff]
        %v10716 = vld [vmem:[#allocation12 + $0x4c0] sm:$0xff]
        %v10717 = vld [vmem:[#allocation12 + $0x4c8] sm:$0xff]
        %v10718 = vld [vmem:[#allocation12 + $0x4d0] sm:$0xff]
        %v10719 = vld [vmem:[#allocation12 + $0x4d8] sm:$0xff]
        %v10720 = vld [vmem:[#allocation12 + $0x4e0] sm:$0xff]
        %v10721 = vld [vmem:[#allocation12 + $0x4e8] sm:$0xff]
        %v10722 = vld [vmem:[#allocation12 + $0x4f0] sm:$0xff]
        %v10723 = vld [vmem:[#allocation12 + $0x4f8] sm:$0xff]
        %v10724 = vld [vmem:[#allocation12 + $0x500] sm:$0xff]
        %v10725 = vld [vmem:[#allocation12 + $0x508] sm:$0xff]
        %v10726 = vld [vmem:[#allocation12 + $0x510] sm:$0xff]
        %v10727 = vld [vmem:[#allocation12 + $0x518] sm:$0xff]
        %v10728 = vld [vmem:[#allocation12 + $0x520] sm:$0xff]
        %v10729 = vld [vmem:[#allocation12 + $0x528] sm:$0xff]
        %v10730 = vld [vmem:[#allocation12 + $0x530] sm:$0xff]
        %v10731 = vld [vmem:[#allocation12 + $0x538] sm:$0xff]
        %v10732 = vld [vmem:[#allocation12 + $0x540] sm:$0xff]
        %v10733 = vld [vmem:[#allocation12 + $0x548] sm:$0xff]
        %v10734 = vld [vmem:[#allocation12 + $0x550] sm:$0xff]
        %v10735 = vld [vmem:[#allocation12 + $0x558] sm:$0xff]
        %v10736 = vld [vmem:[#allocation12 + $0x560] sm:$0xff]
        %v10737 = vld [vmem:[#allocation12 + $0x568] sm:$0xff]
        %v10738 = vld [vmem:[#allocation12 + $0x570] sm:$0xff]
        %v10739 = vld [vmem:[#allocation12 + $0x578] sm:$0xff]
        %v10740 = vld [vmem:[#allocation12 + $0x580] sm:$0xff]
        %v10741 = vld [vmem:[#allocation12 + $0x588] sm:$0xff]
        %v10742 = vld [vmem:[#allocation12 + $0x590] sm:$0xff]
        %v10743 = vld [vmem:[#allocation12 + $0x598] sm:$0xff]
        %v10744 = vld [vmem:[#allocation12 + $0x5a0] sm:$0xff]
        %v10745 = vld [vmem:[#allocation12 + $0x5a8] sm:$0xff]
        %v10746 = vld [vmem:[#allocation12 + $0x5b0] sm:$0xff]
        %v10747 = vld [vmem:[#allocation12 + $0x5b8] sm:$0xff]
        %v10748 = vld [vmem:[#allocation12 + $0x5c0] sm:$0xff]
        %v10749 = vld [vmem:[#allocation12 + $0x5c8] sm:$0xff]
        %v10750 = vld [vmem:[#allocation12 + $0x5d0] sm:$0xff]
        %v10751 = vld [vmem:[#allocation12 + $0x5d8] sm:$0xff]
        %v10752 = vld [vmem:[#allocation12 + $0x5e0] sm:$0xff]
        %v10753 = vld [vmem:[#allocation12 + $0x5e8] sm:$0xff]
        %v10754 = vld [vmem:[#allocation12 + $0x5f0] sm:$0xff]
        %v10755 = vld [vmem:[#allocation12 + $0x5f8] sm:$0xff]
        %v10756 = vld [vmem:[#allocation12 + $0x600] sm:$0xff]
        %v10757 = vld [vmem:[#allocation12 + $0x608] sm:$0xff]
        %v10758 = vld [vmem:[#allocation12 + $0x610] sm:$0xff]
        %v10759 = vld [vmem:[#allocation12 + $0x618] sm:$0xff]
        %v10760 = vld [vmem:[#allocation12 + $0x620] sm:$0xff]
        %v10761 = vld [vmem:[#allocation12 + $0x628] sm:$0xff]
        %v10762 = vld [vmem:[#allocation12 + $0x630] sm:$0xff]
        %v10763 = vld [vmem:[#allocation12 + $0x638] sm:$0xff]
        %v10764 = vld [vmem:[#allocation12 + $0x640] sm:$0xff]
        %v10765 = vld [vmem:[#allocation12 + $0x648] sm:$0xff]
        %v10766 = vld [vmem:[#allocation12 + $0x650] sm:$0xff]
        %v10767 = vld [vmem:[#allocation12 + $0x658] sm:$0xff]
        %v10768 = vld [vmem:[#allocation12 + $0x660] sm:$0xff]
        %v10769 = vld [vmem:[#allocation12 + $0x668] sm:$0xff]
        %v10770 = vld [vmem:[#allocation12 + $0x670] sm:$0xff]
        %v10771 = vld [vmem:[#allocation12 + $0x678] sm:$0xff]
        %v10772 = vld [vmem:[#allocation12 + $0x680] sm:$0xff]
        %v10773 = vld [vmem:[#allocation12 + $0x688] sm:$0xff]
        %v10774 = vld [vmem:[#allocation12 + $0x690] sm:$0xff]
        %v10775 = vld [vmem:[#allocation12 + $0x698] sm:$0xff]
        %v10776 = vld [vmem:[#allocation12 + $0x6a0] sm:$0xff]
        %v10777 = vld [vmem:[#allocation12 + $0x6a8] sm:$0xff]
        %v10778 = vld [vmem:[#allocation12 + $0x6b0] sm:$0xff]
        %v10779 = vld [vmem:[#allocation12 + $0x6b8] sm:$0xff]
        %v10780 = vld [vmem:[#allocation12 + $0x6c0] sm:$0xff]
        %v10781 = vld [vmem:[#allocation12 + $0x6c8] sm:$0xff]
        %v10782 = vld [vmem:[#allocation12 + $0x6d0] sm:$0xff]
        %v10783 = vld [vmem:[#allocation12 + $0x6d8] sm:$0xff]
        %v10784 = vld [vmem:[#allocation12 + $0x6e0] sm:$0xff]
        %v10785 = vld [vmem:[#allocation12 + $0x6e8] sm:$0xff]
        %v10786 = vld [vmem:[#allocation12 + $0x6f0] sm:$0xff]
        %v10787 = vld [vmem:[#allocation12 + $0x6f8] sm:$0xff]
        %v10788 = vld [vmem:[#allocation12 + $0x700] sm:$0xff]
        %v10789 = vld [vmem:[#allocation12 + $0x708] sm:$0xff]
        %v10790 = vld [vmem:[#allocation12 + $0x710] sm:$0xff]
        %v10791 = vld [vmem:[#allocation12 + $0x718] sm:$0xff]
        %v10792 = vld [vmem:[#allocation12 + $0x720] sm:$0xff]
        %v10793 = vld [vmem:[#allocation12 + $0x728] sm:$0xff]
        %v10794 = vld [vmem:[#allocation12 + $0x730] sm:$0xff]
        %v10795 = vld [vmem:[#allocation12 + $0x738] sm:$0xff]
        %v10796 = vld [vmem:[#allocation12 + $0x740] sm:$0xff]
        %v10797 = vld [vmem:[#allocation12 + $0x748] sm:$0xff]
        %v10798 = vld [vmem:[#allocation12 + $0x750] sm:$0xff]
        %v10799 = vld [vmem:[#allocation12 + $0x758] sm:$0xff]
        %v10800 = vld [vmem:[#allocation12 + $0x760] sm:$0xff]
        %v10801 = vld [vmem:[#allocation12 + $0x768] sm:$0xff]
        %v10802 = vld [vmem:[#allocation12 + $0x770] sm:$0xff]
        %v10803 = vld [vmem:[#allocation12 + $0x778] sm:$0xff]
        %v10804 = vld [vmem:[#allocation12 + $0x780] sm:$0xff]
        %v10805 = vld [vmem:[#allocation12 + $0x788] sm:$0xff]
        %v10806 = vld [vmem:[#allocation12 + $0x790] sm:$0xff]
        %v10807 = vld [vmem:[#allocation12 + $0x798] sm:$0xff]
        %v10808 = vld [vmem:[#allocation12 + $0x7a0] sm:$0xff]
        %v10809 = vld [vmem:[#allocation12 + $0x7a8] sm:$0xff]
        %v10810 = vld [vmem:[#allocation12 + $0x7b0] sm:$0xff]
        %v10811 = vld [vmem:[#allocation12 + $0x7b8] sm:$0xff]
        %v10812 = vld [vmem:[#allocation12 + $0x7c0] sm:$0xff]
        %v10813 = vld [vmem:[#allocation12 + $0x7c8] sm:$0xff]
        %v10814 = vld [vmem:[#allocation12 + $0x7d0] sm:$0xff]
        %v10815 = vld [vmem:[#allocation12 + $0x7d8] sm:$0xff]
        %v10816 = vld [vmem:[#allocation12 + $0x7e0] sm:$0xff]
        %v10817 = vld [vmem:[#allocation12 + $0x7e8] sm:$0xff]
        %v10818 = vld [vmem:[#allocation12 + $0x7f0] sm:$0xff]
        %v10819 = vld [vmem:[#allocation12 + $0x7f8] sm:$0xff]
        %v10820 = vld [vmem:[#allocation13] sm:$0xf]
        %v11077 = vunpack.c.l.b16 %v10564
        %v11078 = vunpack.c.h.b16 %v10564
        %v11079 = vunpack.c.l.b16 %v10565
        %v11080 = vunpack.c.h.b16 %v10565
        %v11081 = vunpack.c.l.b16 %v10566
        %v11082 = vunpack.c.h.b16 %v10566
        %v11083 = vunpack.c.l.b16 %v10567
        %v11084 = vunpack.c.h.b16 %v10567
        %v11085 = vunpack.c.l.b16 %v10568
        %v11086 = vunpack.c.h.b16 %v10568
        %v11087 = vunpack.c.l.b16 %v10569
        %v11088 = vunpack.c.h.b16 %v10569
        %v11089 = vunpack.c.l.b16 %v10570
        %v11090 = vunpack.c.h.b16 %v10570
        %v11091 = vunpack.c.l.b16 %v10571
        %v11092 = vunpack.c.h.b16 %v10571
        %v11093 = vunpack.c.l.b16 %v10572
        %v11094 = vunpack.c.h.b16 %v10572
        %v11095 = vunpack.c.l.b16 %v10573
        %v11096 = vunpack.c.h.b16 %v10573
        %v11097 = vunpack.c.l.b16 %v10574
        %v11098 = vunpack.c.h.b16 %v10574
        %v11099 = vunpack.c.l.b16 %v10575
        %v11100 = vunpack.c.h.b16 %v10575
        %v11101 = vunpack.c.l.b16 %v10576
        %v11102 = vunpack.c.h.b16 %v10576
        %v11103 = vunpack.c.l.b16 %v10577
        %v11104 = vunpack.c.h.b16 %v10577
        %v11105 = vunpack.c.l.b16 %v10578
        %v11106 = vunpack.c.h.b16 %v10578
        %v11107 = vunpack.c.l.b16 %v10579
        %v11108 = vunpack.c.h.b16 %v10579
        %v11109 = vunpack.c.l.b16 %v10580
        %v11110 = vunpack.c.h.b16 %v10580
        %v11111 = vunpack.c.l.b16 %v10581
        %v11112 = vunpack.c.h.b16 %v10581
        %v11113 = vunpack.c.l.b16 %v10582
        %v11114 = vunpack.c.h.b16 %v10582
        %v11115 = vunpack.c.l.b16 %v10583
        %v11116 = vunpack.c.h.b16 %v10583
        %v11117 = vunpack.c.l.b16 %v10584
        %v11118 = vunpack.c.h.b16 %v10584
        %v11119 = vunpack.c.l.b16 %v10585
        %v11120 = vunpack.c.h.b16 %v10585
        %v11121 = vunpack.c.l.b16 %v10586
        %v11122 = vunpack.c.h.b16 %v10586
        %v11123 = vunpack.c.l.b16 %v10587
        %v11124 = vunpack.c.h.b16 %v10587
        %v11125 = vunpack.c.l.b16 %v10588
        %v11126 = vunpack.c.h.b16 %v10588
        %v11127 = vunpack.c.l.b16 %v10589
        %v11128 = vunpack.c.h.b16 %v10589
        %v11129 = vunpack.c.l.b16 %v10590
        %v11130 = vunpack.c.h.b16 %v10590
        %v11131 = vunpack.c.l.b16 %v10591
        %v11132 = vunpack.c.h.b16 %v10591
        %v11133 = vunpack.c.l.b16 %v10592
        %v11134 = vunpack.c.h.b16 %v10592
        %v11135 = vunpack.c.l.b16 %v10593
        %v11136 = vunpack.c.h.b16 %v10593
        %v11137 = vunpack.c.l.b16 %v10594
        %v11138 = vunpack.c.h.b16 %v10594
        %v11139 = vunpack.c.l.b16 %v10595
        %v11140 = vunpack.c.h.b16 %v10595
        %v11141 = vunpack.c.l.b16 %v10596
        %v11142 = vunpack.c.h.b16 %v10596
        %v11143 = vunpack.c.l.b16 %v10597
        %v11144 = vunpack.c.h.b16 %v10597
        %v11145 = vunpack.c.l.b16 %v10598
        %v11146 = vunpack.c.h.b16 %v10598
        %v11147 = vunpack.c.l.b16 %v10599
        %v11148 = vunpack.c.h.b16 %v10599
        %v11149 = vunpack.c.l.b16 %v10600
        %v11150 = vunpack.c.h.b16 %v10600
        %v11151 = vunpack.c.l.b16 %v10601
        %v11152 = vunpack.c.h.b16 %v10601
        %v11153 = vunpack.c.l.b16 %v10602
        %v11154 = vunpack.c.h.b16 %v10602
        %v11155 = vunpack.c.l.b16 %v10603
        %v11156 = vunpack.c.h.b16 %v10603
        %v11157 = vunpack.c.l.b16 %v10604
        %v11158 = vunpack.c.h.b16 %v10604
        %v11159 = vunpack.c.l.b16 %v10605
        %v11160 = vunpack.c.h.b16 %v10605
        %v11161 = vunpack.c.l.b16 %v10606
        %v11162 = vunpack.c.h.b16 %v10606
        %v11163 = vunpack.c.l.b16 %v10607
        %v11164 = vunpack.c.h.b16 %v10607
        %v11165 = vunpack.c.l.b16 %v10608
        %v11166 = vunpack.c.h.b16 %v10608
        %v11167 = vunpack.c.l.b16 %v10609
        %v11168 = vunpack.c.h.b16 %v10609
        %v11169 = vunpack.c.l.b16 %v10610
        %v11170 = vunpack.c.h.b16 %v10610
        %v11171 = vunpack.c.l.b16 %v10611
        %v11172 = vunpack.c.h.b16 %v10611
        %v11173 = vunpack.c.l.b16 %v10612
        %v11174 = vunpack.c.h.b16 %v10612
        %v11175 = vunpack.c.l.b16 %v10613
        %v11176 = vunpack.c.h.b16 %v10613
        %v11177 = vunpack.c.l.b16 %v10614
        %v11178 = vunpack.c.h.b16 %v10614
        %v11179 = vunpack.c.l.b16 %v10615
        %v11180 = vunpack.c.h.b16 %v10615
        %v11181 = vunpack.c.l.b16 %v10616
        %v11182 = vunpack.c.h.b16 %v10616
        %v11183 = vunpack.c.l.b16 %v10617
        %v11184 = vunpack.c.h.b16 %v10617
        %v11185 = vunpack.c.l.b16 %v10618
        %v11186 = vunpack.c.h.b16 %v10618
        %v11187 = vunpack.c.l.b16 %v10619
        %v11188 = vunpack.c.h.b16 %v10619
        %v11189 = vunpack.c.l.b16 %v10620
        %v11190 = vunpack.c.h.b16 %v10620
        %v11191 = vunpack.c.l.b16 %v10621
        %v11192 = vunpack.c.h.b16 %v10621
        %v11193 = vunpack.c.l.b16 %v10622
        %v11194 = vunpack.c.h.b16 %v10622
        %v11195 = vunpack.c.l.b16 %v10623
        %v11196 = vunpack.c.h.b16 %v10623
        %v11197 = vunpack.c.l.b16 %v10624
        %v11198 = vunpack.c.h.b16 %v10624
        %v11199 = vunpack.c.l.b16 %v10625
        %v11200 = vunpack.c.h.b16 %v10625
        %v11201 = vunpack.c.l.b16 %v10626
        %v11202 = vunpack.c.h.b16 %v10626
        %v11203 = vunpack.c.l.b16 %v10627
        %v11204 = vunpack.c.h.b16 %v10627
        %v11205 = vunpack.c.l.b16 %v10628
        %v11206 = vunpack.c.h.b16 %v10628
        %v11207 = vunpack.c.l.b16 %v10629
        %v11208 = vunpack.c.h.b16 %v10629
        %v11209 = vunpack.c.l.b16 %v10630
        %v11210 = vunpack.c.h.b16 %v10630
        %v11211 = vunpack.c.l.b16 %v10631
        %v11212 = vunpack.c.h.b16 %v10631
        %v11213 = vunpack.c.l.b16 %v10632
        %v11214 = vunpack.c.h.b16 %v10632
        %v11215 = vunpack.c.l.b16 %v10633
        %v11216 = vunpack.c.h.b16 %v10633
        %v11217 = vunpack.c.l.b16 %v10634
        %v11218 = vunpack.c.h.b16 %v10634
        %v11219 = vunpack.c.l.b16 %v10635
        %v11220 = vunpack.c.h.b16 %v10635
        %v11221 = vunpack.c.l.b16 %v10636
        %v11222 = vunpack.c.h.b16 %v10636
        %v11223 = vunpack.c.l.b16 %v10637
        %v11224 = vunpack.c.h.b16 %v10637
        %v11225 = vunpack.c.l.b16 %v10638
        %v11226 = vunpack.c.h.b16 %v10638
        %v11227 = vunpack.c.l.b16 %v10639
        %v11228 = vunpack.c.h.b16 %v10639
        %v11229 = vunpack.c.l.b16 %v10640
        %v11230 = vunpack.c.h.b16 %v10640
        %v11231 = vunpack.c.l.b16 %v10641
        %v11232 = vunpack.c.h.b16 %v10641
        %v11233 = vunpack.c.l.b16 %v10642
        %v11234 = vunpack.c.h.b16 %v10642
        %v11235 = vunpack.c.l.b16 %v10643
        %v11236 = vunpack.c.h.b16 %v10643
        %v11237 = vunpack.c.l.b16 %v10644
        %v11238 = vunpack.c.h.b16 %v10644
        %v11239 = vunpack.c.l.b16 %v10645
        %v11240 = vunpack.c.h.b16 %v10645
        %v11241 = vunpack.c.l.b16 %v10646
        %v11242 = vunpack.c.h.b16 %v10646
        %v11243 = vunpack.c.l.b16 %v10647
        %v11244 = vunpack.c.h.b16 %v10647
        %v11245 = vunpack.c.l.b16 %v10648
        %v11246 = vunpack.c.h.b16 %v10648
        %v11247 = vunpack.c.l.b16 %v10649
        %v11248 = vunpack.c.h.b16 %v10649
        %v11249 = vunpack.c.l.b16 %v10650
        %v11250 = vunpack.c.h.b16 %v10650
        %v11251 = vunpack.c.l.b16 %v10651
        %v11252 = vunpack.c.h.b16 %v10651
        %v11253 = vunpack.c.l.b16 %v10652
        %v11254 = vunpack.c.h.b16 %v10652
        %v11255 = vunpack.c.l.b16 %v10653
        %v11256 = vunpack.c.h.b16 %v10653
        %v11257 = vunpack.c.l.b16 %v10654
        %v11258 = vunpack.c.h.b16 %v10654
        %v11259 = vunpack.c.l.b16 %v10655
        %v11260 = vunpack.c.h.b16 %v10655
        %v11261 = vunpack.c.l.b16 %v10656
        %v11262 = vunpack.c.h.b16 %v10656
        %v11263 = vunpack.c.l.b16 %v10657
        %v11264 = vunpack.c.h.b16 %v10657
        %v11265 = vunpack.c.l.b16 %v10658
        %v11266 = vunpack.c.h.b16 %v10658
        %v11267 = vunpack.c.l.b16 %v10659
        %v11268 = vunpack.c.h.b16 %v10659
        %v11269 = vunpack.c.l.b16 %v10660
        %v11270 = vunpack.c.h.b16 %v10660
        %v11271 = vunpack.c.l.b16 %v10661
        %v11272 = vunpack.c.h.b16 %v10661
        %v11273 = vunpack.c.l.b16 %v10662
        %v11274 = vunpack.c.h.b16 %v10662
        %v11275 = vunpack.c.l.b16 %v10663
        %v11276 = vunpack.c.h.b16 %v10663
        %v11277 = vunpack.c.l.b16 %v10664
        %v11278 = vunpack.c.h.b16 %v10664
        %v11279 = vunpack.c.l.b16 %v10665
        %v11280 = vunpack.c.h.b16 %v10665
        %v11281 = vunpack.c.l.b16 %v10666
        %v11282 = vunpack.c.h.b16 %v10666
        %v11283 = vunpack.c.l.b16 %v10667
        %v11284 = vunpack.c.h.b16 %v10667
        %v11285 = vunpack.c.l.b16 %v10668
        %v11286 = vunpack.c.h.b16 %v10668
        %v11287 = vunpack.c.l.b16 %v10669
        %v11288 = vunpack.c.h.b16 %v10669
        %v11289 = vunpack.c.l.b16 %v10670
        %v11290 = vunpack.c.h.b16 %v10670
        %v11291 = vunpack.c.l.b16 %v10671
        %v11292 = vunpack.c.h.b16 %v10671
        %v11293 = vunpack.c.l.b16 %v10672
        %v11294 = vunpack.c.h.b16 %v10672
        %v11295 = vunpack.c.l.b16 %v10673
        %v11296 = vunpack.c.h.b16 %v10673
        %v11297 = vunpack.c.l.b16 %v10674
        %v11298 = vunpack.c.h.b16 %v10674
        %v11299 = vunpack.c.l.b16 %v10675
        %v11300 = vunpack.c.h.b16 %v10675
        %v11301 = vunpack.c.l.b16 %v10676
        %v11302 = vunpack.c.h.b16 %v10676
        %v11303 = vunpack.c.l.b16 %v10677
        %v11304 = vunpack.c.h.b16 %v10677
        %v11305 = vunpack.c.l.b16 %v10678
        %v11306 = vunpack.c.h.b16 %v10678
        %v11307 = vunpack.c.l.b16 %v10679
        %v11308 = vunpack.c.h.b16 %v10679
        %v11309 = vunpack.c.l.b16 %v10680
        %v11310 = vunpack.c.h.b16 %v10680
        %v11311 = vunpack.c.l.b16 %v10681
        %v11312 = vunpack.c.h.b16 %v10681
        %v11313 = vunpack.c.l.b16 %v10682
        %v11314 = vunpack.c.h.b16 %v10682
        %v11315 = vunpack.c.l.b16 %v10683
        %v11316 = vunpack.c.h.b16 %v10683
        %v11317 = vunpack.c.l.b16 %v10684
        %v11318 = vunpack.c.h.b16 %v10684
        %v11319 = vunpack.c.l.b16 %v10685
        %v11320 = vunpack.c.h.b16 %v10685
        %v11321 = vunpack.c.l.b16 %v10686
        %v11322 = vunpack.c.h.b16 %v10686
        %v11323 = vunpack.c.l.b16 %v10687
        %v11324 = vunpack.c.h.b16 %v10687
        %v11325 = vunpack.c.l.b16 %v10688
        %v11326 = vunpack.c.h.b16 %v10688
        %v11327 = vunpack.c.l.b16 %v10689
        %v11328 = vunpack.c.h.b16 %v10689
        %v11329 = vunpack.c.l.b16 %v10690
        %v11330 = vunpack.c.h.b16 %v10690
        %v11331 = vunpack.c.l.b16 %v10691
        %v11332 = vunpack.c.h.b16 %v10691
        %v11333 = vunpack.c.l.b16 %v10692
        %v11334 = vunpack.c.h.b16 %v10692
        %v11335 = vunpack.c.l.b16 %v10693
        %v11336 = vunpack.c.h.b16 %v10693
        %v11337 = vunpack.c.l.b16 %v10694
        %v11338 = vunpack.c.h.b16 %v10694
        %v11339 = vunpack.c.l.b16 %v10695
        %v11340 = vunpack.c.h.b16 %v10695
        %v11341 = vunpack.c.l.b16 %v10696
        %v11342 = vunpack.c.h.b16 %v10696
        %v11343 = vunpack.c.l.b16 %v10697
        %v11344 = vunpack.c.h.b16 %v10697
        %v11345 = vunpack.c.l.b16 %v10698
        %v11346 = vunpack.c.h.b16 %v10698
        %v11347 = vunpack.c.l.b16 %v10699
        %v11348 = vunpack.c.h.b16 %v10699
        %v11349 = vunpack.c.l.b16 %v10700
        %v11350 = vunpack.c.h.b16 %v10700
        %v11351 = vunpack.c.l.b16 %v10701
        %v11352 = vunpack.c.h.b16 %v10701
        %v11353 = vunpack.c.l.b16 %v10702
        %v11354 = vunpack.c.h.b16 %v10702
        %v11355 = vunpack.c.l.b16 %v10703
        %v11356 = vunpack.c.h.b16 %v10703
        %v11357 = vunpack.c.l.b16 %v10704
        %v11358 = vunpack.c.h.b16 %v10704
        %v11359 = vunpack.c.l.b16 %v10705
        %v11360 = vunpack.c.h.b16 %v10705
        %v11361 = vunpack.c.l.b16 %v10706
        %v11362 = vunpack.c.h.b16 %v10706
        %v11363 = vunpack.c.l.b16 %v10707
        %v11364 = vunpack.c.h.b16 %v10707
        %v11365 = vunpack.c.l.b16 %v10708
        %v11366 = vunpack.c.h.b16 %v10708
        %v11367 = vunpack.c.l.b16 %v10709
        %v11368 = vunpack.c.h.b16 %v10709
        %v11369 = vunpack.c.l.b16 %v10710
        %v11370 = vunpack.c.h.b16 %v10710
        %v11371 = vunpack.c.l.b16 %v10711
        %v11372 = vunpack.c.h.b16 %v10711
        %v11373 = vunpack.c.l.b16 %v10712
        %v11374 = vunpack.c.h.b16 %v10712
        %v11375 = vunpack.c.l.b16 %v10713
        %v11376 = vunpack.c.h.b16 %v10713
        %v11377 = vunpack.c.l.b16 %v10714
        %v11378 = vunpack.c.h.b16 %v10714
        %v11379 = vunpack.c.l.b16 %v10715
        %v11380 = vunpack.c.h.b16 %v10715
        %v11381 = vunpack.c.l.b16 %v10716
        %v11382 = vunpack.c.h.b16 %v10716
        %v11383 = vunpack.c.l.b16 %v10717
        %v11384 = vunpack.c.h.b16 %v10717
        %v11385 = vunpack.c.l.b16 %v10718
        %v11386 = vunpack.c.h.b16 %v10718
        %v11387 = vunpack.c.l.b16 %v10719
        %v11388 = vunpack.c.h.b16 %v10719
        %v11389 = vunpack.c.l.b16 %v10720
        %v11390 = vunpack.c.h.b16 %v10720
        %v11391 = vunpack.c.l.b16 %v10721
        %v11392 = vunpack.c.h.b16 %v10721
        %v11393 = vunpack.c.l.b16 %v10722
        %v11394 = vunpack.c.h.b16 %v10722
        %v11395 = vunpack.c.l.b16 %v10723
        %v11396 = vunpack.c.h.b16 %v10723
        %v11397 = vunpack.c.l.b16 %v10724
        %v11398 = vunpack.c.h.b16 %v10724
        %v11399 = vunpack.c.l.b16 %v10725
        %v11400 = vunpack.c.h.b16 %v10725
        %v11401 = vunpack.c.l.b16 %v10726
        %v11402 = vunpack.c.h.b16 %v10726
        %v11403 = vunpack.c.l.b16 %v10727
        %v11404 = vunpack.c.h.b16 %v10727
        %v11405 = vunpack.c.l.b16 %v10728
        %v11406 = vunpack.c.h.b16 %v10728
        %v11407 = vunpack.c.l.b16 %v10729
        %v11408 = vunpack.c.h.b16 %v10729
        %v11409 = vunpack.c.l.b16 %v10730
        %v11410 = vunpack.c.h.b16 %v10730
        %v11411 = vunpack.c.l.b16 %v10731
        %v11412 = vunpack.c.h.b16 %v10731
        %v11413 = vunpack.c.l.b16 %v10732
        %v11414 = vunpack.c.h.b16 %v10732
        %v11415 = vunpack.c.l.b16 %v10733
        %v11416 = vunpack.c.h.b16 %v10733
        %v11417 = vunpack.c.l.b16 %v10734
        %v11418 = vunpack.c.h.b16 %v10734
        %v11419 = vunpack.c.l.b16 %v10735
        %v11420 = vunpack.c.h.b16 %v10735
        %v11421 = vunpack.c.l.b16 %v10736
        %v11422 = vunpack.c.h.b16 %v10736
        %v11423 = vunpack.c.l.b16 %v10737
        %v11424 = vunpack.c.h.b16 %v10737
        %v11425 = vunpack.c.l.b16 %v10738
        %v11426 = vunpack.c.h.b16 %v10738
        %v11427 = vunpack.c.l.b16 %v10739
        %v11428 = vunpack.c.h.b16 %v10739
        %v11429 = vunpack.c.l.b16 %v10740
        %v11430 = vunpack.c.h.b16 %v10740
        %v11431 = vunpack.c.l.b16 %v10741
        %v11432 = vunpack.c.h.b16 %v10741
        %v11433 = vunpack.c.l.b16 %v10742
        %v11434 = vunpack.c.h.b16 %v10742
        %v11435 = vunpack.c.l.b16 %v10743
        %v11436 = vunpack.c.h.b16 %v10743
        %v11437 = vunpack.c.l.b16 %v10744
        %v11438 = vunpack.c.h.b16 %v10744
        %v11439 = vunpack.c.l.b16 %v10745
        %v11440 = vunpack.c.h.b16 %v10745
        %v11441 = vunpack.c.l.b16 %v10746
        %v11442 = vunpack.c.h.b16 %v10746
        %v11443 = vunpack.c.l.b16 %v10747
        %v11444 = vunpack.c.h.b16 %v10747
        %v11445 = vunpack.c.l.b16 %v10748
        %v11446 = vunpack.c.h.b16 %v10748
        %v11447 = vunpack.c.l.b16 %v10749
        %v11448 = vunpack.c.h.b16 %v10749
        %v11449 = vunpack.c.l.b16 %v10750
        %v11450 = vunpack.c.h.b16 %v10750
        %v11451 = vunpack.c.l.b16 %v10751
        %v11452 = vunpack.c.h.b16 %v10751
        %v11453 = vunpack.c.l.b16 %v10752
        %v11454 = vunpack.c.h.b16 %v10752
        %v11455 = vunpack.c.l.b16 %v10753
        %v11456 = vunpack.c.h.b16 %v10753
        %v11457 = vunpack.c.l.b16 %v10754
        %v11458 = vunpack.c.h.b16 %v10754
        %v11459 = vunpack.c.l.b16 %v10755
        %v11460 = vunpack.c.h.b16 %v10755
        %v11461 = vunpack.c.l.b16 %v10756
        %v11462 = vunpack.c.h.b16 %v10756
        %v11463 = vunpack.c.l.b16 %v10757
        %v11464 = vunpack.c.h.b16 %v10757
        %v11465 = vunpack.c.l.b16 %v10758
        %v11466 = vunpack.c.h.b16 %v10758
        %v11467 = vunpack.c.l.b16 %v10759
        %v11468 = vunpack.c.h.b16 %v10759
        %v11469 = vunpack.c.l.b16 %v10760
        %v11470 = vunpack.c.h.b16 %v10760
        %v11471 = vunpack.c.l.b16 %v10761
        %v11472 = vunpack.c.h.b16 %v10761
        %v11473 = vunpack.c.l.b16 %v10762
        %v11474 = vunpack.c.h.b16 %v10762
        %v11475 = vunpack.c.l.b16 %v10763
        %v11476 = vunpack.c.h.b16 %v10763
        %v11477 = vunpack.c.l.b16 %v10764
        %v11478 = vunpack.c.h.b16 %v10764
        %v11479 = vunpack.c.l.b16 %v10765
        %v11480 = vunpack.c.h.b16 %v10765
        %v11481 = vunpack.c.l.b16 %v10766
        %v11482 = vunpack.c.h.b16 %v10766
        %v11483 = vunpack.c.l.b16 %v10767
        %v11484 = vunpack.c.h.b16 %v10767
        %v11485 = vunpack.c.l.b16 %v10768
        %v11486 = vunpack.c.h.b16 %v10768
        %v11487 = vunpack.c.l.b16 %v10769
        %v11488 = vunpack.c.h.b16 %v10769
        %v11489 = vunpack.c.l.b16 %v10770
        %v11490 = vunpack.c.h.b16 %v10770
        %v11491 = vunpack.c.l.b16 %v10771
        %v11492 = vunpack.c.h.b16 %v10771
        %v11493 = vunpack.c.l.b16 %v10772
        %v11494 = vunpack.c.h.b16 %v10772
        %v11495 = vunpack.c.l.b16 %v10773
        %v11496 = vunpack.c.h.b16 %v10773
        %v11497 = vunpack.c.l.b16 %v10774
        %v11498 = vunpack.c.h.b16 %v10774
        %v11499 = vunpack.c.l.b16 %v10775
        %v11500 = vunpack.c.h.b16 %v10775
        %v11501 = vunpack.c.l.b16 %v10776
        %v11502 = vunpack.c.h.b16 %v10776
        %v11503 = vunpack.c.l.b16 %v10777
        %v11504 = vunpack.c.h.b16 %v10777
        %v11505 = vunpack.c.l.b16 %v10778
        %v11506 = vunpack.c.h.b16 %v10778
        %v11507 = vunpack.c.l.b16 %v10779
        %v11508 = vunpack.c.h.b16 %v10779
        %v11509 = vunpack.c.l.b16 %v10780
        %v11510 = vunpack.c.h.b16 %v10780
        %v11511 = vunpack.c.l.b16 %v10781
        %v11512 = vunpack.c.h.b16 %v10781
        %v11513 = vunpack.c.l.b16 %v10782
        %v11514 = vunpack.c.h.b16 %v10782
        %v11515 = vunpack.c.l.b16 %v10783
        %v11516 = vunpack.c.h.b16 %v10783
        %v11517 = vunpack.c.l.b16 %v10784
        %v11518 = vunpack.c.h.b16 %v10784
        %v11519 = vunpack.c.l.b16 %v10785
        %v11520 = vunpack.c.h.b16 %v10785
        %v11521 = vunpack.c.l.b16 %v10786
        %v11522 = vunpack.c.h.b16 %v10786
        %v11523 = vunpack.c.l.b16 %v10787
        %v11524 = vunpack.c.h.b16 %v10787
        %v11525 = vunpack.c.l.b16 %v10788
        %v11526 = vunpack.c.h.b16 %v10788
        %v11527 = vunpack.c.l.b16 %v10789
        %v11528 = vunpack.c.h.b16 %v10789
        %v11529 = vunpack.c.l.b16 %v10790
        %v11530 = vunpack.c.h.b16 %v10790
        %v11531 = vunpack.c.l.b16 %v10791
        %v11532 = vunpack.c.h.b16 %v10791
        %v11533 = vunpack.c.l.b16 %v10792
        %v11534 = vunpack.c.h.b16 %v10792
        %v11535 = vunpack.c.l.b16 %v10793
        %v11536 = vunpack.c.h.b16 %v10793
        %v11537 = vunpack.c.l.b16 %v10794
        %v11538 = vunpack.c.h.b16 %v10794
        %v11539 = vunpack.c.l.b16 %v10795
        %v11540 = vunpack.c.h.b16 %v10795
        %v11541 = vunpack.c.l.b16 %v10796
        %v11542 = vunpack.c.h.b16 %v10796
        %v11543 = vunpack.c.l.b16 %v10797
        %v11544 = vunpack.c.h.b16 %v10797
        %v11545 = vunpack.c.l.b16 %v10798
        %v11546 = vunpack.c.h.b16 %v10798
        %v11547 = vunpack.c.l.b16 %v10799
        %v11548 = vunpack.c.h.b16 %v10799
        %v11549 = vunpack.c.l.b16 %v10800
        %v11550 = vunpack.c.h.b16 %v10800
        %v11551 = vunpack.c.l.b16 %v10801
        %v11552 = vunpack.c.h.b16 %v10801
        %v11553 = vunpack.c.l.b16 %v10802
        %v11554 = vunpack.c.h.b16 %v10802
        %v11555 = vunpack.c.l.b16 %v10803
        %v11556 = vunpack.c.h.b16 %v10803
        %v11557 = vunpack.c.l.b16 %v10804
        %v11558 = vunpack.c.h.b16 %v10804
        %v11559 = vunpack.c.l.b16 %v10805
        %v11560 = vunpack.c.h.b16 %v10805
        %v11561 = vunpack.c.l.b16 %v10806
        %v11562 = vunpack.c.h.b16 %v10806
        %v11563 = vunpack.c.l.b16 %v10807
        %v11564 = vunpack.c.h.b16 %v10807
        %v11565 = vunpack.c.l.b16 %v10808
        %v11566 = vunpack.c.h.b16 %v10808
        %v11567 = vunpack.c.l.b16 %v10809
        %v11568 = vunpack.c.h.b16 %v10809
        %v11569 = vunpack.c.l.b16 %v10810
        %v11570 = vunpack.c.h.b16 %v10810
        %v11571 = vunpack.c.l.b16 %v10811
        %v11572 = vunpack.c.h.b16 %v10811
        %v11573 = vunpack.c.l.b16 %v10812
        %v11574 = vunpack.c.h.b16 %v10812
        %v11575 = vunpack.c.l.b16 %v10813
        %v11576 = vunpack.c.h.b16 %v10813
        %v11577 = vunpack.c.l.b16 %v10814
        %v11578 = vunpack.c.h.b16 %v10814
        %v11579 = vunpack.c.l.b16 %v10815
        %v11580 = vunpack.c.h.b16 %v10815
        %v11581 = vunpack.c.l.b16 %v10816
        %v11582 = vunpack.c.h.b16 %v10816
        %v11583 = vunpack.c.l.b16 %v10817
        %v11584 = vunpack.c.h.b16 %v10817
        %v11585 = vunpack.c.l.b16 %v10818
        %v11586 = vunpack.c.h.b16 %v10818
        %v11587 = vunpack.c.l.b16 %v10819
        %v11588 = vunpack.c.h.b16 %v10819
        %v11589 = vpack.c.b16 %v11081, %v11077
        %v11590 = vpack.c.b16 %v11082, %v11078
        %v11591 = vpack.c.b16 %v11083, %v11079
        %v11592 = vpack.c.b16 %v11084, %v11080
        %v11593 = vpack.c.b16 %v11089, %v11085
        %v11594 = vpack.c.b16 %v11090, %v11086
        %v11595 = vpack.c.b16 %v11091, %v11087
        %v11596 = vpack.c.b16 %v11092, %v11088
        %v11597 = vpack.c.b16 %v11097, %v11093
        %v11598 = vpack.c.b16 %v11098, %v11094
        %v11599 = vpack.c.b16 %v11099, %v11095
        %v11600 = vpack.c.b16 %v11100, %v11096
        %v11601 = vpack.c.b16 %v11105, %v11101
        %v11602 = vpack.c.b16 %v11106, %v11102
        %v11603 = vpack.c.b16 %v11107, %v11103
        %v11604 = vpack.c.b16 %v11108, %v11104
        %v11605 = vpack.c.b16 %v11113, %v11109
        %v11606 = vpack.c.b16 %v11114, %v11110
        %v11607 = vpack.c.b16 %v11115, %v11111
        %v11608 = vpack.c.b16 %v11116, %v11112
        %v11609 = vpack.c.b16 %v11121, %v11117
        %v11610 = vpack.c.b16 %v11122, %v11118
        %v11611 = vpack.c.b16 %v11123, %v11119
        %v11612 = vpack.c.b16 %v11124, %v11120
        %v11613 = vpack.c.b16 %v11129, %v11125
        %v11614 = vpack.c.b16 %v11130, %v11126
        %v11615 = vpack.c.b16 %v11131, %v11127
        %v11616 = vpack.c.b16 %v11132, %v11128
        %v11617 = vpack.c.b16 %v11137, %v11133
        %v11618 = vpack.c.b16 %v11138, %v11134
        %v11619 = vpack.c.b16 %v11139, %v11135
        %v11620 = vpack.c.b16 %v11140, %v11136
        %v11621 = vpack.c.b16 %v11145, %v11141
        %v11622 = vpack.c.b16 %v11146, %v11142
        %v11623 = vpack.c.b16 %v11147, %v11143
        %v11624 = vpack.c.b16 %v11148, %v11144
        %v11625 = vpack.c.b16 %v11153, %v11149
        %v11626 = vpack.c.b16 %v11154, %v11150
        %v11627 = vpack.c.b16 %v11155, %v11151
        %v11628 = vpack.c.b16 %v11156, %v11152
        %v11629 = vpack.c.b16 %v11161, %v11157
        %v11630 = vpack.c.b16 %v11162, %v11158
        %v11631 = vpack.c.b16 %v11163, %v11159
        %v11632 = vpack.c.b16 %v11164, %v11160
        %v11633 = vpack.c.b16 %v11169, %v11165
        %v11634 = vpack.c.b16 %v11170, %v11166
        %v11635 = vpack.c.b16 %v11171, %v11167
        %v11636 = vpack.c.b16 %v11172, %v11168
        %v11637 = vpack.c.b16 %v11177, %v11173
        %v11638 = vpack.c.b16 %v11178, %v11174
        %v11639 = vpack.c.b16 %v11179, %v11175
        %v11640 = vpack.c.b16 %v11180, %v11176
        %v11641 = vpack.c.b16 %v11185, %v11181
        %v11642 = vpack.c.b16 %v11186, %v11182
        %v11643 = vpack.c.b16 %v11187, %v11183
        %v11644 = vpack.c.b16 %v11188, %v11184
        %v11645 = vpack.c.b16 %v11193, %v11189
        %v11646 = vpack.c.b16 %v11194, %v11190
        %v11647 = vpack.c.b16 %v11195, %v11191
        %v11648 = vpack.c.b16 %v11196, %v11192
        %v11649 = vpack.c.b16 %v11201, %v11197
        %v11650 = vpack.c.b16 %v11202, %v11198
        %v11651 = vpack.c.b16 %v11203, %v11199
        %v11652 = vpack.c.b16 %v11204, %v11200
        %v11653 = vpack.c.b16 %v11209, %v11205
        %v11654 = vpack.c.b16 %v11210, %v11206
        %v11655 = vpack.c.b16 %v11211, %v11207
        %v11656 = vpack.c.b16 %v11212, %v11208
        %v11657 = vpack.c.b16 %v11217, %v11213
        %v11658 = vpack.c.b16 %v11218, %v11214
        %v11659 = vpack.c.b16 %v11219, %v11215
        %v11660 = vpack.c.b16 %v11220, %v11216
        %v11661 = vpack.c.b16 %v11225, %v11221
        %v11662 = vpack.c.b16 %v11226, %v11222
        %v11663 = vpack.c.b16 %v11227, %v11223
        %v11664 = vpack.c.b16 %v11228, %v11224
        %v11665 = vpack.c.b16 %v11233, %v11229
        %v11666 = vpack.c.b16 %v11234, %v11230
        %v11667 = vpack.c.b16 %v11235, %v11231
        %v11668 = vpack.c.b16 %v11236, %v11232
        %v11669 = vpack.c.b16 %v11241, %v11237
        %v11670 = vpack.c.b16 %v11242, %v11238
        %v11671 = vpack.c.b16 %v11243, %v11239
        %v11672 = vpack.c.b16 %v11244, %v11240
        %v11673 = vpack.c.b16 %v11249, %v11245
        %v11674 = vpack.c.b16 %v11250, %v11246
        %v11675 = vpack.c.b16 %v11251, %v11247
        %v11676 = vpack.c.b16 %v11252, %v11248
        %v11677 = vpack.c.b16 %v11257, %v11253
        %v11678 = vpack.c.b16 %v11258, %v11254
        %v11679 = vpack.c.b16 %v11259, %v11255
        %v11680 = vpack.c.b16 %v11260, %v11256
        %v11681 = vpack.c.b16 %v11265, %v11261
        %v11682 = vpack.c.b16 %v11266, %v11262
        %v11683 = vpack.c.b16 %v11267, %v11263
        %v11684 = vpack.c.b16 %v11268, %v11264
        %v11685 = vpack.c.b16 %v11273, %v11269
        %v11686 = vpack.c.b16 %v11274, %v11270
        %v11687 = vpack.c.b16 %v11275, %v11271
        %v11688 = vpack.c.b16 %v11276, %v11272
        %v11689 = vpack.c.b16 %v11281, %v11277
        %v11690 = vpack.c.b16 %v11282, %v11278
        %v11691 = vpack.c.b16 %v11283, %v11279
        %v11692 = vpack.c.b16 %v11284, %v11280
        %v11693 = vpack.c.b16 %v11289, %v11285
        %v11694 = vpack.c.b16 %v11290, %v11286
        %v11695 = vpack.c.b16 %v11291, %v11287
        %v11696 = vpack.c.b16 %v11292, %v11288
        %v11697 = vpack.c.b16 %v11297, %v11293
        %v11698 = vpack.c.b16 %v11298, %v11294
        %v11699 = vpack.c.b16 %v11299, %v11295
        %v11700 = vpack.c.b16 %v11300, %v11296
        %v11701 = vpack.c.b16 %v11305, %v11301
        %v11702 = vpack.c.b16 %v11306, %v11302
        %v11703 = vpack.c.b16 %v11307, %v11303
        %v11704 = vpack.c.b16 %v11308, %v11304
        %v11705 = vpack.c.b16 %v11313, %v11309
        %v11706 = vpack.c.b16 %v11314, %v11310
        %v11707 = vpack.c.b16 %v11315, %v11311
        %v11708 = vpack.c.b16 %v11316, %v11312
        %v11709 = vpack.c.b16 %v11321, %v11317
        %v11710 = vpack.c.b16 %v11322, %v11318
        %v11711 = vpack.c.b16 %v11323, %v11319
        %v11712 = vpack.c.b16 %v11324, %v11320
        %v11713 = vpack.c.b16 %v11329, %v11325
        %v11714 = vpack.c.b16 %v11330, %v11326
        %v11715 = vpack.c.b16 %v11331, %v11327
        %v11716 = vpack.c.b16 %v11332, %v11328
        %v11717 = vpack.c.b16 %v11337, %v11333
        %v11718 = vpack.c.b16 %v11338, %v11334
        %v11719 = vpack.c.b16 %v11339, %v11335
        %v11720 = vpack.c.b16 %v11340, %v11336
        %v11721 = vpack.c.b16 %v11345, %v11341
        %v11722 = vpack.c.b16 %v11346, %v11342
        %v11723 = vpack.c.b16 %v11347, %v11343
        %v11724 = vpack.c.b16 %v11348, %v11344
        %v11725 = vpack.c.b16 %v11353, %v11349
        %v11726 = vpack.c.b16 %v11354, %v11350
        %v11727 = vpack.c.b16 %v11355, %v11351
        %v11728 = vpack.c.b16 %v11356, %v11352
        %v11729 = vpack.c.b16 %v11361, %v11357
        %v11730 = vpack.c.b16 %v11362, %v11358
        %v11731 = vpack.c.b16 %v11363, %v11359
        %v11732 = vpack.c.b16 %v11364, %v11360
        %v11733 = vpack.c.b16 %v11369, %v11365
        %v11734 = vpack.c.b16 %v11370, %v11366
        %v11735 = vpack.c.b16 %v11371, %v11367
        %v11736 = vpack.c.b16 %v11372, %v11368
        %v11737 = vpack.c.b16 %v11377, %v11373
        %v11738 = vpack.c.b16 %v11378, %v11374
        %v11739 = vpack.c.b16 %v11379, %v11375
        %v11740 = vpack.c.b16 %v11380, %v11376
        %v11741 = vpack.c.b16 %v11385, %v11381
        %v11742 = vpack.c.b16 %v11386, %v11382
        %v11743 = vpack.c.b16 %v11387, %v11383
        %v11744 = vpack.c.b16 %v11388, %v11384
        %v11745 = vpack.c.b16 %v11393, %v11389
        %v11746 = vpack.c.b16 %v11394, %v11390
        %v11747 = vpack.c.b16 %v11395, %v11391
        %v11748 = vpack.c.b16 %v11396, %v11392
        %v11749 = vpack.c.b16 %v11401, %v11397
        %v11750 = vpack.c.b16 %v11402, %v11398
        %v11751 = vpack.c.b16 %v11403, %v11399
        %v11752 = vpack.c.b16 %v11404, %v11400
        %v11753 = vpack.c.b16 %v11409, %v11405
        %v11754 = vpack.c.b16 %v11410, %v11406
        %v11755 = vpack.c.b16 %v11411, %v11407
        %v11756 = vpack.c.b16 %v11412, %v11408
        %v11757 = vpack.c.b16 %v11417, %v11413
        %v11758 = vpack.c.b16 %v11418, %v11414
        %v11759 = vpack.c.b16 %v11419, %v11415
        %v11760 = vpack.c.b16 %v11420, %v11416
        %v11761 = vpack.c.b16 %v11425, %v11421
        %v11762 = vpack.c.b16 %v11426, %v11422
        %v11763 = vpack.c.b16 %v11427, %v11423
        %v11764 = vpack.c.b16 %v11428, %v11424
        %v11765 = vpack.c.b16 %v11433, %v11429
        %v11766 = vpack.c.b16 %v11434, %v11430
        %v11767 = vpack.c.b16 %v11435, %v11431
        %v11768 = vpack.c.b16 %v11436, %v11432
        %v11769 = vpack.c.b16 %v11441, %v11437
        %v11770 = vpack.c.b16 %v11442, %v11438
        %v11771 = vpack.c.b16 %v11443, %v11439
        %v11772 = vpack.c.b16 %v11444, %v11440
        %v11773 = vpack.c.b16 %v11449, %v11445
        %v11774 = vpack.c.b16 %v11450, %v11446
        %v11775 = vpack.c.b16 %v11451, %v11447
        %v11776 = vpack.c.b16 %v11452, %v11448
        %v11777 = vpack.c.b16 %v11457, %v11453
        %v11778 = vpack.c.b16 %v11458, %v11454
        %v11779 = vpack.c.b16 %v11459, %v11455
        %v11780 = vpack.c.b16 %v11460, %v11456
        %v11781 = vpack.c.b16 %v11465, %v11461
        %v11782 = vpack.c.b16 %v11466, %v11462
        %v11783 = vpack.c.b16 %v11467, %v11463
        %v11784 = vpack.c.b16 %v11468, %v11464
        %v11785 = vpack.c.b16 %v11473, %v11469
        %v11786 = vpack.c.b16 %v11474, %v11470
        %v11787 = vpack.c.b16 %v11475, %v11471
        %v11788 = vpack.c.b16 %v11476, %v11472
        %v11789 = vpack.c.b16 %v11481, %v11477
        %v11790 = vpack.c.b16 %v11482, %v11478
        %v11791 = vpack.c.b16 %v11483, %v11479
        %v11792 = vpack.c.b16 %v11484, %v11480
        %v11793 = vpack.c.b16 %v11489, %v11485
        %v11794 = vpack.c.b16 %v11490, %v11486
        %v11795 = vpack.c.b16 %v11491, %v11487
        %v11796 = vpack.c.b16 %v11492, %v11488
        %v11797 = vpack.c.b16 %v11497, %v11493
        %v11798 = vpack.c.b16 %v11498, %v11494
        %v11799 = vpack.c.b16 %v11499, %v11495
        %v11800 = vpack.c.b16 %v11500, %v11496
        %v11801 = vpack.c.b16 %v11505, %v11501
        %v11802 = vpack.c.b16 %v11506, %v11502
        %v11803 = vpack.c.b16 %v11507, %v11503
        %v11804 = vpack.c.b16 %v11508, %v11504
        %v11805 = vpack.c.b16 %v11513, %v11509
        %v11806 = vpack.c.b16 %v11514, %v11510
        %v11807 = vpack.c.b16 %v11515, %v11511
        %v11808 = vpack.c.b16 %v11516, %v11512
        %v11809 = vpack.c.b16 %v11521, %v11517
        %v11810 = vpack.c.b16 %v11522, %v11518
        %v11811 = vpack.c.b16 %v11523, %v11519
        %v11812 = vpack.c.b16 %v11524, %v11520
        %v11813 = vpack.c.b16 %v11529, %v11525
        %v11814 = vpack.c.b16 %v11530, %v11526
        %v11815 = vpack.c.b16 %v11531, %v11527
        %v11816 = vpack.c.b16 %v11532, %v11528
        %v11817 = vpack.c.b16 %v11537, %v11533
        %v11818 = vpack.c.b16 %v11538, %v11534
        %v11819 = vpack.c.b16 %v11539, %v11535
        %v11820 = vpack.c.b16 %v11540, %v11536
        %v11821 = vpack.c.b16 %v11545, %v11541
        %v11822 = vpack.c.b16 %v11546, %v11542
        %v11823 = vpack.c.b16 %v11547, %v11543
        %v11824 = vpack.c.b16 %v11548, %v11544
        %v11825 = vpack.c.b16 %v11553, %v11549
        %v11826 = vpack.c.b16 %v11554, %v11550
        %v11827 = vpack.c.b16 %v11555, %v11551
        %v11828 = vpack.c.b16 %v11556, %v11552
        %v11829 = vpack.c.b16 %v11561, %v11557
        %v11830 = vpack.c.b16 %v11562, %v11558
        %v11831 = vpack.c.b16 %v11563, %v11559
        %v11832 = vpack.c.b16 %v11564, %v11560
        %v11833 = vpack.c.b16 %v11569, %v11565
        %v11834 = vpack.c.b16 %v11570, %v11566
        %v11835 = vpack.c.b16 %v11571, %v11567
        %v11836 = vpack.c.b16 %v11572, %v11568
        %v11837 = vpack.c.b16 %v11577, %v11573
        %v11838 = vpack.c.b16 %v11578, %v11574
        %v11839 = vpack.c.b16 %v11579, %v11575
        %v11840 = vpack.c.b16 %v11580, %v11576
        %v11841 = vpack.c.b16 %v11585, %v11581
        %v11842 = vpack.c.b16 %v11586, %v11582
        %v11843 = vpack.c.b16 %v11587, %v11583
        %v11844 = vpack.c.b16 %v11588, %v11584
        %v12102 = vlaneseq
        %v12103 = vshrl.u32 %v12102, 7
        %v12104 = vsub.s32 0, %v12103
        %v12105 = vrot.slane %v10820, %v12104
        %v12106 = vlaneseq
        %v12107 = vshrl.u32 %v12106, 7
        %v12108 = vsub.s32 1, %v12107
        %v12109 = vrot.slane %v10820, %v12108
        %v12110 = vlaneseq
        %v12111 = vshrl.u32 %v12110, 7
        %v12112 = vsub.s32 2, %v12111
        %v12113 = vrot.slane %v10820, %v12112
        %v12114 = vlaneseq
        %v12115 = vshrl.u32 %v12114, 7
        %v12116 = vsub.s32 3, %v12115
        %v12117 = vrot.slane %v10820, %v12116
        %12122 = vmatprep.subr.bf16.mxu0 %v11590
        %12123 = vmatpush1.bf16.msra.mxu0 %v11589
        %12124 = vmatprep.subr.bf16.mxu0 %v11594
        %12125 = vmatpush1.bf16.msra.mxu0 %v11593
        %12126 = vmatprep.subr.bf16.mxu0 %v11598
        %12127 = vmatpush1.bf16.msra.mxu0 %v11597
        %12128 = vmatprep.subr.bf16.mxu0 %v11602
        %12129 = vmatpush1.bf16.msra.mxu0 %v11601
        %12130 = vmatprep.subr.bf16.mxu0 %v11606
        %12131 = vmatpush1.bf16.msra.mxu0 %v11605
        %12132 = vmatprep.subr.bf16.mxu0 %v11610
        %12133 = vmatpush1.bf16.msra.mxu0 %v11609
        %12134 = vmatprep.subr.bf16.mxu0 %v11614
        %12135 = vmatpush1.bf16.msra.mxu0 %v11613
        %12136 = vmatprep.subr.bf16.mxu0 %v11618
        %12137 = vmatpush1.bf16.msra.mxu0 %v11617
        %12138 = vmatprep.subr.bf16.mxu0 %v11622
        %12139 = vmatpush1.bf16.msra.mxu0 %v11621
        %12140 = vmatprep.subr.bf16.mxu0 %v11626
        %12141 = vmatpush1.bf16.msra.mxu0 %v11625
        %12142 = vmatprep.subr.bf16.mxu0 %v11630
        %12143 = vmatpush1.bf16.msra.mxu0 %v11629
        %12144 = vmatprep.subr.bf16.mxu0 %v11634
        %12145 = vmatpush1.bf16.msra.mxu0 %v11633
        %12146 = vmatprep.subr.bf16.mxu0 %v11638
        %12147 = vmatpush1.bf16.msra.mxu0 %v11637
        %12148 = vmatprep.subr.bf16.mxu0 %v11642
        %12149 = vmatpush1.bf16.msra.mxu0 %v11641
        %12150 = vmatprep.subr.bf16.mxu0 %v11646
        %12151 = vmatpush1.bf16.msra.mxu0 %v11645
        %12152 = vmatprep.subr.bf16.mxu0 %v11650
        %12153 = vmatpush1.bf16.msra.mxu0 %v11649
        %12154 = vmatprep.mubr.bf16.mxu0 %v10557
        %12155 = vmatmul.mubr.bf16.gmra.mrb[0].mxu0 %v10556
        %v12156 = vpop.f32.mrb[0].mxu0
        %v12157 = vadd.f32 %v12105, %v12156
        %v12158 = vpop.f32.mrb[0].mxu0
        %v12159 = vadd.f32 %v12109, %v12158
        %v12160 = vpop.f32.mrb[0].mxu0
        %v12161 = vpop.f32.mrb[0].mxu0
        %12162 = vdwg.mxu0
        %12163 = vmatprep.subr.bf16.mxu0 %v11654
        %12164 = vmatpush1.bf16.msra.mxu0 %v11653
        %12165 = vmatprep.subr.bf16.mxu0 %v11658
        %12166 = vmatpush1.bf16.msra.mxu0 %v11657
        %12167 = vmatprep.subr.bf16.mxu0 %v11662
        %12168 = vmatpush1.bf16.msra.mxu0 %v11661
        %12169 = vmatprep.subr.bf16.mxu0 %v11666
        %12170 = vmatpush1.bf16.msra.mxu0 %v11665
        %12171 = vmatprep.subr.bf16.mxu0 %v11670
        %12172 = vmatpush1.bf16.msra.mxu0 %v11669
        %12173 = vmatprep.subr.bf16.mxu0 %v11674
        %12174 = vmatpush1.bf16.msra.mxu0 %v11673
        %12175 = vmatprep.subr.bf16.mxu0 %v11678
        %12176 = vmatpush1.bf16.msra.mxu0 %v11677
        %12177 = vmatprep.subr.bf16.mxu0 %v11682
        %12178 = vmatpush1.bf16.msra.mxu0 %v11681
        %12179 = vmatprep.subr.bf16.mxu0 %v11686
        %12180 = vmatpush1.bf16.msra.mxu0 %v11685
        %12181 = vmatprep.subr.bf16.mxu0 %v11690
        %12182 = vmatpush1.bf16.msra.mxu0 %v11689
        %12183 = vmatprep.subr.bf16.mxu0 %v11694
        %12184 = vmatpush1.bf16.msra.mxu0 %v11693
        %12185 = vmatprep.subr.bf16.mxu0 %v11698
        %12186 = vmatpush1.bf16.msra.mxu0 %v11697
        %12187 = vmatprep.subr.bf16.mxu0 %v11702
        %12188 = vmatpush1.bf16.msra.mxu0 %v11701
        %12189 = vmatprep.subr.bf16.mxu0 %v11706
        %12190 = vmatpush1.bf16.msra.mxu0 %v11705
        %12191 = vmatprep.subr.bf16.mxu0 %v11710
        %12192 = vmatpush1.bf16.msra.mxu0 %v11709
        %12193 = vmatprep.subr.bf16.mxu0 %v11714
        %12194 = vmatpush1.bf16.msra.mxu0 %v11713
        %12195 = vmatprep.mubr.bf16.mxu0 %v10559
        %12196 = vmatmul.mubr.bf16.gmra.mrb[0].mxu0 %v10558
        %v12197 = vpop.f32.mrb[0].mxu0
        %v12198 = vadd.f32 %v12157, %v12197
        %v12199 = vpop.f32.mrb[0].mxu0
        %v12200 = vadd.f32 %v12159, %v12199
        %v12201 = vpop.f32.mrb[0].mxu0
        %v12202 = vpop.f32.mrb[0].mxu0
        %12203 = vdwg.mxu0
        %12204 = vmatprep.subr.bf16.mxu0 %v11718
        %12205 = vmatpush1.bf16.msra.mxu0 %v11717
        %12206 = vmatprep.subr.bf16.mxu0 %v11722
        %12207 = vmatpush1.bf16.msra.mxu0 %v11721
        %12208 = vmatprep.subr.bf16.mxu0 %v11726
        %12209 = vmatpush1.bf16.msra.mxu0 %v11725
        %12210 = vmatprep.subr.bf16.mxu0 %v11730
        %12211 = vmatpush1.bf16.msra.mxu0 %v11729
        %12212 = vmatprep.subr.bf16.mxu0 %v11734
        %12213 = vmatpush1.bf16.msra.mxu0 %v11733
        %12214 = vmatprep.subr.bf16.mxu0 %v11738
        %12215 = vmatpush1.bf16.msra.mxu0 %v11737
        %12216 = vmatprep.subr.bf16.mxu0 %v11742
        %12217 = vmatpush1.bf16.msra.mxu0 %v11741
        %12218 = vmatprep.subr.bf16.mxu0 %v11746
        %12219 = vmatpush1.bf16.msra.mxu0 %v11745
        %12220 = vmatprep.subr.bf16.mxu0 %v11750
        %12221 = vmatpush1.bf16.msra.mxu0 %v11749
        %12222 = vmatprep.subr.bf16.mxu0 %v11754
        %12223 = vmatpush1.bf16.msra.mxu0 %v11753
        %12224 = vmatprep.subr.bf16.mxu0 %v11758
        %12225 = vmatpush1.bf16.msra.mxu0 %v11757
        %12226 = vmatprep.subr.bf16.mxu0 %v11762
        %12227 = vmatpush1.bf16.msra.mxu0 %v11761
        %12228 = vmatprep.subr.bf16.mxu0 %v11766
        %12229 = vmatpush1.bf16.msra.mxu0 %v11765
        %12230 = vmatprep.subr.bf16.mxu0 %v11770
        %12231 = vmatpush1.bf16.msra.mxu0 %v11769
        %12232 = vmatprep.subr.bf16.mxu0 %v11774
        %12233 = vmatpush1.bf16.msra.mxu0 %v11773
        %12234 = vmatprep.subr.bf16.mxu0 %v11778
        %12235 = vmatpush1.bf16.msra.mxu0 %v11777
        %12236 = vmatprep.mubr.bf16.mxu0 %v10561
        %12237 = vmatmul.mubr.bf16.gmra.mrb[0].mxu0 %v10560
        %v12238 = vpop.f32.mrb[0].mxu0
        %v12239 = vadd.f32 %v12198, %v12238
        %v12240 = vpop.f32.mrb[0].mxu0
        %v12241 = vadd.f32 %v12200, %v12240
        %v12242 = vpop.f32.mrb[0].mxu0
        %v12243 = vpop.f32.mrb[0].mxu0
        %12244 = vdwg.mxu0
        %12245 = vmatprep.subr.bf16.mxu0 %v11782
        %12246 = vmatpush1.bf16.msra.mxu0 %v11781
        %12247 = vmatprep.subr.bf16.mxu0 %v11786
        %12248 = vmatpush1.bf16.msra.mxu0 %v11785
        %12249 = vmatprep.subr.bf16.mxu0 %v11790
        %12250 = vmatpush1.bf16.msra.mxu0 %v11789
        %12251 = vmatprep.subr.bf16.mxu0 %v11794
        %12252 = vmatpush1.bf16.msra.mxu0 %v11793
        %12253 = vmatprep.subr.bf16.mxu0 %v11798
        %12254 = vmatpush1.bf16.msra.mxu0 %v11797
        %12255 = vmatprep.subr.bf16.mxu0 %v11802
        %12256 = vmatpush1.bf16.msra.mxu0 %v11801
        %12257 = vmatprep.subr.bf16.mxu0 %v11806
        %12258 = vmatpush1.bf16.msra.mxu0 %v11805
        %12259 = vmatprep.subr.bf16.mxu0 %v11810
        %12260 = vmatpush1.bf16.msra.mxu0 %v11809
        %12261 = vmatprep.subr.bf16.mxu0 %v11814
        %12262 = vmatpush1.bf16.msra.mxu0 %v11813
        %12263 = vmatprep.subr.bf16.mxu0 %v11818
        %12264 = vmatpush1.bf16.msra.mxu0 %v11817
        %12265 = vmatprep.subr.bf16.mxu0 %v11822
        %12266 = vmatpush1.bf16.msra.mxu0 %v11821
        %12267 = vmatprep.subr.bf16.mxu0 %v11826
        %12268 = vmatpush1.bf16.msra.mxu0 %v11825
        %12269 = vmatprep.subr.bf16.mxu0 %v11830
        %12270 = vmatpush1.bf16.msra.mxu0 %v11829
        %12271 = vmatprep.subr.bf16.mxu0 %v11834
        %12272 = vmatpush1.bf16.msra.mxu0 %v11833
        %12273 = vmatprep.subr.bf16.mxu0 %v11838
        %12274 = vmatpush1.bf16.msra.mxu0 %v11837
        %12275 = vmatprep.subr.bf16.mxu0 %v11842
        %12276 = vmatpush1.bf16.msra.mxu0 %v11841
        %12277 = vmatprep.mubr.bf16.mxu0 %v10563
        %12278 = vmatmul.mubr.bf16.gmra.mrb[0].mxu0 %v10562
        %v12279 = vpop.f32.mrb[0].mxu0
        %v12280 = vadd.f32 %v12239, %v12279
        %v12281 = vpop.f32.mrb[0].mxu0
        %v12282 = vadd.f32 %v12241, %v12281
        %v12283 = vpop.f32.mrb[0].mxu0
        %v12284 = vpop.f32.mrb[0].mxu0
        %12285 = vdwg.mxu0
        %12286 = vmatprep.subr.bf16.mxu0 %v11592
        %12287 = vmatpush1.bf16.msra.mxu0 %v11591
        %12288 = vmatprep.subr.bf16.mxu0 %v11596
        %12289 = vmatpush1.bf16.msra.mxu0 %v11595
        %12290 = vmatprep.subr.bf16.mxu0 %v11600
        %12291 = vmatpush1.bf16.msra.mxu0 %v11599
        %12292 = vmatprep.subr.bf16.mxu0 %v11604
        %12293 = vmatpush1.bf16.msra.mxu0 %v11603
        %12294 = vmatprep.subr.bf16.mxu0 %v11608
        %12295 = vmatpush1.bf16.msra.mxu0 %v11607
        %12296 = vmatprep.subr.bf16.mxu0 %v11612
        %12297 = vmatpush1.bf16.msra.mxu0 %v11611
        %12298 = vmatprep.subr.bf16.mxu0 %v11616
        %12299 = vmatpush1.bf16.msra.mxu0 %v11615
        %12300 = vmatprep.subr.bf16.mxu0 %v11620
        %12301 = vmatpush1.bf16.msra.mxu0 %v11619
        %12302 = vmatprep.subr.bf16.mxu0 %v11624
        %12303 = vmatpush1.bf16.msra.mxu0 %v11623
        %12304 = vmatprep.subr.bf16.mxu0 %v11628
        %12305 = vmatpush1.bf16.msra.mxu0 %v11627
        %12306 = vmatprep.subr.bf16.mxu0 %v11632
        %12307 = vmatpush1.bf16.msra.mxu0 %v11631
        %12308 = vmatprep.subr.bf16.mxu0 %v11636
        %12309 = vmatpush1.bf16.msra.mxu0 %v11635
        %12310 = vmatprep.subr.bf16.mxu0 %v11640
        %12311 = vmatpush1.bf16.msra.mxu0 %v11639
        %12312 = vmatprep.subr.bf16.mxu0 %v11644
        %12313 = vmatpush1.bf16.msra.mxu0 %v11643
        %12314 = vmatprep.subr.bf16.mxu0 %v11648
        %12315 = vmatpush1.bf16.msra.mxu0 %v11647
        %12316 = vmatprep.subr.bf16.mxu0 %v11652
        %12317 = vmatpush1.bf16.msra.mxu0 %v11651
        %12318 = vmatprep.mubr.bf16.mxu0 %v10557
        %12319 = vmatmul.mubr.bf16.gmra.mrb[0].mxu0 %v10556
        %v12320 = vpop.f32.mrb[0].mxu0
        %v12321 = vadd.f32 %v12113, %v12320
        %v12322 = vpop.f32.mrb[0].mxu0
        %v12323 = vadd.f32 %v12117, %v12322
        %v12324 = vpop.f32.mrb[0].mxu0
        %v12325 = vpop.f32.mrb[0].mxu0
        %12326 = vdwg.mxu0
        %12327 = vmatprep.subr.bf16.mxu0 %v11656
        %12328 = vmatpush1.bf16.msra.mxu0 %v11655
        %12329 = vmatprep.subr.bf16.mxu0 %v11660
        %12330 = vmatpush1.bf16.msra.mxu0 %v11659
        %12331 = vmatprep.subr.bf16.mxu0 %v11664
        %12332 = vmatpush1.bf16.msra.mxu0 %v11663
        %12333 = vmatprep.subr.bf16.mxu0 %v11668
        %12334 = vmatpush1.bf16.msra.mxu0 %v11667
        %12335 = vmatprep.subr.bf16.mxu0 %v11672
        %12336 = vmatpush1.bf16.msra.mxu0 %v11671
        %12337 = vmatprep.subr.bf16.mxu0 %v11676
        %12338 = vmatpush1.bf16.msra.mxu0 %v11675
        %12339 = vmatprep.subr.bf16.mxu0 %v11680
        %12340 = vmatpush1.bf16.msra.mxu0 %v11679
        %12341 = vmatprep.subr.bf16.mxu0 %v11684
        %12342 = vmatpush1.bf16.msra.mxu0 %v11683
        %12343 = vmatprep.subr.bf16.mxu0 %v11688
        %12344 = vmatpush1.bf16.msra.mxu0 %v11687
        %12345 = vmatprep.subr.bf16.mxu0 %v11692
        %12346 = vmatpush1.bf16.msra.mxu0 %v11691
        %12347 = vmatprep.subr.bf16.mxu0 %v11696
        %12348 = vmatpush1.bf16.msra.mxu0 %v11695
        %12349 = vmatprep.subr.bf16.mxu0 %v11700
        %12350 = vmatpush1.bf16.msra.mxu0 %v11699
        %12351 = vmatprep.subr.bf16.mxu0 %v11704
        %12352 = vmatpush1.bf16.msra.mxu0 %v11703
        %12353 = vmatprep.subr.bf16.mxu0 %v11708
        %12354 = vmatpush1.bf16.msra.mxu0 %v11707
        %12355 = vmatprep.subr.bf16.mxu0 %v11712
        %12356 = vmatpush1.bf16.msra.mxu0 %v11711
        %12357 = vmatprep.subr.bf16.mxu0 %v11716
        %12358 = vmatpush1.bf16.msra.mxu0 %v11715
        %12359 = vmatprep.mubr.bf16.mxu0 %v10559
        %12360 = vmatmul.mubr.bf16.gmra.mrb[0].mxu0 %v10558
        %v12361 = vpop.f32.mrb[0].mxu0
        %v12362 = vadd.f32 %v12321, %v12361
        %v12363 = vpop.f32.mrb[0].mxu0
        %v12364 = vadd.f32 %v12323, %v12363
        %v12365 = vpop.f32.mrb[0].mxu0
        %v12366 = vpop.f32.mrb[0].mxu0
        %12367 = vdwg.mxu0
        %12368 = vmatprep.subr.bf16.mxu0 %v11720
        %12369 = vmatpush1.bf16.msra.mxu0 %v11719
        %12370 = vmatprep.subr.bf16.mxu0 %v11724
        %12371 = vmatpush1.bf16.msra.mxu0 %v11723
        %12372 = vmatprep.subr.bf16.mxu0 %v11728
        %12373 = vmatpush1.bf16.msra.mxu0 %v11727
        %12374 = vmatprep.subr.bf16.mxu0 %v11732
        %12375 = vmatpush1.bf16.msra.mxu0 %v11731
        %12376 = vmatprep.subr.bf16.mxu0 %v11736
        %12377 = vmatpush1.bf16.msra.mxu0 %v11735
        %12378 = vmatprep.subr.bf16.mxu0 %v11740
        %12379 = vmatpush1.bf16.msra.mxu0 %v11739
        %12380 = vmatprep.subr.bf16.mxu0 %v11744
        %12381 = vmatpush1.bf16.msra.mxu0 %v11743
        %12382 = vmatprep.subr.bf16.mxu0 %v11748
        %12383 = vmatpush1.bf16.msra.mxu0 %v11747
        %12384 = vmatprep.subr.bf16.mxu0 %v11752
        %12385 = vmatpush1.bf16.msra.mxu0 %v11751
        %12386 = vmatprep.subr.bf16.mxu0 %v11756
        %12387 = vmatpush1.bf16.msra.mxu0 %v11755
        %12388 = vmatprep.subr.bf16.mxu0 %v11760
        %12389 = vmatpush1.bf16.msra.mxu0 %v11759
        %12390 = vmatprep.subr.bf16.mxu0 %v11764
        %12391 = vmatpush1.bf16.msra.mxu0 %v11763
        %12392 = vmatprep.subr.bf16.mxu0 %v11768
        %12393 = vmatpush1.bf16.msra.mxu0 %v11767
        %12394 = vmatprep.subr.bf16.mxu0 %v11772
        %12395 = vmatpush1.bf16.msra.mxu0 %v11771
        %12396 = vmatprep.subr.bf16.mxu0 %v11776
        %12397 = vmatpush1.bf16.msra.mxu0 %v11775
        %12398 = vmatprep.subr.bf16.mxu0 %v11780
        %12399 = vmatpush1.bf16.msra.mxu0 %v11779
        %12400 = vmatprep.mubr.bf16.mxu0 %v10561
        %12401 = vmatmul.mubr.bf16.gmra.mrb[0].mxu0 %v10560
        %v12402 = vpop.f32.mrb[0].mxu0
        %v12403 = vadd.f32 %v12362, %v12402
        %v12404 = vpop.f32.mrb[0].mxu0
        %v12405 = vadd.f32 %v12364, %v12404
        %v12406 = vpop.f32.mrb[0].mxu0
        %v12407 = vpop.f32.mrb[0].mxu0
        %12408 = vdwg.mxu0
        %12409 = vmatprep.subr.bf16.mxu0 %v11784
        %12410 = vmatpush1.bf16.msra.mxu0 %v11783
        %12411 = vmatprep.subr.bf16.mxu0 %v11788
        %12412 = vmatpush1.bf16.msra.mxu0 %v11787
        %12413 = vmatprep.subr.bf16.mxu0 %v11792
        %12414 = vmatpush1.bf16.msra.mxu0 %v11791
        %12415 = vmatprep.subr.bf16.mxu0 %v11796
        %12416 = vmatpush1.bf16.msra.mxu0 %v11795
        %12417 = vmatprep.subr.bf16.mxu0 %v11800
        %12418 = vmatpush1.bf16.msra.mxu0 %v11799
        %12419 = vmatprep.subr.bf16.mxu0 %v11804
        %12420 = vmatpush1.bf16.msra.mxu0 %v11803
        %12421 = vmatprep.subr.bf16.mxu0 %v11808
        %12422 = vmatpush1.bf16.msra.mxu0 %v11807
        %12423 = vmatprep.subr.bf16.mxu0 %v11812
        %12424 = vmatpush1.bf16.msra.mxu0 %v11811
        %12425 = vmatprep.subr.bf16.mxu0 %v11816
        %12426 = vmatpush1.bf16.msra.mxu0 %v11815
        %12427 = vmatprep.subr.bf16.mxu0 %v11820
        %12428 = vmatpush1.bf16.msra.mxu0 %v11819
        %12429 = vmatprep.subr.bf16.mxu0 %v11824
        %12430 = vmatpush1.bf16.msra.mxu0 %v11823
        %12431 = vmatprep.subr.bf16.mxu0 %v11828
        %12432 = vmatpush1.bf16.msra.mxu0 %v11827
        %12433 = vmatprep.subr.bf16.mxu0 %v11832
        %12434 = vmatpush1.bf16.msra.mxu0 %v11831
        %12435 = vmatprep.subr.bf16.mxu0 %v11836
        %12436 = vmatpush1.bf16.msra.mxu0 %v11835
        %12437 = vmatprep.subr.bf16.mxu0 %v11840
        %12438 = vmatpush1.bf16.msra.mxu0 %v11839
        %12439 = vmatprep.subr.bf16.mxu0 %v11844
        %12440 = vmatpush1.bf16.msra.mxu0 %v11843
        %12441 = vmatprep.mubr.bf16.mxu0 %v10563
        %12442 = vmatmul.mubr.bf16.gmra.mrb[0].mxu0 %v10562
        %v12443 = vpop.f32.mrb[0].mxu0
        %v12444 = vadd.f32 %v12403, %v12443
        %v12445 = vpop.f32.mrb[0].mxu0
        %v12446 = vadd.f32 %v12405, %v12445
        %v12447 = vpop.f32.mrb[0].mxu0
        %v12448 = vpop.f32.mrb[0].mxu0
        %12449 = vdwg.mxu0
        %v12450 = vmax.f32 %v12280, 0.0
        %v12451 = vmax.f32 %v12282, 0.0
        %v12452 = vmax.f32 %v12444, 0.0
        %v12453 = vmax.f32 %v12446, 0.0
        %v12454 = vpack.c.bf16 %v12450, %v12450
        %v12455 = vpack.c.bf16 %v12451, %v12451
        %v12456 = vpack.c.bf16 %v12452, %v12452
        %v12457 = vpack.c.bf16 %v12453, %v12453
        %v12458 = vld [vmem:[#allocation15] sm:$0xf]
        %v12459 = vld [vmem:[#allocation15 + $0x4] sm:$0xf]
        %v12460 = vld [vmem:[#allocation15 + $0x8] sm:$0xf]
        %v12461 = vld [vmem:[#allocation15 + $0xc] sm:$0xf]
        %v12462 = vld [vmem:[#allocation15 + $0x10] sm:$0xf]
        %v12463 = vld [vmem:[#allocation15 + $0x14] sm:$0xf]
        %v12464 = vld [vmem:[#allocation15 + $0x18] sm:$0xf]
        %v12465 = vld [vmem:[#allocation15 + $0x1c] sm:$0xf]
        %v12466 = vld [vmem:[#allocation15 + $0x20] sm:$0xf]
        %v12467 = vld [vmem:[#allocation15 + $0x24] sm:$0xf]
        %v12468 = vld [vmem:[#allocation15 + $0x28] sm:$0xf]
        %v12469 = vld [vmem:[#allocation15 + $0x2c] sm:$0xf]
        %v12470 = vld [vmem:[#allocation15 + $0x30] sm:$0xf]
        %v12471 = vld [vmem:[#allocation15 + $0x34] sm:$0xf]
        %v12472 = vld [vmem:[#allocation15 + $0x38] sm:$0xf]
        %v12473 = vld [vmem:[#allocation15 + $0x3c] sm:$0xf]
        %v12474 = vld [vmem:[#allocation15 + $0x40] sm:$0xf]
        %v12475 = vld [vmem:[#allocation15 + $0x44] sm:$0xf]
        %v12476 = vld [vmem:[#allocation15 + $0x48] sm:$0xf]
        %v12477 = vld [vmem:[#allocation15 + $0x4c] sm:$0xf]
        %v12478 = vld [vmem:[#allocation15 + $0x50] sm:$0xf]
        %v12479 = vld [vmem:[#allocation15 + $0x54] sm:$0xf]
        %v12480 = vld [vmem:[#allocation15 + $0x58] sm:$0xf]
        %v12481 = vld [vmem:[#allocation15 + $0x5c] sm:$0xf]
        %v12482 = vld [vmem:[#allocation15 + $0x60] sm:$0xf]
        %v12483 = vld [vmem:[#allocation15 + $0x64] sm:$0xf]
        %v12484 = vld [vmem:[#allocation15 + $0x68] sm:$0xf]
        %v12485 = vld [vmem:[#allocation15 + $0x6c] sm:$0xf]
        %v12486 = vld [vmem:[#allocation15 + $0x70] sm:$0xf]
        %v12487 = vld [vmem:[#allocation15 + $0x74] sm:$0xf]
        %v12488 = vld [vmem:[#allocation15 + $0x78] sm:$0xf]
        %v12489 = vld [vmem:[#allocation15 + $0x7c] sm:$0xf]
        %v12490 = vld [vmem:[#allocation15 + $0x80] sm:$0xf]
        %v12491 = vld [vmem:[#allocation15 + $0x84] sm:$0xf]
        %v12492 = vld [vmem:[#allocation15 + $0x88] sm:$0xf]
        %v12493 = vld [vmem:[#allocation15 + $0x8c] sm:$0xf]
        %v12494 = vld [vmem:[#allocation15 + $0x90] sm:$0xf]
        %v12495 = vld [vmem:[#allocation15 + $0x94] sm:$0xf]
        %v12496 = vld [vmem:[#allocation15 + $0x98] sm:$0xf]
        %v12497 = vld [vmem:[#allocation15 + $0x9c] sm:$0xf]
        %v12498 = vld [vmem:[#allocation15 + $0xa0] sm:$0xf]
        %v12499 = vld [vmem:[#allocation15 + $0xa4] sm:$0xf]
        %v12500 = vld [vmem:[#allocation15 + $0xa8] sm:$0xf]
        %v12501 = vld [vmem:[#allocation15 + $0xac] sm:$0xf]
        %v12502 = vld [vmem:[#allocation15 + $0xb0] sm:$0xf]
        %v12503 = vld [vmem:[#allocation15 + $0xb4] sm:$0xf]
        %v12504 = vld [vmem:[#allocation15 + $0xb8] sm:$0xf]
        %v12505 = vld [vmem:[#allocation15 + $0xbc] sm:$0xf]
        %v12506 = vld [vmem:[#allocation15 + $0xc0] sm:$0xf]
        %v12507 = vld [vmem:[#allocation15 + $0xc4] sm:$0xf]
        %v12508 = vld [vmem:[#allocation15 + $0xc8] sm:$0xf]
        %v12509 = vld [vmem:[#allocation15 + $0xcc] sm:$0xf]
        %v12510 = vld [vmem:[#allocation15 + $0xd0] sm:$0xf]
        %v12511 = vld [vmem:[#allocation15 + $0xd4] sm:$0xf]
        %v12512 = vld [vmem:[#allocation15 + $0xd8] sm:$0xf]
        %v12513 = vld [vmem:[#allocation15 + $0xdc] sm:$0xf]
        %v12514 = vld [vmem:[#allocation15 + $0xe0] sm:$0xf]
        %v12515 = vld [vmem:[#allocation15 + $0xe4] sm:$0xf]
        %v12516 = vld [vmem:[#allocation15 + $0xe8] sm:$0xf]
        %v12517 = vld [vmem:[#allocation15 + $0xec] sm:$0xf]
        %v12518 = vld [vmem:[#allocation15 + $0xf0] sm:$0xf]
        %v12519 = vld [vmem:[#allocation15 + $0xf4] sm:$0xf]
        %v12520 = vld [vmem:[#allocation15 + $0xf8] sm:$0xf]
        %v12521 = vld [vmem:[#allocation15 + $0xfc] sm:$0xf]
        %v12522 = vld [vmem:[#allocation16] sm:$0x1]
        %v12587 = vunpack.c.l.b16 %v12458
        %v12588 = vunpack.c.l.b16 %v12459
        %v12589 = vunpack.c.l.b16 %v12460
        %v12590 = vunpack.c.l.b16 %v12461
        %v12591 = vunpack.c.l.b16 %v12462
        %v12592 = vunpack.c.l.b16 %v12463
        %v12593 = vunpack.c.l.b16 %v12464
        %v12594 = vunpack.c.l.b16 %v12465
        %v12595 = vunpack.c.l.b16 %v12466
        %v12596 = vunpack.c.l.b16 %v12467
        %v12597 = vunpack.c.l.b16 %v12468
        %v12598 = vunpack.c.l.b16 %v12469
        %v12599 = vunpack.c.l.b16 %v12470
        %v12600 = vunpack.c.l.b16 %v12471
        %v12601 = vunpack.c.l.b16 %v12472
        %v12602 = vunpack.c.l.b16 %v12473
        %v12603 = vunpack.c.l.b16 %v12474
        %v12604 = vunpack.c.l.b16 %v12475
        %v12605 = vunpack.c.l.b16 %v12476
        %v12606 = vunpack.c.l.b16 %v12477
        %v12607 = vunpack.c.l.b16 %v12478
        %v12608 = vunpack.c.l.b16 %v12479
        %v12609 = vunpack.c.l.b16 %v12480
        %v12610 = vunpack.c.l.b16 %v12481
        %v12611 = vunpack.c.l.b16 %v12482
        %v12612 = vunpack.c.l.b16 %v12483
        %v12613 = vunpack.c.l.b16 %v12484
        %v12614 = vunpack.c.l.b16 %v12485
        %v12615 = vunpack.c.l.b16 %v12486
        %v12616 = vunpack.c.l.b16 %v12487
        %v12617 = vunpack.c.l.b16 %v12488
        %v12618 = vunpack.c.l.b16 %v12489
        %v12619 = vunpack.c.l.b16 %v12490
        %v12620 = vunpack.c.l.b16 %v12491
        %v12621 = vunpack.c.l.b16 %v12492
        %v12622 = vunpack.c.l.b16 %v12493
        %v12623 = vunpack.c.l.b16 %v12494
        %v12624 = vunpack.c.l.b16 %v12495
        %v12625 = vunpack.c.l.b16 %v12496
        %v12626 = vunpack.c.l.b16 %v12497
        %v12627 = vunpack.c.l.b16 %v12498
        %v12628 = vunpack.c.l.b16 %v12499
        %v12629 = vunpack.c.l.b16 %v12500
        %v12630 = vunpack.c.l.b16 %v12501
        %v12631 = vunpack.c.l.b16 %v12502
        %v12632 = vunpack.c.l.b16 %v12503
        %v12633 = vunpack.c.l.b16 %v12504
        %v12634 = vunpack.c.l.b16 %v12505
        %v12635 = vunpack.c.l.b16 %v12506
        %v12636 = vunpack.c.l.b16 %v12507
        %v12637 = vunpack.c.l.b16 %v12508
        %v12638 = vunpack.c.l.b16 %v12509
        %v12639 = vunpack.c.l.b16 %v12510
        %v12640 = vunpack.c.l.b16 %v12511
        %v12641 = vunpack.c.l.b16 %v12512
        %v12642 = vunpack.c.l.b16 %v12513
        %v12643 = vunpack.c.l.b16 %v12514
        %v12644 = vunpack.c.l.b16 %v12515
        %v12645 = vunpack.c.l.b16 %v12516
        %v12646 = vunpack.c.l.b16 %v12517
        %v12647 = vunpack.c.l.b16 %v12518
        %v12648 = vunpack.c.l.b16 %v12519
        %v12649 = vunpack.c.l.b16 %v12520
        %v12650 = vunpack.c.l.b16 %v12521
        %v12651 = vpack.c.b16 %v12588, %v12587
        %v12652 = vpack.c.b16 %v12590, %v12589
        %v12653 = vpack.c.b16 %v12592, %v12591
        %v12654 = vpack.c.b16 %v12594, %v12593
        %v12655 = vpack.c.b16 %v12596, %v12595
        %v12656 = vpack.c.b16 %v12598, %v12597
        %v12657 = vpack.c.b16 %v12600, %v12599
        %v12658 = vpack.c.b16 %v12602, %v12601
        %v12659 = vpack.c.b16 %v12604, %v12603
        %v12660 = vpack.c.b16 %v12606, %v12605
        %v12661 = vpack.c.b16 %v12608, %v12607
        %v12662 = vpack.c.b16 %v12610, %v12609
        %v12663 = vpack.c.b16 %v12612, %v12611
        %v12664 = vpack.c.b16 %v12614, %v12613
        %v12665 = vpack.c.b16 %v12616, %v12615
        %v12666 = vpack.c.b16 %v12618, %v12617
        %v12667 = vpack.c.b16 %v12620, %v12619
        %v12668 = vpack.c.b16 %v12622, %v12621
        %v12669 = vpack.c.b16 %v12624, %v12623
        %v12670 = vpack.c.b16 %v12626, %v12625
        %v12671 = vpack.c.b16 %v12628, %v12627
        %v12672 = vpack.c.b16 %v12630, %v12629
        %v12673 = vpack.c.b16 %v12632, %v12631
        %v12674 = vpack.c.b16 %v12634, %v12633
        %v12675 = vpack.c.b16 %v12636, %v12635
        %v12676 = vpack.c.b16 %v12638, %v12637
        %v12677 = vpack.c.b16 %v12640, %v12639
        %v12678 = vpack.c.b16 %v12642, %v12641
        %v12679 = vpack.c.b16 %v12644, %v12643
        %v12680 = vpack.c.b16 %v12646, %v12645
        %v12681 = vpack.c.b16 %v12648, %v12647
        %v12682 = vpack.c.b16 %v12650, %v12649
        %12715 = vmatprep.subr.bf16.mxu0 0
        %12716 = vmatpush1.bf16.msra.mxu0 %v12651
        %12717 = vmatprep.subr.bf16.mxu0 0
        %12718 = vmatpush1.bf16.msra.mxu0 %v12652
        %12719 = vmatprep.subr.bf16.mxu0 0
        %12720 = vmatpush1.bf16.msra.mxu0 %v12653
        %12721 = vmatprep.subr.bf16.mxu0 0
        %12722 = vmatpush1.bf16.msra.mxu0 %v12654
        %12723 = vmatprep.subr.bf16.mxu0 0
        %12724 = vmatpush1.bf16.msra.mxu0 %v12655
        %12725 = vmatprep.subr.bf16.mxu0 0
        %12726 = vmatpush1.bf16.msra.mxu0 %v12656
        %12727 = vmatprep.subr.bf16.mxu0 0
        %12728 = vmatpush1.bf16.msra.mxu0 %v12657
        %12729 = vmatprep.subr.bf16.mxu0 0
        %12730 = vmatpush1.bf16.msra.mxu0 %v12658
        %12731 = vmatprep.subr.bf16.mxu0 0
        %12732 = vmatpush1.bf16.msra.mxu0 %v12659
        %12733 = vmatprep.subr.bf16.mxu0 0
        %12734 = vmatpush1.bf16.msra.mxu0 %v12660
        %12735 = vmatprep.subr.bf16.mxu0 0
        %12736 = vmatpush1.bf16.msra.mxu0 %v12661
        %12737 = vmatprep.subr.bf16.mxu0 0
        %12738 = vmatpush1.bf16.msra.mxu0 %v12662
        %12739 = vmatprep.subr.bf16.mxu0 0
        %12740 = vmatpush1.bf16.msra.mxu0 %v12663
        %12741 = vmatprep.subr.bf16.mxu0 0
        %12742 = vmatpush1.bf16.msra.mxu0 %v12664
        %12743 = vmatprep.subr.bf16.mxu0 0
        %12744 = vmatpush1.bf16.msra.mxu0 %v12665
        %12745 = vmatprep.subr.bf16.mxu0 0
        %12746 = vmatpush1.bf16.msra.mxu0 %v12666
        %12747 = vmatprep.mubr.bf16.mxu0 %v12455
        %12748 = vmatmul.mubr.bf16.gmra.mrb[0].mxu0 %v12454
        %v12749 = vpop.f32.mrb[0].mxu0
        %v12750 = vadd.f32 %v12522, %v12749
        %v12751 = vpop.f32.mrb[0].mxu0
        %v12752 = vpop.f32.mrb[0].mxu0
        %v12753 = vpop.f32.mrb[0].mxu0
        %12754 = vdwg.mxu0
        %12755 = vmatprep.subr.bf16.mxu0 0
        %12756 = vmatpush1.bf16.msra.mxu0 %v12667
        %12757 = vmatprep.subr.bf16.mxu0 0
        %12758 = vmatpush1.bf16.msra.mxu0 %v12668
        %12759 = vmatprep.subr.bf16.mxu0 0
        %12760 = vmatpush1.bf16.msra.mxu0 %v12669
        %12761 = vmatprep.subr.bf16.mxu0 0
        %12762 = vmatpush1.bf16.msra.mxu0 %v12670
        %12763 = vmatprep.subr.bf16.mxu0 0
        %12764 = vmatpush1.bf16.msra.mxu0 %v12671
        %12765 = vmatprep.subr.bf16.mxu0 0
        %12766 = vmatpush1.bf16.msra.mxu0 %v12672
        %12767 = vmatprep.subr.bf16.mxu0 0
        %12768 = vmatpush1.bf16.msra.mxu0 %v12673
        %12769 = vmatprep.subr.bf16.mxu0 0
        %12770 = vmatpush1.bf16.msra.mxu0 %v12674
        %12771 = vmatprep.subr.bf16.mxu0 0
        %12772 = vmatpush1.bf16.msra.mxu0 %v12675
        %12773 = vmatprep.subr.bf16.mxu0 0
        %12774 = vmatpush1.bf16.msra.mxu0 %v12676
        %12775 = vmatprep.subr.bf16.mxu0 0
        %12776 = vmatpush1.bf16.msra.mxu0 %v12677
        %12777 = vmatprep.subr.bf16.mxu0 0
        %12778 = vmatpush1.bf16.msra.mxu0 %v12678
        %12779 = vmatprep.subr.bf16.mxu0 0
        %12780 = vmatpush1.bf16.msra.mxu0 %v12679
        %12781 = vmatprep.subr.bf16.mxu0 0
        %12782 = vmatpush1.bf16.msra.mxu0 %v12680
        %12783 = vmatprep.subr.bf16.mxu0 0
        %12784 = vmatpush1.bf16.msra.mxu0 %v12681
        %12785 = vmatprep.subr.bf16.mxu0 0
        %12786 = vmatpush1.bf16.msra.mxu0 %v12682
        %12787 = vmatprep.mubr.bf16.mxu0 %v12457
        %12788 = vmatmul.mubr.bf16.gmra.mrb[0].mxu0 %v12456
        %v12789 = vpop.f32.mrb[0].mxu0
        %v12790 = vadd.f32 %v12750, %v12789
        %v12791 = vpop.f32.mrb[0].mxu0
        %v12792 = vpop.f32.mrb[0].mxu0
        %v12793 = vpop.f32.mrb[0].mxu0
        %12794 = vdwg.mxu0
        %12795 = vst [vmem:[%s522] sm:$0x1] %v12790
        %p12796 = scmp.lt.s32.totalorder %s28, 1
        %s12797 = scalar_select %p12796, %s28, 1
        %s12798 = scalar_lea.vmem %s11, %s12797
        // Predicated region
        $region105: #{improved_dr_model_forward.1} parent=63 // pred_check
          %p12799 = pneg %p282
        $region106: #{improved_dr_model_forward.1} parent=63 // pred_check_branch
          %12801 = sbr.rel (%p12799) target = $region108
        $region107: #{improved_dr_model_forward.1} parent=63 // pred_region
          _
        $region108: #{improved_dr_model_forward.1} parent=63 // pred_fallthru
          _
      $region64: #{improved_dr_model_forward.1} parent=5 // pred_fallthru
        _
      %p12802 = scmp.le.s32.totalorder 2, %s23
      // Predicated region
      $region109: #{improved_dr_model_forward.1} parent=5 // pred_check
        %p12803 = pneg %p12802
      $region110: #{improved_dr_model_forward.1} parent=5 // pred_check_branch
        %12805 = sbr.rel (%p12803) target = $region112
      $region111: #{improved_dr_model_forward.1} parent=5 // pred_region
        %s12806 = ssub.s32 %s23, 2
        // Predicated region
        $region113: #{improved_dr_model_forward.1} parent=111 // pred_check
          %p12807 = pneg %p288
        $region114: #{improved_dr_model_forward.1} parent=111 // pred_check_branch
          %12809 = sbr.rel (%p12807) target = $region116
        $region115: #{improved_dr_model_forward.1} parent=111 // pred_region
          %p12810 = scmp.lt.s32.totalorder %s29, 1
          %s12811 = scalar_select %p12810, %s29, 1
          %s12812 = scalar_lea.vmem %s11, %s12811
        $region116: #{improved_dr_model_forward.1} parent=111 // pred_fallthru
          _
      $region112: #{improved_dr_model_forward.1} parent=5 // pred_fallthru
        _
    $region6: #{improved_dr_model_forward.1} parent=1 // loop_footer
      %s27 = sadd.s32 1, %s23
    $region7: #{improved_dr_model_forward.1} parent=1 // loop_footer_branch
      %22 = sbr.rel target = $region3
    $region8: #{improved_dr_model_forward.1} parent=1 // loop_exit
      _
    %12813 = vsyncpa [#allocation3], 1
    %s12814 = scalar_lea.sflag [#allocation3], 1
    %12815 = vsyncpa %s12814, 1
    %12816 = vsyncpa [#allocation5], 1
    %12817 = vsyncpa [#allocation8], 1
    %12818 = vsyncpa [#allocation11], 1
    %12819 = vsyncpa [#allocation14], 1
    %12820 = vsyncpa [#allocation17], 1

</llo_original>
